<compile_context>
chip_gen: v6e
topology: v6e:2x2x1
jax: 0.10.0
libtpu: 0.0.40
codegen_flags: <defaults>
</compile_context>

<pallas_src>
import jax
import jax.numpy as jnp
from jax.experimental import pallas as pl
from jax.experimental.pallas import tpu as pltpu

VMEM = pl.BlockSpec(memory_space=pltpu.MemorySpace.VMEM)

WORD_DIM = 32
MEM_DIM = 32
IMG_DIM = 1000


# ----------------------------------------------------------------------------
# Pallas kernels
# ----------------------------------------------------------------------------
def _linear_kernel(x_ref, w_ref, b_ref, o_ref):
    # y = x @ W + b   (W stored (in, out); b (1, out)); x cast to W's dtype (bf16 MXU path
    # when W is bf16), accumulation in f32.
    x = x_ref[...].astype(w_ref.dtype)
    o_ref[...] = (
        jnp.dot(x, w_ref[...], preferred_element_type=jnp.float32) + b_ref[...]
    )


def pallas_linear(x, w, b):
    return pl.pallas_call(
        _linear_kernel,
        out_shape=jax.ShapeDtypeStruct((x.shape[0], w.shape[1]), jnp.float32),
        in_specs=[VMEM] * 3,
        out_specs=VMEM,
    )(x, w, b)


def _leaf_lstm_kernel(x_ref, wix, wox, wux, bi, bo, bu, c_ref, h_ref):
    """Batched ChildSumLSTM cell with zero children.

    For child_c = child_h = 0:
      iou = x @ Wioux + (bioux + biouh)   (iouh(0) contributes only its bias)
      f * child_c == 0, so  c = i*u,  h = o*tanh(c).
    x: (N, word_dim) -> c, h: (N, mem_dim).  Gate weights are lane-aligned (32 wide).
    """
    x = x_ref[...]
    i = jax.nn.sigmoid(jnp.dot(x, wix[...], preferred_element_type=jnp.float32) + bi[...])
    o = jax.nn.sigmoid(jnp.dot(x, wox[...], preferred_element_type=jnp.float32) + bo[...])
    u = jnp.tanh(jnp.dot(x, wux[...], preferred_element_type=jnp.float32) + bu[...])
    c = i * u
    c_ref[...] = c
    h_ref[...] = o * jnp.tanh(c)


def _child_sum_lstm_kernel(
    x_ref, cc_ref, ch_ref,
    wix, wih, bi, wox, woh, bo, wux, wuh, bu,
    wfx, bfx, wfh, bfh,
    c_ref, h_ref,
):
    """Full ChildSumLSTM cell forward for one path node.

    x: (1, word_dim); cc/ch: (N, mem_dim) actual children (no padding; topology is static).
    Gates computed with per-gate lane-aligned weight matrices (no 96-lane slicing);
    biases bi/bo/bu already hold bioux + biouh.
    """
    x = x_ref[...]
    cc = cc_ref[...]
    ch = ch_ref[...]

    ch_sum = jnp.sum(ch, axis=0, keepdims=True)                                   # (1, M)

    i = jax.nn.sigmoid(
        jnp.dot(x, wix[...], preferred_element_type=jnp.float32)
        + jnp.dot(ch_sum, wih[...], preferred_element_type=jnp.float32) + bi[...])
    o = jax.nn.sigmoid(
        jnp.dot(x, wox[...], preferred_element_type=jnp.float32)
        + jnp.dot(ch_sum, woh[...], preferred_element_type=jnp.float32) + bo[...])
    u = jnp.tanh(
        jnp.dot(x, wux[...], preferred_element_type=jnp.float32)
        + jnp.dot(ch_sum, wuh[...], preferred_element_type=jnp.float32) + bu[...])

    fx = jnp.dot(x, wfx[...], preferred_element_type=jnp.float32) + bfx[...]       # (1, M)
    fh = jnp.dot(ch, wfh[...], preferred_element_type=jnp.float32) + bfh[...]      # (N, M)
    f = jax.nn.sigmoid(fh + fx)                                                    # broadcast
    fc = f * cc

    c = i * u + jnp.sum(fc, axis=0, keepdims=True)                                 # (1, M)
    c_ref[...] = c
    h_ref[...] = o * jnp.tanh(c)


def _h_to_word_kernel(h_ref, w1, b1, w2, b2, w3, b3, o_ref):
    """Batched Linear(M,1024)-ReLU-[Dropout=id]-Linear(1024,512)-ReLU-[Dropout=id]-
    Linear(512,W)-Softmax(dim=1).  Weights bf16, activations / accumulation f32."""
    y = jnp.dot(h_ref[...].astype(w1.dtype), w1[...],
                preferred_element_type=jnp.float32) + b1[...]
    y = jnp.maximum(y, 0.0)
    y = jnp.dot(y.astype(w2.dtype), w2[...],
                preferred_element_type=jnp.float32) + b2[...]
    y = jnp.maximum(y, 0.0)
    logits = jnp.dot(y.astype(w3.dtype), w3[...],
                     preferred_element_type=jnp.float32) + b3[...]
    m = jnp.max(logits, axis=-1, keepdims=True)
    e = jnp.exp(logits - m)
    denom = jnp.sum(e, axis=-1, keepdims=True)
    o_ref[...] = e * pl.reciprocal(denom, approx=True)


# ----------------------------------------------------------------------------
# Parameter setup (deterministic, synthetic)
# ----------------------------------------------------------------------------
def init_params(key):
    def lin(key, fan_in, fan_out, scale=0.02, dtype=jnp.float32):
        kw, kb = jax.random.split(key)
        w = (scale * jax.random.normal(kw, (fan_in, fan_out), jnp.float32)).astype(dtype)
        b = scale * jax.random.normal(kb, (1, fan_out), jnp.float32)
        return w, b

    keys = jax.random.split(key, 9)
    p = {}
    # CNN stub: flattened image -> img_dim features (bf16 weights)
    p["cnn_w"], p["cnn_b"] = lin(keys[0], 3 * 16 * 16, IMG_DIM, dtype=jnp.bfloat16)
    # img_to_c: Linear(img_dim, mem_dim)
    p["img_to_c_w"], p["img_to_c_b"] = lin(keys[1], IMG_DIM, MEM_DIM)

    # ChildSumLSTMCell: init combined (PyTorch parametrization), store split per gate.
    wioux, bioux = lin(keys[2], WORD_DIM, 3 * MEM_DIM)
    wiouh, biouh = lin(keys[3], MEM_DIM, 3 * MEM_DIM)
    b_iou = bioux + biouh          # ioux(x) + iouh(h_sum) adds both biases
    M = MEM_DIM
    p["wix"], p["wox"], p["wux"] = wioux[:, :M], wioux[:, M:2 * M], wioux[:, 2 * M:]
    p["wih"], p["woh"], p["wuh"] = wiouh[:, :M], wiouh[:, M:2 * M], wiouh[:, 2 * M:]
    p["bi"], p["bo"], p["bu"] = b_iou[:, :M], b_iou[:, M:2 * M], b_iou[:, 2 * M:]

    p["wfx"], p["bfx"] = lin(keys[4], WORD_DIM, MEM_DIM)
    p["wfh"], p["bfh"] = lin(keys[5], MEM_DIM, MEM_DIM)

    # h_to_word MLP (bf16 weights, f32 biases)
    p["w1"], p["b1"] = lin(keys[6], MEM_DIM, 1024, dtype=jnp.bfloat16)
    p["w2"], p["b2"] = lin(keys[7], 1024, 512, dtype=jnp.bfloat16)
    p["w3"], p["b3"] = lin(keys[8], 512, WORD_DIM, dtype=jnp.bfloat16)
    return p


# ----------------------------------------------------------------------------
# Module wrappers (Python glue around Pallas kernels)
# ----------------------------------------------------------------------------
def leaf_lstm_batched(params, xs):
    """xs: (N, word_dim) -> (c, h) each (N, mem_dim). All leaf cells of one step, batched."""
    n = xs.shape[0]
    return pl.pallas_call(
        _leaf_lstm_kernel,
        out_shape=(jax.ShapeDtypeStruct((n, MEM_DIM), jnp.float32),
                   jax.ShapeDtypeStruct((n, MEM_DIM), jnp.float32)),
        in_specs=[VMEM] * 7,
        out_specs=(VMEM, VMEM),
    )(xs, params["wix"], params["wox"], params["wux"],
      params["bi"], params["bo"], params["bu"])


def tree_lstm_cell(params, x, child_c, child_h):
    """x: (1, word_dim); child_c/child_h: (N, mem_dim). Returns (c, h), each (1, mem_dim)."""
    return pl.pallas_call(
        _child_sum_lstm_kernel,
        out_shape=(jax.ShapeDtypeStruct((1, MEM_DIM), jnp.float32),
                   jax.ShapeDtypeStruct((1, MEM_DIM), jnp.float32)),
        in_specs=[VMEM] * 16,
        out_specs=(VMEM, VMEM),
    )(x, child_c, child_h,
      params["wix"], params["wih"], params["bi"],
      params["wox"], params["woh"], params["bo"],
      params["wux"], params["wuh"], params["bu"],
      params["wfx"], params["bfx"], params["wfh"], params["bfh"])


def h_to_word(params, h):
    """h: (P, mem_dim) -> (P, word_dim) softmax rows. Batched over all path nodes."""
    return pl.pallas_call(
        _h_to_word_kernel,
        out_shape=jax.ShapeDtypeStruct((h.shape[0], WORD_DIM), jnp.float32),
        in_specs=[VMEM] * 7,
        out_specs=VMEM,
    )(h, params["w1"], params["b1"], params["w2"], params["b2"],
      params["w3"], params["b3"])


def cnn_stub(params, img):
    # img: (1, 3, H, W) NCHW -> flatten -> Pallas linear -> (1, img_dim)
    x = img.reshape(1, -1).astype(jnp.float32)
    return pallas_linear(x, params["cnn_w"], params["cnn_b"])


# ----------------------------------------------------------------------------
# Tree structure + Pix2TreeReverse forward (mirrors the PyTorch control flow)
# ----------------------------------------------------------------------------
class Tree:
    def __init__(self, value):
        self.value = value          # (1, word_dim) jnp array
        self.parent = None
        self.children = []

    def add_child(self, child):
        child.parent = self
        self.children.append(child)
        return child


def make_pix2tree_forward(path):
    """Build forward(params, img) for a FIXED tree/path structure (jit-friendly).

    Tree topology is resolved in Python at trace time; node value arrays are captured
    as trace-time constants; per-step independent leaf cells and the final h_to_word
    head are batched into single pallas_calls.
    """
    def forward(params, img):
        states = {}                                    # id(path node) -> (c, h)
        path_h = []
        zero = jnp.zeros((1, MEM_DIM), jnp.float32)

        for i, node in enumerate(path):
            if node.parent is None:
                img_features = cnn_stub(params, img)                               # (1, 1000)
                c0 = pallas_linear(img_features, params["img_to_c_w"],
                                   params["img_to_c_b"])                           # (1, mem)
                h0 = zero
                leaves = []
            else:
                c0, h0 = states[id(node.parent)]
                idx = node.parent.children.index(node)
                leaves = list(node.parent.children[:idx])                          # siblings

            if i == len(path) - 1:
                idx = len(node.children)
            else:
                idx = node.children.index(path[i + 1])
            leaves += list(node.children[:idx])                                    # children

            if leaves:
                xs = jnp.concatenate([leaf.value for leaf in leaves], axis=0)      # (N, word)
                leaf_c, leaf_h = leaf_lstm_batched(params, xs)                     # (N, mem)
                child_c = jnp.concatenate([c0, leaf_c], axis=0)
                child_h = jnp.concatenate([h0, leaf_h], axis=0)
            else:
                child_c, child_h = c0, h0

            c, h = tree_lstm_cell(params, node.value, child_c, child_h)
            states[id(node)] = (c, h)
            path_h.append(h)

        # One batched MLP head over all path nodes (no cross-node dependence).
        return h_to_word(params, jnp.concatenate(path_h, axis=0))                  # (P, word)

    return forward


# ----------------------------------------------------------------------------
# Example run
# ----------------------------------------------------------------------------
if __name__ == "__main__":
    key = jax.random.PRNGKey(0)
    kp, kimg, kval = jax.random.split(key, 3)
    params = init_params(kp)

    img = jax.random.normal(kimg, (1, 3, 16, 16), jnp.float32)

    # Small deterministic tree:
    #   root -> [c0, c1, c2];  c1 -> [c1a, c1b];  path = [root, c1]
    vkeys = jax.random.split(kval, 6)
    mk = lambda k: Tree(0.1 * jax.random.normal(k, (1, WORD_DIM), jnp.float32))
    root = mk(vkeys[0])
    c0 = root.add_child(mk(vkeys[1]))
    c1 = root.add_child(mk(vkeys[2]))
    c2 = root.add_child(mk(vkeys[3]))
    c1a = c1.add_child(mk(vkeys[4]))
    c1b = c1.add_child(mk(vkeys[5]))
    path = [root, c1]

    forward = jax.jit(make_pix2tree_forward(path))   # whole forward = one compiled program
    out = jax.block_until_ready(forward(params, img))

    assert out.shape == (len(path), WORD_DIM), out.shape
    assert bool(jnp.all(jnp.isfinite(out)))
    # each row is (approximately) a softmax distribution; tolerance covers the EUP
    # approximate reciprocal and bf16 weights
    assert bool(jnp.allclose(jnp.sum(out, axis=-1), 1.0, atol=1e-2))
    print("KERNEL_OK")
</pallas_src>

<mosaic_0001>
module attributes {stable_mosaic.version = 11 : i64} {
  func.func @_linear_kernel(%arg0: memref<1x768xf32, #tpu.memory_space<vmem>>, %arg1: memref<768x1000xbf16, #tpu.memory_space<vmem>>, %arg2: memref<1x1000xf32, #tpu.memory_space<vmem>>, %arg3: memref<1x1000xf32, #tpu.memory_space<vmem>>) attributes {dimension_semantics = [], scalar_prefetch = 0 : i64, scratch_operands = 0 : i64, tpu.core_type = #tpu.core_type<tc>} {
    %c0 = arith.constant 0 : index
    %c0_0 = arith.constant 0 : index
    %0 = vector.load %arg0[%c0, %c0_0] : memref<1x768xf32, #tpu.memory_space<vmem>>, vector<1x768xf32>
    %1 = arith.truncf %0 : vector<1x768xf32> to vector<1x768xbf16>
    %c0_1 = arith.constant 0 : index
    %c0_2 = arith.constant 0 : index
    %2 = vector.load %arg1[%c0_1, %c0_2] : memref<768x1000xbf16, #tpu.memory_space<vmem>>, vector<768x1000xbf16>
    %cst = arith.constant dense<0.000000e+00> : vector<1x1000xf32>
    %3 = tpu.matmul %1, %2, %cst {dimension_numbers = #tpu.dot_dimension_numbers<[1], [0], [0], [1], [0, 0, 1, 1], [], []>} : vector<1x768xbf16>, vector<768x1000xbf16>, vector<1x1000xf32> -> vector<1x1000xf32>
    %c0_3 = arith.constant 0 : index
    %c0_4 = arith.constant 0 : index
    %4 = vector.load %arg2[%c0_3, %c0_4] : memref<1x1000xf32, #tpu.memory_space<vmem>>, vector<1x1000xf32>
    %5 = arith.addf %3, %4 : vector<1x1000xf32>
    %c0_5 = arith.constant 0 : index
    %c0_6 = arith.constant 0 : index
    %6 = vector.load %arg3[%c0_5, %c0_6] : memref<1x1000xf32, #tpu.memory_space<vmem>>, vector<1x1000xf32>
    tpu.vector_store %arg3[%c0_5, %c0_6], %5 {strides = array<i32>} : memref<1x1000xf32, #tpu.memory_space<vmem>>, vector<1x1000xf32>,
    return
  }
}

module attributes {stable_mosaic.version = 11 : i64} {
  func.func @_leaf_lstm_kernel(%arg0: memref<1x32xf32, #tpu.memory_space<vmem>>, %arg1: memref<32x32xf32, #tpu.memory_space<vmem>>, %arg2: memref<32x32xf32, #tpu.memory_space<vmem>>, %arg3: memref<32x32xf32, #tpu.memory_space<vmem>>, %arg4: memref<1x32xf32, #tpu.memory_space<vmem>>, %arg5: memref<1x32xf32, #tpu.memory_space<vmem>>, %arg6: memref<1x32xf32, #tpu.memory_space<vmem>>, %arg7: memref<1x32xf32, #tpu.memory_space<vmem>>, %arg8: memref<1x32xf32, #tpu.memory_space<vmem>>) attributes {dimension_semantics = [], scalar_prefetch = 0 : i64, scratch_operands = 0 : i64, tpu.core_type = #tpu.core_type<tc>} {
    %c0 = arith.constant 0 : index
    %c0_0 = arith.constant 0 : index
    %0 = vector.load %arg0[%c0, %c0_0] : memref<1x32xf32, #tpu.memory_space<vmem>>, vector<1x32xf32>
    %c0_1 = arith.constant 0 : index
    %c0_2 = arith.constant 0 : index
    %1 = vector.load %arg1[%c0_1, %c0_2] : memref<32x32xf32, #tpu.memory_space<vmem>>, vector<32x32xf32>
    %cst = arith.constant dense<0.000000e+00> : vector<1x32xf32>
    %2 = tpu.matmul %0, %1, %cst {dimension_numbers = #tpu.dot_dimension_numbers<[1], [0], [0], [1], [0, 0, 1, 1], [], []>} : vector<1x32xf32>, vector<32x32xf32>, vector<1x32xf32> -> vector<1x32xf32>
    %c0_3 = arith.constant 0 : index
    %c0_4 = arith.constant 0 : index
    %3 = vector.load %arg4[%c0_3, %c0_4] : memref<1x32xf32, #tpu.memory_space<vmem>>, vector<1x32xf32>
    %4 = arith.addf %2, %3 : vector<1x32xf32>
    %5 = arith.negf %4 : vector<1x32xf32>
    %6 = math.exp %5 : vector<1x32xf32>
    %cst_5 = arith.constant 1.000000e+00 : f32
    %7 = vector.broadcast %cst_5 : f32 to vector<1x32xf32>
    %8 = arith.addf %7, %6 : vector<1x32xf32>
    %9 = arith.divf %7, %8 : vector<1x32xf32>
    %c0_6 = arith.constant 0 : index
    %c0_7 = arith.constant 0 : index
    %10 = vector.load %arg2[%c0_6, %c0_7] : memref<32x32xf32, #tpu.memory_space<vmem>>, vector<32x32xf32>
    %cst_8 = arith.constant dense<0.000000e+00> : vector<1x32xf32>
    %11 = tpu.matmul %0, %10, %cst_8 {dimension_numbers = #tpu.dot_dimension_numbers<[1], [0], [0], [1], [0, 0, 1, 1], [], []>} : vector<1x32xf32>, vector<32x32xf32>, vector<1x32xf32> -> vector<1x32xf32>
    %c0_9 = arith.constant 0 : index
    %c0_10 = arith.constant 0 : index
    %12 = vector.load %arg5[%c0_9, %c0_10] : memref<1x32xf32, #tpu.memory_space<vmem>>, vector<1x32xf32>
    %13 = arith.addf %11, %12 : vector<1x32xf32>
    %14 = arith.negf %13 : vector<1x32xf32>
    %15 = math.exp %14 : vector<1x32xf32>
    %cst_11 = arith.constant 1.000000e+00 : f32
    %16 = vector.broadcast %cst_11 : f32 to vector<1x32xf32>
    %17 = arith.addf %16, %15 : vector<1x32xf32>
    %18 = arith.divf %16, %17 : vector<1x32xf32>
    %c0_12 = arith.constant 0 : index
    %c0_13 = arith.constant 0 : index
    %19 = vector.load %arg3[%c0_12, %c0_13] : memref<32x32xf32, #tpu.memory_space<vmem>>, vector<32x32xf32>
    %cst_14 = arith.constant dense<0.000000e+00> : vector<1x32xf32>
    %20 = tpu.matmul %0, %19, %cst_14 {dimension_numbers = #tpu.dot_dimension_numbers<[1], [0], [0], [1], [0, 0, 1, 1], [], []>} : vector<1x32xf32>, vector<32x32xf32>, vector<1x32xf32> -> vector<1x32xf32>
    %c0_15 = arith.constant 0 : index
    %c0_16 = arith.constant 0 : index
    %21 = vector.load %arg6[%c0_15, %c0_16] : memref<1x32xf32, #tpu.memory_space<vmem>>, vector<1x32xf32>
    %22 = arith.addf %20, %21 : vector<1x32xf32>
    %23 = math.tanh %22 : vector<1x32xf32>
    %24 = arith.mulf %9, %23 : vector<1x32xf32>
    %c0_17 = arith.constant 0 : index
    %c0_18 = arith.constant 0 : index
    %25 = vector.load %arg7[%c0_17, %c0_18] : memref<1x32xf32, #tpu.memory_space<vmem>>, vector<1x32xf32>
    tpu.vector_store %arg7[%c0_17, %c0_18], %24 {strides = array<i32>} : memref<1x32xf32, #tpu.memory_space<vmem>>, vector<1x32xf32>,
    %26 = math.tanh %24 : vector<1x32xf32>
    %27 = arith.mulf %18, %26 : vector<1x32xf32>
    %c0_19 = arith.constant 0 : index
    %c0_20 = arith.constant 0 : index
    %28 = vector.load %arg8[%c0_19, %c0_20] : memref<1x32xf32, #tpu.memory_space<vmem>>, vector<1x32xf32>
    tpu.vector_store %arg8[%c0_19, %c0_20], %27 {strides = array<i32>} : memref<1x32xf32, #tpu.memory_space<vmem>>, vector<1x32xf32>,
    return
  }
}

module attributes {stable_mosaic.version = 11 : i64} {
  func.func @_linear_kernel(%arg0: memref<1x1000xf32, #tpu.memory_space<vmem>>, %arg1: memref<1000x32xf32, #tpu.memory_space<vmem>>, %arg2: memref<1x32xf32, #tpu.memory_space<vmem>>, %arg3: memref<1x32xf32, #tpu.memory_space<vmem>>) attributes {dimension_semantics = [], scalar_prefetch = 0 : i64, scratch_operands = 0 : i64, tpu.core_type = #tpu.core_type<tc>} {
    %c0 = arith.constant 0 : index
    %c0_0 = arith.constant 0 : index
    %0 = vector.load %arg0[%c0, %c0_0] : memref<1x1000xf32, #tpu.memory_space<vmem>>, vector<1x1000xf32>
    %c0_1 = arith.constant 0 : index
    %c0_2 = arith.constant 0 : index
    %1 = vector.load %arg1[%c0_1, %c0_2] : memref<1000x32xf32, #tpu.memory_space<vmem>>, vector<1000x32xf32>
    %cst = arith.constant dense<0.000000e+00> : vector<1x32xf32>
    %2 = tpu.matmul %0, %1, %cst {dimension_numbers = #tpu.dot_dimension_numbers<[1], [0], [0], [1], [0, 0, 1, 1], [], []>} : vector<1x1000xf32>, vector<1000x32xf32>, vector<1x32xf32> -> vector<1x32xf32>
    %c0_3 = arith.constant 0 : index
    %c0_4 = arith.constant 0 : index
    %3 = vector.load %arg2[%c0_3, %c0_4] : memref<1x32xf32, #tpu.memory_space<vmem>>, vector<1x32xf32>
    %4 = arith.addf %2, %3 : vector<1x32xf32>
    %c0_5 = arith.constant 0 : index
    %c0_6 = arith.constant 0 : index
    %5 = vector.load %arg3[%c0_5, %c0_6] : memref<1x32xf32, #tpu.memory_space<vmem>>, vector<1x32xf32>
    tpu.vector_store %arg3[%c0_5, %c0_6], %4 {strides = array<i32>} : memref<1x32xf32, #tpu.memory_space<vmem>>, vector<1x32xf32>,
    return
  }
}

module attributes {stable_mosaic.version = 11 : i64} {
  func.func @_child_sum_lstm_kernel(%arg0: memref<1x32xf32, #tpu.memory_space<vmem>>, %arg1: memref<2x32xf32, #tpu.memory_space<vmem>>, %arg2: memref<2x32xf32, #tpu.memory_space<vmem>>, %arg3: memref<32x32xf32, #tpu.memory_space<vmem>>, %arg4: memref<32x32xf32, #tpu.memory_space<vmem>>, %arg5: memref<1x32xf32, #tpu.memory_space<vmem>>, %arg6: memref<32x32xf32, #tpu.memory_space<vmem>>, %arg7: memref<32x32xf32, #tpu.memory_space<vmem>>, %arg8: memref<1x32xf32, #tpu.memory_space<vmem>>, %arg9: memref<32x32xf32, #tpu.memory_space<vmem>>, %arg10: memref<32x32xf32, #tpu.memory_space<vmem>>, %arg11: memref<1x32xf32, #tpu.memory_space<vmem>>, %arg12: memref<32x32xf32, #tpu.memory_space<vmem>>, %arg13: memref<1x32xf32, #tpu.memory_space<vmem>>, %arg14: memref<32x32xf32, #tpu.memory_space<vmem>>, %arg15: memref<1x32xf32, #tpu.memory_space<vmem>>, %arg16: memref<1x32xf32, #tpu.memory_space<vmem>>, %arg17: memref<1x32xf32, #tpu.memory_space<vmem>>) attributes {dimension_semantics = [], scalar_prefetch = 0 : i64, scratch_operands = 0 : i64, tpu.core_type = #tpu.core_type<tc>} {
    %c0 = arith.constant 0 : index
    %c0_0 = arith.constant 0 : index
    %0 = vector.load %arg0[%c0, %c0_0] : memref<1x32xf32, #tpu.memory_space<vmem>>, vector<1x32xf32>
    %c0_1 = arith.constant 0 : index
    %c0_2 = arith.constant 0 : index
    %1 = vector.load %arg1[%c0_1, %c0_2] : memref<2x32xf32, #tpu.memory_space<vmem>>, vector<2x32xf32>
    %c0_3 = arith.constant 0 : index
    %c0_4 = arith.constant 0 : index
    %2 = vector.load %arg2[%c0_3, %c0_4] : memref<2x32xf32, #tpu.memory_space<vmem>>, vector<2x32xf32>
    %cst = arith.constant dense<0.000000e+00> : vector<32xf32>
    %3 = vector.multi_reduction <add>, %2, %cst [0] : vector<2x32xf32> to vector<32xf32>
    %4 = vector.shape_cast %3 : vector<32xf32> to vector<1x32xf32>
    %c0_5 = arith.constant 0 : index
    %c0_6 = arith.constant 0 : index
    %5 = vector.load %arg3[%c0_5, %c0_6] : memref<32x32xf32, #tpu.memory_space<vmem>>, vector<32x32xf32>
    %cst_7 = arith.constant dense<0.000000e+00> : vector<1x32xf32>
    %6 = tpu.matmul %0, %5, %cst_7 {dimension_numbers = #tpu.dot_dimension_numbers<[1], [0], [0], [1], [0, 0, 1, 1], [], []>} : vector<1x32xf32>, vector<32x32xf32>, vector<1x32xf32> -> vector<1x32xf32>
    %c0_8 = arith.constant 0 : index
    %c0_9 = arith.constant 0 : index
    %7 = vector.load %arg4[%c0_8, %c0_9] : memref<32x32xf32, #tpu.memory_space<vmem>>, vector<32x32xf32>
    %cst_10 = arith.constant dense<0.000000e+00> : vector<1x32xf32>
    %8 = tpu.matmul %4, %7, %cst_10 {dimension_numbers = #tpu.dot_dimension_numbers<[1], [0], [0], [1], [0, 0, 1, 1], [], []>} : vector<1x32xf32>, vector<32x32xf32>, vector<1x32xf32> -> vector<1x32xf32>
    %9 = arith.addf %6, %8 : vector<1x32xf32>
    %c0_11 = arith.constant 0 : index
    %c0_12 = arith.constant 0 : index
    %10 = vector.load %arg5[%c0_11, %c0_12] : memref<1x32xf32, #tpu.memory_space<vmem>>, vector<1x32xf32>
    %11 = arith.addf %9, %10 : vector<1x32xf32>
    %12 = arith.negf %11 : vector<1x32xf32>
    %13 = math.exp %12 : vector<1x32xf32>
    %cst_13 = arith.constant 1.000000e+00 : f32
    %14 = vector.broadcast %cst_13 : f32 to vector<1x32xf32>
    %15 = arith.addf %14, %13 : vector<1x32xf32>
    %16 = arith.divf %14, %15 : vector<1x32xf32>
    %c0_14 = arith.constant 0 : index
    %c0_15 = arith.constant 0 : index
    %17 = vector.load %arg6[%c0_14, %c0_15] : memref<32x32xf32, #tpu.memory_space<vmem>>, vector<32x32xf32>
    %cst_16 = arith.constant dense<0.000000e+00> : vector<1x32xf32>
    %18 = tpu.matmul %0, %17, %cst_16 {dimension_numbers = #tpu.dot_dimension_numbers<[1], [0], [0], [1], [0, 0, 1, 1], [], []>} : vector<1x32xf32>, vector<32x32xf32>, vector<1x32xf32> -> vector<1x32xf32>
    %c0_17 = arith.constant 0 : index
    %c0_18 = arith.constant 0 : index
    %19 = vector.load %arg7[%c0_17, %c0_18] : memref<32x32xf32, #tpu.memory_space<vmem>>, vector<32x32xf32>
    %cst_19 = arith.constant dense<0.000000e+00> : vector<1x32xf32>
    %20 = tpu.matmul %4, %19, %cst_19 {dimension_numbers = #tpu.dot_dimension_numbers<[1], [0], [0], [1], [0, 0, 1, 1], [], []>} : vector<1x32xf32>, vector<32x32xf32>, vector<1x32xf32> -> vector<1x32xf32>
    %21 = arith.addf %18, %20 : vector<1x32xf32>
    %c0_20 = arith.constant 0 : index
    %c0_21 = arith.constant 0 : index
    %22 = vector.load %arg8[%c0_20, %c0_21] : memref<1x32xf32, #tpu.memory_space<vmem>>, vector<1x32xf32>
    %23 = arith.addf %21, %22 : vector<1x32xf32>
    %24 = arith.negf %23 : vector<1x32xf32>
    %25 = math.exp %24 : vector<1x32xf32>
    %cst_22 = arith.constant 1.000000e+00 : f32
    %26 = vector.broadcast %cst_22 : f32 to vector<1x32xf32>
    %27 = arith.addf %26, %25 : vector<1x32xf32>
    %28 = arith.divf %26, %27 : vector<1x32xf32>
    %c0_23 = arith.constant 0 : index
    %c0_24 = arith.constant 0 : index
    %29 = vector.load %arg9[%c0_23, %c0_24] : memref<32x32xf32, #tpu.memory_space<vmem>>, vector<32x32xf32>
    %cst_25 = arith.constant dense<0.000000e+00> : vector<1x32xf32>
    %30 = tpu.matmul %0, %29, %cst_25 {dimension_numbers = #tpu.dot_dimension_numbers<[1], [0], [0], [1], [0, 0, 1, 1], [], []>} : vector<1x32xf32>, vector<32x32xf32>, vector<1x32xf32> -> vector<1x32xf32>
    %c0_26 = arith.constant 0 : index
    %c0_27 = arith.constant 0 : index
    %31 = vector.load %arg10[%c0_26, %c0_27] : memref<32x32xf32, #tpu.memory_space<vmem>>, vector<32x32xf32>
    %cst_28 = arith.constant dense<0.000000e+00> : vector<1x32xf32>
    %32 = tpu.matmul %4, %31, %cst_28 {dimension_numbers = #tpu.dot_dimension_numbers<[1], [0], [0], [1], [0, 0, 1, 1], [], []>} : vector<1x32xf32>, vector<32x32xf32>, vector<1x32xf32> -> vector<1x32xf32>
    %33 = arith.addf %30, %32 : vector<1x32xf32>
    %c0_29 = arith.constant 0 : index
    %c0_30 = arith.constant 0 : index
    %34 = vector.load %arg11[%c0_29, %c0_30] : memref<1x32xf32, #tpu.memory_space<vmem>>, vector<1x32xf32>
    %35 = arith.addf %33, %34 : vector<1x32xf32>
    %36 = math.tanh %35 : vector<1x32xf32>
    %c0_31 = arith.constant 0 : index
    %c0_32 = arith.constant 0 : index
    %37 = vector.load %arg12[%c0_31, %c0_32] : memref<32x32xf32, #tpu.memory_space<vmem>>, vector<32x32xf32>
    %cst_33 = arith.constant dense<0.000000e+00> : vector<1x32xf32>
    %38 = tpu.matmul %0, %37, %cst_33 {dimension_numbers = #tpu.dot_dimension_numbers<[1], [0], [0], [1], [0, 0, 1, 1], [], []>} : vector<1x32xf32>, vector<32x32xf32>, vector<1x32xf32> -> vector<1x32xf32>
    %c0_34 = arith.constant 0 : index
    %c0_35 = arith.constant 0 : index
    %39 = vector.load %arg13[%c0_34, %c0_35] : memref<1x32xf32, #tpu.memory_space<vmem>>, vector<1x32xf32>
    %40 = arith.addf %38, %39 : vector<1x32xf32>
    %c0_36 = arith.constant 0 : index
    %c0_37 = arith.constant 0 : index
    %41 = vector.load %arg14[%c0_36, %c0_37] : memref<32x32xf32, #tpu.memory_space<vmem>>, vector<32x32xf32>
    %cst_38 = arith.constant dense<0.000000e+00> : vector<2x32xf32>
    %42 = tpu.matmul %2, %41, %cst_38 {dimension_numbers = #tpu.dot_dimension_numbers<[1], [0], [0], [1], [0, 0, 1, 1], [], []>} : vector<2x32xf32>, vector<32x32xf32>, vector<2x32xf32> -> vector<2x32xf32>
    %c0_39 = arith.constant 0 : index
    %c0_40 = arith.constant 0 : index
    %43 = vector.load %arg15[%c0_39, %c0_40] : memref<1x32xf32, #tpu.memory_space<vmem>>, vector<1x32xf32>
    %44 = vector.broadcast %43 : vector<1x32xf32> to vector<2x32xf32>
    %45 = arith.addf %42, %44 : vector<2x32xf32>
    %46 = vector.broadcast %40 : vector<1x32xf32> to vector<2x32xf32>
    %47 = arith.addf %45, %46 : vector<2x32xf32>
    %48 = arith.negf %47 : vector<2x32xf32>
    %49 = math.exp %48 : vector<2x32xf32>
    %cst_41 = arith.constant 1.000000e+00 : f32
    %50 = vector.broadcast %cst_41 : f32 to vector<2x32xf32>
    %51 = arith.addf %50, %49 : vector<2x32xf32>
    %52 = arith.divf %50, %51 : vector<2x32xf32>
    %53 = arith.mulf %52, %1 : vector<2x32xf32>
    %54 = arith.mulf %16, %36 : vector<1x32xf32>
    %cst_42 = arith.constant dense<0.000000e+00> : vector<32xf32>
    %55 = vector.multi_reduction <add>, %53, %cst_42 [0] : vector<2x32xf32> to vector<32xf32>
    %56 = vector.shape_cast %55 : vector<32xf32> to vector<1x32xf32>
    %57 = arith.addf %54, %56 : vector<1x32xf32>
    %c0_43 = arith.constant 0 : index
    %c0_44 = arith.constant 0 : index
    %58 = vector.load %arg16[%c0_43, %c0_44] : memref<1x32xf32, #tpu.memory_space<vmem>>, vector<1x32xf32>
    tpu.vector_store %arg16[%c0_43, %c0_44], %57 {strides = array<i32>} : memref<1x32xf32, #tpu.memory_space<vmem>>, vector<1x32xf32>,
    %59 = math.tanh %57 : vector<1x32xf32>
    %60 = arith.mulf %28, %59 : vector<1x32xf32>
    %c0_45 = arith.constant 0 : index
    %c0_46 = arith.constant 0 : index
    %61 = vector.load %arg17[%c0_45, %c0_46] : memref<1x32xf32, #tpu.memory_space<vmem>>, vector<1x32xf32>
    tpu.vector_store %arg17[%c0_45, %c0_46], %60 {strides = array<i32>} : memref<1x32xf32, #tpu.memory_space<vmem>>, vector<1x32xf32>,
    return
  }
}

module attributes {stable_mosaic.version = 11 : i64} {
  func.func @_leaf_lstm_kernel(%arg0: memref<3x32xf32, #tpu.memory_space<vmem>>, %arg1: memref<32x32xf32, #tpu.memory_space<vmem>>, %arg2: memref<32x32xf32, #tpu.memory_space<vmem>>, %arg3: memref<32x32xf32, #tpu.memory_space<vmem>>, %arg4: memref<1x32xf32, #tpu.memory_space<vmem>>, %arg5: memref<1x32xf32, #tpu.memory_space<vmem>>, %arg6: memref<1x32xf32, #tpu.memory_space<vmem>>, %arg7: memref<3x32xf32, #tpu.memory_space<vmem>>, %arg8: memref<3x32xf32, #tpu.memory_space<vmem>>) attributes {dimension_semantics = [], scalar_prefetch = 0 : i64, scratch_operands = 0 : i64, tpu.core_type = #tpu.core_type<tc>} {
    %c0 = arith.constant 0 : index
    %c0_0 = arith.constant 0 : index
    %0 = vector.load %arg0[%c0, %c0_0] : memref<3x32xf32, #tpu.memory_space<vmem>>, vector<3x32xf32>
    %c0_1 = arith.constant 0 : index
    %c0_2 = arith.constant 0 : index
    %1 = vector.load %arg1[%c0_1, %c0_2] : memref<32x32xf32, #tpu.memory_space<vmem>>, vector<32x32xf32>
    %cst = arith.constant dense<0.000000e+00> : vector<3x32xf32>
    %2 = tpu.matmul %0, %1, %cst {dimension_numbers = #tpu.dot_dimension_numbers<[1], [0], [0], [1], [0, 0, 1, 1], [], []>} : vector<3x32xf32>, vector<32x32xf32>, vector<3x32xf32> -> vector<3x32xf32>
    %c0_3 = arith.constant 0 : index
    %c0_4 = arith.constant 0 : index
    %3 = vector.load %arg4[%c0_3, %c0_4] : memref<1x32xf32, #tpu.memory_space<vmem>>, vector<1x32xf32>
    %4 = vector.broadcast %3 : vector<1x32xf32> to vector<3x32xf32>
    %5 = arith.addf %2, %4 : vector<3x32xf32>
    %6 = arith.negf %5 : vector<3x32xf32>
    %7 = math.exp %6 : vector<3x32xf32>
    %cst_5 = arith.constant 1.000000e+00 : f32
    %8 = vector.broadcast %cst_5 : f32 to vector<3x32xf32>
    %9 = arith.addf %8, %7 : vector<3x32xf32>
    %10 = arith.divf %8, %9 : vector<3x32xf32>
    %c0_6 = arith.constant 0 : index
    %c0_7 = arith.constant 0 : index
    %11 = vector.load %arg2[%c0_6, %c0_7] : memref<32x32xf32, #tpu.memory_space<vmem>>, vector<32x32xf32>
    %cst_8 = arith.constant dense<0.000000e+00> : vector<3x32xf32>
    %12 = tpu.matmul %0, %11, %cst_8 {dimension_numbers = #tpu.dot_dimension_numbers<[1], [0], [0], [1], [0, 0, 1, 1], [], []>} : vector<3x32xf32>, vector<32x32xf32>, vector<3x32xf32> -> vector<3x32xf32>
    %c0_9 = arith.constant 0 : index
    %c0_10 = arith.constant 0 : index
    %13 = vector.load %arg5[%c0_9, %c0_10] : memref<1x32xf32, #tpu.memory_space<vmem>>, vector<1x32xf32>
    %14 = vector.broadcast %13 : vector<1x32xf32> to vector<3x32xf32>
    %15 = arith.addf %12, %14 : vector<3x32xf32>
    %16 = arith.negf %15 : vector<3x32xf32>
    %17 = math.exp %16 : vector<3x32xf32>
    %cst_11 = arith.constant 1.000000e+00 : f32
    %18 = vector.broadcast %cst_11 : f32 to vector<3x32xf32>
    %19 = arith.addf %18, %17 : vector<3x32xf32>
    %20 = arith.divf %18, %19 : vector<3x32xf32>
    %c0_12 = arith.constant 0 : index
    %c0_13 = arith.constant 0 : index
    %21 = vector.load %arg3[%c0_12, %c0_13] : memref<32x32xf32, #tpu.memory_space<vmem>>, vector<32x32xf32>
    %cst_14 = arith.constant dense<0.000000e+00> : vector<3x32xf32>
    %22 = tpu.matmul %0, %21, %cst_14 {dimension_numbers = #tpu.dot_dimension_numbers<[1], [0], [0], [1], [0, 0, 1, 1], [], []>} : vector<3x32xf32>, vector<32x32xf32>, vector<3x32xf32> -> vector<3x32xf32>
    %c0_15 = arith.constant 0 : index
    %c0_16 = arith.constant 0 : index
    %23 = vector.load %arg6[%c0_15, %c0_16] : memref<1x32xf32, #tpu.memory_space<vmem>>, vector<1x32xf32>
    %24 = vector.broadcast %23 : vector<1x32xf32> to vector<3x32xf32>
    %25 = arith.addf %22, %24 : vector<3x32xf32>
    %26 = math.tanh %25 : vector<3x32xf32>
    %27 = arith.mulf %10, %26 : vector<3x32xf32>
    %c0_17 = arith.constant 0 : index
    %c0_18 = arith.constant 0 : index
    %28 = vector.load %arg7[%c0_17, %c0_18] : memref<3x32xf32, #tpu.memory_space<vmem>>, vector<3x32xf32>
    tpu.vector_store %arg7[%c0_17, %c0_18], %27 {strides = array<i32>} : memref<3x32xf32, #tpu.memory_space<vmem>>, vector<3x32xf32>,
    %29 = math.tanh %27 : vector<3x32xf32>
    %30 = arith.mulf %20, %29 : vector<3x32xf32>
    %c0_19 = arith.constant 0 : index
    %c0_20 = arith.constant 0 : index
    %31 = vector.load %arg8[%c0_19, %c0_20] : memref<3x32xf32, #tpu.memory_space<vmem>>, vector<3x32xf32>
    tpu.vector_store %arg8[%c0_19, %c0_20], %30 {strides = array<i32>} : memref<3x32xf32, #tpu.memory_space<vmem>>, vector<3x32xf32>,
    return
  }
}

module attributes {stable_mosaic.version = 11 : i64} {
  func.func @_child_sum_lstm_kernel(%arg0: memref<1x32xf32, #tpu.memory_space<vmem>>, %arg1: memref<4x32xf32, #tpu.memory_space<vmem>>, %arg2: memref<4x32xf32, #tpu.memory_space<vmem>>, %arg3: memref<32x32xf32, #tpu.memory_space<vmem>>, %arg4: memref<32x32xf32, #tpu.memory_space<vmem>>, %arg5: memref<1x32xf32, #tpu.memory_space<vmem>>, %arg6: memref<32x32xf32, #tpu.memory_space<vmem>>, %arg7: memref<32x32xf32, #tpu.memory_space<vmem>>, %arg8: memref<1x32xf32, #tpu.memory_space<vmem>>, %arg9: memref<32x32xf32, #tpu.memory_space<vmem>>, %arg10: memref<32x32xf32, #tpu.memory_space<vmem>>, %arg11: memref<1x32xf32, #tpu.memory_space<vmem>>, %arg12: memref<32x32xf32, #tpu.memory_space<vmem>>, %arg13: memref<1x32xf32, #tpu.memory_space<vmem>>, %arg14: memref<32x32xf32, #tpu.memory_space<vmem>>, %arg15: memref<1x32xf32, #tpu.memory_space<vmem>>, %arg16: memref<1x32xf32, #tpu.memory_space<vmem>>, %arg17: memref<1x32xf32, #tpu.memory_space<vmem>>) attributes {dimension_semantics = [], scalar_prefetch = 0 : i64, scratch_operands = 0 : i64, tpu.core_type = #tpu.core_type<tc>} {
    %c0 = arith.constant 0 : index
    %c0_0 = arith.constant 0 : index
    %0 = vector.load %arg0[%c0, %c0_0] : memref<1x32xf32, #tpu.memory_space<vmem>>, vector<1x32xf32>
    %c0_1 = arith.constant 0 : index
    %c0_2 = arith.constant 0 : index
    %1 = vector.load %arg1[%c0_1, %c0_2] : memref<4x32xf32, #tpu.memory_space<vmem>>, vector<4x32xf32>
    %c0_3 = arith.constant 0 : index
    %c0_4 = arith.constant 0 : index
    %2 = vector.load %arg2[%c0_3, %c0_4] : memref<4x32xf32, #tpu.memory_space<vmem>>, vector<4x32xf32>
    %cst = arith.constant dense<0.000000e+00> : vector<32xf32>
    %3 = vector.multi_reduction <add>, %2, %cst [0] : vector<4x32xf32> to vector<32xf32>
    %4 = vector.shape_cast %3 : vector<32xf32> to vector<1x32xf32>
    %c0_5 = arith.constant 0 : index
    %c0_6 = arith.constant 0 : index
    %5 = vector.load %arg3[%c0_5, %c0_6] : memref<32x32xf32, #tpu.memory_space<vmem>>, vector<32x32xf32>
    %cst_7 = arith.constant dense<0.000000e+00> : vector<1x32xf32>
    %6 = tpu.matmul %0, %5, %cst_7 {dimension_numbers = #tpu.dot_dimension_numbers<[1], [0], [0], [1], [0, 0, 1, 1], [], []>} : vector<1x32xf32>, vector<32x32xf32>, vector<1x32xf32> -> vector<1x32xf32>
    %c0_8 = arith.constant 0 : index
    %c0_9 = arith.constant 0 : index
    %7 = vector.load %arg4[%c0_8, %c0_9] : memref<32x32xf32, #tpu.memory_space<vmem>>, vector<32x32xf32>
    %cst_10 = arith.constant dense<0.000000e+00> : vector<1x32xf32>
    %8 = tpu.matmul %4, %7, %cst_10 {dimension_numbers = #tpu.dot_dimension_numbers<[1], [0], [0], [1], [0, 0, 1, 1], [], []>} : vector<1x32xf32>, vector<32x32xf32>, vector<1x32xf32> -> vector<1x32xf32>
    %9 = arith.addf %6, %8 : vector<1x32xf32>
    %c0_11 = arith.constant 0 : index
    %c0_12 = arith.constant 0 : index
    %10 = vector.load %arg5[%c0_11, %c0_12] : memref<1x32xf32, #tpu.memory_space<vmem>>, vector<1x32xf32>
    %11 = arith.addf %9, %10 : vector<1x32xf32>
    %12 = arith.negf %11 : vector<1x32xf32>
    %13 = math.exp %12 : vector<1x32xf32>
    %cst_13 = arith.constant 1.000000e+00 : f32
    %14 = vector.broadcast %cst_13 : f32 to vector<1x32xf32>
    %15 = arith.addf %14, %13 : vector<1x32xf32>
    %16 = arith.divf %14, %15 : vector<1x32xf32>
    %c0_14 = arith.constant 0 : index
    %c0_15 = arith.constant 0 : index
    %17 = vector.load %arg6[%c0_14, %c0_15] : memref<32x32xf32, #tpu.memory_space<vmem>>, vector<32x32xf32>
    %cst_16 = arith.constant dense<0.000000e+00> : vector<1x32xf32>
    %18 = tpu.matmul %0, %17, %cst_16 {dimension_numbers = #tpu.dot_dimension_numbers<[1], [0], [0], [1], [0, 0, 1, 1], [], []>} : vector<1x32xf32>, vector<32x32xf32>, vector<1x32xf32> -> vector<1x32xf32>
    %c0_17 = arith.constant 0 : index
    %c0_18 = arith.constant 0 : index
    %19 = vector.load %arg7[%c0_17, %c0_18] : memref<32x32xf32, #tpu.memory_space<vmem>>, vector<32x32xf32>
    %cst_19 = arith.constant dense<0.000000e+00> : vector<1x32xf32>
    %20 = tpu.matmul %4, %19, %cst_19 {dimension_numbers = #tpu.dot_dimension_numbers<[1], [0], [0], [1], [0, 0, 1, 1], [], []>} : vector<1x32xf32>, vector<32x32xf32>, vector<1x32xf32> -> vector<1x32xf32>
    %21 = arith.addf %18, %20 : vector<1x32xf32>
    %c0_20 = arith.constant 0 : index
    %c0_21 = arith.constant 0 : index
    %22 = vector.load %arg8[%c0_20, %c0_21] : memref<1x32xf32, #tpu.memory_space<vmem>>, vector<1x32xf32>
    %23 = arith.addf %21, %22 : vector<1x32xf32>
    %24 = arith.negf %23 : vector<1x32xf32>
    %25 = math.exp %24 : vector<1x32xf32>
    %cst_22 = arith.constant 1.000000e+00 : f32
    %26 = vector.broadcast %cst_22 : f32 to vector<1x32xf32>
    %27 = arith.addf %26, %25 : vector<1x32xf32>
    %28 = arith.divf %26, %27 : vector<1x32xf32>
    %c0_23 = arith.constant 0 : index
    %c0_24 = arith.constant 0 : index
    %29 = vector.load %arg9[%c0_23, %c0_24] : memref<32x32xf32, #tpu.memory_space<vmem>>, vector<32x32xf32>
    %cst_25 = arith.constant dense<0.000000e+00> : vector<1x32xf32>
    %30 = tpu.matmul %0, %29, %cst_25 {dimension_numbers = #tpu.dot_dimension_numbers<[1], [0], [0], [1], [0, 0, 1, 1], [], []>} : vector<1x32xf32>, vector<32x32xf32>, vector<1x32xf32> -> vector<1x32xf32>
    %c0_26 = arith.constant 0 : index
    %c0_27 = arith.constant 0 : index
    %31 = vector.load %arg10[%c0_26, %c0_27] : memref<32x32xf32, #tpu.memory_space<vmem>>, vector<32x32xf32>
    %cst_28 = arith.constant dense<0.000000e+00> : vector<1x32xf32>
    %32 = tpu.matmul %4, %31, %cst_28 {dimension_numbers = #tpu.dot_dimension_numbers<[1], [0], [0], [1], [0, 0, 1, 1], [], []>} : vector<1x32xf32>, vector<32x32xf32>, vector<1x32xf32> -> vector<1x32xf32>
    %33 = arith.addf %30, %32 : vector<1x32xf32>
    %c0_29 = arith.constant 0 : index
    %c0_30 = arith.constant 0 : index
    %34 = vector.load %arg11[%c0_29, %c0_30] : memref<1x32xf32, #tpu.memory_space<vmem>>, vector<1x32xf32>
    %35 = arith.addf %33, %34 : vector<1x32xf32>
    %36 = math.tanh %35 : vector<1x32xf32>
    %c0_31 = arith.constant 0 : index
    %c0_32 = arith.constant 0 : index
    %37 = vector.load %arg12[%c0_31, %c0_32] : memref<32x32xf32, #tpu.memory_space<vmem>>, vector<32x32xf32>
    %cst_33 = arith.constant dense<0.000000e+00> : vector<1x32xf32>
    %38 = tpu.matmul %0, %37, %cst_33 {dimension_numbers = #tpu.dot_dimension_numbers<[1], [0], [0], [1], [0, 0, 1, 1], [], []>} : vector<1x32xf32>, vector<32x32xf32>, vector<1x32xf32> -> vector<1x32xf32>
    %c0_34 = arith.constant 0 : index
    %c0_35 = arith.constant 0 : index
    %39 = vector.load %arg13[%c0_34, %c0_35] : memref<1x32xf32, #tpu.memory_space<vmem>>, vector<1x32xf32>
    %40 = arith.addf %38, %39 : vector<1x32xf32>
    %c0_36 = arith.constant 0 : index
    %c0_37 = arith.constant 0 : index
    %41 = vector.load %arg14[%c0_36, %c0_37] : memref<32x32xf32, #tpu.memory_space<vmem>>, vector<32x32xf32>
    %cst_38 = arith.constant dense<0.000000e+00> : vector<4x32xf32>
    %42 = tpu.matmul %2, %41, %cst_38 {dimension_numbers = #tpu.dot_dimension_numbers<[1], [0], [0], [1], [0, 0, 1, 1], [], []>} : vector<4x32xf32>, vector<32x32xf32>, vector<4x32xf32> -> vector<4x32xf32>
    %c0_39 = arith.constant 0 : index
    %c0_40 = arith.constant 0 : index
    %43 = vector.load %arg15[%c0_39, %c0_40] : memref<1x32xf32, #tpu.memory_space<vmem>>, vector<1x32xf32>
    %44 = vector.broadcast %43 : vector<1x32xf32> to vector<4x32xf32>
    %45 = arith.addf %42, %44 : vector<4x32xf32>
    %46 = vector.broadcast %40 : vector<1x32xf32> to vector<4x32xf32>
    %47 = arith.addf %45, %46 : vector<4x32xf32>
    %48 = arith.negf %47 : vector<4x32xf32>
    %49 = math.exp %48 : vector<4x32xf32>
    %cst_41 = arith.constant 1.000000e+00 : f32
    %50 = vector.broadcast %cst_41 : f32 to vector<4x32xf32>
    %51 = arith.addf %50, %49 : vector<4x32xf32>
    %52 = arith.divf %50, %51 : vector<4x32xf32>
    %53 = arith.mulf %52, %1 : vector<4x32xf32>
    %54 = arith.mulf %16, %36 : vector<1x32xf32>
    %cst_42 = arith.constant dense<0.000000e+00> : vector<32xf32>
    %55 = vector.multi_reduction <add>, %53, %cst_42 [0] : vector<4x32xf32> to vector<32xf32>
    %56 = vector.shape_cast %55 : vector<32xf32> to vector<1x32xf32>
    %57 = arith.addf %54, %56 : vector<1x32xf32>
    %c0_43 = arith.constant 0 : index
    %c0_44 = arith.constant 0 : index
    %58 = vector.load %arg16[%c0_43, %c0_44] : memref<1x32xf32, #tpu.memory_space<vmem>>, vector<1x32xf32>
    tpu.vector_store %arg16[%c0_43, %c0_44], %57 {strides = array<i32>} : memref<1x32xf32, #tpu.memory_space<vmem>>, vector<1x32xf32>,
    %59 = math.tanh %57 : vector<1x32xf32>
    %60 = arith.mulf %28, %59 : vector<1x32xf32>
    %c0_45 = arith.constant 0 : index
    %c0_46 = arith.constant 0 : index
    %61 = vector.load %arg17[%c0_45, %c0_46] : memref<1x32xf32, #tpu.memory_space<vmem>>, vector<1x32xf32>
    tpu.vector_store %arg17[%c0_45, %c0_46], %60 {strides = array<i32>} : memref<1x32xf32, #tpu.memory_space<vmem>>, vector<1x32xf32>,
    return
  }
}

module attributes {stable_mosaic.version = 11 : i64} {
  func.func @_h_to_word_kernel(%arg0: memref<2x32xf32, #tpu.memory_space<vmem>>, %arg1: memref<32x1024xbf16, #tpu.memory_space<vmem>>, %arg2: memref<1x1024xf32, #tpu.memory_space<vmem>>, %arg3: memref<1024x512xbf16, #tpu.memory_space<vmem>>, %arg4: memref<1x512xf32, #tpu.memory_space<vmem>>, %arg5: memref<512x32xbf16, #tpu.memory_space<vmem>>, %arg6: memref<1x32xf32, #tpu.memory_space<vmem>>, %arg7: memref<2x32xf32, #tpu.memory_space<vmem>>) attributes {dimension_semantics = [], scalar_prefetch = 0 : i64, scratch_operands = 0 : i64, tpu.core_type = #tpu.core_type<tc>} {
    %c0 = arith.constant 0 : index
    %c0_0 = arith.constant 0 : index
    %0 = vector.load %arg0[%c0, %c0_0] : memref<2x32xf32, #tpu.memory_space<vmem>>, vector<2x32xf32>
    %1 = arith.truncf %0 : vector<2x32xf32> to vector<2x32xbf16>
    %c0_1 = arith.constant 0 : index
    %c0_2 = arith.constant 0 : index
    %2 = vector.load %arg1[%c0_1, %c0_2] : memref<32x1024xbf16, #tpu.memory_space<vmem>>, vector<32x1024xbf16>
    %cst = arith.constant dense<0.000000e+00> : vector<2x1024xf32>
    %3 = tpu.matmul %1, %2, %cst {dimension_numbers = #tpu.dot_dimension_numbers<[1], [0], [0], [1], [0, 0, 1, 1], [], []>} : vector<2x32xbf16>, vector<32x1024xbf16>, vector<2x1024xf32> -> vector<2x1024xf32>
    %c0_3 = arith.constant 0 : index
    %c0_4 = arith.constant 0 : index
    %4 = vector.load %arg2[%c0_3, %c0_4] : memref<1x1024xf32, #tpu.memory_space<vmem>>, vector<1x1024xf32>
    %5 = vector.broadcast %4 : vector<1x1024xf32> to vector<2x1024xf32>
    %6 = arith.addf %3, %5 : vector<2x1024xf32>
    %cst_5 = arith.constant 0.000000e+00 : f32
    %7 = vector.broadcast %cst_5 : f32 to vector<2x1024xf32>
    %8 = arith.maximumf %6, %7 : vector<2x1024xf32>
    %9 = arith.truncf %8 : vector<2x1024xf32> to vector<2x1024xbf16>
    %c0_6 = arith.constant 0 : index
    %c0_7 = arith.constant 0 : index
    %10 = vector.load %arg3[%c0_6, %c0_7] : memref<1024x512xbf16, #tpu.memory_space<vmem>>, vector<1024x512xbf16>
    %cst_8 = arith.constant dense<0.000000e+00> : vector<2x512xf32>
    %11 = tpu.matmul %9, %10, %cst_8 {dimension_numbers = #tpu.dot_dimension_numbers<[1], [0], [0], [1], [0, 0, 1, 1], [], []>} : vector<2x1024xbf16>, vector<1024x512xbf16>, vector<2x512xf32> -> vector<2x512xf32>
    %c0_9 = arith.constant 0 : index
    %c0_10 = arith.constant 0 : index
    %12 = vector.load %arg4[%c0_9, %c0_10] : memref<1x512xf32, #tpu.memory_space<vmem>>, vector<1x512xf32>
    %13 = vector.broadcast %12 : vector<1x512xf32> to vector<2x512xf32>
    %14 = arith.addf %11, %13 : vector<2x512xf32>
    %cst_11 = arith.constant 0.000000e+00 : f32
    %15 = vector.broadcast %cst_11 : f32 to vector<2x512xf32>
    %16 = arith.maximumf %14, %15 : vector<2x512xf32>
    %17 = arith.truncf %16 : vector<2x512xf32> to vector<2x512xbf16>
    %c0_12 = arith.constant 0 : index
    %c0_13 = arith.constant 0 : index
    %18 = vector.load %arg5[%c0_12, %c0_13] : memref<512x32xbf16, #tpu.memory_space<vmem>>, vector<512x32xbf16>
    %cst_14 = arith.constant dense<0.000000e+00> : vector<2x32xf32>
    %19 = tpu.matmul %17, %18, %cst_14 {dimension_numbers = #tpu.dot_dimension_numbers<[1], [0], [0], [1], [0, 0, 1, 1], [], []>} : vector<2x512xbf16>, vector<512x32xbf16>, vector<2x32xf32> -> vector<2x32xf32>
    %c0_15 = arith.constant 0 : index
    %c0_16 = arith.constant 0 : index
    %20 = vector.load %arg6[%c0_15, %c0_16] : memref<1x32xf32, #tpu.memory_space<vmem>>, vector<1x32xf32>
    %21 = vector.broadcast %20 : vector<1x32xf32> to vector<2x32xf32>
    %22 = arith.addf %19, %21 : vector<2x32xf32>
    %cst_17 = arith.constant dense<0xFF800000> : vector<2xf32>
    %23 = vector.multi_reduction <maximumf>, %22, %cst_17 [1] : vector<2x32xf32> to vector<2xf32>
    %24 = vector.shape_cast %23 : vector<2xf32> to vector<2x1xf32>
    %25 = vector.broadcast %24 : vector<2x1xf32> to vector<2x32xf32>
    %26 = arith.subf %22, %25 : vector<2x32xf32>
    %27 = math.exp %26 : vector<2x32xf32>
    %cst_18 = arith.constant dense<0.000000e+00> : vector<2xf32>
    %28 = vector.multi_reduction <add>, %27, %cst_18 [1] : vector<2x32xf32> to vector<2xf32>
    %29 = vector.shape_cast %28 : vector<2xf32> to vector<2x1xf32>
    %30 = tpu.reciprocal %29 {approx = true} : vector<2x1xf32> -> vector<2x1xf32>
    %31 = vector.broadcast %30 : vector<2x1xf32> to vector<2x32xf32>
    %32 = arith.mulf %27, %31 : vector<2x32xf32>
    %c0_19 = arith.constant 0 : index
    %c0_20 = arith.constant 0 : index
    %33 = vector.load %arg7[%c0_19, %c0_20] : memref<2x32xf32, #tpu.memory_space<vmem>>, vector<2x32xf32>
    tpu.vector_store %arg7[%c0_19, %c0_20], %32 {strides = array<i32>} : memref<2x32xf32, #tpu.memory_space<vmem>>, vector<2x32xf32>,
    return
  }
}

</mosaic_0001>

<llo_original>
// kernel: forward.9
$region0: #{forward.9}
  #allocation0 [shape = 'u32[]', space=smem, size = 0x4, offset = 0x4, fixed_abs, tag = 'smem constant byte address 0x4 - core index']
  #allocation1 [shape = 'u32[144,128]{1,0:T(1,128)}', space=vmem, size = 0x12000, scoped, tag = 'internal scratch']
  %s0 = inlined_call_operand.hbm [shape: f32[1,32], index: 0, kind: input, shape index: {}]
  %s1 = inlined_call_operand.hbm [shape: f32[32,32], index: 1, kind: input, shape index: {}]
  %s2 = inlined_call_operand.hbm [shape: f32[32,32], index: 2, kind: input, shape index: {}]
  %s3 = inlined_call_operand.hbm [shape: f32[32,32], index: 3, kind: input, shape index: {}]
  %s4 = inlined_call_operand.hbm [shape: f32[1,32], index: 4, kind: input, shape index: {}]
  %s5 = inlined_call_operand.hbm [shape: f32[1,32], index: 5, kind: input, shape index: {}]
  %s6 = inlined_call_operand.hbm [shape: f32[1,32], index: 6, kind: input, shape index: {}]
  %s7 = inlined_call_operand.vmem [shape: f32[1,32], index: 7, kind: output, shape index: {0}]
  %s8 = inlined_call_operand.vmem [shape: f32[1,32], index: 8, kind: output, shape index: {1}]
  %9 = xla_tuple %s7, %s8
  %s10 = sld [smem:[#allocation0]]
  $region74: #{forward.9} parent=0
    _
  %s12 = ssub.s32 1, %s10
  %s13 = scalar_select 0, %s12, %s10
  $region1: #{forward.9} parent=0
    #allocation2 [shape = 'u8[512]{0}', space=vmem, size = 0x400, scoped, tag = 'input window, operand 0, single buffered']
    #allocation3 [shape = 's32[1]{0}', space=sflag, size = 0x4, scoped, tag = 'scoped memory for forward.9']
    #allocation4 [shape = 'u8[16384]{0}', space=vmem, size = 0x4000, scoped, tag = 'input window, operand 1, single buffered']
    #allocation5 [shape = 's32[1]{0}', space=sflag, size = 0x4, scoped, tag = 'scoped memory for forward.9']
    #allocation6 [shape = 'u8[16384]{0}', space=vmem, size = 0x4000, scoped, tag = 'input window, operand 2, single buffered']
    #allocation7 [shape = 'u8[16384]{0}', space=vmem, size = 0x4000, scoped, tag = 'input window, operand 3, single buffered']
    #allocation8 [shape = 's32[1]{0}', space=sflag, size = 0x4, scoped, tag = 'scoped memory for forward.9']
    #allocation9 [shape = 'u8[512]{0}', space=vmem, size = 0x400, scoped, tag = 'input window, operand 4, single buffered']
    #allocation10 [shape = 'u8[512]{0}', space=vmem, size = 0x400, scoped, tag = 'input window, operand 5, single buffered']
    #allocation11 [shape = 's32[1]{0}', space=sflag, size = 0x4, scoped, tag = 'scoped memory for forward.9']
    #allocation12 [shape = 'u8[512]{0}', space=vmem, size = 0x400, scoped, tag = 'input window, operand 6, single buffered']
    %14 = vsyncpa [#allocation3], 0
    %15 = vsyncpa [#allocation5], 0
    %16 = vsyncpa [#allocation8], 0
    %17 = vsyncpa [#allocation11], 0
    // Predicated region
    $region2: #{forward.9} parent=1 // pred_check
      _
    $region3: #{forward.9} parent=1 // pred_check_branch
      %19 = sbr.rel (0) target = $region5
    $region4: #{forward.9} parent=1 // pred_region
      %s21 = ssub.s32 16, 16
      %22 = vsyncadd [#allocation3], %s21
      %s24 = sshll.u32 [#allocation2], 4
      %s25 = int_to_ptr.vmem [resolvable:$true] %s24
      %27 = dma.hbm_to_vmem [thread:$0]  %s0, 16, %s25, [#allocation3]
    $region5: #{forward.9} parent=1 // pred_fallthru
      _
    // Predicated region
    $region6: #{forward.9} parent=1 // pred_check
      _
    $region7: #{forward.9} parent=1 // pred_check_branch
      %29 = sbr.rel (0) target = $region9
    $region8: #{forward.9} parent=1 // pred_region
      %s31 = ssub.s32 512, 512
      %32 = vsyncadd [#allocation5], %s31
      %s33 = sshll.u32 [#allocation4], 4
      %s34 = int_to_ptr.vmem [resolvable:$true] %s33
      %39 = dma.hbm_to_vmem [thread:$0]  %s1, 512, %s34, [#allocation5], 128, 128, 8
    $region9: #{forward.9} parent=1 // pred_fallthru
      _
    // Predicated region
    $region10: #{forward.9} parent=1 // pred_check
      _
    $region11: #{forward.9} parent=1 // pred_check_branch
      %41 = sbr.rel (0) target = $region13
    $region12: #{forward.9} parent=1 // pred_region
      %s43 = ssub.s32 512, 512
      %44 = vsyncadd [#allocation5], %s43
      %s45 = sshll.u32 [#allocation6], 4
      %s46 = int_to_ptr.vmem [resolvable:$true] %s45
      %51 = dma.hbm_to_vmem [thread:$0]  %s2, 512, %s46, [#allocation5], 128, 128, 8
    $region13: #{forward.9} parent=1 // pred_fallthru
      _
    // Predicated region
    $region14: #{forward.9} parent=1 // pred_check
      _
    $region15: #{forward.9} parent=1 // pred_check_branch
      %53 = sbr.rel (0) target = $region17
    $region16: #{forward.9} parent=1 // pred_region
      %s55 = ssub.s32 512, 512
      %56 = vsyncadd [#allocation8], %s55
      %s57 = sshll.u32 [#allocation7], 4
      %s58 = int_to_ptr.vmem [resolvable:$true] %s57
      %63 = dma.hbm_to_vmem [thread:$0]  %s3, 512, %s58, [#allocation8], 128, 128, 8
    $region17: #{forward.9} parent=1 // pred_fallthru
      _
    // Predicated region
    $region18: #{forward.9} parent=1 // pred_check
      _
    $region19: #{forward.9} parent=1 // pred_check_branch
      %65 = sbr.rel (0) target = $region21
    $region20: #{forward.9} parent=1 // pred_region
      %s67 = ssub.s32 16, 16
      %68 = vsyncadd [#allocation8], %s67
      %s70 = sshll.u32 [#allocation9], 4
      %s71 = int_to_ptr.vmem [resolvable:$true] %s70
      %73 = dma.hbm_to_vmem [thread:$0]  %s4, 16, %s71, [#allocation8]
    $region21: #{forward.9} parent=1 // pred_fallthru
      _
    // Predicated region
    $region22: #{forward.9} parent=1 // pred_check
      _
    $region23: #{forward.9} parent=1 // pred_check_branch
      %75 = sbr.rel (0) target = $region25
    $region24: #{forward.9} parent=1 // pred_region
      %s77 = ssub.s32 16, 16
      %78 = vsyncadd [#allocation11], %s77
      %s80 = sshll.u32 [#allocation10], 4
      %s81 = int_to_ptr.vmem [resolvable:$true] %s80
      %83 = dma.hbm_to_vmem [thread:$0]  %s5, 16, %s81, [#allocation11]
    $region25: #{forward.9} parent=1 // pred_fallthru
      _
    // Predicated region
    $region26: #{forward.9} parent=1 // pred_check
      _
    $region27: #{forward.9} parent=1 // pred_check_branch
      %85 = sbr.rel (0) target = $region29
    $region28: #{forward.9} parent=1 // pred_region
      %s87 = ssub.s32 16, 16
      %88 = vsyncadd [#allocation11], %s87
      %s90 = sshll.u32 [#allocation12], 4
      %s91 = int_to_ptr.vmem [resolvable:$true] %s90
      %93 = dma.hbm_to_vmem [thread:$0]  %s6, 16, %s91, [#allocation11]
    $region29: #{forward.9} parent=1 // pred_fallthru
      _
    // Predicated region
    $region30: #{forward.9} parent=1 // pred_check
      _
    $region31: #{forward.9} parent=1 // pred_check_branch
      %95 = sbr.rel (0) target = $region33
    $region32: #{forward.9} parent=1 // pred_region
      %96 = dma.done [#allocation3], 16
    $region33: #{forward.9} parent=1 // pred_fallthru
      _
    // Predicated region
    $region34: #{forward.9} parent=1 // pred_check
      _
    $region35: #{forward.9} parent=1 // pred_check_branch
      %98 = sbr.rel (0) target = $region37
    $region36: #{forward.9} parent=1 // pred_region
      %99 = dma.done [#allocation5], 512
    $region37: #{forward.9} parent=1 // pred_fallthru
      _
    // Predicated region
    $region38: #{forward.9} parent=1 // pred_check
      _
    $region39: #{forward.9} parent=1 // pred_check_branch
      %101 = sbr.rel (0) target = $region41
    $region40: #{forward.9} parent=1 // pred_region
      %102 = dma.done [#allocation5], 512
    $region41: #{forward.9} parent=1 // pred_fallthru
      _
    // Predicated region
    $region42: #{forward.9} parent=1 // pred_check
      _
    $region43: #{forward.9} parent=1 // pred_check_branch
      %104 = sbr.rel (0) target = $region45
    $region44: #{forward.9} parent=1 // pred_region
      %105 = dma.done [#allocation8], 512
    $region45: #{forward.9} parent=1 // pred_fallthru
      _
    // Predicated region
    $region46: #{forward.9} parent=1 // pred_check
      _
    $region47: #{forward.9} parent=1 // pred_check_branch
      %107 = sbr.rel (0) target = $region49
    $region48: #{forward.9} parent=1 // pred_region
      %108 = dma.done [#allocation8], 16
    $region49: #{forward.9} parent=1 // pred_fallthru
      _
    // Predicated region
    $region50: #{forward.9} parent=1 // pred_check
      _
    $region51: #{forward.9} parent=1 // pred_check_branch
      %110 = sbr.rel (0) target = $region53
    $region52: #{forward.9} parent=1 // pred_region
      %111 = dma.done [#allocation11], 16
    $region53: #{forward.9} parent=1 // pred_fallthru
      _
    // Predicated region
    $region54: #{forward.9} parent=1 // pred_check
      _
    $region55: #{forward.9} parent=1 // pred_check_branch
      %113 = sbr.rel (0) target = $region57
    $region56: #{forward.9} parent=1 // pred_region
      %114 = dma.done [#allocation11], 16
    $region57: #{forward.9} parent=1 // pred_fallthru
      _
    %v115 = vld [vmem:[#allocation2] sm:$0x1]
    %v116 = vld [vmem:[#allocation4] sm:$0xff]
    %v117 = vld [vmem:[#allocation4 + $0x8] sm:$0xff]
    %v118 = vld [vmem:[#allocation4 + $0x10] sm:$0xff]
    %v119 = vld [vmem:[#allocation4 + $0x18] sm:$0xff]
    %v120 = vld [vmem:[#allocation9] sm:$0x1]
    %vm121 = vcmask 261120
    %v123 = vsel %vm121, %v115, 0
    %125 = vmatprep.subr.mxu0 0.0
    %126 = vmatpush1.msra.mxu0 0.0
    %127 = vmatprep.subr.mxu0 0.0
    %128 = vmatpush1.msra.mxu0 0.0
    %129 = vmatprep.subr.mxu0 0.0
    %130 = vmatpush1.msra.mxu0 0.0
    %131 = vmatprep.subr.mxu0 0.0
    %132 = vmatpush1.msra.mxu0 0.0
    %133 = vmatprep.subr.mxu0 0.0
    %134 = vmatpush1.msra.mxu0 0.0
    %135 = vmatprep.subr.mxu0 0.0
    %136 = vmatpush1.msra.mxu0 0.0
    %137 = vmatprep.subr.mxu0 0.0
    %138 = vmatpush1.msra.mxu0 0.0
    %139 = vmatprep.subr.mxu0 0.0
    %140 = vmatpush1.msra.mxu0 0.0
    %141 = vmatprep.subr.mxu0 0.0
    %142 = vmatpush1.msra.mxu0 0.0
    %143 = vmatprep.subr.mxu0 0.0
    %144 = vmatpush1.msra.mxu0 0.0
    %145 = vmatprep.subr.mxu0 0.0
    %146 = vmatpush1.msra.mxu0 0.0
    %147 = vmatprep.subr.mxu0 0.0
    %148 = vmatpush1.msra.mxu0 0.0
    %149 = vmatprep.subr.mxu0 0.0
    %150 = vmatpush1.msra.mxu0 %v119
    %151 = vmatprep.subr.mxu0 0.0
    %152 = vmatpush1.msra.mxu0 %v118
    %153 = vmatprep.subr.mxu0 0.0
    %154 = vmatpush1.msra.mxu0 %v117
    %155 = vmatprep.subr.mxu0 0.0
    %156 = vmatpush1.msra.mxu0 %v116
    %157 = vmatprep.subr.mxu0 0.0
    %158 = vmatpush2.msra.mxu0 0.0
    %159 = vmatprep.subr.mxu0 0.0
    %160 = vmatpush2.msra.mxu0 0.0
    %161 = vmatprep.subr.mxu0 0.0
    %162 = vmatpush2.msra.mxu0 0.0
    %163 = vmatprep.subr.mxu0 0.0
    %164 = vmatpush2.msra.mxu0 0.0
    %165 = vmatprep.subr.mxu0 0.0
    %166 = vmatpush2.msra.mxu0 0.0
    %167 = vmatprep.subr.mxu0 0.0
    %168 = vmatpush2.msra.mxu0 0.0
    %169 = vmatprep.subr.mxu0 0.0
    %170 = vmatpush2.msra.mxu0 0.0
    %171 = vmatprep.subr.mxu0 0.0
    %172 = vmatpush2.msra.mxu0 0.0
    %173 = vmatprep.subr.mxu0 0.0
    %174 = vmatpush2.msra.mxu0 0.0
    %175 = vmatprep.subr.mxu0 0.0
    %176 = vmatpush2.msra.mxu0 0.0
    %177 = vmatprep.subr.mxu0 0.0
    %178 = vmatpush2.msra.mxu0 0.0
    %179 = vmatprep.subr.mxu0 0.0
    %180 = vmatpush2.msra.mxu0 0.0
    %181 = vmatprep.subr.mxu0 0.0
    %182 = vmatpush2.msra.mxu0 0.0
    %183 = vmatprep.subr.mxu0 0.0
    %184 = vmatpush2.msra.mxu0 0.0
    %185 = vmatprep.subr.mxu0 0.0
    %186 = vmatpush2.msra.mxu0 0.0
    %187 = vmatprep.subr.mxu0 0.0
    %188 = vmatpush2.msra.mxu0 0.0
    %189 = vmatprep.mubr.f32.mxu0 0.0
    %190 = vmatmul.mubr.f32.gmra.mxu0 %v123
    %v191 = vpop.f32.mrf.mxu0
    %v192 = vadd.f32 %v120, %v191
    %v193 = vpop.f32.mrf.mxu0
    %194 = vdwg.mxu0
    %v195 = vxor.u32 %v192, 2147483648
    %v196 = vmul.f32 %v195, 1.442695
    %v197 = vpow.pop %v196
    %v198 = vadd.f32 %v197, 1.0
    %v199 = vrcp.pop %v198
    %v200 = vmul.f32 1.0, %v199
    %v201 = vld [vmem:[#allocation6] sm:$0xff]
    %v202 = vld [vmem:[#allocation6 + $0x8] sm:$0xff]
    %v203 = vld [vmem:[#allocation6 + $0x10] sm:$0xff]
    %v204 = vld [vmem:[#allocation6 + $0x18] sm:$0xff]
    %v205 = vld [vmem:[#allocation10] sm:$0x1]
    %206 = vmatprep.subr.mxu0 0.0
    %207 = vmatpush1.msra.mxu0 0.0
    %208 = vmatprep.subr.mxu0 0.0
    %209 = vmatpush1.msra.mxu0 0.0
    %210 = vmatprep.subr.mxu0 0.0
    %211 = vmatpush1.msra.mxu0 0.0
    %212 = vmatprep.subr.mxu0 0.0
    %213 = vmatpush1.msra.mxu0 0.0
    %214 = vmatprep.subr.mxu0 0.0
    %215 = vmatpush1.msra.mxu0 0.0
    %216 = vmatprep.subr.mxu0 0.0
    %217 = vmatpush1.msra.mxu0 0.0
    %218 = vmatprep.subr.mxu0 0.0
    %219 = vmatpush1.msra.mxu0 0.0
    %220 = vmatprep.subr.mxu0 0.0
    %221 = vmatpush1.msra.mxu0 0.0
    %222 = vmatprep.subr.mxu0 0.0
    %223 = vmatpush1.msra.mxu0 0.0
    %224 = vmatprep.subr.mxu0 0.0
    %225 = vmatpush1.msra.mxu0 0.0
    %226 = vmatprep.subr.mxu0 0.0
    %227 = vmatpush1.msra.mxu0 0.0
    %228 = vmatprep.subr.mxu0 0.0
    %229 = vmatpush1.msra.mxu0 0.0
    %230 = vmatprep.subr.mxu0 0.0
    %231 = vmatpush1.msra.mxu0 %v204
    %232 = vmatprep.subr.mxu0 0.0
    %233 = vmatpush1.msra.mxu0 %v203
    %234 = vmatprep.subr.mxu0 0.0
    %235 = vmatpush1.msra.mxu0 %v202
    %236 = vmatprep.subr.mxu0 0.0
    %237 = vmatpush1.msra.mxu0 %v201
    %238 = vmatprep.subr.mxu0 0.0
    %239 = vmatpush2.msra.mxu0 0.0
    %240 = vmatprep.subr.mxu0 0.0
    %241 = vmatpush2.msra.mxu0 0.0
    %242 = vmatprep.subr.mxu0 0.0
    %243 = vmatpush2.msra.mxu0 0.0
    %244 = vmatprep.subr.mxu0 0.0
    %245 = vmatpush2.msra.mxu0 0.0
    %246 = vmatprep.subr.mxu0 0.0
    %247 = vmatpush2.msra.mxu0 0.0
    %248 = vmatprep.subr.mxu0 0.0
    %249 = vmatpush2.msra.mxu0 0.0
    %250 = vmatprep.subr.mxu0 0.0
    %251 = vmatpush2.msra.mxu0 0.0
    %252 = vmatprep.subr.mxu0 0.0
    %253 = vmatpush2.msra.mxu0 0.0
    %254 = vmatprep.subr.mxu0 0.0
    %255 = vmatpush2.msra.mxu0 0.0
    %256 = vmatprep.subr.mxu0 0.0
    %257 = vmatpush2.msra.mxu0 0.0
    %258 = vmatprep.subr.mxu0 0.0
    %259 = vmatpush2.msra.mxu0 0.0
    %260 = vmatprep.subr.mxu0 0.0
    %261 = vmatpush2.msra.mxu0 0.0
    %262 = vmatprep.subr.mxu0 0.0
    %263 = vmatpush2.msra.mxu0 0.0
    %264 = vmatprep.subr.mxu0 0.0
    %265 = vmatpush2.msra.mxu0 0.0
    %266 = vmatprep.subr.mxu0 0.0
    %267 = vmatpush2.msra.mxu0 0.0
    %268 = vmatprep.subr.mxu0 0.0
    %269 = vmatpush2.msra.mxu0 0.0
    %270 = vmatprep.mubr.f32.mxu0 0.0
    %271 = vmatmul.mubr.f32.gmra.mxu0 %v123
    %v272 = vpop.f32.mrf.mxu0
    %v273 = vadd.f32 %v205, %v272
    %v274 = vpop.f32.mrf.mxu0
    %275 = vdwg.mxu0
    %v276 = vxor.u32 %v273, 2147483648
    %v277 = vmul.f32 %v276, 1.442695
    %v278 = vpow.pop %v277
    %v279 = vadd.f32 %v278, 1.0
    %v280 = vrcp.pop %v279
    %v281 = vmul.f32 1.0, %v280
    %v282 = vld [vmem:[#allocation7] sm:$0xff]
    %v283 = vld [vmem:[#allocation7 + $0x8] sm:$0xff]
    %v284 = vld [vmem:[#allocation7 + $0x10] sm:$0xff]
    %v285 = vld [vmem:[#allocation7 + $0x18] sm:$0xff]
    %v286 = vld [vmem:[#allocation12] sm:$0x1]
    %287 = vmatprep.subr.mxu0 0.0
    %288 = vmatpush1.msra.mxu0 0.0
    %289 = vmatprep.subr.mxu0 0.0
    %290 = vmatpush1.msra.mxu0 0.0
    %291 = vmatprep.subr.mxu0 0.0
    %292 = vmatpush1.msra.mxu0 0.0
    %293 = vmatprep.subr.mxu0 0.0
    %294 = vmatpush1.msra.mxu0 0.0
    %295 = vmatprep.subr.mxu0 0.0
    %296 = vmatpush1.msra.mxu0 0.0
    %297 = vmatprep.subr.mxu0 0.0
    %298 = vmatpush1.msra.mxu0 0.0
    %299 = vmatprep.subr.mxu0 0.0
    %300 = vmatpush1.msra.mxu0 0.0
    %301 = vmatprep.subr.mxu0 0.0
    %302 = vmatpush1.msra.mxu0 0.0
    %303 = vmatprep.subr.mxu0 0.0
    %304 = vmatpush1.msra.mxu0 0.0
    %305 = vmatprep.subr.mxu0 0.0
    %306 = vmatpush1.msra.mxu0 0.0
    %307 = vmatprep.subr.mxu0 0.0
    %308 = vmatpush1.msra.mxu0 0.0
    %309 = vmatprep.subr.mxu0 0.0
    %310 = vmatpush1.msra.mxu0 0.0
    %311 = vmatprep.subr.mxu0 0.0
    %312 = vmatpush1.msra.mxu0 %v285
    %313 = vmatprep.subr.mxu0 0.0
    %314 = vmatpush1.msra.mxu0 %v284
    %315 = vmatprep.subr.mxu0 0.0
    %316 = vmatpush1.msra.mxu0 %v283
    %317 = vmatprep.subr.mxu0 0.0
    %318 = vmatpush1.msra.mxu0 %v282
    %319 = vmatprep.subr.mxu0 0.0
    %320 = vmatpush2.msra.mxu0 0.0
    %321 = vmatprep.subr.mxu0 0.0
    %322 = vmatpush2.msra.mxu0 0.0
    %323 = vmatprep.subr.mxu0 0.0
    %324 = vmatpush2.msra.mxu0 0.0
    %325 = vmatprep.subr.mxu0 0.0
    %326 = vmatpush2.msra.mxu0 0.0
    %327 = vmatprep.subr.mxu0 0.0
    %328 = vmatpush2.msra.mxu0 0.0
    %329 = vmatprep.subr.mxu0 0.0
    %330 = vmatpush2.msra.mxu0 0.0
    %331 = vmatprep.subr.mxu0 0.0
    %332 = vmatpush2.msra.mxu0 0.0
    %333 = vmatprep.subr.mxu0 0.0
    %334 = vmatpush2.msra.mxu0 0.0
    %335 = vmatprep.subr.mxu0 0.0
    %336 = vmatpush2.msra.mxu0 0.0
    %337 = vmatprep.subr.mxu0 0.0
    %338 = vmatpush2.msra.mxu0 0.0
    %339 = vmatprep.subr.mxu0 0.0
    %340 = vmatpush2.msra.mxu0 0.0
    %341 = vmatprep.subr.mxu0 0.0
    %342 = vmatpush2.msra.mxu0 0.0
    %343 = vmatprep.subr.mxu0 0.0
    %344 = vmatpush2.msra.mxu0 0.0
    %345 = vmatprep.subr.mxu0 0.0
    %346 = vmatpush2.msra.mxu0 0.0
    %347 = vmatprep.subr.mxu0 0.0
    %348 = vmatpush2.msra.mxu0 0.0
    %349 = vmatprep.subr.mxu0 0.0
    %350 = vmatpush2.msra.mxu0 0.0
    %351 = vmatprep.mubr.f32.mxu0 0.0
    %352 = vmatmul.mubr.f32.gmra.mxu0 %v123
    %v353 = vpop.f32.mrf.mxu0
    %v354 = vadd.f32 %v286, %v353
    %v355 = vpop.f32.mrf.mxu0
    %356 = vdwg.mxu0
    %v357 = vtanh.pop %v354
    %v358 = vmul.f32 %v200, %v357
    %vm359 = vcmask 253952
    %360 = vst.msk [vmem:[%s7] sm:$0x1] %vm359, %v358
    %v361 = vtanh.pop %v358
    %v362 = vmul.f32 %v281, %v361
    %363 = vst.msk [vmem:[%s8] sm:$0x1] %vm359, %v362
    // Predicated region
    $region58: #{forward.9} parent=1 // pred_check
      _
    $region59: #{forward.9} parent=1 // pred_check_branch
      %365 = sbr.rel (0) target = $region61
    $region60: #{forward.9} parent=1 // pred_region
      _
    $region61: #{forward.9} parent=1 // pred_fallthru
      _
    // Predicated region
    $region62: #{forward.9} parent=1 // pred_check
      _
    $region63: #{forward.9} parent=1 // pred_check_branch
      %367 = sbr.rel (0) target = $region65
    $region64: #{forward.9} parent=1 // pred_region
      _
    $region65: #{forward.9} parent=1 // pred_fallthru
      _
    // Predicated region
    $region66: #{forward.9} parent=1 // pred_check
      _
    $region67: #{forward.9} parent=1 // pred_check_branch
      %369 = sbr.rel (0) target = $region69
    $region68: #{forward.9} parent=1 // pred_region
      _
    $region69: #{forward.9} parent=1 // pred_fallthru
      _
    // Predicated region
    $region70: #{forward.9} parent=1 // pred_check
      _
    $region71: #{forward.9} parent=1 // pred_check_branch
      %371 = sbr.rel (0) target = $region73
    $region72: #{forward.9} parent=1 // pred_region
      _
    $region73: #{forward.9} parent=1 // pred_fallthru
      _
    %372 = vsyncpa [#allocation3], 1
    %373 = vsyncpa [#allocation5], 1
    %374 = vsyncpa [#allocation8], 1
    %375 = vsyncpa [#allocation11], 1

// kernel: forward.8
$region0: #{forward.8}
  #allocation0 [shape = 'u32[]', space=smem, size = 0x4, offset = 0x4, fixed_abs, tag = 'smem constant byte address 0x4 - core index']
  #allocation1 [shape = 'u32[144,128]{1,0:T(1,128)}', space=vmem, size = 0x12000, scoped, tag = 'internal scratch']
  %s0 = inlined_call_operand.vmem [shape: f32[1,1000], index: 0, kind: input, shape index: {}]
  %s1 = inlined_call_operand.vmem [shape: f32[1000,32], index: 1, kind: input, shape index: {}]
  %s2 = inlined_call_operand.vmem [shape: f32[1,32], index: 2, kind: input, shape index: {}]
  %s3 = inlined_call_operand.vmem [shape: f32[1,32], index: 3, kind: output, shape index: {}]
  %s4 = sld [smem:[#allocation0]]
  $region22: #{forward.8} parent=0
    _
  %s6 = ssub.s32 1, %s4
  %s7 = scalar_select 0, %s6, %s4
  // Predicated region
  $region2: #{forward.8} parent=0 // pred_check
    _
  $region3: #{forward.8} parent=0 // pred_check_branch
    %9 = sbr.rel (0) target = $region5
  $region4: #{forward.8} parent=0 // pred_region
    _
  $region5: #{forward.8} parent=0 // pred_fallthru
    _
  // Predicated region
  $region6: #{forward.8} parent=0 // pred_check
    _
  $region7: #{forward.8} parent=0 // pred_check_branch
    %11 = sbr.rel (0) target = $region9
  $region8: #{forward.8} parent=0 // pred_region
    _
  $region9: #{forward.8} parent=0 // pred_fallthru
    _
  // Predicated region
  $region10: #{forward.8} parent=0 // pred_check
    _
  $region11: #{forward.8} parent=0 // pred_check_branch
    %13 = sbr.rel (0) target = $region13
  $region12: #{forward.8} parent=0 // pred_region
    _
  $region13: #{forward.8} parent=0 // pred_fallthru
    _
  %v14 = vld [vmem:[%s0] sm:$0xff]
  %v15 = vld [vmem:[%s1] sm:$0xff]
  %v16 = vld [vmem:[%s1 + $0x8] sm:$0xff]
  %v17 = vld [vmem:[%s1 + $0x10] sm:$0xff]
  %v18 = vld [vmem:[%s1 + $0x18] sm:$0xff]
  %v19 = vld [vmem:[%s1 + $0x20] sm:$0xff]
  %v20 = vld [vmem:[%s1 + $0x28] sm:$0xff]
  %v21 = vld [vmem:[%s1 + $0x30] sm:$0xff]
  %v22 = vld [vmem:[%s1 + $0x38] sm:$0xff]
  %v23 = vld [vmem:[%s1 + $0x40] sm:$0xff]
  %v24 = vld [vmem:[%s1 + $0x48] sm:$0xff]
  %v25 = vld [vmem:[%s1 + $0x50] sm:$0xff]
  %v26 = vld [vmem:[%s1 + $0x58] sm:$0xff]
  %v27 = vld [vmem:[%s1 + $0x60] sm:$0xff]
  %v28 = vld [vmem:[%s1 + $0x68] sm:$0xff]
  %v29 = vld [vmem:[%s1 + $0x70] sm:$0xff]
  %v30 = vld [vmem:[%s1 + $0x78] sm:$0xff]
  %v31 = vld [vmem:[%s1 + $0x80] sm:$0xff]
  %v32 = vld [vmem:[%s1 + $0x88] sm:$0xff]
  %v33 = vld [vmem:[%s1 + $0x90] sm:$0xff]
  %v34 = vld [vmem:[%s1 + $0x98] sm:$0xff]
  %v35 = vld [vmem:[%s1 + $0xa0] sm:$0xff]
  %v36 = vld [vmem:[%s1 + $0xa8] sm:$0xff]
  %v37 = vld [vmem:[%s1 + $0xb0] sm:$0xff]
  %v38 = vld [vmem:[%s1 + $0xb8] sm:$0xff]
  %v39 = vld [vmem:[%s1 + $0xc0] sm:$0xff]
  %v40 = vld [vmem:[%s1 + $0xc8] sm:$0xff]
  %v41 = vld [vmem:[%s1 + $0xd0] sm:$0xff]
  %v42 = vld [vmem:[%s1 + $0xd8] sm:$0xff]
  %v43 = vld [vmem:[%s1 + $0xe0] sm:$0xff]
  %v44 = vld [vmem:[%s1 + $0xe8] sm:$0xff]
  %v45 = vld [vmem:[%s1 + $0xf0] sm:$0xff]
  %v46 = vld [vmem:[%s1 + $0xf8] sm:$0xff]
  %v47 = vld [vmem:[%s1 + $0x100] sm:$0xff]
  %v48 = vld [vmem:[%s1 + $0x108] sm:$0xff]
  %v49 = vld [vmem:[%s1 + $0x110] sm:$0xff]
  %v50 = vld [vmem:[%s1 + $0x118] sm:$0xff]
  %v51 = vld [vmem:[%s1 + $0x120] sm:$0xff]
  %v52 = vld [vmem:[%s1 + $0x128] sm:$0xff]
  %v53 = vld [vmem:[%s1 + $0x130] sm:$0xff]
  %v54 = vld [vmem:[%s1 + $0x138] sm:$0xff]
  %v55 = vld [vmem:[%s1 + $0x140] sm:$0xff]
  %v56 = vld [vmem:[%s1 + $0x148] sm:$0xff]
  %v57 = vld [vmem:[%s1 + $0x150] sm:$0xff]
  %v58 = vld [vmem:[%s1 + $0x158] sm:$0xff]
  %v59 = vld [vmem:[%s1 + $0x160] sm:$0xff]
  %v60 = vld [vmem:[%s1 + $0x168] sm:$0xff]
  %v61 = vld [vmem:[%s1 + $0x170] sm:$0xff]
  %v62 = vld [vmem:[%s1 + $0x178] sm:$0xff]
  %v63 = vld [vmem:[%s1 + $0x180] sm:$0xff]
  %v64 = vld [vmem:[%s1 + $0x188] sm:$0xff]
  %v65 = vld [vmem:[%s1 + $0x190] sm:$0xff]
  %v66 = vld [vmem:[%s1 + $0x198] sm:$0xff]
  %v67 = vld [vmem:[%s1 + $0x1a0] sm:$0xff]
  %v68 = vld [vmem:[%s1 + $0x1a8] sm:$0xff]
  %v69 = vld [vmem:[%s1 + $0x1b0] sm:$0xff]
  %v70 = vld [vmem:[%s1 + $0x1b8] sm:$0xff]
  %v71 = vld [vmem:[%s1 + $0x1c0] sm:$0xff]
  %v72 = vld [vmem:[%s1 + $0x1c8] sm:$0xff]
  %v73 = vld [vmem:[%s1 + $0x1d0] sm:$0xff]
  %v74 = vld [vmem:[%s1 + $0x1d8] sm:$0xff]
  %v75 = vld [vmem:[%s1 + $0x1e0] sm:$0xff]
  %v76 = vld [vmem:[%s1 + $0x1e8] sm:$0xff]
  %v77 = vld [vmem:[%s1 + $0x1f0] sm:$0xff]
  %v78 = vld [vmem:[%s1 + $0x1f8] sm:$0xff]
  %v79 = vld [vmem:[%s1 + $0x200] sm:$0xff]
  %v80 = vld [vmem:[%s1 + $0x208] sm:$0xff]
  %v81 = vld [vmem:[%s1 + $0x210] sm:$0xff]
  %v82 = vld [vmem:[%s1 + $0x218] sm:$0xff]
  %v83 = vld [vmem:[%s1 + $0x220] sm:$0xff]
  %v84 = vld [vmem:[%s1 + $0x228] sm:$0xff]
  %v85 = vld [vmem:[%s1 + $0x230] sm:$0xff]
  %v86 = vld [vmem:[%s1 + $0x238] sm:$0xff]
  %v87 = vld [vmem:[%s1 + $0x240] sm:$0xff]
  %v88 = vld [vmem:[%s1 + $0x248] sm:$0xff]
  %v89 = vld [vmem:[%s1 + $0x250] sm:$0xff]
  %v90 = vld [vmem:[%s1 + $0x258] sm:$0xff]
  %v91 = vld [vmem:[%s1 + $0x260] sm:$0xff]
  %v92 = vld [vmem:[%s1 + $0x268] sm:$0xff]
  %v93 = vld [vmem:[%s1 + $0x270] sm:$0xff]
  %v94 = vld [vmem:[%s1 + $0x278] sm:$0xff]
  %v95 = vld [vmem:[%s1 + $0x280] sm:$0xff]
  %v96 = vld [vmem:[%s1 + $0x288] sm:$0xff]
  %v97 = vld [vmem:[%s1 + $0x290] sm:$0xff]
  %v98 = vld [vmem:[%s1 + $0x298] sm:$0xff]
  %v99 = vld [vmem:[%s1 + $0x2a0] sm:$0xff]
  %v100 = vld [vmem:[%s1 + $0x2a8] sm:$0xff]
  %v101 = vld [vmem:[%s1 + $0x2b0] sm:$0xff]
  %v102 = vld [vmem:[%s1 + $0x2b8] sm:$0xff]
  %v103 = vld [vmem:[%s1 + $0x2c0] sm:$0xff]
  %v104 = vld [vmem:[%s1 + $0x2c8] sm:$0xff]
  %v105 = vld [vmem:[%s1 + $0x2d0] sm:$0xff]
  %v106 = vld [vmem:[%s1 + $0x2d8] sm:$0xff]
  %v107 = vld [vmem:[%s1 + $0x2e0] sm:$0xff]
  %v108 = vld [vmem:[%s1 + $0x2e8] sm:$0xff]
  %v109 = vld [vmem:[%s1 + $0x2f0] sm:$0xff]
  %v110 = vld [vmem:[%s1 + $0x2f8] sm:$0xff]
  %v111 = vld [vmem:[%s1 + $0x300] sm:$0xff]
  %v112 = vld [vmem:[%s1 + $0x308] sm:$0xff]
  %v113 = vld [vmem:[%s1 + $0x310] sm:$0xff]
  %v114 = vld [vmem:[%s1 + $0x318] sm:$0xff]
  %v115 = vld [vmem:[%s1 + $0x320] sm:$0xff]
  %v116 = vld [vmem:[%s1 + $0x328] sm:$0xff]
  %v117 = vld [vmem:[%s1 + $0x330] sm:$0xff]
  %v118 = vld [vmem:[%s1 + $0x338] sm:$0xff]
  %v119 = vld [vmem:[%s1 + $0x340] sm:$0xff]
  %v120 = vld [vmem:[%s1 + $0x348] sm:$0xff]
  %v121 = vld [vmem:[%s1 + $0x350] sm:$0xff]
  %v122 = vld [vmem:[%s1 + $0x358] sm:$0xff]
  %v123 = vld [vmem:[%s1 + $0x360] sm:$0xff]
  %v124 = vld [vmem:[%s1 + $0x368] sm:$0xff]
  %v125 = vld [vmem:[%s1 + $0x370] sm:$0xff]
  %v126 = vld [vmem:[%s1 + $0x378] sm:$0xff]
  %v127 = vld [vmem:[%s1 + $0x380] sm:$0xff]
  %v128 = vld [vmem:[%s1 + $0x388] sm:$0xff]
  %v129 = vld [vmem:[%s1 + $0x390] sm:$0xff]
  %v130 = vld [vmem:[%s1 + $0x398] sm:$0xff]
  %v131 = vld [vmem:[%s1 + $0x3a0] sm:$0xff]
  %v132 = vld [vmem:[%s1 + $0x3a8] sm:$0xff]
  %v133 = vld [vmem:[%s1 + $0x3b0] sm:$0xff]
  %v134 = vld [vmem:[%s1 + $0x3b8] sm:$0xff]
  %v135 = vld [vmem:[%s1 + $0x3c0] sm:$0xff]
  %v136 = vld [vmem:[%s1 + $0x3c8] sm:$0xff]
  %v137 = vld [vmem:[%s1 + $0x3d0] sm:$0xff]
  %v138 = vld [vmem:[%s1 + $0x3d8] sm:$0xff]
  %v139 = vld [vmem:[%s1 + $0x3e0] sm:$0xff]
  %v140 = vld [vmem:[%s2] sm:$0x1]
  %v142 = vlaneseq
  %v143 = vshrl.u32 %v142, 7
  %v144 = vsub.s32 0, %v143
  %v145 = vrot.slane %v14, %v144
  %v146 = vlaneseq
  %v147 = vshrl.u32 %v146, 7
  %v148 = vsub.s32 1, %v147
  %v149 = vrot.slane %v14, %v148
  %v150 = vlaneseq
  %v151 = vshrl.u32 %v150, 7
  %v152 = vsub.s32 2, %v151
  %v153 = vrot.slane %v14, %v152
  %v154 = vlaneseq
  %v155 = vshrl.u32 %v154, 7
  %v156 = vsub.s32 3, %v155
  %v157 = vrot.slane %v14, %v156
  %v158 = vlaneseq
  %v159 = vshrl.u32 %v158, 7
  %v160 = vsub.s32 4, %v159
  %v161 = vrot.slane %v14, %v160
  %v162 = vlaneseq
  %v163 = vshrl.u32 %v162, 7
  %v164 = vsub.s32 5, %v163
  %v165 = vrot.slane %v14, %v164
  %v166 = vlaneseq
  %v167 = vshrl.u32 %v166, 7
  %v168 = vsub.s32 6, %v167
  %v169 = vrot.slane %v14, %v168
  %v170 = vlaneseq
  %v171 = vshrl.u32 %v170, 7
  %v172 = vsub.s32 7, %v171
  %v173 = vrot.slane %v14, %v172
  %vm181 = vcmask 850944
  %v182 = vsel %vm181, %v173, 0
  %184 = vmatprep.subr.mxu0 0.0
  %185 = vmatpush1.msra.mxu0 %v30
  %186 = vmatprep.subr.mxu0 0.0
  %187 = vmatpush1.msra.mxu0 %v29
  %188 = vmatprep.subr.mxu0 0.0
  %189 = vmatpush1.msra.mxu0 %v28
  %190 = vmatprep.subr.mxu0 0.0
  %191 = vmatpush1.msra.mxu0 %v27
  %192 = vmatprep.subr.mxu0 0.0
  %193 = vmatpush1.msra.mxu0 %v26
  %194 = vmatprep.subr.mxu0 0.0
  %195 = vmatpush1.msra.mxu0 %v25
  %196 = vmatprep.subr.mxu0 0.0
  %197 = vmatpush1.msra.mxu0 %v24
  %198 = vmatprep.subr.mxu0 0.0
  %199 = vmatpush1.msra.mxu0 %v23
  %200 = vmatprep.subr.mxu0 0.0
  %201 = vmatpush1.msra.mxu0 %v22
  %202 = vmatprep.subr.mxu0 0.0
  %203 = vmatpush1.msra.mxu0 %v21
  %204 = vmatprep.subr.mxu0 0.0
  %205 = vmatpush1.msra.mxu0 %v20
  %206 = vmatprep.subr.mxu0 0.0
  %207 = vmatpush1.msra.mxu0 %v19
  %208 = vmatprep.subr.mxu0 0.0
  %209 = vmatpush1.msra.mxu0 %v18
  %210 = vmatprep.subr.mxu0 0.0
  %211 = vmatpush1.msra.mxu0 %v17
  %212 = vmatprep.subr.mxu0 0.0
  %213 = vmatpush1.msra.mxu0 %v16
  %214 = vmatprep.subr.mxu0 0.0
  %215 = vmatpush1.msra.mxu0 %v15
  %216 = vmatprep.subr.mxu0 0.0
  %217 = vmatpush2.msra.mxu0 %v46
  %218 = vmatprep.subr.mxu0 0.0
  %219 = vmatpush2.msra.mxu0 %v45
  %220 = vmatprep.subr.mxu0 0.0
  %221 = vmatpush2.msra.mxu0 %v44
  %222 = vmatprep.subr.mxu0 0.0
  %223 = vmatpush2.msra.mxu0 %v43
  %224 = vmatprep.subr.mxu0 0.0
  %225 = vmatpush2.msra.mxu0 %v42
  %226 = vmatprep.subr.mxu0 0.0
  %227 = vmatpush2.msra.mxu0 %v41
  %228 = vmatprep.subr.mxu0 0.0
  %229 = vmatpush2.msra.mxu0 %v40
  %230 = vmatprep.subr.mxu0 0.0
  %231 = vmatpush2.msra.mxu0 %v39
  %232 = vmatprep.subr.mxu0 0.0
  %233 = vmatpush2.msra.mxu0 %v38
  %234 = vmatprep.subr.mxu0 0.0
  %235 = vmatpush2.msra.mxu0 %v37
  %236 = vmatprep.subr.mxu0 0.0
  %237 = vmatpush2.msra.mxu0 %v36
  %238 = vmatprep.subr.mxu0 0.0
  %239 = vmatpush2.msra.mxu0 %v35
  %240 = vmatprep.subr.mxu0 0.0
  %241 = vmatpush2.msra.mxu0 %v34
  %242 = vmatprep.subr.mxu0 0.0
  %243 = vmatpush2.msra.mxu0 %v33
  %244 = vmatprep.subr.mxu0 0.0
  %245 = vmatpush2.msra.mxu0 %v32
  %246 = vmatprep.subr.mxu0 0.0
  %247 = vmatpush2.msra.mxu0 %v31
  %248 = vmatprep.mubr.f32.mxu0 %v149
  %249 = vmatmul.mubr.f32.gmra.mxu0 %v145
  %v250 = vpop.f32.mrf.mxu0
  %v251 = vadd.f32 %v140, %v250
  %v252 = vpop.f32.mrf.mxu0
  %253 = vdwg.mxu0
  %254 = vmatprep.subr.mxu0 0.0
  %255 = vmatpush1.msra.mxu0 %v62
  %256 = vmatprep.subr.mxu0 0.0
  %257 = vmatpush1.msra.mxu0 %v61
  %258 = vmatprep.subr.mxu0 0.0
  %259 = vmatpush1.msra.mxu0 %v60
  %260 = vmatprep.subr.mxu0 0.0
  %261 = vmatpush1.msra.mxu0 %v59
  %262 = vmatprep.subr.mxu0 0.0
  %263 = vmatpush1.msra.mxu0 %v58
  %264 = vmatprep.subr.mxu0 0.0
  %265 = vmatpush1.msra.mxu0 %v57
  %266 = vmatprep.subr.mxu0 0.0
  %267 = vmatpush1.msra.mxu0 %v56
  %268 = vmatprep.subr.mxu0 0.0
  %269 = vmatpush1.msra.mxu0 %v55
  %270 = vmatprep.subr.mxu0 0.0
  %271 = vmatpush1.msra.mxu0 %v54
  %272 = vmatprep.subr.mxu0 0.0
  %273 = vmatpush1.msra.mxu0 %v53
  %274 = vmatprep.subr.mxu0 0.0
  %275 = vmatpush1.msra.mxu0 %v52
  %276 = vmatprep.subr.mxu0 0.0
  %277 = vmatpush1.msra.mxu0 %v51
  %278 = vmatprep.subr.mxu0 0.0
  %279 = vmatpush1.msra.mxu0 %v50
  %280 = vmatprep.subr.mxu0 0.0
  %281 = vmatpush1.msra.mxu0 %v49
  %282 = vmatprep.subr.mxu0 0.0
  %283 = vmatpush1.msra.mxu0 %v48
  %284 = vmatprep.subr.mxu0 0.0
  %285 = vmatpush1.msra.mxu0 %v47
  %286 = vmatprep.subr.mxu0 0.0
  %287 = vmatpush2.msra.mxu0 %v78
  %288 = vmatprep.subr.mxu0 0.0
  %289 = vmatpush2.msra.mxu0 %v77
  %290 = vmatprep.subr.mxu0 0.0
  %291 = vmatpush2.msra.mxu0 %v76
  %292 = vmatprep.subr.mxu0 0.0
  %293 = vmatpush2.msra.mxu0 %v75
  %294 = vmatprep.subr.mxu0 0.0
  %295 = vmatpush2.msra.mxu0 %v74
  %296 = vmatprep.subr.mxu0 0.0
  %297 = vmatpush2.msra.mxu0 %v73
  %298 = vmatprep.subr.mxu0 0.0
  %299 = vmatpush2.msra.mxu0 %v72
  %300 = vmatprep.subr.mxu0 0.0
  %301 = vmatpush2.msra.mxu0 %v71
  %302 = vmatprep.subr.mxu0 0.0
  %303 = vmatpush2.msra.mxu0 %v70
  %304 = vmatprep.subr.mxu0 0.0
  %305 = vmatpush2.msra.mxu0 %v69
  %306 = vmatprep.subr.mxu0 0.0
  %307 = vmatpush2.msra.mxu0 %v68
  %308 = vmatprep.subr.mxu0 0.0
  %309 = vmatpush2.msra.mxu0 %v67
  %310 = vmatprep.subr.mxu0 0.0
  %311 = vmatpush2.msra.mxu0 %v66
  %312 = vmatprep.subr.mxu0 0.0
  %313 = vmatpush2.msra.mxu0 %v65
  %314 = vmatprep.subr.mxu0 0.0
  %315 = vmatpush2.msra.mxu0 %v64
  %316 = vmatprep.subr.mxu0 0.0
  %317 = vmatpush2.msra.mxu0 %v63
  %318 = vmatprep.mubr.f32.mxu0 %v157
  %319 = vmatmul.mubr.f32.gmra.mxu0 %v153
  %v320 = vpop.f32.mrf.mxu0
  %v321 = vadd.f32 %v251, %v320
  %v322 = vpop.f32.mrf.mxu0
  %323 = vdwg.mxu0
  %324 = vmatprep.subr.mxu0 0.0
  %325 = vmatpush1.msra.mxu0 %v94
  %326 = vmatprep.subr.mxu0 0.0
  %327 = vmatpush1.msra.mxu0 %v93
  %328 = vmatprep.subr.mxu0 0.0
  %329 = vmatpush1.msra.mxu0 %v92
  %330 = vmatprep.subr.mxu0 0.0
  %331 = vmatpush1.msra.mxu0 %v91
  %332 = vmatprep.subr.mxu0 0.0
  %333 = vmatpush1.msra.mxu0 %v90
  %334 = vmatprep.subr.mxu0 0.0
  %335 = vmatpush1.msra.mxu0 %v89
  %336 = vmatprep.subr.mxu0 0.0
  %337 = vmatpush1.msra.mxu0 %v88
  %338 = vmatprep.subr.mxu0 0.0
  %339 = vmatpush1.msra.mxu0 %v87
  %340 = vmatprep.subr.mxu0 0.0
  %341 = vmatpush1.msra.mxu0 %v86
  %342 = vmatprep.subr.mxu0 0.0
  %343 = vmatpush1.msra.mxu0 %v85
  %344 = vmatprep.subr.mxu0 0.0
  %345 = vmatpush1.msra.mxu0 %v84
  %346 = vmatprep.subr.mxu0 0.0
  %347 = vmatpush1.msra.mxu0 %v83
  %348 = vmatprep.subr.mxu0 0.0
  %349 = vmatpush1.msra.mxu0 %v82
  %350 = vmatprep.subr.mxu0 0.0
  %351 = vmatpush1.msra.mxu0 %v81
  %352 = vmatprep.subr.mxu0 0.0
  %353 = vmatpush1.msra.mxu0 %v80
  %354 = vmatprep.subr.mxu0 0.0
  %355 = vmatpush1.msra.mxu0 %v79
  %356 = vmatprep.subr.mxu0 0.0
  %357 = vmatpush2.msra.mxu0 %v110
  %358 = vmatprep.subr.mxu0 0.0
  %359 = vmatpush2.msra.mxu0 %v109
  %360 = vmatprep.subr.mxu0 0.0
  %361 = vmatpush2.msra.mxu0 %v108
  %362 = vmatprep.subr.mxu0 0.0
  %363 = vmatpush2.msra.mxu0 %v107
  %364 = vmatprep.subr.mxu0 0.0
  %365 = vmatpush2.msra.mxu0 %v106
  %366 = vmatprep.subr.mxu0 0.0
  %367 = vmatpush2.msra.mxu0 %v105
  %368 = vmatprep.subr.mxu0 0.0
  %369 = vmatpush2.msra.mxu0 %v104
  %370 = vmatprep.subr.mxu0 0.0
  %371 = vmatpush2.msra.mxu0 %v103
  %372 = vmatprep.subr.mxu0 0.0
  %373 = vmatpush2.msra.mxu0 %v102
  %374 = vmatprep.subr.mxu0 0.0
  %375 = vmatpush2.msra.mxu0 %v101
  %376 = vmatprep.subr.mxu0 0.0
  %377 = vmatpush2.msra.mxu0 %v100
  %378 = vmatprep.subr.mxu0 0.0
  %379 = vmatpush2.msra.mxu0 %v99
  %380 = vmatprep.subr.mxu0 0.0
  %381 = vmatpush2.msra.mxu0 %v98
  %382 = vmatprep.subr.mxu0 0.0
  %383 = vmatpush2.msra.mxu0 %v97
  %384 = vmatprep.subr.mxu0 0.0
  %385 = vmatpush2.msra.mxu0 %v96
  %386 = vmatprep.subr.mxu0 0.0
  %387 = vmatpush2.msra.mxu0 %v95
  %388 = vmatprep.mubr.f32.mxu0 %v165
  %389 = vmatmul.mubr.f32.gmra.mxu0 %v161
  %v390 = vpop.f32.mrf.mxu0
  %v391 = vadd.f32 %v321, %v390
  %v392 = vpop.f32.mrf.mxu0
  %393 = vdwg.mxu0
  %394 = vmatprep.subr.mxu0 0.0
  %395 = vmatpush1.msra.mxu0 %v126
  %396 = vmatprep.subr.mxu0 0.0
  %397 = vmatpush1.msra.mxu0 %v125
  %398 = vmatprep.subr.mxu0 0.0
  %399 = vmatpush1.msra.mxu0 %v124
  %400 = vmatprep.subr.mxu0 0.0
  %401 = vmatpush1.msra.mxu0 %v123
  %402 = vmatprep.subr.mxu0 0.0
  %403 = vmatpush1.msra.mxu0 %v122
  %404 = vmatprep.subr.mxu0 0.0
  %405 = vmatpush1.msra.mxu0 %v121
  %406 = vmatprep.subr.mxu0 0.0
  %407 = vmatpush1.msra.mxu0 %v120
  %408 = vmatprep.subr.mxu0 0.0
  %409 = vmatpush1.msra.mxu0 %v119
  %410 = vmatprep.subr.mxu0 0.0
  %411 = vmatpush1.msra.mxu0 %v118
  %412 = vmatprep.subr.mxu0 0.0
  %413 = vmatpush1.msra.mxu0 %v117
  %414 = vmatprep.subr.mxu0 0.0
  %415 = vmatpush1.msra.mxu0 %v116
  %416 = vmatprep.subr.mxu0 0.0
  %417 = vmatpush1.msra.mxu0 %v115
  %418 = vmatprep.subr.mxu0 0.0
  %419 = vmatpush1.msra.mxu0 %v114
  %420 = vmatprep.subr.mxu0 0.0
  %421 = vmatpush1.msra.mxu0 %v113
  %422 = vmatprep.subr.mxu0 0.0
  %423 = vmatpush1.msra.mxu0 %v112
  %424 = vmatprep.subr.mxu0 0.0
  %425 = vmatpush1.msra.mxu0 %v111
  %426 = vmatprep.subr.mxu0 0.0
  %427 = vmatpush2.msra.mxu0 0.0
  %428 = vmatprep.subr.mxu0 0.0
  %429 = vmatpush2.msra.mxu0 0.0
  %430 = vmatprep.subr.mxu0 0.0
  %431 = vmatpush2.msra.mxu0 0.0
  %432 = vmatprep.subr.mxu0 0.0
  %433 = vmatpush2.msra.mxu0 %v139
  %434 = vmatprep.subr.mxu0 0.0
  %435 = vmatpush2.msra.mxu0 %v138
  %436 = vmatprep.subr.mxu0 0.0
  %437 = vmatpush2.msra.mxu0 %v137
  %438 = vmatprep.subr.mxu0 0.0
  %439 = vmatpush2.msra.mxu0 %v136
  %440 = vmatprep.subr.mxu0 0.0
  %441 = vmatpush2.msra.mxu0 %v135
  %442 = vmatprep.subr.mxu0 0.0
  %443 = vmatpush2.msra.mxu0 %v134
  %444 = vmatprep.subr.mxu0 0.0
  %445 = vmatpush2.msra.mxu0 %v133
  %446 = vmatprep.subr.mxu0 0.0
  %447 = vmatpush2.msra.mxu0 %v132
  %448 = vmatprep.subr.mxu0 0.0
  %449 = vmatpush2.msra.mxu0 %v131
  %450 = vmatprep.subr.mxu0 0.0
  %451 = vmatpush2.msra.mxu0 %v130
  %452 = vmatprep.subr.mxu0 0.0
  %453 = vmatpush2.msra.mxu0 %v129
  %454 = vmatprep.subr.mxu0 0.0
  %455 = vmatpush2.msra.mxu0 %v128
  %456 = vmatprep.subr.mxu0 0.0
  %457 = vmatpush2.msra.mxu0 %v127
  %458 = vmatprep.mubr.f32.mxu0 %v182
  %459 = vmatmul.mubr.f32.gmra.mxu0 %v169
  %v460 = vpop.f32.mrf.mxu0
  %v461 = vadd.f32 %v391, %v460
  %v462 = vpop.f32.mrf.mxu0
  %463 = vdwg.mxu0
  %vm464 = vcmask 253952
  %465 = vst.msk [vmem:[%s3] sm:$0x1] %vm464, %v461
  // Predicated region
  $region14: #{forward.8} parent=0 // pred_check
    _
  $region15: #{forward.8} parent=0 // pred_check_branch
    %467 = sbr.rel (0) target = $region17
  $region16: #{forward.8} parent=0 // pred_region
    _
  $region17: #{forward.8} parent=0 // pred_fallthru
    _
  // Predicated region
  $region18: #{forward.8} parent=0 // pred_check
    _
  $region19: #{forward.8} parent=0 // pred_check_branch
    %469 = sbr.rel (0) target = $region21
  $region20: #{forward.8} parent=0 // pred_region
    _
  $region21: #{forward.8} parent=0 // pred_fallthru
    _

// kernel: forward.11
$region0: #{forward.11}
  #allocation0 [shape = 'u32[]', space=smem, size = 0x4, offset = 0x4, fixed_abs, tag = 'smem constant byte address 0x4 - core index']
  #allocation1 [shape = 'u32[144,128]{1,0:T(1,128)}', space=vmem, size = 0x12000, scoped, tag = 'internal scratch']
  %s0 = inlined_call_operand.vmem [shape: f32[3,32], index: 0, kind: input, shape index: {}]
  %s1 = inlined_call_operand.vmem [shape: f32[32,32], index: 1, kind: input, shape index: {}]
  %s2 = inlined_call_operand.vmem [shape: f32[32,32], index: 2, kind: input, shape index: {}]
  %s3 = inlined_call_operand.vmem [shape: f32[32,32], index: 3, kind: input, shape index: {}]
  %s4 = inlined_call_operand.vmem [shape: f32[1,32], index: 4, kind: input, shape index: {}]
  %s5 = inlined_call_operand.vmem [shape: f32[1,32], index: 5, kind: input, shape index: {}]
  %s6 = inlined_call_operand.vmem [shape: f32[1,32], index: 6, kind: input, shape index: {}]
  %s7 = inlined_call_operand.vmem [shape: f32[3,32], index: 7, kind: output, shape index: {0}]
  %s8 = inlined_call_operand.vmem [shape: f32[3,32], index: 8, kind: output, shape index: {1}]
  %9 = xla_tuple %s7, %s8
  %s10 = sld [smem:[#allocation0]]
  $region46: #{forward.11} parent=0
    _
  %s12 = ssub.s32 1, %s10
  %s13 = scalar_select 0, %s12, %s10
  // Predicated region
  $region2: #{forward.11} parent=0 // pred_check
    _
  $region3: #{forward.11} parent=0 // pred_check_branch
    %15 = sbr.rel (0) target = $region5
  $region4: #{forward.11} parent=0 // pred_region
    _
  $region5: #{forward.11} parent=0 // pred_fallthru
    _
  // Predicated region
  $region6: #{forward.11} parent=0 // pred_check
    _
  $region7: #{forward.11} parent=0 // pred_check_branch
    %17 = sbr.rel (0) target = $region9
  $region8: #{forward.11} parent=0 // pred_region
    _
  $region9: #{forward.11} parent=0 // pred_fallthru
    _
  // Predicated region
  $region10: #{forward.11} parent=0 // pred_check
    _
  $region11: #{forward.11} parent=0 // pred_check_branch
    %19 = sbr.rel (0) target = $region13
  $region12: #{forward.11} parent=0 // pred_region
    _
  $region13: #{forward.11} parent=0 // pred_fallthru
    _
  // Predicated region
  $region14: #{forward.11} parent=0 // pred_check
    _
  $region15: #{forward.11} parent=0 // pred_check_branch
    %21 = sbr.rel (0) target = $region17
  $region16: #{forward.11} parent=0 // pred_region
    _
  $region17: #{forward.11} parent=0 // pred_fallthru
    _
  // Predicated region
  $region18: #{forward.11} parent=0 // pred_check
    _
  $region19: #{forward.11} parent=0 // pred_check_branch
    %23 = sbr.rel (0) target = $region21
  $region20: #{forward.11} parent=0 // pred_region
    _
  $region21: #{forward.11} parent=0 // pred_fallthru
    _
  // Predicated region
  $region22: #{forward.11} parent=0 // pred_check
    _
  $region23: #{forward.11} parent=0 // pred_check_branch
    %25 = sbr.rel (0) target = $region25
  $region24: #{forward.11} parent=0 // pred_region
    _
  $region25: #{forward.11} parent=0 // pred_fallthru
    _
  // Predicated region
  $region26: #{forward.11} parent=0 // pred_check
    _
  $region27: #{forward.11} parent=0 // pred_check_branch
    %27 = sbr.rel (0) target = $region29
  $region28: #{forward.11} parent=0 // pred_region
    _
  $region29: #{forward.11} parent=0 // pred_fallthru
    _
  %v28 = vld [vmem:[%s0] sm:$0x7]
  %v29 = vld [vmem:[%s1] sm:$0xff]
  %v30 = vld [vmem:[%s1 + $0x8] sm:$0xff]
  %v31 = vld [vmem:[%s1 + $0x10] sm:$0xff]
  %v32 = vld [vmem:[%s1 + $0x18] sm:$0xff]
  %v33 = vld [vmem:[%s4] sm:$0x1]
  %v35 = vlaneseq
  %v36 = vshrl.u32 %v35, 7
  %v37 = vsub.s32 0, %v36
  %v38 = vrot.slane %v33, %v37
  %vm40 = vcmask 261120
  %v42 = vsel %vm40, %v28, 0
  %44 = vmatprep.subr.mxu0 0.0
  %45 = vmatpush1.msra.mxu0 0.0
  %46 = vmatprep.subr.mxu0 0.0
  %47 = vmatpush1.msra.mxu0 0.0
  %48 = vmatprep.subr.mxu0 0.0
  %49 = vmatpush1.msra.mxu0 0.0
  %50 = vmatprep.subr.mxu0 0.0
  %51 = vmatpush1.msra.mxu0 0.0
  %52 = vmatprep.subr.mxu0 0.0
  %53 = vmatpush1.msra.mxu0 0.0
  %54 = vmatprep.subr.mxu0 0.0
  %55 = vmatpush1.msra.mxu0 0.0
  %56 = vmatprep.subr.mxu0 0.0
  %57 = vmatpush1.msra.mxu0 0.0
  %58 = vmatprep.subr.mxu0 0.0
  %59 = vmatpush1.msra.mxu0 0.0
  %60 = vmatprep.subr.mxu0 0.0
  %61 = vmatpush1.msra.mxu0 0.0
  %62 = vmatprep.subr.mxu0 0.0
  %63 = vmatpush1.msra.mxu0 0.0
  %64 = vmatprep.subr.mxu0 0.0
  %65 = vmatpush1.msra.mxu0 0.0
  %66 = vmatprep.subr.mxu0 0.0
  %67 = vmatpush1.msra.mxu0 0.0
  %68 = vmatprep.subr.mxu0 0.0
  %69 = vmatpush1.msra.mxu0 %v32
  %70 = vmatprep.subr.mxu0 0.0
  %71 = vmatpush1.msra.mxu0 %v31
  %72 = vmatprep.subr.mxu0 0.0
  %73 = vmatpush1.msra.mxu0 %v30
  %74 = vmatprep.subr.mxu0 0.0
  %75 = vmatpush1.msra.mxu0 %v29
  %76 = vmatprep.subr.mxu0 0.0
  %77 = vmatpush2.msra.mxu0 0.0
  %78 = vmatprep.subr.mxu0 0.0
  %79 = vmatpush2.msra.mxu0 0.0
  %80 = vmatprep.subr.mxu0 0.0
  %81 = vmatpush2.msra.mxu0 0.0
  %82 = vmatprep.subr.mxu0 0.0
  %83 = vmatpush2.msra.mxu0 0.0
  %84 = vmatprep.subr.mxu0 0.0
  %85 = vmatpush2.msra.mxu0 0.0
  %86 = vmatprep.subr.mxu0 0.0
  %87 = vmatpush2.msra.mxu0 0.0
  %88 = vmatprep.subr.mxu0 0.0
  %89 = vmatpush2.msra.mxu0 0.0
  %90 = vmatprep.subr.mxu0 0.0
  %91 = vmatpush2.msra.mxu0 0.0
  %92 = vmatprep.subr.mxu0 0.0
  %93 = vmatpush2.msra.mxu0 0.0
  %94 = vmatprep.subr.mxu0 0.0
  %95 = vmatpush2.msra.mxu0 0.0
  %96 = vmatprep.subr.mxu0 0.0
  %97 = vmatpush2.msra.mxu0 0.0
  %98 = vmatprep.subr.mxu0 0.0
  %99 = vmatpush2.msra.mxu0 0.0
  %100 = vmatprep.subr.mxu0 0.0
  %101 = vmatpush2.msra.mxu0 0.0
  %102 = vmatprep.subr.mxu0 0.0
  %103 = vmatpush2.msra.mxu0 0.0
  %104 = vmatprep.subr.mxu0 0.0
  %105 = vmatpush2.msra.mxu0 0.0
  %106 = vmatprep.subr.mxu0 0.0
  %107 = vmatpush2.msra.mxu0 0.0
  %108 = vmatprep.mubr.f32.mxu0 0.0
  %109 = vmatmul.mubr.f32.gmra.mxu0 %v42
  %v110 = vpop.f32.mrf.mxu0
  %v111 = vadd.f32 %v38, %v110
  %v112 = vpop.f32.mrf.mxu0
  %113 = vdwg.mxu0
  %v114 = vxor.u32 %v111, 2147483648
  %v115 = vmul.f32 %v114, 1.442695
  %v116 = vpow.pop %v115
  %v117 = vadd.f32 %v116, 1.0
  %v118 = vrcp.pop %v117
  %v119 = vmul.f32 1.0, %v118
  %v120 = vld [vmem:[%s2] sm:$0xff]
  %v121 = vld [vmem:[%s2 + $0x8] sm:$0xff]
  %v122 = vld [vmem:[%s2 + $0x10] sm:$0xff]
  %v123 = vld [vmem:[%s2 + $0x18] sm:$0xff]
  %v124 = vld [vmem:[%s5] sm:$0x1]
  %v126 = vlaneseq
  %v127 = vshrl.u32 %v126, 7
  %v128 = vsub.s32 0, %v127
  %v129 = vrot.slane %v124, %v128
  %131 = vmatprep.subr.mxu0 0.0
  %132 = vmatpush1.msra.mxu0 0.0
  %133 = vmatprep.subr.mxu0 0.0
  %134 = vmatpush1.msra.mxu0 0.0
  %135 = vmatprep.subr.mxu0 0.0
  %136 = vmatpush1.msra.mxu0 0.0
  %137 = vmatprep.subr.mxu0 0.0
  %138 = vmatpush1.msra.mxu0 0.0
  %139 = vmatprep.subr.mxu0 0.0
  %140 = vmatpush1.msra.mxu0 0.0
  %141 = vmatprep.subr.mxu0 0.0
  %142 = vmatpush1.msra.mxu0 0.0
  %143 = vmatprep.subr.mxu0 0.0
  %144 = vmatpush1.msra.mxu0 0.0
  %145 = vmatprep.subr.mxu0 0.0
  %146 = vmatpush1.msra.mxu0 0.0
  %147 = vmatprep.subr.mxu0 0.0
  %148 = vmatpush1.msra.mxu0 0.0
  %149 = vmatprep.subr.mxu0 0.0
  %150 = vmatpush1.msra.mxu0 0.0
  %151 = vmatprep.subr.mxu0 0.0
  %152 = vmatpush1.msra.mxu0 0.0
  %153 = vmatprep.subr.mxu0 0.0
  %154 = vmatpush1.msra.mxu0 0.0
  %155 = vmatprep.subr.mxu0 0.0
  %156 = vmatpush1.msra.mxu0 %v123
  %157 = vmatprep.subr.mxu0 0.0
  %158 = vmatpush1.msra.mxu0 %v122
  %159 = vmatprep.subr.mxu0 0.0
  %160 = vmatpush1.msra.mxu0 %v121
  %161 = vmatprep.subr.mxu0 0.0
  %162 = vmatpush1.msra.mxu0 %v120
  %163 = vmatprep.subr.mxu0 0.0
  %164 = vmatpush2.msra.mxu0 0.0
  %165 = vmatprep.subr.mxu0 0.0
  %166 = vmatpush2.msra.mxu0 0.0
  %167 = vmatprep.subr.mxu0 0.0
  %168 = vmatpush2.msra.mxu0 0.0
  %169 = vmatprep.subr.mxu0 0.0
  %170 = vmatpush2.msra.mxu0 0.0
  %171 = vmatprep.subr.mxu0 0.0
  %172 = vmatpush2.msra.mxu0 0.0
  %173 = vmatprep.subr.mxu0 0.0
  %174 = vmatpush2.msra.mxu0 0.0
  %175 = vmatprep.subr.mxu0 0.0
  %176 = vmatpush2.msra.mxu0 0.0
  %177 = vmatprep.subr.mxu0 0.0
  %178 = vmatpush2.msra.mxu0 0.0
  %179 = vmatprep.subr.mxu0 0.0
  %180 = vmatpush2.msra.mxu0 0.0
  %181 = vmatprep.subr.mxu0 0.0
  %182 = vmatpush2.msra.mxu0 0.0
  %183 = vmatprep.subr.mxu0 0.0
  %184 = vmatpush2.msra.mxu0 0.0
  %185 = vmatprep.subr.mxu0 0.0
  %186 = vmatpush2.msra.mxu0 0.0
  %187 = vmatprep.subr.mxu0 0.0
  %188 = vmatpush2.msra.mxu0 0.0
  %189 = vmatprep.subr.mxu0 0.0
  %190 = vmatpush2.msra.mxu0 0.0
  %191 = vmatprep.subr.mxu0 0.0
  %192 = vmatpush2.msra.mxu0 0.0
  %193 = vmatprep.subr.mxu0 0.0
  %194 = vmatpush2.msra.mxu0 0.0
  %195 = vmatprep.mubr.f32.mxu0 0.0
  %196 = vmatmul.mubr.f32.gmra.mxu0 %v42
  %v197 = vpop.f32.mrf.mxu0
  %v198 = vadd.f32 %v129, %v197
  %v199 = vpop.f32.mrf.mxu0
  %200 = vdwg.mxu0
  %v201 = vxor.u32 %v198, 2147483648
  %v202 = vmul.f32 %v201, 1.442695
  %v203 = vpow.pop %v202
  %v204 = vadd.f32 %v203, 1.0
  %v205 = vrcp.pop %v204
  %v206 = vmul.f32 1.0, %v205
  %v207 = vld [vmem:[%s3] sm:$0xff]
  %v208 = vld [vmem:[%s3 + $0x8] sm:$0xff]
  %v209 = vld [vmem:[%s3 + $0x10] sm:$0xff]
  %v210 = vld [vmem:[%s3 + $0x18] sm:$0xff]
  %v211 = vld [vmem:[%s6] sm:$0x1]
  %v213 = vlaneseq
  %v214 = vshrl.u32 %v213, 7
  %v215 = vsub.s32 0, %v214
  %v216 = vrot.slane %v211, %v215
  %218 = vmatprep.subr.mxu0 0.0
  %219 = vmatpush1.msra.mxu0 0.0
  %220 = vmatprep.subr.mxu0 0.0
  %221 = vmatpush1.msra.mxu0 0.0
  %222 = vmatprep.subr.mxu0 0.0
  %223 = vmatpush1.msra.mxu0 0.0
  %224 = vmatprep.subr.mxu0 0.0
  %225 = vmatpush1.msra.mxu0 0.0
  %226 = vmatprep.subr.mxu0 0.0
  %227 = vmatpush1.msra.mxu0 0.0
  %228 = vmatprep.subr.mxu0 0.0
  %229 = vmatpush1.msra.mxu0 0.0
  %230 = vmatprep.subr.mxu0 0.0
  %231 = vmatpush1.msra.mxu0 0.0
  %232 = vmatprep.subr.mxu0 0.0
  %233 = vmatpush1.msra.mxu0 0.0
  %234 = vmatprep.subr.mxu0 0.0
  %235 = vmatpush1.msra.mxu0 0.0
  %236 = vmatprep.subr.mxu0 0.0
  %237 = vmatpush1.msra.mxu0 0.0
  %238 = vmatprep.subr.mxu0 0.0
  %239 = vmatpush1.msra.mxu0 0.0
  %240 = vmatprep.subr.mxu0 0.0
  %241 = vmatpush1.msra.mxu0 0.0
  %242 = vmatprep.subr.mxu0 0.0
  %243 = vmatpush1.msra.mxu0 %v210
  %244 = vmatprep.subr.mxu0 0.0
  %245 = vmatpush1.msra.mxu0 %v209
  %246 = vmatprep.subr.mxu0 0.0
  %247 = vmatpush1.msra.mxu0 %v208
  %248 = vmatprep.subr.mxu0 0.0
  %249 = vmatpush1.msra.mxu0 %v207
  %250 = vmatprep.subr.mxu0 0.0
  %251 = vmatpush2.msra.mxu0 0.0
  %252 = vmatprep.subr.mxu0 0.0
  %253 = vmatpush2.msra.mxu0 0.0
  %254 = vmatprep.subr.mxu0 0.0
  %255 = vmatpush2.msra.mxu0 0.0
  %256 = vmatprep.subr.mxu0 0.0
  %257 = vmatpush2.msra.mxu0 0.0
  %258 = vmatprep.subr.mxu0 0.0
  %259 = vmatpush2.msra.mxu0 0.0
  %260 = vmatprep.subr.mxu0 0.0
  %261 = vmatpush2.msra.mxu0 0.0
  %262 = vmatprep.subr.mxu0 0.0
  %263 = vmatpush2.msra.mxu0 0.0
  %264 = vmatprep.subr.mxu0 0.0
  %265 = vmatpush2.msra.mxu0 0.0
  %266 = vmatprep.subr.mxu0 0.0
  %267 = vmatpush2.msra.mxu0 0.0
  %268 = vmatprep.subr.mxu0 0.0
  %269 = vmatpush2.msra.mxu0 0.0
  %270 = vmatprep.subr.mxu0 0.0
  %271 = vmatpush2.msra.mxu0 0.0
  %272 = vmatprep.subr.mxu0 0.0
  %273 = vmatpush2.msra.mxu0 0.0
  %274 = vmatprep.subr.mxu0 0.0
  %275 = vmatpush2.msra.mxu0 0.0
  %276 = vmatprep.subr.mxu0 0.0
  %277 = vmatpush2.msra.mxu0 0.0
  %278 = vmatprep.subr.mxu0 0.0
  %279 = vmatpush2.msra.mxu0 0.0
  %280 = vmatprep.subr.mxu0 0.0
  %281 = vmatpush2.msra.mxu0 0.0
  %282 = vmatprep.mubr.f32.mxu0 0.0
  %283 = vmatmul.mubr.f32.gmra.mxu0 %v42
  %v284 = vpop.f32.mrf.mxu0
  %v285 = vadd.f32 %v216, %v284
  %v286 = vpop.f32.mrf.mxu0
  %287 = vdwg.mxu0
  %v288 = vtanh.pop %v285
  %v289 = vmul.f32 %v119, %v288
  %vm290 = vcmask 256000
  %291 = vst.msk [vmem:[%s7] sm:$0x7] %vm290, %v289
  %v292 = vtanh.pop %v289
  %v293 = vmul.f32 %v206, %v292
  %294 = vst.msk [vmem:[%s8] sm:$0x7] %vm290, %v293
  // Predicated region
  $region30: #{forward.11} parent=0 // pred_check
    _
  $region31: #{forward.11} parent=0 // pred_check_branch
    %296 = sbr.rel (0) target = $region33
  $region32: #{forward.11} parent=0 // pred_region
    _
  $region33: #{forward.11} parent=0 // pred_fallthru
    _
  // Predicated region
  $region34: #{forward.11} parent=0 // pred_check
    _
  $region35: #{forward.11} parent=0 // pred_check_branch
    %298 = sbr.rel (0) target = $region37
  $region36: #{forward.11} parent=0 // pred_region
    _
  $region37: #{forward.11} parent=0 // pred_fallthru
    _
  // Predicated region
  $region38: #{forward.11} parent=0 // pred_check
    _
  $region39: #{forward.11} parent=0 // pred_check_branch
    %300 = sbr.rel (0) target = $region41
  $region40: #{forward.11} parent=0 // pred_region
    _
  $region41: #{forward.11} parent=0 // pred_fallthru
    _
  // Predicated region
  $region42: #{forward.11} parent=0 // pred_check
    _
  $region43: #{forward.11} parent=0 // pred_check_branch
    %302 = sbr.rel (0) target = $region45
  $region44: #{forward.11} parent=0 // pred_region
    _
  $region45: #{forward.11} parent=0 // pred_fallthru
    _

// kernel: forward.7
$region0: #{forward.7}
  #allocation0 [shape = 'u32[]', space=smem, size = 0x4, offset = 0x4, fixed_abs, tag = 'smem constant byte address 0x4 - core index']
  #allocation1 [shape = 'u32[144,128]{1,0:T(1,128)}', space=vmem, size = 0x12000, scoped, tag = 'internal scratch']
  %s0 = inlined_call_operand.vmem [shape: f32[1,768], index: 0, kind: input, shape index: {}]
  %s1 = inlined_call_operand.vmem [shape: bf16[768,1000], index: 1, kind: input, shape index: {}]
  %s2 = inlined_call_operand.vmem [shape: f32[1,1000], index: 2, kind: input, shape index: {}]
  %s3 = inlined_call_operand.vmem [shape: f32[1,1000], index: 3, kind: output, shape index: {}]
  %s4 = sld [smem:[#allocation0]]
  $region22: #{forward.7} parent=0
    _
  %s6 = ssub.s32 1, %s4
  %s7 = scalar_select 0, %s6, %s4
  // Predicated region
  $region2: #{forward.7} parent=0 // pred_check
    _
  $region3: #{forward.7} parent=0 // pred_check_branch
    %9 = sbr.rel (0) target = $region5
  $region4: #{forward.7} parent=0 // pred_region
    _
  $region5: #{forward.7} parent=0 // pred_fallthru
    _
  // Predicated region
  $region6: #{forward.7} parent=0 // pred_check
    _
  $region7: #{forward.7} parent=0 // pred_check_branch
    %11 = sbr.rel (0) target = $region9
  $region8: #{forward.7} parent=0 // pred_region
    _
  $region9: #{forward.7} parent=0 // pred_fallthru
    _
  // Predicated region
  $region10: #{forward.7} parent=0 // pred_check
    _
  $region11: #{forward.7} parent=0 // pred_check_branch
    %13 = sbr.rel (0) target = $region13
  $region12: #{forward.7} parent=0 // pred_region
    _
  $region13: #{forward.7} parent=0 // pred_fallthru
    _
  %v14 = vld [vmem:[%s0] sm:$0x3f]
  %v16 = vlaneseq
  %v17 = vshrl.u32 %v16, 7
  %v18 = vsub.s32 0, %v17
  %v19 = vrot.slane %v14, %v18
  %v20 = vlaneseq
  %v21 = vshrl.u32 %v20, 7
  %v22 = vsub.s32 1, %v21
  %v23 = vrot.slane %v14, %v22
  %v24 = vlaneseq
  %v25 = vshrl.u32 %v24, 7
  %v26 = vsub.s32 2, %v25
  %v27 = vrot.slane %v14, %v26
  %v28 = vlaneseq
  %v29 = vshrl.u32 %v28, 7
  %v30 = vsub.s32 3, %v29
  %v31 = vrot.slane %v14, %v30
  %v32 = vlaneseq
  %v33 = vshrl.u32 %v32, 7
  %v34 = vsub.s32 4, %v33
  %v35 = vrot.slane %v14, %v34
  %v36 = vlaneseq
  %v37 = vshrl.u32 %v36, 7
  %v38 = vsub.s32 5, %v37
  %v39 = vrot.slane %v14, %v38
  %v46 = vpack.c.bf16 %v19, %v19
  %v47 = vpack.c.bf16 %v23, %v23
  %v48 = vpack.c.bf16 %v27, %v27
  %v49 = vpack.c.bf16 %v31, %v31
  %v50 = vpack.c.bf16 %v35, %v35
  %v51 = vpack.c.bf16 %v39, %v39
  %v52 = vld [vmem:[%s1] sm:$0xff]
  %v53 = vld [vmem:[%s1 + $0x8] sm:$0xff]
  %v54 = vld [vmem:[%s1 + $0x10] sm:$0xff]
  %v55 = vld [vmem:[%s1 + $0x18] sm:$0xff]
  %v56 = vld [vmem:[%s1 + $0x20] sm:$0xff]
  %v57 = vld [vmem:[%s1 + $0x28] sm:$0xff]
  %v58 = vld [vmem:[%s1 + $0x30] sm:$0xff]
  %v59 = vld [vmem:[%s1 + $0x38] sm:$0xff]
  %v60 = vld [vmem:[%s1 + $0x40] sm:$0xff]
  %v61 = vld [vmem:[%s1 + $0x48] sm:$0xff]
  %v62 = vld [vmem:[%s1 + $0x50] sm:$0xff]
  %v63 = vld [vmem:[%s1 + $0x58] sm:$0xff]
  %v64 = vld [vmem:[%s1 + $0x60] sm:$0xff]
  %v65 = vld [vmem:[%s1 + $0x68] sm:$0xff]
  %v66 = vld [vmem:[%s1 + $0x70] sm:$0xff]
  %v67 = vld [vmem:[%s1 + $0x78] sm:$0xff]
  %v68 = vld [vmem:[%s1 + $0x80] sm:$0xff]
  %v69 = vld [vmem:[%s1 + $0x88] sm:$0xff]
  %v70 = vld [vmem:[%s1 + $0x90] sm:$0xff]
  %v71 = vld [vmem:[%s1 + $0x98] sm:$0xff]
  %v72 = vld [vmem:[%s1 + $0xa0] sm:$0xff]
  %v73 = vld [vmem:[%s1 + $0xa8] sm:$0xff]
  %v74 = vld [vmem:[%s1 + $0xb0] sm:$0xff]
  %v75 = vld [vmem:[%s1 + $0xb8] sm:$0xff]
  %v76 = vld [vmem:[%s1 + $0xc0] sm:$0xff]
  %v77 = vld [vmem:[%s1 + $0xc8] sm:$0xff]
  %v78 = vld [vmem:[%s1 + $0xd0] sm:$0xff]
  %v79 = vld [vmem:[%s1 + $0xd8] sm:$0xff]
  %v80 = vld [vmem:[%s1 + $0xe0] sm:$0xff]
  %v81 = vld [vmem:[%s1 + $0xe8] sm:$0xff]
  %v82 = vld [vmem:[%s1 + $0xf0] sm:$0xff]
  %v83 = vld [vmem:[%s1 + $0xf8] sm:$0xff]
  %v84 = vld [vmem:[%s1 + $0x100] sm:$0xff]
  %v85 = vld [vmem:[%s1 + $0x108] sm:$0xff]
  %v86 = vld [vmem:[%s1 + $0x110] sm:$0xff]
  %v87 = vld [vmem:[%s1 + $0x118] sm:$0xff]
  %v88 = vld [vmem:[%s1 + $0x120] sm:$0xff]
  %v89 = vld [vmem:[%s1 + $0x128] sm:$0xff]
  %v90 = vld [vmem:[%s1 + $0x130] sm:$0xff]
  %v91 = vld [vmem:[%s1 + $0x138] sm:$0xff]
  %v92 = vld [vmem:[%s1 + $0x140] sm:$0xff]
  %v93 = vld [vmem:[%s1 + $0x148] sm:$0xff]
  %v94 = vld [vmem:[%s1 + $0x150] sm:$0xff]
  %v95 = vld [vmem:[%s1 + $0x158] sm:$0xff]
  %v96 = vld [vmem:[%s1 + $0x160] sm:$0xff]
  %v97 = vld [vmem:[%s1 + $0x168] sm:$0xff]
  %v98 = vld [vmem:[%s1 + $0x170] sm:$0xff]
  %v99 = vld [vmem:[%s1 + $0x178] sm:$0xff]
  %v100 = vld [vmem:[%s1 + $0x180] sm:$0xff]
  %v101 = vld [vmem:[%s1 + $0x188] sm:$0xff]
  %v102 = vld [vmem:[%s1 + $0x190] sm:$0xff]
  %v103 = vld [vmem:[%s1 + $0x198] sm:$0xff]
  %v104 = vld [vmem:[%s1 + $0x1a0] sm:$0xff]
  %v105 = vld [vmem:[%s1 + $0x1a8] sm:$0xff]
  %v106 = vld [vmem:[%s1 + $0x1b0] sm:$0xff]
  %v107 = vld [vmem:[%s1 + $0x1b8] sm:$0xff]
  %v108 = vld [vmem:[%s1 + $0x1c0] sm:$0xff]
  %v109 = vld [vmem:[%s1 + $0x1c8] sm:$0xff]
  %v110 = vld [vmem:[%s1 + $0x1d0] sm:$0xff]
  %v111 = vld [vmem:[%s1 + $0x1d8] sm:$0xff]
  %v112 = vld [vmem:[%s1 + $0x1e0] sm:$0xff]
  %v113 = vld [vmem:[%s1 + $0x1e8] sm:$0xff]
  %v114 = vld [vmem:[%s1 + $0x1f0] sm:$0xff]
  %v115 = vld [vmem:[%s1 + $0x1f8] sm:$0xff]
  %v116 = vld [vmem:[%s1 + $0x200] sm:$0xff]
  %v117 = vld [vmem:[%s1 + $0x208] sm:$0xff]
  %v118 = vld [vmem:[%s1 + $0x210] sm:$0xff]
  %v119 = vld [vmem:[%s1 + $0x218] sm:$0xff]
  %v120 = vld [vmem:[%s1 + $0x220] sm:$0xff]
  %v121 = vld [vmem:[%s1 + $0x228] sm:$0xff]
  %v122 = vld [vmem:[%s1 + $0x230] sm:$0xff]
  %v123 = vld [vmem:[%s1 + $0x238] sm:$0xff]
  %v124 = vld [vmem:[%s1 + $0x240] sm:$0xff]
  %v125 = vld [vmem:[%s1 + $0x248] sm:$0xff]
  %v126 = vld [vmem:[%s1 + $0x250] sm:$0xff]
  %v127 = vld [vmem:[%s1 + $0x258] sm:$0xff]
  %v128 = vld [vmem:[%s1 + $0x260] sm:$0xff]
  %v129 = vld [vmem:[%s1 + $0x268] sm:$0xff]
  %v130 = vld [vmem:[%s1 + $0x270] sm:$0xff]
  %v131 = vld [vmem:[%s1 + $0x278] sm:$0xff]
  %v132 = vld [vmem:[%s1 + $0x280] sm:$0xff]
  %v133 = vld [vmem:[%s1 + $0x288] sm:$0xff]
  %v134 = vld [vmem:[%s1 + $0x290] sm:$0xff]
  %v135 = vld [vmem:[%s1 + $0x298] sm:$0xff]
  %v136 = vld [vmem:[%s1 + $0x2a0] sm:$0xff]
  %v137 = vld [vmem:[%s1 + $0x2a8] sm:$0xff]
  %v138 = vld [vmem:[%s1 + $0x2b0] sm:$0xff]
  %v139 = vld [vmem:[%s1 + $0x2b8] sm:$0xff]
  %v140 = vld [vmem:[%s1 + $0x2c0] sm:$0xff]
  %v141 = vld [vmem:[%s1 + $0x2c8] sm:$0xff]
  %v142 = vld [vmem:[%s1 + $0x2d0] sm:$0xff]
  %v143 = vld [vmem:[%s1 + $0x2d8] sm:$0xff]
  %v144 = vld [vmem:[%s1 + $0x2e0] sm:$0xff]
  %v145 = vld [vmem:[%s1 + $0x2e8] sm:$0xff]
  %v146 = vld [vmem:[%s1 + $0x2f0] sm:$0xff]
  %v147 = vld [vmem:[%s1 + $0x2f8] sm:$0xff]
  %v148 = vld [vmem:[%s1 + $0x300] sm:$0xff]
  %v149 = vld [vmem:[%s1 + $0x308] sm:$0xff]
  %v150 = vld [vmem:[%s1 + $0x310] sm:$0xff]
  %v151 = vld [vmem:[%s1 + $0x318] sm:$0xff]
  %v152 = vld [vmem:[%s1 + $0x320] sm:$0xff]
  %v153 = vld [vmem:[%s1 + $0x328] sm:$0xff]
  %v154 = vld [vmem:[%s1 + $0x330] sm:$0xff]
  %v155 = vld [vmem:[%s1 + $0x338] sm:$0xff]
  %v156 = vld [vmem:[%s1 + $0x340] sm:$0xff]
  %v157 = vld [vmem:[%s1 + $0x348] sm:$0xff]
  %v158 = vld [vmem:[%s1 + $0x350] sm:$0xff]
  %v159 = vld [vmem:[%s1 + $0x358] sm:$0xff]
  %v160 = vld [vmem:[%s1 + $0x360] sm:$0xff]
  %v161 = vld [vmem:[%s1 + $0x368] sm:$0xff]
  %v162 = vld [vmem:[%s1 + $0x370] sm:$0xff]
  %v163 = vld [vmem:[%s1 + $0x378] sm:$0xff]
  %v164 = vld [vmem:[%s1 + $0x380] sm:$0xff]
  %v165 = vld [vmem:[%s1 + $0x388] sm:$0xff]
  %v166 = vld [vmem:[%s1 + $0x390] sm:$0xff]
  %v167 = vld [vmem:[%s1 + $0x398] sm:$0xff]
  %v168 = vld [vmem:[%s1 + $0x3a0] sm:$0xff]
  %v169 = vld [vmem:[%s1 + $0x3a8] sm:$0xff]
  %v170 = vld [vmem:[%s1 + $0x3b0] sm:$0xff]
  %v171 = vld [vmem:[%s1 + $0x3b8] sm:$0xff]
  %v172 = vld [vmem:[%s1 + $0x3c0] sm:$0xff]
  %v173 = vld [vmem:[%s1 + $0x3c8] sm:$0xff]
  %v174 = vld [vmem:[%s1 + $0x3d0] sm:$0xff]
  %v175 = vld [vmem:[%s1 + $0x3d8] sm:$0xff]
  %v176 = vld [vmem:[%s1 + $0x3e0] sm:$0xff]
  %v177 = vld [vmem:[%s1 + $0x3e8] sm:$0xff]
  %v178 = vld [vmem:[%s1 + $0x3f0] sm:$0xff]
  %v179 = vld [vmem:[%s1 + $0x3f8] sm:$0xff]
  %v180 = vld [vmem:[%s1 + $0x400] sm:$0xff]
  %v181 = vld [vmem:[%s1 + $0x408] sm:$0xff]
  %v182 = vld [vmem:[%s1 + $0x410] sm:$0xff]
  %v183 = vld [vmem:[%s1 + $0x418] sm:$0xff]
  %v184 = vld [vmem:[%s1 + $0x420] sm:$0xff]
  %v185 = vld [vmem:[%s1 + $0x428] sm:$0xff]
  %v186 = vld [vmem:[%s1 + $0x430] sm:$0xff]
  %v187 = vld [vmem:[%s1 + $0x438] sm:$0xff]
  %v188 = vld [vmem:[%s1 + $0x440] sm:$0xff]
  %v189 = vld [vmem:[%s1 + $0x448] sm:$0xff]
  %v190 = vld [vmem:[%s1 + $0x450] sm:$0xff]
  %v191 = vld [vmem:[%s1 + $0x458] sm:$0xff]
  %v192 = vld [vmem:[%s1 + $0x460] sm:$0xff]
  %v193 = vld [vmem:[%s1 + $0x468] sm:$0xff]
  %v194 = vld [vmem:[%s1 + $0x470] sm:$0xff]
  %v195 = vld [vmem:[%s1 + $0x478] sm:$0xff]
  %v196 = vld [vmem:[%s1 + $0x480] sm:$0xff]
  %v197 = vld [vmem:[%s1 + $0x488] sm:$0xff]
  %v198 = vld [vmem:[%s1 + $0x490] sm:$0xff]
  %v199 = vld [vmem:[%s1 + $0x498] sm:$0xff]
  %v200 = vld [vmem:[%s1 + $0x4a0] sm:$0xff]
  %v201 = vld [vmem:[%s1 + $0x4a8] sm:$0xff]
  %v202 = vld [vmem:[%s1 + $0x4b0] sm:$0xff]
  %v203 = vld [vmem:[%s1 + $0x4b8] sm:$0xff]
  %v204 = vld [vmem:[%s1 + $0x4c0] sm:$0xff]
  %v205 = vld [vmem:[%s1 + $0x4c8] sm:$0xff]
  %v206 = vld [vmem:[%s1 + $0x4d0] sm:$0xff]
  %v207 = vld [vmem:[%s1 + $0x4d8] sm:$0xff]
  %v208 = vld [vmem:[%s1 + $0x4e0] sm:$0xff]
  %v209 = vld [vmem:[%s1 + $0x4e8] sm:$0xff]
  %v210 = vld [vmem:[%s1 + $0x4f0] sm:$0xff]
  %v211 = vld [vmem:[%s1 + $0x4f8] sm:$0xff]
  %v212 = vld [vmem:[%s1 + $0x500] sm:$0xff]
  %v213 = vld [vmem:[%s1 + $0x508] sm:$0xff]
  %v214 = vld [vmem:[%s1 + $0x510] sm:$0xff]
  %v215 = vld [vmem:[%s1 + $0x518] sm:$0xff]
  %v216 = vld [vmem:[%s1 + $0x520] sm:$0xff]
  %v217 = vld [vmem:[%s1 + $0x528] sm:$0xff]
  %v218 = vld [vmem:[%s1 + $0x530] sm:$0xff]
  %v219 = vld [vmem:[%s1 + $0x538] sm:$0xff]
  %v220 = vld [vmem:[%s1 + $0x540] sm:$0xff]
  %v221 = vld [vmem:[%s1 + $0x548] sm:$0xff]
  %v222 = vld [vmem:[%s1 + $0x550] sm:$0xff]
  %v223 = vld [vmem:[%s1 + $0x558] sm:$0xff]
  %v224 = vld [vmem:[%s1 + $0x560] sm:$0xff]
  %v225 = vld [vmem:[%s1 + $0x568] sm:$0xff]
  %v226 = vld [vmem:[%s1 + $0x570] sm:$0xff]
  %v227 = vld [vmem:[%s1 + $0x578] sm:$0xff]
  %v228 = vld [vmem:[%s1 + $0x580] sm:$0xff]
  %v229 = vld [vmem:[%s1 + $0x588] sm:$0xff]
  %v230 = vld [vmem:[%s1 + $0x590] sm:$0xff]
  %v231 = vld [vmem:[%s1 + $0x598] sm:$0xff]
  %v232 = vld [vmem:[%s1 + $0x5a0] sm:$0xff]
  %v233 = vld [vmem:[%s1 + $0x5a8] sm:$0xff]
  %v234 = vld [vmem:[%s1 + $0x5b0] sm:$0xff]
  %v235 = vld [vmem:[%s1 + $0x5b8] sm:$0xff]
  %v236 = vld [vmem:[%s1 + $0x5c0] sm:$0xff]
  %v237 = vld [vmem:[%s1 + $0x5c8] sm:$0xff]
  %v238 = vld [vmem:[%s1 + $0x5d0] sm:$0xff]
  %v239 = vld [vmem:[%s1 + $0x5d8] sm:$0xff]
  %v240 = vld [vmem:[%s1 + $0x5e0] sm:$0xff]
  %v241 = vld [vmem:[%s1 + $0x5e8] sm:$0xff]
  %v242 = vld [vmem:[%s1 + $0x5f0] sm:$0xff]
  %v243 = vld [vmem:[%s1 + $0x5f8] sm:$0xff]
  %v244 = vld [vmem:[%s1 + $0x600] sm:$0xff]
  %v245 = vld [vmem:[%s1 + $0x608] sm:$0xff]
  %v246 = vld [vmem:[%s1 + $0x610] sm:$0xff]
  %v247 = vld [vmem:[%s1 + $0x618] sm:$0xff]
  %v248 = vld [vmem:[%s1 + $0x620] sm:$0xff]
  %v249 = vld [vmem:[%s1 + $0x628] sm:$0xff]
  %v250 = vld [vmem:[%s1 + $0x630] sm:$0xff]
  %v251 = vld [vmem:[%s1 + $0x638] sm:$0xff]
  %v252 = vld [vmem:[%s1 + $0x640] sm:$0xff]
  %v253 = vld [vmem:[%s1 + $0x648] sm:$0xff]
  %v254 = vld [vmem:[%s1 + $0x650] sm:$0xff]
  %v255 = vld [vmem:[%s1 + $0x658] sm:$0xff]
  %v256 = vld [vmem:[%s1 + $0x660] sm:$0xff]
  %v257 = vld [vmem:[%s1 + $0x668] sm:$0xff]
  %v258 = vld [vmem:[%s1 + $0x670] sm:$0xff]
  %v259 = vld [vmem:[%s1 + $0x678] sm:$0xff]
  %v260 = vld [vmem:[%s1 + $0x680] sm:$0xff]
  %v261 = vld [vmem:[%s1 + $0x688] sm:$0xff]
  %v262 = vld [vmem:[%s1 + $0x690] sm:$0xff]
  %v263 = vld [vmem:[%s1 + $0x698] sm:$0xff]
  %v264 = vld [vmem:[%s1 + $0x6a0] sm:$0xff]
  %v265 = vld [vmem:[%s1 + $0x6a8] sm:$0xff]
  %v266 = vld [vmem:[%s1 + $0x6b0] sm:$0xff]
  %v267 = vld [vmem:[%s1 + $0x6b8] sm:$0xff]
  %v268 = vld [vmem:[%s1 + $0x6c0] sm:$0xff]
  %v269 = vld [vmem:[%s1 + $0x6c8] sm:$0xff]
  %v270 = vld [vmem:[%s1 + $0x6d0] sm:$0xff]
  %v271 = vld [vmem:[%s1 + $0x6d8] sm:$0xff]
  %v272 = vld [vmem:[%s1 + $0x6e0] sm:$0xff]
  %v273 = vld [vmem:[%s1 + $0x6e8] sm:$0xff]
  %v274 = vld [vmem:[%s1 + $0x6f0] sm:$0xff]
  %v275 = vld [vmem:[%s1 + $0x6f8] sm:$0xff]
  %v276 = vld [vmem:[%s1 + $0x700] sm:$0xff]
  %v277 = vld [vmem:[%s1 + $0x708] sm:$0xff]
  %v278 = vld [vmem:[%s1 + $0x710] sm:$0xff]
  %v279 = vld [vmem:[%s1 + $0x718] sm:$0xff]
  %v280 = vld [vmem:[%s1 + $0x720] sm:$0xff]
  %v281 = vld [vmem:[%s1 + $0x728] sm:$0xff]
  %v282 = vld [vmem:[%s1 + $0x730] sm:$0xff]
  %v283 = vld [vmem:[%s1 + $0x738] sm:$0xff]
  %v284 = vld [vmem:[%s1 + $0x740] sm:$0xff]
  %v285 = vld [vmem:[%s1 + $0x748] sm:$0xff]
  %v286 = vld [vmem:[%s1 + $0x750] sm:$0xff]
  %v287 = vld [vmem:[%s1 + $0x758] sm:$0xff]
  %v288 = vld [vmem:[%s1 + $0x760] sm:$0xff]
  %v289 = vld [vmem:[%s1 + $0x768] sm:$0xff]
  %v290 = vld [vmem:[%s1 + $0x770] sm:$0xff]
  %v291 = vld [vmem:[%s1 + $0x778] sm:$0xff]
  %v292 = vld [vmem:[%s1 + $0x780] sm:$0xff]
  %v293 = vld [vmem:[%s1 + $0x788] sm:$0xff]
  %v294 = vld [vmem:[%s1 + $0x790] sm:$0xff]
  %v295 = vld [vmem:[%s1 + $0x798] sm:$0xff]
  %v296 = vld [vmem:[%s1 + $0x7a0] sm:$0xff]
  %v297 = vld [vmem:[%s1 + $0x7a8] sm:$0xff]
  %v298 = vld [vmem:[%s1 + $0x7b0] sm:$0xff]
  %v299 = vld [vmem:[%s1 + $0x7b8] sm:$0xff]
  %v300 = vld [vmem:[%s1 + $0x7c0] sm:$0xff]
  %v301 = vld [vmem:[%s1 + $0x7c8] sm:$0xff]
  %v302 = vld [vmem:[%s1 + $0x7d0] sm:$0xff]
  %v303 = vld [vmem:[%s1 + $0x7d8] sm:$0xff]
  %v304 = vld [vmem:[%s1 + $0x7e0] sm:$0xff]
  %v305 = vld [vmem:[%s1 + $0x7e8] sm:$0xff]
  %v306 = vld [vmem:[%s1 + $0x7f0] sm:$0xff]
  %v307 = vld [vmem:[%s1 + $0x7f8] sm:$0xff]
  %v308 = vld [vmem:[%s1 + $0x800] sm:$0xff]
  %v309 = vld [vmem:[%s1 + $0x808] sm:$0xff]
  %v310 = vld [vmem:[%s1 + $0x810] sm:$0xff]
  %v311 = vld [vmem:[%s1 + $0x818] sm:$0xff]
  %v312 = vld [vmem:[%s1 + $0x820] sm:$0xff]
  %v313 = vld [vmem:[%s1 + $0x828] sm:$0xff]
  %v314 = vld [vmem:[%s1 + $0x830] sm:$0xff]
  %v315 = vld [vmem:[%s1 + $0x838] sm:$0xff]
  %v316 = vld [vmem:[%s1 + $0x840] sm:$0xff]
  %v317 = vld [vmem:[%s1 + $0x848] sm:$0xff]
  %v318 = vld [vmem:[%s1 + $0x850] sm:$0xff]
  %v319 = vld [vmem:[%s1 + $0x858] sm:$0xff]
  %v320 = vld [vmem:[%s1 + $0x860] sm:$0xff]
  %v321 = vld [vmem:[%s1 + $0x868] sm:$0xff]
  %v322 = vld [vmem:[%s1 + $0x870] sm:$0xff]
  %v323 = vld [vmem:[%s1 + $0x878] sm:$0xff]
  %v324 = vld [vmem:[%s1 + $0x880] sm:$0xff]
  %v325 = vld [vmem:[%s1 + $0x888] sm:$0xff]
  %v326 = vld [vmem:[%s1 + $0x890] sm:$0xff]
  %v327 = vld [vmem:[%s1 + $0x898] sm:$0xff]
  %v328 = vld [vmem:[%s1 + $0x8a0] sm:$0xff]
  %v329 = vld [vmem:[%s1 + $0x8a8] sm:$0xff]
  %v330 = vld [vmem:[%s1 + $0x8b0] sm:$0xff]
  %v331 = vld [vmem:[%s1 + $0x8b8] sm:$0xff]
  %v332 = vld [vmem:[%s1 + $0x8c0] sm:$0xff]
  %v333 = vld [vmem:[%s1 + $0x8c8] sm:$0xff]
  %v334 = vld [vmem:[%s1 + $0x8d0] sm:$0xff]
  %v335 = vld [vmem:[%s1 + $0x8d8] sm:$0xff]
  %v336 = vld [vmem:[%s1 + $0x8e0] sm:$0xff]
  %v337 = vld [vmem:[%s1 + $0x8e8] sm:$0xff]
  %v338 = vld [vmem:[%s1 + $0x8f0] sm:$0xff]
  %v339 = vld [vmem:[%s1 + $0x8f8] sm:$0xff]
  %v340 = vld [vmem:[%s1 + $0x900] sm:$0xff]
  %v341 = vld [vmem:[%s1 + $0x908] sm:$0xff]
  %v342 = vld [vmem:[%s1 + $0x910] sm:$0xff]
  %v343 = vld [vmem:[%s1 + $0x918] sm:$0xff]
  %v344 = vld [vmem:[%s1 + $0x920] sm:$0xff]
  %v345 = vld [vmem:[%s1 + $0x928] sm:$0xff]
  %v346 = vld [vmem:[%s1 + $0x930] sm:$0xff]
  %v347 = vld [vmem:[%s1 + $0x938] sm:$0xff]
  %v348 = vld [vmem:[%s1 + $0x940] sm:$0xff]
  %v349 = vld [vmem:[%s1 + $0x948] sm:$0xff]
  %v350 = vld [vmem:[%s1 + $0x950] sm:$0xff]
  %v351 = vld [vmem:[%s1 + $0x958] sm:$0xff]
  %v352 = vld [vmem:[%s1 + $0x960] sm:$0xff]
  %v353 = vld [vmem:[%s1 + $0x968] sm:$0xff]
  %v354 = vld [vmem:[%s1 + $0x970] sm:$0xff]
  %v355 = vld [vmem:[%s1 + $0x978] sm:$0xff]
  %v356 = vld [vmem:[%s1 + $0x980] sm:$0xff]
  %v357 = vld [vmem:[%s1 + $0x988] sm:$0xff]
  %v358 = vld [vmem:[%s1 + $0x990] sm:$0xff]
  %v359 = vld [vmem:[%s1 + $0x998] sm:$0xff]
  %v360 = vld [vmem:[%s1 + $0x9a0] sm:$0xff]
  %v361 = vld [vmem:[%s1 + $0x9a8] sm:$0xff]
  %v362 = vld [vmem:[%s1 + $0x9b0] sm:$0xff]
  %v363 = vld [vmem:[%s1 + $0x9b8] sm:$0xff]
  %v364 = vld [vmem:[%s1 + $0x9c0] sm:$0xff]
  %v365 = vld [vmem:[%s1 + $0x9c8] sm:$0xff]
  %v366 = vld [vmem:[%s1 + $0x9d0] sm:$0xff]
  %v367 = vld [vmem:[%s1 + $0x9d8] sm:$0xff]
  %v368 = vld [vmem:[%s1 + $0x9e0] sm:$0xff]
  %v369 = vld [vmem:[%s1 + $0x9e8] sm:$0xff]
  %v370 = vld [vmem:[%s1 + $0x9f0] sm:$0xff]
  %v371 = vld [vmem:[%s1 + $0x9f8] sm:$0xff]
  %v372 = vld [vmem:[%s1 + $0xa00] sm:$0xff]
  %v373 = vld [vmem:[%s1 + $0xa08] sm:$0xff]
  %v374 = vld [vmem:[%s1 + $0xa10] sm:$0xff]
  %v375 = vld [vmem:[%s1 + $0xa18] sm:$0xff]
  %v376 = vld [vmem:[%s1 + $0xa20] sm:$0xff]
  %v377 = vld [vmem:[%s1 + $0xa28] sm:$0xff]
  %v378 = vld [vmem:[%s1 + $0xa30] sm:$0xff]
  %v379 = vld [vmem:[%s1 + $0xa38] sm:$0xff]
  %v380 = vld [vmem:[%s1 + $0xa40] sm:$0xff]
  %v381 = vld [vmem:[%s1 + $0xa48] sm:$0xff]
  %v382 = vld [vmem:[%s1 + $0xa50] sm:$0xff]
  %v383 = vld [vmem:[%s1 + $0xa58] sm:$0xff]
  %v384 = vld [vmem:[%s1 + $0xa60] sm:$0xff]
  %v385 = vld [vmem:[%s1 + $0xa68] sm:$0xff]
  %v386 = vld [vmem:[%s1 + $0xa70] sm:$0xff]
  %v387 = vld [vmem:[%s1 + $0xa78] sm:$0xff]
  %v388 = vld [vmem:[%s1 + $0xa80] sm:$0xff]
  %v389 = vld [vmem:[%s1 + $0xa88] sm:$0xff]
  %v390 = vld [vmem:[%s1 + $0xa90] sm:$0xff]
  %v391 = vld [vmem:[%s1 + $0xa98] sm:$0xff]
  %v392 = vld [vmem:[%s1 + $0xaa0] sm:$0xff]
  %v393 = vld [vmem:[%s1 + $0xaa8] sm:$0xff]
  %v394 = vld [vmem:[%s1 + $0xab0] sm:$0xff]
  %v395 = vld [vmem:[%s1 + $0xab8] sm:$0xff]
  %v396 = vld [vmem:[%s1 + $0xac0] sm:$0xff]
  %v397 = vld [vmem:[%s1 + $0xac8] sm:$0xff]
  %v398 = vld [vmem:[%s1 + $0xad0] sm:$0xff]
  %v399 = vld [vmem:[%s1 + $0xad8] sm:$0xff]
  %v400 = vld [vmem:[%s1 + $0xae0] sm:$0xff]
  %v401 = vld [vmem:[%s1 + $0xae8] sm:$0xff]
  %v402 = vld [vmem:[%s1 + $0xaf0] sm:$0xff]
  %v403 = vld [vmem:[%s1 + $0xaf8] sm:$0xff]
  %v404 = vld [vmem:[%s1 + $0xb00] sm:$0xff]
  %v405 = vld [vmem:[%s1 + $0xb08] sm:$0xff]
  %v406 = vld [vmem:[%s1 + $0xb10] sm:$0xff]
  %v407 = vld [vmem:[%s1 + $0xb18] sm:$0xff]
  %v408 = vld [vmem:[%s1 + $0xb20] sm:$0xff]
  %v409 = vld [vmem:[%s1 + $0xb28] sm:$0xff]
  %v410 = vld [vmem:[%s1 + $0xb30] sm:$0xff]
  %v411 = vld [vmem:[%s1 + $0xb38] sm:$0xff]
  %v412 = vld [vmem:[%s1 + $0xb40] sm:$0xff]
  %v413 = vld [vmem:[%s1 + $0xb48] sm:$0xff]
  %v414 = vld [vmem:[%s1 + $0xb50] sm:$0xff]
  %v415 = vld [vmem:[%s1 + $0xb58] sm:$0xff]
  %v416 = vld [vmem:[%s1 + $0xb60] sm:$0xff]
  %v417 = vld [vmem:[%s1 + $0xb68] sm:$0xff]
  %v418 = vld [vmem:[%s1 + $0xb70] sm:$0xff]
  %v419 = vld [vmem:[%s1 + $0xb78] sm:$0xff]
  %v420 = vld [vmem:[%s1 + $0xb80] sm:$0xff]
  %v421 = vld [vmem:[%s1 + $0xb88] sm:$0xff]
  %v422 = vld [vmem:[%s1 + $0xb90] sm:$0xff]
  %v423 = vld [vmem:[%s1 + $0xb98] sm:$0xff]
  %v424 = vld [vmem:[%s1 + $0xba0] sm:$0xff]
  %v425 = vld [vmem:[%s1 + $0xba8] sm:$0xff]
  %v426 = vld [vmem:[%s1 + $0xbb0] sm:$0xff]
  %v427 = vld [vmem:[%s1 + $0xbb8] sm:$0xff]
  %v428 = vld [vmem:[%s1 + $0xbc0] sm:$0xff]
  %v429 = vld [vmem:[%s1 + $0xbc8] sm:$0xff]
  %v430 = vld [vmem:[%s1 + $0xbd0] sm:$0xff]
  %v431 = vld [vmem:[%s1 + $0xbd8] sm:$0xff]
  %v432 = vld [vmem:[%s1 + $0xbe0] sm:$0xff]
  %v433 = vld [vmem:[%s1 + $0xbe8] sm:$0xff]
  %v434 = vld [vmem:[%s1 + $0xbf0] sm:$0xff]
  %v435 = vld [vmem:[%s1 + $0xbf8] sm:$0xff]
  %v436 = vld [vmem:[%s2] sm:$0xff]
  %v821 = vunpack.c.l.b16 %v52
  %v822 = vunpack.c.h.b16 %v52
  %v823 = vunpack.c.l.b16 %v53
  %v824 = vunpack.c.h.b16 %v53
  %v825 = vunpack.c.l.b16 %v54
  %v826 = vunpack.c.h.b16 %v54
  %v827 = vunpack.c.l.b16 %v55
  %v828 = vunpack.c.h.b16 %v55
  %v829 = vunpack.c.l.b16 %v56
  %v830 = vunpack.c.h.b16 %v56
  %v831 = vunpack.c.l.b16 %v57
  %v832 = vunpack.c.h.b16 %v57
  %v833 = vunpack.c.l.b16 %v58
  %v834 = vunpack.c.h.b16 %v58
  %v835 = vunpack.c.l.b16 %v59
  %v836 = vunpack.c.h.b16 %v59
  %v837 = vunpack.c.l.b16 %v60
  %v838 = vunpack.c.h.b16 %v60
  %v839 = vunpack.c.l.b16 %v61
  %v840 = vunpack.c.h.b16 %v61
  %v841 = vunpack.c.l.b16 %v62
  %v842 = vunpack.c.h.b16 %v62
  %v843 = vunpack.c.l.b16 %v63
  %v844 = vunpack.c.h.b16 %v63
  %v845 = vunpack.c.l.b16 %v64
  %v846 = vunpack.c.h.b16 %v64
  %v847 = vunpack.c.l.b16 %v65
  %v848 = vunpack.c.h.b16 %v65
  %v849 = vunpack.c.l.b16 %v66
  %v850 = vunpack.c.h.b16 %v66
  %v851 = vunpack.c.l.b16 %v67
  %v852 = vunpack.c.h.b16 %v67
  %v853 = vunpack.c.l.b16 %v68
  %v854 = vunpack.c.h.b16 %v68
  %v855 = vunpack.c.l.b16 %v69
  %v856 = vunpack.c.h.b16 %v69
  %v857 = vunpack.c.l.b16 %v70
  %v858 = vunpack.c.h.b16 %v70
  %v859 = vunpack.c.l.b16 %v71
  %v860 = vunpack.c.h.b16 %v71
  %v861 = vunpack.c.l.b16 %v72
  %v862 = vunpack.c.h.b16 %v72
  %v863 = vunpack.c.l.b16 %v73
  %v864 = vunpack.c.h.b16 %v73
  %v865 = vunpack.c.l.b16 %v74
  %v866 = vunpack.c.h.b16 %v74
  %v867 = vunpack.c.l.b16 %v75
  %v868 = vunpack.c.h.b16 %v75
  %v869 = vunpack.c.l.b16 %v76
  %v870 = vunpack.c.h.b16 %v76
  %v871 = vunpack.c.l.b16 %v77
  %v872 = vunpack.c.h.b16 %v77
  %v873 = vunpack.c.l.b16 %v78
  %v874 = vunpack.c.h.b16 %v78
  %v875 = vunpack.c.l.b16 %v79
  %v876 = vunpack.c.h.b16 %v79
  %v877 = vunpack.c.l.b16 %v80
  %v878 = vunpack.c.h.b16 %v80
  %v879 = vunpack.c.l.b16 %v81
  %v880 = vunpack.c.h.b16 %v81
  %v881 = vunpack.c.l.b16 %v82
  %v882 = vunpack.c.h.b16 %v82
  %v883 = vunpack.c.l.b16 %v83
  %v884 = vunpack.c.h.b16 %v83
  %v885 = vunpack.c.l.b16 %v84
  %v886 = vunpack.c.h.b16 %v84
  %v887 = vunpack.c.l.b16 %v85
  %v888 = vunpack.c.h.b16 %v85
  %v889 = vunpack.c.l.b16 %v86
  %v890 = vunpack.c.h.b16 %v86
  %v891 = vunpack.c.l.b16 %v87
  %v892 = vunpack.c.h.b16 %v87
  %v893 = vunpack.c.l.b16 %v88
  %v894 = vunpack.c.h.b16 %v88
  %v895 = vunpack.c.l.b16 %v89
  %v896 = vunpack.c.h.b16 %v89
  %v897 = vunpack.c.l.b16 %v90
  %v898 = vunpack.c.h.b16 %v90
  %v899 = vunpack.c.l.b16 %v91
  %v900 = vunpack.c.h.b16 %v91
  %v901 = vunpack.c.l.b16 %v92
  %v902 = vunpack.c.h.b16 %v92
  %v903 = vunpack.c.l.b16 %v93
  %v904 = vunpack.c.h.b16 %v93
  %v905 = vunpack.c.l.b16 %v94
  %v906 = vunpack.c.h.b16 %v94
  %v907 = vunpack.c.l.b16 %v95
  %v908 = vunpack.c.h.b16 %v95
  %v909 = vunpack.c.l.b16 %v96
  %v910 = vunpack.c.h.b16 %v96
  %v911 = vunpack.c.l.b16 %v97
  %v912 = vunpack.c.h.b16 %v97
  %v913 = vunpack.c.l.b16 %v98
  %v914 = vunpack.c.h.b16 %v98
  %v915 = vunpack.c.l.b16 %v99
  %v916 = vunpack.c.h.b16 %v99
  %v917 = vunpack.c.l.b16 %v100
  %v918 = vunpack.c.h.b16 %v100
  %v919 = vunpack.c.l.b16 %v101
  %v920 = vunpack.c.h.b16 %v101
  %v921 = vunpack.c.l.b16 %v102
  %v922 = vunpack.c.h.b16 %v102
  %v923 = vunpack.c.l.b16 %v103
  %v924 = vunpack.c.h.b16 %v103
  %v925 = vunpack.c.l.b16 %v104
  %v926 = vunpack.c.h.b16 %v104
  %v927 = vunpack.c.l.b16 %v105
  %v928 = vunpack.c.h.b16 %v105
  %v929 = vunpack.c.l.b16 %v106
  %v930 = vunpack.c.h.b16 %v106
  %v931 = vunpack.c.l.b16 %v107
  %v932 = vunpack.c.h.b16 %v107
  %v933 = vunpack.c.l.b16 %v108
  %v934 = vunpack.c.h.b16 %v108
  %v935 = vunpack.c.l.b16 %v109
  %v936 = vunpack.c.h.b16 %v109
  %v937 = vunpack.c.l.b16 %v110
  %v938 = vunpack.c.h.b16 %v110
  %v939 = vunpack.c.l.b16 %v111
  %v940 = vunpack.c.h.b16 %v111
  %v941 = vunpack.c.l.b16 %v112
  %v942 = vunpack.c.h.b16 %v112
  %v943 = vunpack.c.l.b16 %v113
  %v944 = vunpack.c.h.b16 %v113
  %v945 = vunpack.c.l.b16 %v114
  %v946 = vunpack.c.h.b16 %v114
  %v947 = vunpack.c.l.b16 %v115
  %v948 = vunpack.c.h.b16 %v115
  %v949 = vunpack.c.l.b16 %v116
  %v950 = vunpack.c.h.b16 %v116
  %v951 = vunpack.c.l.b16 %v117
  %v952 = vunpack.c.h.b16 %v117
  %v953 = vunpack.c.l.b16 %v118
  %v954 = vunpack.c.h.b16 %v118
  %v955 = vunpack.c.l.b16 %v119
  %v956 = vunpack.c.h.b16 %v119
  %v957 = vunpack.c.l.b16 %v120
  %v958 = vunpack.c.h.b16 %v120
  %v959 = vunpack.c.l.b16 %v121
  %v960 = vunpack.c.h.b16 %v121
  %v961 = vunpack.c.l.b16 %v122
  %v962 = vunpack.c.h.b16 %v122
  %v963 = vunpack.c.l.b16 %v123
  %v964 = vunpack.c.h.b16 %v123
  %v965 = vunpack.c.l.b16 %v124
  %v966 = vunpack.c.h.b16 %v124
  %v967 = vunpack.c.l.b16 %v125
  %v968 = vunpack.c.h.b16 %v125
  %v969 = vunpack.c.l.b16 %v126
  %v970 = vunpack.c.h.b16 %v126
  %v971 = vunpack.c.l.b16 %v127
  %v972 = vunpack.c.h.b16 %v127
  %v973 = vunpack.c.l.b16 %v128
  %v974 = vunpack.c.h.b16 %v128
  %v975 = vunpack.c.l.b16 %v129
  %v976 = vunpack.c.h.b16 %v129
  %v977 = vunpack.c.l.b16 %v130
  %v978 = vunpack.c.h.b16 %v130
  %v979 = vunpack.c.l.b16 %v131
  %v980 = vunpack.c.h.b16 %v131
  %v981 = vunpack.c.l.b16 %v132
  %v982 = vunpack.c.h.b16 %v132
  %v983 = vunpack.c.l.b16 %v133
  %v984 = vunpack.c.h.b16 %v133
  %v985 = vunpack.c.l.b16 %v134
  %v986 = vunpack.c.h.b16 %v134
  %v987 = vunpack.c.l.b16 %v135
  %v988 = vunpack.c.h.b16 %v135
  %v989 = vunpack.c.l.b16 %v136
  %v990 = vunpack.c.h.b16 %v136
  %v991 = vunpack.c.l.b16 %v137
  %v992 = vunpack.c.h.b16 %v137
  %v993 = vunpack.c.l.b16 %v138
  %v994 = vunpack.c.h.b16 %v138
  %v995 = vunpack.c.l.b16 %v139
  %v996 = vunpack.c.h.b16 %v139
  %v997 = vunpack.c.l.b16 %v140
  %v998 = vunpack.c.h.b16 %v140
  %v999 = vunpack.c.l.b16 %v141
  %v1000 = vunpack.c.h.b16 %v141
  %v1001 = vunpack.c.l.b16 %v142
  %v1002 = vunpack.c.h.b16 %v142
  %v1003 = vunpack.c.l.b16 %v143
  %v1004 = vunpack.c.h.b16 %v143
  %v1005 = vunpack.c.l.b16 %v144
  %v1006 = vunpack.c.h.b16 %v144
  %v1007 = vunpack.c.l.b16 %v145
  %v1008 = vunpack.c.h.b16 %v145
  %v1009 = vunpack.c.l.b16 %v146
  %v1010 = vunpack.c.h.b16 %v146
  %v1011 = vunpack.c.l.b16 %v147
  %v1012 = vunpack.c.h.b16 %v147
  %v1013 = vunpack.c.l.b16 %v148
  %v1014 = vunpack.c.h.b16 %v148
  %v1015 = vunpack.c.l.b16 %v149
  %v1016 = vunpack.c.h.b16 %v149
  %v1017 = vunpack.c.l.b16 %v150
  %v1018 = vunpack.c.h.b16 %v150
  %v1019 = vunpack.c.l.b16 %v151
  %v1020 = vunpack.c.h.b16 %v151
  %v1021 = vunpack.c.l.b16 %v152
  %v1022 = vunpack.c.h.b16 %v152
  %v1023 = vunpack.c.l.b16 %v153
  %v1024 = vunpack.c.h.b16 %v153
  %v1025 = vunpack.c.l.b16 %v154
  %v1026 = vunpack.c.h.b16 %v154
  %v1027 = vunpack.c.l.b16 %v155
  %v1028 = vunpack.c.h.b16 %v155
  %v1029 = vunpack.c.l.b16 %v156
  %v1030 = vunpack.c.h.b16 %v156
  %v1031 = vunpack.c.l.b16 %v157
  %v1032 = vunpack.c.h.b16 %v157
  %v1033 = vunpack.c.l.b16 %v158
  %v1034 = vunpack.c.h.b16 %v158
  %v1035 = vunpack.c.l.b16 %v159
  %v1036 = vunpack.c.h.b16 %v159
  %v1037 = vunpack.c.l.b16 %v160
  %v1038 = vunpack.c.h.b16 %v160
  %v1039 = vunpack.c.l.b16 %v161
  %v1040 = vunpack.c.h.b16 %v161
  %v1041 = vunpack.c.l.b16 %v162
  %v1042 = vunpack.c.h.b16 %v162
  %v1043 = vunpack.c.l.b16 %v163
  %v1044 = vunpack.c.h.b16 %v163
  %v1045 = vunpack.c.l.b16 %v164
  %v1046 = vunpack.c.h.b16 %v164
  %v1047 = vunpack.c.l.b16 %v165
  %v1048 = vunpack.c.h.b16 %v165
  %v1049 = vunpack.c.l.b16 %v166
  %v1050 = vunpack.c.h.b16 %v166
  %v1051 = vunpack.c.l.b16 %v167
  %v1052 = vunpack.c.h.b16 %v167
  %v1053 = vunpack.c.l.b16 %v168
  %v1054 = vunpack.c.h.b16 %v168
  %v1055 = vunpack.c.l.b16 %v169
  %v1056 = vunpack.c.h.b16 %v169
  %v1057 = vunpack.c.l.b16 %v170
  %v1058 = vunpack.c.h.b16 %v170
  %v1059 = vunpack.c.l.b16 %v171
  %v1060 = vunpack.c.h.b16 %v171
  %v1061 = vunpack.c.l.b16 %v172
  %v1062 = vunpack.c.h.b16 %v172
  %v1063 = vunpack.c.l.b16 %v173
  %v1064 = vunpack.c.h.b16 %v173
  %v1065 = vunpack.c.l.b16 %v174
  %v1066 = vunpack.c.h.b16 %v174
  %v1067 = vunpack.c.l.b16 %v175
  %v1068 = vunpack.c.h.b16 %v175
  %v1069 = vunpack.c.l.b16 %v176
  %v1070 = vunpack.c.h.b16 %v176
  %v1071 = vunpack.c.l.b16 %v177
  %v1072 = vunpack.c.h.b16 %v177
  %v1073 = vunpack.c.l.b16 %v178
  %v1074 = vunpack.c.h.b16 %v178
  %v1075 = vunpack.c.l.b16 %v179
  %v1076 = vunpack.c.h.b16 %v179
  %v1077 = vunpack.c.l.b16 %v180
  %v1078 = vunpack.c.h.b16 %v180
  %v1079 = vunpack.c.l.b16 %v181
  %v1080 = vunpack.c.h.b16 %v181
  %v1081 = vunpack.c.l.b16 %v182
  %v1082 = vunpack.c.h.b16 %v182
  %v1083 = vunpack.c.l.b16 %v183
  %v1084 = vunpack.c.h.b16 %v183
  %v1085 = vunpack.c.l.b16 %v184
  %v1086 = vunpack.c.h.b16 %v184
  %v1087 = vunpack.c.l.b16 %v185
  %v1088 = vunpack.c.h.b16 %v185
  %v1089 = vunpack.c.l.b16 %v186
  %v1090 = vunpack.c.h.b16 %v186
  %v1091 = vunpack.c.l.b16 %v187
  %v1092 = vunpack.c.h.b16 %v187
  %v1093 = vunpack.c.l.b16 %v188
  %v1094 = vunpack.c.h.b16 %v188
  %v1095 = vunpack.c.l.b16 %v189
  %v1096 = vunpack.c.h.b16 %v189
  %v1097 = vunpack.c.l.b16 %v190
  %v1098 = vunpack.c.h.b16 %v190
  %v1099 = vunpack.c.l.b16 %v191
  %v1100 = vunpack.c.h.b16 %v191
  %v1101 = vunpack.c.l.b16 %v192
  %v1102 = vunpack.c.h.b16 %v192
  %v1103 = vunpack.c.l.b16 %v193
  %v1104 = vunpack.c.h.b16 %v193
  %v1105 = vunpack.c.l.b16 %v194
  %v1106 = vunpack.c.h.b16 %v194
  %v1107 = vunpack.c.l.b16 %v195
  %v1108 = vunpack.c.h.b16 %v195
  %v1109 = vunpack.c.l.b16 %v196
  %v1110 = vunpack.c.h.b16 %v196
  %v1111 = vunpack.c.l.b16 %v197
  %v1112 = vunpack.c.h.b16 %v197
  %v1113 = vunpack.c.l.b16 %v198
  %v1114 = vunpack.c.h.b16 %v198
  %v1115 = vunpack.c.l.b16 %v199
  %v1116 = vunpack.c.h.b16 %v199
  %v1117 = vunpack.c.l.b16 %v200
  %v1118 = vunpack.c.h.b16 %v200
  %v1119 = vunpack.c.l.b16 %v201
  %v1120 = vunpack.c.h.b16 %v201
  %v1121 = vunpack.c.l.b16 %v202
  %v1122 = vunpack.c.h.b16 %v202
  %v1123 = vunpack.c.l.b16 %v203
  %v1124 = vunpack.c.h.b16 %v203
  %v1125 = vunpack.c.l.b16 %v204
  %v1126 = vunpack.c.h.b16 %v204
  %v1127 = vunpack.c.l.b16 %v205
  %v1128 = vunpack.c.h.b16 %v205
  %v1129 = vunpack.c.l.b16 %v206
  %v1130 = vunpack.c.h.b16 %v206
  %v1131 = vunpack.c.l.b16 %v207
  %v1132 = vunpack.c.h.b16 %v207
  %v1133 = vunpack.c.l.b16 %v208
  %v1134 = vunpack.c.h.b16 %v208
  %v1135 = vunpack.c.l.b16 %v209
  %v1136 = vunpack.c.h.b16 %v209
  %v1137 = vunpack.c.l.b16 %v210
  %v1138 = vunpack.c.h.b16 %v210
  %v1139 = vunpack.c.l.b16 %v211
  %v1140 = vunpack.c.h.b16 %v211
  %v1141 = vunpack.c.l.b16 %v212
  %v1142 = vunpack.c.h.b16 %v212
  %v1143 = vunpack.c.l.b16 %v213
  %v1144 = vunpack.c.h.b16 %v213
  %v1145 = vunpack.c.l.b16 %v214
  %v1146 = vunpack.c.h.b16 %v214
  %v1147 = vunpack.c.l.b16 %v215
  %v1148 = vunpack.c.h.b16 %v215
  %v1149 = vunpack.c.l.b16 %v216
  %v1150 = vunpack.c.h.b16 %v216
  %v1151 = vunpack.c.l.b16 %v217
  %v1152 = vunpack.c.h.b16 %v217
  %v1153 = vunpack.c.l.b16 %v218
  %v1154 = vunpack.c.h.b16 %v218
  %v1155 = vunpack.c.l.b16 %v219
  %v1156 = vunpack.c.h.b16 %v219
  %v1157 = vunpack.c.l.b16 %v220
  %v1158 = vunpack.c.h.b16 %v220
  %v1159 = vunpack.c.l.b16 %v221
  %v1160 = vunpack.c.h.b16 %v221
  %v1161 = vunpack.c.l.b16 %v222
  %v1162 = vunpack.c.h.b16 %v222
  %v1163 = vunpack.c.l.b16 %v223
  %v1164 = vunpack.c.h.b16 %v223
  %v1165 = vunpack.c.l.b16 %v224
  %v1166 = vunpack.c.h.b16 %v224
  %v1167 = vunpack.c.l.b16 %v225
  %v1168 = vunpack.c.h.b16 %v225
  %v1169 = vunpack.c.l.b16 %v226
  %v1170 = vunpack.c.h.b16 %v226
  %v1171 = vunpack.c.l.b16 %v227
  %v1172 = vunpack.c.h.b16 %v227
  %v1173 = vunpack.c.l.b16 %v228
  %v1174 = vunpack.c.h.b16 %v228
  %v1175 = vunpack.c.l.b16 %v229
  %v1176 = vunpack.c.h.b16 %v229
  %v1177 = vunpack.c.l.b16 %v230
  %v1178 = vunpack.c.h.b16 %v230
  %v1179 = vunpack.c.l.b16 %v231
  %v1180 = vunpack.c.h.b16 %v231
  %v1181 = vunpack.c.l.b16 %v232
  %v1182 = vunpack.c.h.b16 %v232
  %v1183 = vunpack.c.l.b16 %v233
  %v1184 = vunpack.c.h.b16 %v233
  %v1185 = vunpack.c.l.b16 %v234
  %v1186 = vunpack.c.h.b16 %v234
  %v1187 = vunpack.c.l.b16 %v235
  %v1188 = vunpack.c.h.b16 %v235
  %v1189 = vunpack.c.l.b16 %v236
  %v1190 = vunpack.c.h.b16 %v236
  %v1191 = vunpack.c.l.b16 %v237
  %v1192 = vunpack.c.h.b16 %v237
  %v1193 = vunpack.c.l.b16 %v238
  %v1194 = vunpack.c.h.b16 %v238
  %v1195 = vunpack.c.l.b16 %v239
  %v1196 = vunpack.c.h.b16 %v239
  %v1197 = vunpack.c.l.b16 %v240
  %v1198 = vunpack.c.h.b16 %v240
  %v1199 = vunpack.c.l.b16 %v241
  %v1200 = vunpack.c.h.b16 %v241
  %v1201 = vunpack.c.l.b16 %v242
  %v1202 = vunpack.c.h.b16 %v242
  %v1203 = vunpack.c.l.b16 %v243
  %v1204 = vunpack.c.h.b16 %v243
  %v1205 = vunpack.c.l.b16 %v244
  %v1206 = vunpack.c.h.b16 %v244
  %v1207 = vunpack.c.l.b16 %v245
  %v1208 = vunpack.c.h.b16 %v245
  %v1209 = vunpack.c.l.b16 %v246
  %v1210 = vunpack.c.h.b16 %v246
  %v1211 = vunpack.c.l.b16 %v247
  %v1212 = vunpack.c.h.b16 %v247
  %v1213 = vunpack.c.l.b16 %v248
  %v1214 = vunpack.c.h.b16 %v248
  %v1215 = vunpack.c.l.b16 %v249
  %v1216 = vunpack.c.h.b16 %v249
  %v1217 = vunpack.c.l.b16 %v250
  %v1218 = vunpack.c.h.b16 %v250
  %v1219 = vunpack.c.l.b16 %v251
  %v1220 = vunpack.c.h.b16 %v251
  %v1221 = vunpack.c.l.b16 %v252
  %v1222 = vunpack.c.h.b16 %v252
  %v1223 = vunpack.c.l.b16 %v253
  %v1224 = vunpack.c.h.b16 %v253
  %v1225 = vunpack.c.l.b16 %v254
  %v1226 = vunpack.c.h.b16 %v254
  %v1227 = vunpack.c.l.b16 %v255
  %v1228 = vunpack.c.h.b16 %v255
  %v1229 = vunpack.c.l.b16 %v256
  %v1230 = vunpack.c.h.b16 %v256
  %v1231 = vunpack.c.l.b16 %v257
  %v1232 = vunpack.c.h.b16 %v257
  %v1233 = vunpack.c.l.b16 %v258
  %v1234 = vunpack.c.h.b16 %v258
  %v1235 = vunpack.c.l.b16 %v259
  %v1236 = vunpack.c.h.b16 %v259
  %v1237 = vunpack.c.l.b16 %v260
  %v1238 = vunpack.c.h.b16 %v260
  %v1239 = vunpack.c.l.b16 %v261
  %v1240 = vunpack.c.h.b16 %v261
  %v1241 = vunpack.c.l.b16 %v262
  %v1242 = vunpack.c.h.b16 %v262
  %v1243 = vunpack.c.l.b16 %v263
  %v1244 = vunpack.c.h.b16 %v263
  %v1245 = vunpack.c.l.b16 %v264
  %v1246 = vunpack.c.h.b16 %v264
  %v1247 = vunpack.c.l.b16 %v265
  %v1248 = vunpack.c.h.b16 %v265
  %v1249 = vunpack.c.l.b16 %v266
  %v1250 = vunpack.c.h.b16 %v266
  %v1251 = vunpack.c.l.b16 %v267
  %v1252 = vunpack.c.h.b16 %v267
  %v1253 = vunpack.c.l.b16 %v268
  %v1254 = vunpack.c.h.b16 %v268
  %v1255 = vunpack.c.l.b16 %v269
  %v1256 = vunpack.c.h.b16 %v269
  %v1257 = vunpack.c.l.b16 %v270
  %v1258 = vunpack.c.h.b16 %v270
  %v1259 = vunpack.c.l.b16 %v271
  %v1260 = vunpack.c.h.b16 %v271
  %v1261 = vunpack.c.l.b16 %v272
  %v1262 = vunpack.c.h.b16 %v272
  %v1263 = vunpack.c.l.b16 %v273
  %v1264 = vunpack.c.h.b16 %v273
  %v1265 = vunpack.c.l.b16 %v274
  %v1266 = vunpack.c.h.b16 %v274
  %v1267 = vunpack.c.l.b16 %v275
  %v1268 = vunpack.c.h.b16 %v275
  %v1269 = vunpack.c.l.b16 %v276
  %v1270 = vunpack.c.h.b16 %v276
  %v1271 = vunpack.c.l.b16 %v277
  %v1272 = vunpack.c.h.b16 %v277
  %v1273 = vunpack.c.l.b16 %v278
  %v1274 = vunpack.c.h.b16 %v278
  %v1275 = vunpack.c.l.b16 %v279
  %v1276 = vunpack.c.h.b16 %v279
  %v1277 = vunpack.c.l.b16 %v280
  %v1278 = vunpack.c.h.b16 %v280
  %v1279 = vunpack.c.l.b16 %v281
  %v1280 = vunpack.c.h.b16 %v281
  %v1281 = vunpack.c.l.b16 %v282
  %v1282 = vunpack.c.h.b16 %v282
  %v1283 = vunpack.c.l.b16 %v283
  %v1284 = vunpack.c.h.b16 %v283
  %v1285 = vunpack.c.l.b16 %v284
  %v1286 = vunpack.c.h.b16 %v284
  %v1287 = vunpack.c.l.b16 %v285
  %v1288 = vunpack.c.h.b16 %v285
  %v1289 = vunpack.c.l.b16 %v286
  %v1290 = vunpack.c.h.b16 %v286
  %v1291 = vunpack.c.l.b16 %v287
  %v1292 = vunpack.c.h.b16 %v287
  %v1293 = vunpack.c.l.b16 %v288
  %v1294 = vunpack.c.h.b16 %v288
  %v1295 = vunpack.c.l.b16 %v289
  %v1296 = vunpack.c.h.b16 %v289
  %v1297 = vunpack.c.l.b16 %v290
  %v1298 = vunpack.c.h.b16 %v290
  %v1299 = vunpack.c.l.b16 %v291
  %v1300 = vunpack.c.h.b16 %v291
  %v1301 = vunpack.c.l.b16 %v292
  %v1302 = vunpack.c.h.b16 %v292
  %v1303 = vunpack.c.l.b16 %v293
  %v1304 = vunpack.c.h.b16 %v293
  %v1305 = vunpack.c.l.b16 %v294
  %v1306 = vunpack.c.h.b16 %v294
  %v1307 = vunpack.c.l.b16 %v295
  %v1308 = vunpack.c.h.b16 %v295
  %v1309 = vunpack.c.l.b16 %v296
  %v1310 = vunpack.c.h.b16 %v296
  %v1311 = vunpack.c.l.b16 %v297
  %v1312 = vunpack.c.h.b16 %v297
  %v1313 = vunpack.c.l.b16 %v298
  %v1314 = vunpack.c.h.b16 %v298
  %v1315 = vunpack.c.l.b16 %v299
  %v1316 = vunpack.c.h.b16 %v299
  %v1317 = vunpack.c.l.b16 %v300
  %v1318 = vunpack.c.h.b16 %v300
  %v1319 = vunpack.c.l.b16 %v301
  %v1320 = vunpack.c.h.b16 %v301
  %v1321 = vunpack.c.l.b16 %v302
  %v1322 = vunpack.c.h.b16 %v302
  %v1323 = vunpack.c.l.b16 %v303
  %v1324 = vunpack.c.h.b16 %v303
  %v1325 = vunpack.c.l.b16 %v304
  %v1326 = vunpack.c.h.b16 %v304
  %v1327 = vunpack.c.l.b16 %v305
  %v1328 = vunpack.c.h.b16 %v305
  %v1329 = vunpack.c.l.b16 %v306
  %v1330 = vunpack.c.h.b16 %v306
  %v1331 = vunpack.c.l.b16 %v307
  %v1332 = vunpack.c.h.b16 %v307
  %v1333 = vunpack.c.l.b16 %v308
  %v1334 = vunpack.c.h.b16 %v308
  %v1335 = vunpack.c.l.b16 %v309
  %v1336 = vunpack.c.h.b16 %v309
  %v1337 = vunpack.c.l.b16 %v310
  %v1338 = vunpack.c.h.b16 %v310
  %v1339 = vunpack.c.l.b16 %v311
  %v1340 = vunpack.c.h.b16 %v311
  %v1341 = vunpack.c.l.b16 %v312
  %v1342 = vunpack.c.h.b16 %v312
  %v1343 = vunpack.c.l.b16 %v313
  %v1344 = vunpack.c.h.b16 %v313
  %v1345 = vunpack.c.l.b16 %v314
  %v1346 = vunpack.c.h.b16 %v314
  %v1347 = vunpack.c.l.b16 %v315
  %v1348 = vunpack.c.h.b16 %v315
  %v1349 = vunpack.c.l.b16 %v316
  %v1350 = vunpack.c.h.b16 %v316
  %v1351 = vunpack.c.l.b16 %v317
  %v1352 = vunpack.c.h.b16 %v317
  %v1353 = vunpack.c.l.b16 %v318
  %v1354 = vunpack.c.h.b16 %v318
  %v1355 = vunpack.c.l.b16 %v319
  %v1356 = vunpack.c.h.b16 %v319
  %v1357 = vunpack.c.l.b16 %v320
  %v1358 = vunpack.c.h.b16 %v320
  %v1359 = vunpack.c.l.b16 %v321
  %v1360 = vunpack.c.h.b16 %v321
  %v1361 = vunpack.c.l.b16 %v322
  %v1362 = vunpack.c.h.b16 %v322
  %v1363 = vunpack.c.l.b16 %v323
  %v1364 = vunpack.c.h.b16 %v323
  %v1365 = vunpack.c.l.b16 %v324
  %v1366 = vunpack.c.h.b16 %v324
  %v1367 = vunpack.c.l.b16 %v325
  %v1368 = vunpack.c.h.b16 %v325
  %v1369 = vunpack.c.l.b16 %v326
  %v1370 = vunpack.c.h.b16 %v326
  %v1371 = vunpack.c.l.b16 %v327
  %v1372 = vunpack.c.h.b16 %v327
  %v1373 = vunpack.c.l.b16 %v328
  %v1374 = vunpack.c.h.b16 %v328
  %v1375 = vunpack.c.l.b16 %v329
  %v1376 = vunpack.c.h.b16 %v329
  %v1377 = vunpack.c.l.b16 %v330
  %v1378 = vunpack.c.h.b16 %v330
  %v1379 = vunpack.c.l.b16 %v331
  %v1380 = vunpack.c.h.b16 %v331
  %v1381 = vunpack.c.l.b16 %v332
  %v1382 = vunpack.c.h.b16 %v332
  %v1383 = vunpack.c.l.b16 %v333
  %v1384 = vunpack.c.h.b16 %v333
  %v1385 = vunpack.c.l.b16 %v334
  %v1386 = vunpack.c.h.b16 %v334
  %v1387 = vunpack.c.l.b16 %v335
  %v1388 = vunpack.c.h.b16 %v335
  %v1389 = vunpack.c.l.b16 %v336
  %v1390 = vunpack.c.h.b16 %v336
  %v1391 = vunpack.c.l.b16 %v337
  %v1392 = vunpack.c.h.b16 %v337
  %v1393 = vunpack.c.l.b16 %v338
  %v1394 = vunpack.c.h.b16 %v338
  %v1395 = vunpack.c.l.b16 %v339
  %v1396 = vunpack.c.h.b16 %v339
  %v1397 = vunpack.c.l.b16 %v340
  %v1398 = vunpack.c.h.b16 %v340
  %v1399 = vunpack.c.l.b16 %v341
  %v1400 = vunpack.c.h.b16 %v341
  %v1401 = vunpack.c.l.b16 %v342
  %v1402 = vunpack.c.h.b16 %v342
  %v1403 = vunpack.c.l.b16 %v343
  %v1404 = vunpack.c.h.b16 %v343
  %v1405 = vunpack.c.l.b16 %v344
  %v1406 = vunpack.c.h.b16 %v344
  %v1407 = vunpack.c.l.b16 %v345
  %v1408 = vunpack.c.h.b16 %v345
  %v1409 = vunpack.c.l.b16 %v346
  %v1410 = vunpack.c.h.b16 %v346
  %v1411 = vunpack.c.l.b16 %v347
  %v1412 = vunpack.c.h.b16 %v347
  %v1413 = vunpack.c.l.b16 %v348
  %v1414 = vunpack.c.h.b16 %v348
  %v1415 = vunpack.c.l.b16 %v349
  %v1416 = vunpack.c.h.b16 %v349
  %v1417 = vunpack.c.l.b16 %v350
  %v1418 = vunpack.c.h.b16 %v350
  %v1419 = vunpack.c.l.b16 %v351
  %v1420 = vunpack.c.h.b16 %v351
  %v1421 = vunpack.c.l.b16 %v352
  %v1422 = vunpack.c.h.b16 %v352
  %v1423 = vunpack.c.l.b16 %v353
  %v1424 = vunpack.c.h.b16 %v353
  %v1425 = vunpack.c.l.b16 %v354
  %v1426 = vunpack.c.h.b16 %v354
  %v1427 = vunpack.c.l.b16 %v355
  %v1428 = vunpack.c.h.b16 %v355
  %v1429 = vunpack.c.l.b16 %v356
  %v1430 = vunpack.c.h.b16 %v356
  %v1431 = vunpack.c.l.b16 %v357
  %v1432 = vunpack.c.h.b16 %v357
  %v1433 = vunpack.c.l.b16 %v358
  %v1434 = vunpack.c.h.b16 %v358
  %v1435 = vunpack.c.l.b16 %v359
  %v1436 = vunpack.c.h.b16 %v359
  %v1437 = vunpack.c.l.b16 %v360
  %v1438 = vunpack.c.h.b16 %v360
  %v1439 = vunpack.c.l.b16 %v361
  %v1440 = vunpack.c.h.b16 %v361
  %v1441 = vunpack.c.l.b16 %v362
  %v1442 = vunpack.c.h.b16 %v362
  %v1443 = vunpack.c.l.b16 %v363
  %v1444 = vunpack.c.h.b16 %v363
  %v1445 = vunpack.c.l.b16 %v364
  %v1446 = vunpack.c.h.b16 %v364
  %v1447 = vunpack.c.l.b16 %v365
  %v1448 = vunpack.c.h.b16 %v365
  %v1449 = vunpack.c.l.b16 %v366
  %v1450 = vunpack.c.h.b16 %v366
  %v1451 = vunpack.c.l.b16 %v367
  %v1452 = vunpack.c.h.b16 %v367
  %v1453 = vunpack.c.l.b16 %v368
  %v1454 = vunpack.c.h.b16 %v368
  %v1455 = vunpack.c.l.b16 %v369
  %v1456 = vunpack.c.h.b16 %v369
  %v1457 = vunpack.c.l.b16 %v370
  %v1458 = vunpack.c.h.b16 %v370
  %v1459 = vunpack.c.l.b16 %v371
  %v1460 = vunpack.c.h.b16 %v371
  %v1461 = vunpack.c.l.b16 %v372
  %v1462 = vunpack.c.h.b16 %v372
  %v1463 = vunpack.c.l.b16 %v373
  %v1464 = vunpack.c.h.b16 %v373
  %v1465 = vunpack.c.l.b16 %v374
  %v1466 = vunpack.c.h.b16 %v374
  %v1467 = vunpack.c.l.b16 %v375
  %v1468 = vunpack.c.h.b16 %v375
  %v1469 = vunpack.c.l.b16 %v376
  %v1470 = vunpack.c.h.b16 %v376
  %v1471 = vunpack.c.l.b16 %v377
  %v1472 = vunpack.c.h.b16 %v377
  %v1473 = vunpack.c.l.b16 %v378
  %v1474 = vunpack.c.h.b16 %v378
  %v1475 = vunpack.c.l.b16 %v379
  %v1476 = vunpack.c.h.b16 %v379
  %v1477 = vunpack.c.l.b16 %v380
  %v1478 = vunpack.c.h.b16 %v380
  %v1479 = vunpack.c.l.b16 %v381
  %v1480 = vunpack.c.h.b16 %v381
  %v1481 = vunpack.c.l.b16 %v382
  %v1482 = vunpack.c.h.b16 %v382
  %v1483 = vunpack.c.l.b16 %v383
  %v1484 = vunpack.c.h.b16 %v383
  %v1485 = vunpack.c.l.b16 %v384
  %v1486 = vunpack.c.h.b16 %v384
  %v1487 = vunpack.c.l.b16 %v385
  %v1488 = vunpack.c.h.b16 %v385
  %v1489 = vunpack.c.l.b16 %v386
  %v1490 = vunpack.c.h.b16 %v386
  %v1491 = vunpack.c.l.b16 %v387
  %v1492 = vunpack.c.h.b16 %v387
  %v1493 = vunpack.c.l.b16 %v388
  %v1494 = vunpack.c.h.b16 %v388
  %v1495 = vunpack.c.l.b16 %v389
  %v1496 = vunpack.c.h.b16 %v389
  %v1497 = vunpack.c.l.b16 %v390
  %v1498 = vunpack.c.h.b16 %v390
  %v1499 = vunpack.c.l.b16 %v391
  %v1500 = vunpack.c.h.b16 %v391
  %v1501 = vunpack.c.l.b16 %v392
  %v1502 = vunpack.c.h.b16 %v392
  %v1503 = vunpack.c.l.b16 %v393
  %v1504 = vunpack.c.h.b16 %v393
  %v1505 = vunpack.c.l.b16 %v394
  %v1506 = vunpack.c.h.b16 %v394
  %v1507 = vunpack.c.l.b16 %v395
  %v1508 = vunpack.c.h.b16 %v395
  %v1509 = vunpack.c.l.b16 %v396
  %v1510 = vunpack.c.h.b16 %v396
  %v1511 = vunpack.c.l.b16 %v397
  %v1512 = vunpack.c.h.b16 %v397
  %v1513 = vunpack.c.l.b16 %v398
  %v1514 = vunpack.c.h.b16 %v398
  %v1515 = vunpack.c.l.b16 %v399
  %v1516 = vunpack.c.h.b16 %v399
  %v1517 = vunpack.c.l.b16 %v400
  %v1518 = vunpack.c.h.b16 %v400
  %v1519 = vunpack.c.l.b16 %v401
  %v1520 = vunpack.c.h.b16 %v401
  %v1521 = vunpack.c.l.b16 %v402
  %v1522 = vunpack.c.h.b16 %v402
  %v1523 = vunpack.c.l.b16 %v403
  %v1524 = vunpack.c.h.b16 %v403
  %v1525 = vunpack.c.l.b16 %v404
  %v1526 = vunpack.c.h.b16 %v404
  %v1527 = vunpack.c.l.b16 %v405
  %v1528 = vunpack.c.h.b16 %v405
  %v1529 = vunpack.c.l.b16 %v406
  %v1530 = vunpack.c.h.b16 %v406
  %v1531 = vunpack.c.l.b16 %v407
  %v1532 = vunpack.c.h.b16 %v407
  %v1533 = vunpack.c.l.b16 %v408
  %v1534 = vunpack.c.h.b16 %v408
  %v1535 = vunpack.c.l.b16 %v409
  %v1536 = vunpack.c.h.b16 %v409
  %v1537 = vunpack.c.l.b16 %v410
  %v1538 = vunpack.c.h.b16 %v410
  %v1539 = vunpack.c.l.b16 %v411
  %v1540 = vunpack.c.h.b16 %v411
  %v1541 = vunpack.c.l.b16 %v412
  %v1542 = vunpack.c.h.b16 %v412
  %v1543 = vunpack.c.l.b16 %v413
  %v1544 = vunpack.c.h.b16 %v413
  %v1545 = vunpack.c.l.b16 %v414
  %v1546 = vunpack.c.h.b16 %v414
  %v1547 = vunpack.c.l.b16 %v415
  %v1548 = vunpack.c.h.b16 %v415
  %v1549 = vunpack.c.l.b16 %v416
  %v1550 = vunpack.c.h.b16 %v416
  %v1551 = vunpack.c.l.b16 %v417
  %v1552 = vunpack.c.h.b16 %v417
  %v1553 = vunpack.c.l.b16 %v418
  %v1554 = vunpack.c.h.b16 %v418
  %v1555 = vunpack.c.l.b16 %v419
  %v1556 = vunpack.c.h.b16 %v419
  %v1557 = vunpack.c.l.b16 %v420
  %v1558 = vunpack.c.h.b16 %v420
  %v1559 = vunpack.c.l.b16 %v421
  %v1560 = vunpack.c.h.b16 %v421
  %v1561 = vunpack.c.l.b16 %v422
  %v1562 = vunpack.c.h.b16 %v422
  %v1563 = vunpack.c.l.b16 %v423
  %v1564 = vunpack.c.h.b16 %v423
  %v1565 = vunpack.c.l.b16 %v424
  %v1566 = vunpack.c.h.b16 %v424
  %v1567 = vunpack.c.l.b16 %v425
  %v1568 = vunpack.c.h.b16 %v425
  %v1569 = vunpack.c.l.b16 %v426
  %v1570 = vunpack.c.h.b16 %v426
  %v1571 = vunpack.c.l.b16 %v427
  %v1572 = vunpack.c.h.b16 %v427
  %v1573 = vunpack.c.l.b16 %v428
  %v1574 = vunpack.c.h.b16 %v428
  %v1575 = vunpack.c.l.b16 %v429
  %v1576 = vunpack.c.h.b16 %v429
  %v1577 = vunpack.c.l.b16 %v430
  %v1578 = vunpack.c.h.b16 %v430
  %v1579 = vunpack.c.l.b16 %v431
  %v1580 = vunpack.c.h.b16 %v431
  %v1581 = vunpack.c.l.b16 %v432
  %v1582 = vunpack.c.h.b16 %v432
  %v1583 = vunpack.c.l.b16 %v433
  %v1584 = vunpack.c.h.b16 %v433
  %v1585 = vunpack.c.l.b16 %v434
  %v1586 = vunpack.c.h.b16 %v434
  %v1587 = vunpack.c.l.b16 %v435
  %v1588 = vunpack.c.h.b16 %v435
  %v1589 = vpack.c.b16 %v829, %v821
  %v1590 = vpack.c.b16 %v830, %v822
  %v1591 = vpack.c.b16 %v831, %v823
  %v1592 = vpack.c.b16 %v832, %v824
  %v1593 = vpack.c.b16 %v833, %v825
  %v1594 = vpack.c.b16 %v834, %v826
  %v1595 = vpack.c.b16 %v835, %v827
  %v1596 = vpack.c.b16 %v836, %v828
  %v1597 = vpack.c.b16 %v845, %v837
  %v1598 = vpack.c.b16 %v846, %v838
  %v1599 = vpack.c.b16 %v847, %v839
  %v1600 = vpack.c.b16 %v848, %v840
  %v1601 = vpack.c.b16 %v849, %v841
  %v1602 = vpack.c.b16 %v850, %v842
  %v1603 = vpack.c.b16 %v851, %v843
  %v1604 = vpack.c.b16 %v852, %v844
  %v1605 = vpack.c.b16 %v861, %v853
  %v1606 = vpack.c.b16 %v862, %v854
  %v1607 = vpack.c.b16 %v863, %v855
  %v1608 = vpack.c.b16 %v864, %v856
  %v1609 = vpack.c.b16 %v865, %v857
  %v1610 = vpack.c.b16 %v866, %v858
  %v1611 = vpack.c.b16 %v867, %v859
  %v1612 = vpack.c.b16 %v868, %v860
  %v1613 = vpack.c.b16 %v877, %v869
  %v1614 = vpack.c.b16 %v878, %v870
  %v1615 = vpack.c.b16 %v879, %v871
  %v1616 = vpack.c.b16 %v880, %v872
  %v1617 = vpack.c.b16 %v881, %v873
  %v1618 = vpack.c.b16 %v882, %v874
  %v1619 = vpack.c.b16 %v883, %v875
  %v1620 = vpack.c.b16 %v884, %v876
  %v1621 = vpack.c.b16 %v893, %v885
  %v1622 = vpack.c.b16 %v894, %v886
  %v1623 = vpack.c.b16 %v895, %v887
  %v1624 = vpack.c.b16 %v896, %v888
  %v1625 = vpack.c.b16 %v897, %v889
  %v1626 = vpack.c.b16 %v898, %v890
  %v1627 = vpack.c.b16 %v899, %v891
  %v1628 = vpack.c.b16 %v900, %v892
  %v1629 = vpack.c.b16 %v909, %v901
  %v1630 = vpack.c.b16 %v910, %v902
  %v1631 = vpack.c.b16 %v911, %v903
  %v1632 = vpack.c.b16 %v912, %v904
  %v1633 = vpack.c.b16 %v913, %v905
  %v1634 = vpack.c.b16 %v914, %v906
  %v1635 = vpack.c.b16 %v915, %v907
  %v1636 = vpack.c.b16 %v916, %v908
  %v1637 = vpack.c.b16 %v925, %v917
  %v1638 = vpack.c.b16 %v926, %v918
  %v1639 = vpack.c.b16 %v927, %v919
  %v1640 = vpack.c.b16 %v928, %v920
  %v1641 = vpack.c.b16 %v929, %v921
  %v1642 = vpack.c.b16 %v930, %v922
  %v1643 = vpack.c.b16 %v931, %v923
  %v1644 = vpack.c.b16 %v932, %v924
  %v1645 = vpack.c.b16 %v941, %v933
  %v1646 = vpack.c.b16 %v942, %v934
  %v1647 = vpack.c.b16 %v943, %v935
  %v1648 = vpack.c.b16 %v944, %v936
  %v1649 = vpack.c.b16 %v945, %v937
  %v1650 = vpack.c.b16 %v946, %v938
  %v1651 = vpack.c.b16 %v947, %v939
  %v1652 = vpack.c.b16 %v948, %v940
  %v1653 = vpack.c.b16 %v957, %v949
  %v1654 = vpack.c.b16 %v958, %v950
  %v1655 = vpack.c.b16 %v959, %v951
  %v1656 = vpack.c.b16 %v960, %v952
  %v1657 = vpack.c.b16 %v961, %v953
  %v1658 = vpack.c.b16 %v962, %v954
  %v1659 = vpack.c.b16 %v963, %v955
  %v1660 = vpack.c.b16 %v964, %v956
  %v1661 = vpack.c.b16 %v973, %v965
  %v1662 = vpack.c.b16 %v974, %v966
  %v1663 = vpack.c.b16 %v975, %v967
  %v1664 = vpack.c.b16 %v976, %v968
  %v1665 = vpack.c.b16 %v977, %v969
  %v1666 = vpack.c.b16 %v978, %v970
  %v1667 = vpack.c.b16 %v979, %v971
  %v1668 = vpack.c.b16 %v980, %v972
  %v1669 = vpack.c.b16 %v989, %v981
  %v1670 = vpack.c.b16 %v990, %v982
  %v1671 = vpack.c.b16 %v991, %v983
  %v1672 = vpack.c.b16 %v992, %v984
  %v1673 = vpack.c.b16 %v993, %v985
  %v1674 = vpack.c.b16 %v994, %v986
  %v1675 = vpack.c.b16 %v995, %v987
  %v1676 = vpack.c.b16 %v996, %v988
  %v1677 = vpack.c.b16 %v1005, %v997
  %v1678 = vpack.c.b16 %v1006, %v998
  %v1679 = vpack.c.b16 %v1007, %v999
  %v1680 = vpack.c.b16 %v1008, %v1000
  %v1681 = vpack.c.b16 %v1009, %v1001
  %v1682 = vpack.c.b16 %v1010, %v1002
  %v1683 = vpack.c.b16 %v1011, %v1003
  %v1684 = vpack.c.b16 %v1012, %v1004
  %v1685 = vpack.c.b16 %v1021, %v1013
  %v1686 = vpack.c.b16 %v1022, %v1014
  %v1687 = vpack.c.b16 %v1023, %v1015
  %v1688 = vpack.c.b16 %v1024, %v1016
  %v1689 = vpack.c.b16 %v1025, %v1017
  %v1690 = vpack.c.b16 %v1026, %v1018
  %v1691 = vpack.c.b16 %v1027, %v1019
  %v1692 = vpack.c.b16 %v1028, %v1020
  %v1693 = vpack.c.b16 %v1037, %v1029
  %v1694 = vpack.c.b16 %v1038, %v1030
  %v1695 = vpack.c.b16 %v1039, %v1031
  %v1696 = vpack.c.b16 %v1040, %v1032
  %v1697 = vpack.c.b16 %v1041, %v1033
  %v1698 = vpack.c.b16 %v1042, %v1034
  %v1699 = vpack.c.b16 %v1043, %v1035
  %v1700 = vpack.c.b16 %v1044, %v1036
  %v1701 = vpack.c.b16 %v1053, %v1045
  %v1702 = vpack.c.b16 %v1054, %v1046
  %v1703 = vpack.c.b16 %v1055, %v1047
  %v1704 = vpack.c.b16 %v1056, %v1048
  %v1705 = vpack.c.b16 %v1057, %v1049
  %v1706 = vpack.c.b16 %v1058, %v1050
  %v1707 = vpack.c.b16 %v1059, %v1051
  %v1708 = vpack.c.b16 %v1060, %v1052
  %v1709 = vpack.c.b16 %v1069, %v1061
  %v1710 = vpack.c.b16 %v1070, %v1062
  %v1711 = vpack.c.b16 %v1071, %v1063
  %v1712 = vpack.c.b16 %v1072, %v1064
  %v1713 = vpack.c.b16 %v1073, %v1065
  %v1714 = vpack.c.b16 %v1074, %v1066
  %v1715 = vpack.c.b16 %v1075, %v1067
  %v1716 = vpack.c.b16 %v1076, %v1068
  %v1717 = vpack.c.b16 %v1085, %v1077
  %v1718 = vpack.c.b16 %v1086, %v1078
  %v1719 = vpack.c.b16 %v1087, %v1079
  %v1720 = vpack.c.b16 %v1088, %v1080
  %v1721 = vpack.c.b16 %v1089, %v1081
  %v1722 = vpack.c.b16 %v1090, %v1082
  %v1723 = vpack.c.b16 %v1091, %v1083
  %v1724 = vpack.c.b16 %v1092, %v1084
  %v1725 = vpack.c.b16 %v1101, %v1093
  %v1726 = vpack.c.b16 %v1102, %v1094
  %v1727 = vpack.c.b16 %v1103, %v1095
  %v1728 = vpack.c.b16 %v1104, %v1096
  %v1729 = vpack.c.b16 %v1105, %v1097
  %v1730 = vpack.c.b16 %v1106, %v1098
  %v1731 = vpack.c.b16 %v1107, %v1099
  %v1732 = vpack.c.b16 %v1108, %v1100
  %v1733 = vpack.c.b16 %v1117, %v1109
  %v1734 = vpack.c.b16 %v1118, %v1110
  %v1735 = vpack.c.b16 %v1119, %v1111
  %v1736 = vpack.c.b16 %v1120, %v1112
  %v1737 = vpack.c.b16 %v1121, %v1113
  %v1738 = vpack.c.b16 %v1122, %v1114
  %v1739 = vpack.c.b16 %v1123, %v1115
  %v1740 = vpack.c.b16 %v1124, %v1116
  %v1741 = vpack.c.b16 %v1133, %v1125
  %v1742 = vpack.c.b16 %v1134, %v1126
  %v1743 = vpack.c.b16 %v1135, %v1127
  %v1744 = vpack.c.b16 %v1136, %v1128
  %v1745 = vpack.c.b16 %v1137, %v1129
  %v1746 = vpack.c.b16 %v1138, %v1130
  %v1747 = vpack.c.b16 %v1139, %v1131
  %v1748 = vpack.c.b16 %v1140, %v1132
  %v1749 = vpack.c.b16 %v1149, %v1141
  %v1750 = vpack.c.b16 %v1150, %v1142
  %v1751 = vpack.c.b16 %v1151, %v1143
  %v1752 = vpack.c.b16 %v1152, %v1144
  %v1753 = vpack.c.b16 %v1153, %v1145
  %v1754 = vpack.c.b16 %v1154, %v1146
  %v1755 = vpack.c.b16 %v1155, %v1147
  %v1756 = vpack.c.b16 %v1156, %v1148
  %v1757 = vpack.c.b16 %v1165, %v1157
  %v1758 = vpack.c.b16 %v1166, %v1158
  %v1759 = vpack.c.b16 %v1167, %v1159
  %v1760 = vpack.c.b16 %v1168, %v1160
  %v1761 = vpack.c.b16 %v1169, %v1161
  %v1762 = vpack.c.b16 %v1170, %v1162
  %v1763 = vpack.c.b16 %v1171, %v1163
  %v1764 = vpack.c.b16 %v1172, %v1164
  %v1765 = vpack.c.b16 %v1181, %v1173
  %v1766 = vpack.c.b16 %v1182, %v1174
  %v1767 = vpack.c.b16 %v1183, %v1175
  %v1768 = vpack.c.b16 %v1184, %v1176
  %v1769 = vpack.c.b16 %v1185, %v1177
  %v1770 = vpack.c.b16 %v1186, %v1178
  %v1771 = vpack.c.b16 %v1187, %v1179
  %v1772 = vpack.c.b16 %v1188, %v1180
  %v1773 = vpack.c.b16 %v1197, %v1189
  %v1774 = vpack.c.b16 %v1198, %v1190
  %v1775 = vpack.c.b16 %v1199, %v1191
  %v1776 = vpack.c.b16 %v1200, %v1192
  %v1777 = vpack.c.b16 %v1201, %v1193
  %v1778 = vpack.c.b16 %v1202, %v1194
  %v1779 = vpack.c.b16 %v1203, %v1195
  %v1780 = vpack.c.b16 %v1204, %v1196
  %v1781 = vpack.c.b16 %v1213, %v1205
  %v1782 = vpack.c.b16 %v1214, %v1206
  %v1783 = vpack.c.b16 %v1215, %v1207
  %v1784 = vpack.c.b16 %v1216, %v1208
  %v1785 = vpack.c.b16 %v1217, %v1209
  %v1786 = vpack.c.b16 %v1218, %v1210
  %v1787 = vpack.c.b16 %v1219, %v1211
  %v1788 = vpack.c.b16 %v1220, %v1212
  %v1789 = vpack.c.b16 %v1229, %v1221
  %v1790 = vpack.c.b16 %v1230, %v1222
  %v1791 = vpack.c.b16 %v1231, %v1223
  %v1792 = vpack.c.b16 %v1232, %v1224
  %v1793 = vpack.c.b16 %v1233, %v1225
  %v1794 = vpack.c.b16 %v1234, %v1226
  %v1795 = vpack.c.b16 %v1235, %v1227
  %v1796 = vpack.c.b16 %v1236, %v1228
  %v1797 = vpack.c.b16 %v1245, %v1237
  %v1798 = vpack.c.b16 %v1246, %v1238
  %v1799 = vpack.c.b16 %v1247, %v1239
  %v1800 = vpack.c.b16 %v1248, %v1240
  %v1801 = vpack.c.b16 %v1249, %v1241
  %v1802 = vpack.c.b16 %v1250, %v1242
  %v1803 = vpack.c.b16 %v1251, %v1243
  %v1804 = vpack.c.b16 %v1252, %v1244
  %v1805 = vpack.c.b16 %v1261, %v1253
  %v1806 = vpack.c.b16 %v1262, %v1254
  %v1807 = vpack.c.b16 %v1263, %v1255
  %v1808 = vpack.c.b16 %v1264, %v1256
  %v1809 = vpack.c.b16 %v1265, %v1257
  %v1810 = vpack.c.b16 %v1266, %v1258
  %v1811 = vpack.c.b16 %v1267, %v1259
  %v1812 = vpack.c.b16 %v1268, %v1260
  %v1813 = vpack.c.b16 %v1277, %v1269
  %v1814 = vpack.c.b16 %v1278, %v1270
  %v1815 = vpack.c.b16 %v1279, %v1271
  %v1816 = vpack.c.b16 %v1280, %v1272
  %v1817 = vpack.c.b16 %v1281, %v1273
  %v1818 = vpack.c.b16 %v1282, %v1274
  %v1819 = vpack.c.b16 %v1283, %v1275
  %v1820 = vpack.c.b16 %v1284, %v1276
  %v1821 = vpack.c.b16 %v1293, %v1285
  %v1822 = vpack.c.b16 %v1294, %v1286
  %v1823 = vpack.c.b16 %v1295, %v1287
  %v1824 = vpack.c.b16 %v1296, %v1288
  %v1825 = vpack.c.b16 %v1297, %v1289
  %v1826 = vpack.c.b16 %v1298, %v1290
  %v1827 = vpack.c.b16 %v1299, %v1291
  %v1828 = vpack.c.b16 %v1300, %v1292
  %v1829 = vpack.c.b16 %v1309, %v1301
  %v1830 = vpack.c.b16 %v1310, %v1302
  %v1831 = vpack.c.b16 %v1311, %v1303
  %v1832 = vpack.c.b16 %v1312, %v1304
  %v1833 = vpack.c.b16 %v1313, %v1305
  %v1834 = vpack.c.b16 %v1314, %v1306
  %v1835 = vpack.c.b16 %v1315, %v1307
  %v1836 = vpack.c.b16 %v1316, %v1308
  %v1837 = vpack.c.b16 %v1325, %v1317
  %v1838 = vpack.c.b16 %v1326, %v1318
  %v1839 = vpack.c.b16 %v1327, %v1319
  %v1840 = vpack.c.b16 %v1328, %v1320
  %v1841 = vpack.c.b16 %v1329, %v1321
  %v1842 = vpack.c.b16 %v1330, %v1322
  %v1843 = vpack.c.b16 %v1331, %v1323
  %v1844 = vpack.c.b16 %v1332, %v1324
  %v1845 = vpack.c.b16 %v1341, %v1333
  %v1846 = vpack.c.b16 %v1342, %v1334
  %v1847 = vpack.c.b16 %v1343, %v1335
  %v1848 = vpack.c.b16 %v1344, %v1336
  %v1849 = vpack.c.b16 %v1345, %v1337
  %v1850 = vpack.c.b16 %v1346, %v1338
  %v1851 = vpack.c.b16 %v1347, %v1339
  %v1852 = vpack.c.b16 %v1348, %v1340
  %v1853 = vpack.c.b16 %v1357, %v1349
  %v1854 = vpack.c.b16 %v1358, %v1350
  %v1855 = vpack.c.b16 %v1359, %v1351
  %v1856 = vpack.c.b16 %v1360, %v1352
  %v1857 = vpack.c.b16 %v1361, %v1353
  %v1858 = vpack.c.b16 %v1362, %v1354
  %v1859 = vpack.c.b16 %v1363, %v1355
  %v1860 = vpack.c.b16 %v1364, %v1356
  %v1861 = vpack.c.b16 %v1373, %v1365
  %v1862 = vpack.c.b16 %v1374, %v1366
  %v1863 = vpack.c.b16 %v1375, %v1367
  %v1864 = vpack.c.b16 %v1376, %v1368
  %v1865 = vpack.c.b16 %v1377, %v1369
  %v1866 = vpack.c.b16 %v1378, %v1370
  %v1867 = vpack.c.b16 %v1379, %v1371
  %v1868 = vpack.c.b16 %v1380, %v1372
  %v1869 = vpack.c.b16 %v1389, %v1381
  %v1870 = vpack.c.b16 %v1390, %v1382
  %v1871 = vpack.c.b16 %v1391, %v1383
  %v1872 = vpack.c.b16 %v1392, %v1384
  %v1873 = vpack.c.b16 %v1393, %v1385
  %v1874 = vpack.c.b16 %v1394, %v1386
  %v1875 = vpack.c.b16 %v1395, %v1387
  %v1876 = vpack.c.b16 %v1396, %v1388
  %v1877 = vpack.c.b16 %v1405, %v1397
  %v1878 = vpack.c.b16 %v1406, %v1398
  %v1879 = vpack.c.b16 %v1407, %v1399
  %v1880 = vpack.c.b16 %v1408, %v1400
  %v1881 = vpack.c.b16 %v1409, %v1401
  %v1882 = vpack.c.b16 %v1410, %v1402
  %v1883 = vpack.c.b16 %v1411, %v1403
  %v1884 = vpack.c.b16 %v1412, %v1404
  %v1885 = vpack.c.b16 %v1421, %v1413
  %v1886 = vpack.c.b16 %v1422, %v1414
  %v1887 = vpack.c.b16 %v1423, %v1415
  %v1888 = vpack.c.b16 %v1424, %v1416
  %v1889 = vpack.c.b16 %v1425, %v1417
  %v1890 = vpack.c.b16 %v1426, %v1418
  %v1891 = vpack.c.b16 %v1427, %v1419
  %v1892 = vpack.c.b16 %v1428, %v1420
  %v1893 = vpack.c.b16 %v1437, %v1429
  %v1894 = vpack.c.b16 %v1438, %v1430
  %v1895 = vpack.c.b16 %v1439, %v1431
  %v1896 = vpack.c.b16 %v1440, %v1432
  %v1897 = vpack.c.b16 %v1441, %v1433
  %v1898 = vpack.c.b16 %v1442, %v1434
  %v1899 = vpack.c.b16 %v1443, %v1435
  %v1900 = vpack.c.b16 %v1444, %v1436
  %v1901 = vpack.c.b16 %v1453, %v1445
  %v1902 = vpack.c.b16 %v1454, %v1446
  %v1903 = vpack.c.b16 %v1455, %v1447
  %v1904 = vpack.c.b16 %v1456, %v1448
  %v1905 = vpack.c.b16 %v1457, %v1449
  %v1906 = vpack.c.b16 %v1458, %v1450
  %v1907 = vpack.c.b16 %v1459, %v1451
  %v1908 = vpack.c.b16 %v1460, %v1452
  %v1909 = vpack.c.b16 %v1469, %v1461
  %v1910 = vpack.c.b16 %v1470, %v1462
  %v1911 = vpack.c.b16 %v1471, %v1463
  %v1912 = vpack.c.b16 %v1472, %v1464
  %v1913 = vpack.c.b16 %v1473, %v1465
  %v1914 = vpack.c.b16 %v1474, %v1466
  %v1915 = vpack.c.b16 %v1475, %v1467
  %v1916 = vpack.c.b16 %v1476, %v1468
  %v1917 = vpack.c.b16 %v1485, %v1477
  %v1918 = vpack.c.b16 %v1486, %v1478
  %v1919 = vpack.c.b16 %v1487, %v1479
  %v1920 = vpack.c.b16 %v1488, %v1480
  %v1921 = vpack.c.b16 %v1489, %v1481
  %v1922 = vpack.c.b16 %v1490, %v1482
  %v1923 = vpack.c.b16 %v1491, %v1483
  %v1924 = vpack.c.b16 %v1492, %v1484
  %v1925 = vpack.c.b16 %v1501, %v1493
  %v1926 = vpack.c.b16 %v1502, %v1494
  %v1927 = vpack.c.b16 %v1503, %v1495
  %v1928 = vpack.c.b16 %v1504, %v1496
  %v1929 = vpack.c.b16 %v1505, %v1497
  %v1930 = vpack.c.b16 %v1506, %v1498
  %v1931 = vpack.c.b16 %v1507, %v1499
  %v1932 = vpack.c.b16 %v1508, %v1500
  %v1933 = vpack.c.b16 %v1517, %v1509
  %v1934 = vpack.c.b16 %v1518, %v1510
  %v1935 = vpack.c.b16 %v1519, %v1511
  %v1936 = vpack.c.b16 %v1520, %v1512
  %v1937 = vpack.c.b16 %v1521, %v1513
  %v1938 = vpack.c.b16 %v1522, %v1514
  %v1939 = vpack.c.b16 %v1523, %v1515
  %v1940 = vpack.c.b16 %v1524, %v1516
  %v1941 = vpack.c.b16 %v1533, %v1525
  %v1942 = vpack.c.b16 %v1534, %v1526
  %v1943 = vpack.c.b16 %v1535, %v1527
  %v1944 = vpack.c.b16 %v1536, %v1528
  %v1945 = vpack.c.b16 %v1537, %v1529
  %v1946 = vpack.c.b16 %v1538, %v1530
  %v1947 = vpack.c.b16 %v1539, %v1531
  %v1948 = vpack.c.b16 %v1540, %v1532
  %v1949 = vpack.c.b16 %v1549, %v1541
  %v1950 = vpack.c.b16 %v1550, %v1542
  %v1951 = vpack.c.b16 %v1551, %v1543
  %v1952 = vpack.c.b16 %v1552, %v1544
  %v1953 = vpack.c.b16 %v1553, %v1545
  %v1954 = vpack.c.b16 %v1554, %v1546
  %v1955 = vpack.c.b16 %v1555, %v1547
  %v1956 = vpack.c.b16 %v1556, %v1548
  %v1957 = vpack.c.b16 %v1565, %v1557
  %v1958 = vpack.c.b16 %v1566, %v1558
  %v1959 = vpack.c.b16 %v1567, %v1559
  %v1960 = vpack.c.b16 %v1568, %v1560
  %v1961 = vpack.c.b16 %v1569, %v1561
  %v1962 = vpack.c.b16 %v1570, %v1562
  %v1963 = vpack.c.b16 %v1571, %v1563
  %v1964 = vpack.c.b16 %v1572, %v1564
  %v1965 = vpack.c.b16 %v1581, %v1573
  %v1966 = vpack.c.b16 %v1582, %v1574
  %v1967 = vpack.c.b16 %v1583, %v1575
  %v1968 = vpack.c.b16 %v1584, %v1576
  %v1969 = vpack.c.b16 %v1585, %v1577
  %v1970 = vpack.c.b16 %v1586, %v1578
  %v1971 = vpack.c.b16 %v1587, %v1579
  %v1972 = vpack.c.b16 %v1588, %v1580
  %v2358 = vlaneseq
  %v2359 = vshrl.u32 %v2358, 7
  %v2360 = vsub.s32 0, %v2359
  %v2361 = vrot.slane %v436, %v2360
  %v2362 = vlaneseq
  %v2363 = vshrl.u32 %v2362, 7
  %v2364 = vsub.s32 1, %v2363
  %v2365 = vrot.slane %v436, %v2364
  %v2366 = vlaneseq
  %v2367 = vshrl.u32 %v2366, 7
  %v2368 = vsub.s32 2, %v2367
  %v2369 = vrot.slane %v436, %v2368
  %v2370 = vlaneseq
  %v2371 = vshrl.u32 %v2370, 7
  %v2372 = vsub.s32 3, %v2371
  %v2373 = vrot.slane %v436, %v2372
  %v2374 = vlaneseq
  %v2375 = vshrl.u32 %v2374, 7
  %v2376 = vsub.s32 4, %v2375
  %v2377 = vrot.slane %v436, %v2376
  %v2378 = vlaneseq
  %v2379 = vshrl.u32 %v2378, 7
  %v2380 = vsub.s32 5, %v2379
  %v2381 = vrot.slane %v436, %v2380
  %v2382 = vlaneseq
  %v2383 = vshrl.u32 %v2382, 7
  %v2384 = vsub.s32 6, %v2383
  %v2385 = vrot.slane %v436, %v2384
  %v2386 = vlaneseq
  %v2387 = vshrl.u32 %v2386, 7
  %v2388 = vsub.s32 7, %v2387
  %v2389 = vrot.slane %v436, %v2388
  %2398 = vmatprep.subr.bf16.mxu0 %v1646
  %2399 = vmatpush1.bf16.msra.mxu0 %v1645
  %2400 = vmatprep.subr.bf16.mxu0 %v1638
  %2401 = vmatpush1.bf16.msra.mxu0 %v1637
  %2402 = vmatprep.subr.bf16.mxu0 %v1630
  %2403 = vmatpush1.bf16.msra.mxu0 %v1629
  %2404 = vmatprep.subr.bf16.mxu0 %v1622
  %2405 = vmatpush1.bf16.msra.mxu0 %v1621
  %2406 = vmatprep.subr.bf16.mxu0 %v1614
  %2407 = vmatpush1.bf16.msra.mxu0 %v1613
  %2408 = vmatprep.subr.bf16.mxu0 %v1606
  %2409 = vmatpush1.bf16.msra.mxu0 %v1605
  %2410 = vmatprep.subr.bf16.mxu0 %v1598
  %2411 = vmatpush1.bf16.msra.mxu0 %v1597
  %2412 = vmatprep.subr.bf16.mxu0 %v1590
  %2413 = vmatpush1.bf16.msra.mxu0 %v1589
  %2414 = vmatprep.subr.bf16.mxu0 %v1710
  %2415 = vmatpush2.bf16.msra.mxu0 %v1709
  %2416 = vmatprep.subr.bf16.mxu0 %v1702
  %2417 = vmatpush2.bf16.msra.mxu0 %v1701
  %2418 = vmatprep.subr.bf16.mxu0 %v1694
  %2419 = vmatpush2.bf16.msra.mxu0 %v1693
  %2420 = vmatprep.subr.bf16.mxu0 %v1686
  %2421 = vmatpush2.bf16.msra.mxu0 %v1685
  %2422 = vmatprep.subr.bf16.mxu0 %v1678
  %2423 = vmatpush2.bf16.msra.mxu0 %v1677
  %2424 = vmatprep.subr.bf16.mxu0 %v1670
  %2425 = vmatpush2.bf16.msra.mxu0 %v1669
  %2426 = vmatprep.subr.bf16.mxu0 %v1662
  %2427 = vmatpush2.bf16.msra.mxu0 %v1661
  %2428 = vmatprep.subr.bf16.mxu0 %v1654
  %2429 = vmatpush2.bf16.msra.mxu0 %v1653
  %2430 = vmatprep.mubr.bf16.mxu0 %v47
  %2431 = vmatmul.mubr.bf16.gmra.mxu0 %v46
  %v2432 = vpop.f32.mrf.mxu0
  %v2433 = vadd.f32 %v2361, %v2432
  %v2434 = vpop.f32.mrf.mxu0
  %v2435 = vadd.f32 %v2365, %v2434
  %v2436 = vpop.f32.mrf.mxu0
  %v2437 = vpop.f32.mrf.mxu0
  %2438 = vdwg.mxu0
  %2439 = vmatprep.subr.bf16.mxu0 %v1774
  %2440 = vmatpush1.bf16.msra.mxu0 %v1773
  %2441 = vmatprep.subr.bf16.mxu0 %v1766
  %2442 = vmatpush1.bf16.msra.mxu0 %v1765
  %2443 = vmatprep.subr.bf16.mxu0 %v1758
  %2444 = vmatpush1.bf16.msra.mxu0 %v1757
  %2445 = vmatprep.subr.bf16.mxu0 %v1750
  %2446 = vmatpush1.bf16.msra.mxu0 %v1749
  %2447 = vmatprep.subr.bf16.mxu0 %v1742
  %2448 = vmatpush1.bf16.msra.mxu0 %v1741
  %2449 = vmatprep.subr.bf16.mxu0 %v1734
  %2450 = vmatpush1.bf16.msra.mxu0 %v1733
  %2451 = vmatprep.subr.bf16.mxu0 %v1726
  %2452 = vmatpush1.bf16.msra.mxu0 %v1725
  %2453 = vmatprep.subr.bf16.mxu0 %v1718
  %2454 = vmatpush1.bf16.msra.mxu0 %v1717
  %2455 = vmatprep.subr.bf16.mxu0 %v1838
  %2456 = vmatpush2.bf16.msra.mxu0 %v1837
  %2457 = vmatprep.subr.bf16.mxu0 %v1830
  %2458 = vmatpush2.bf16.msra.mxu0 %v1829
  %2459 = vmatprep.subr.bf16.mxu0 %v1822
  %2460 = vmatpush2.bf16.msra.mxu0 %v1821
  %2461 = vmatprep.subr.bf16.mxu0 %v1814
  %2462 = vmatpush2.bf16.msra.mxu0 %v1813
  %2463 = vmatprep.subr.bf16.mxu0 %v1806
  %2464 = vmatpush2.bf16.msra.mxu0 %v1805
  %2465 = vmatprep.subr.bf16.mxu0 %v1798
  %2466 = vmatpush2.bf16.msra.mxu0 %v1797
  %2467 = vmatprep.subr.bf16.mxu0 %v1790
  %2468 = vmatpush2.bf16.msra.mxu0 %v1789
  %2469 = vmatprep.subr.bf16.mxu0 %v1782
  %2470 = vmatpush2.bf16.msra.mxu0 %v1781
  %2471 = vmatprep.mubr.bf16.mxu0 %v49
  %2472 = vmatmul.mubr.bf16.gmra.mxu0 %v48
  %v2473 = vpop.f32.mrf.mxu0
  %v2474 = vadd.f32 %v2433, %v2473
  %v2475 = vpop.f32.mrf.mxu0
  %v2476 = vadd.f32 %v2435, %v2475
  %v2477 = vpop.f32.mrf.mxu0
  %v2478 = vpop.f32.mrf.mxu0
  %2479 = vdwg.mxu0
  %2480 = vmatprep.subr.bf16.mxu0 %v1902
  %2481 = vmatpush1.bf16.msra.mxu0 %v1901
  %2482 = vmatprep.subr.bf16.mxu0 %v1894
  %2483 = vmatpush1.bf16.msra.mxu0 %v1893
  %2484 = vmatprep.subr.bf16.mxu0 %v1886
  %2485 = vmatpush1.bf16.msra.mxu0 %v1885
  %2486 = vmatprep.subr.bf16.mxu0 %v1878
  %2487 = vmatpush1.bf16.msra.mxu0 %v1877
  %2488 = vmatprep.subr.bf16.mxu0 %v1870
  %2489 = vmatpush1.bf16.msra.mxu0 %v1869
  %2490 = vmatprep.subr.bf16.mxu0 %v1862
  %2491 = vmatpush1.bf16.msra.mxu0 %v1861
  %2492 = vmatprep.subr.bf16.mxu0 %v1854
  %2493 = vmatpush1.bf16.msra.mxu0 %v1853
  %2494 = vmatprep.subr.bf16.mxu0 %v1846
  %2495 = vmatpush1.bf16.msra.mxu0 %v1845
  %2496 = vmatprep.subr.bf16.mxu0 %v1966
  %2497 = vmatpush2.bf16.msra.mxu0 %v1965
  %2498 = vmatprep.subr.bf16.mxu0 %v1958
  %2499 = vmatpush2.bf16.msra.mxu0 %v1957
  %2500 = vmatprep.subr.bf16.mxu0 %v1950
  %2501 = vmatpush2.bf16.msra.mxu0 %v1949
  %2502 = vmatprep.subr.bf16.mxu0 %v1942
  %2503 = vmatpush2.bf16.msra.mxu0 %v1941
  %2504 = vmatprep.subr.bf16.mxu0 %v1934
  %2505 = vmatpush2.bf16.msra.mxu0 %v1933
  %2506 = vmatprep.subr.bf16.mxu0 %v1926
  %2507 = vmatpush2.bf16.msra.mxu0 %v1925
  %2508 = vmatprep.subr.bf16.mxu0 %v1918
  %2509 = vmatpush2.bf16.msra.mxu0 %v1917
  %2510 = vmatprep.subr.bf16.mxu0 %v1910
  %2511 = vmatpush2.bf16.msra.mxu0 %v1909
  %2512 = vmatprep.mubr.bf16.mxu0 %v51
  %2513 = vmatmul.mubr.bf16.gmra.mxu0 %v50
  %v2514 = vpop.f32.mrf.mxu0
  %v2515 = vadd.f32 %v2474, %v2514
  %v2516 = vpop.f32.mrf.mxu0
  %v2517 = vadd.f32 %v2476, %v2516
  %v2518 = vpop.f32.mrf.mxu0
  %v2519 = vpop.f32.mrf.mxu0
  %2520 = vdwg.mxu0
  %2521 = vmatprep.subr.bf16.mxu0 %v1648
  %2522 = vmatpush1.bf16.msra.mxu0 %v1647
  %2523 = vmatprep.subr.bf16.mxu0 %v1640
  %2524 = vmatpush1.bf16.msra.mxu0 %v1639
  %2525 = vmatprep.subr.bf16.mxu0 %v1632
  %2526 = vmatpush1.bf16.msra.mxu0 %v1631
  %2527 = vmatprep.subr.bf16.mxu0 %v1624
  %2528 = vmatpush1.bf16.msra.mxu0 %v1623
  %2529 = vmatprep.subr.bf16.mxu0 %v1616
  %2530 = vmatpush1.bf16.msra.mxu0 %v1615
  %2531 = vmatprep.subr.bf16.mxu0 %v1608
  %2532 = vmatpush1.bf16.msra.mxu0 %v1607
  %2533 = vmatprep.subr.bf16.mxu0 %v1600
  %2534 = vmatpush1.bf16.msra.mxu0 %v1599
  %2535 = vmatprep.subr.bf16.mxu0 %v1592
  %2536 = vmatpush1.bf16.msra.mxu0 %v1591
  %2537 = vmatprep.subr.bf16.mxu0 %v1712
  %2538 = vmatpush2.bf16.msra.mxu0 %v1711
  %2539 = vmatprep.subr.bf16.mxu0 %v1704
  %2540 = vmatpush2.bf16.msra.mxu0 %v1703
  %2541 = vmatprep.subr.bf16.mxu0 %v1696
  %2542 = vmatpush2.bf16.msra.mxu0 %v1695
  %2543 = vmatprep.subr.bf16.mxu0 %v1688
  %2544 = vmatpush2.bf16.msra.mxu0 %v1687
  %2545 = vmatprep.subr.bf16.mxu0 %v1680
  %2546 = vmatpush2.bf16.msra.mxu0 %v1679
  %2547 = vmatprep.subr.bf16.mxu0 %v1672
  %2548 = vmatpush2.bf16.msra.mxu0 %v1671
  %2549 = vmatprep.subr.bf16.mxu0 %v1664
  %2550 = vmatpush2.bf16.msra.mxu0 %v1663
  %2551 = vmatprep.subr.bf16.mxu0 %v1656
  %2552 = vmatpush2.bf16.msra.mxu0 %v1655
  %2553 = vmatprep.mubr.bf16.mxu0 %v47
  %2554 = vmatmul.mubr.bf16.gmra.mxu0 %v46
  %v2555 = vpop.f32.mrf.mxu0
  %v2556 = vadd.f32 %v2369, %v2555
  %v2557 = vpop.f32.mrf.mxu0
  %v2558 = vadd.f32 %v2373, %v2557
  %v2559 = vpop.f32.mrf.mxu0
  %v2560 = vpop.f32.mrf.mxu0
  %2561 = vdwg.mxu0
  %2562 = vmatprep.subr.bf16.mxu0 %v1776
  %2563 = vmatpush1.bf16.msra.mxu0 %v1775
  %2564 = vmatprep.subr.bf16.mxu0 %v1768
  %2565 = vmatpush1.bf16.msra.mxu0 %v1767
  %2566 = vmatprep.subr.bf16.mxu0 %v1760
  %2567 = vmatpush1.bf16.msra.mxu0 %v1759
  %2568 = vmatprep.subr.bf16.mxu0 %v1752
  %2569 = vmatpush1.bf16.msra.mxu0 %v1751
  %2570 = vmatprep.subr.bf16.mxu0 %v1744
  %2571 = vmatpush1.bf16.msra.mxu0 %v1743
  %2572 = vmatprep.subr.bf16.mxu0 %v1736
  %2573 = vmatpush1.bf16.msra.mxu0 %v1735
  %2574 = vmatprep.subr.bf16.mxu0 %v1728
  %2575 = vmatpush1.bf16.msra.mxu0 %v1727
  %2576 = vmatprep.subr.bf16.mxu0 %v1720
  %2577 = vmatpush1.bf16.msra.mxu0 %v1719
  %2578 = vmatprep.subr.bf16.mxu0 %v1840
  %2579 = vmatpush2.bf16.msra.mxu0 %v1839
  %2580 = vmatprep.subr.bf16.mxu0 %v1832
  %2581 = vmatpush2.bf16.msra.mxu0 %v1831
  %2582 = vmatprep.subr.bf16.mxu0 %v1824
  %2583 = vmatpush2.bf16.msra.mxu0 %v1823
  %2584 = vmatprep.subr.bf16.mxu0 %v1816
  %2585 = vmatpush2.bf16.msra.mxu0 %v1815
  %2586 = vmatprep.subr.bf16.mxu0 %v1808
  %2587 = vmatpush2.bf16.msra.mxu0 %v1807
  %2588 = vmatprep.subr.bf16.mxu0 %v1800
  %2589 = vmatpush2.bf16.msra.mxu0 %v1799
  %2590 = vmatprep.subr.bf16.mxu0 %v1792
  %2591 = vmatpush2.bf16.msra.mxu0 %v1791
  %2592 = vmatprep.subr.bf16.mxu0 %v1784
  %2593 = vmatpush2.bf16.msra.mxu0 %v1783
  %2594 = vmatprep.mubr.bf16.mxu0 %v49
  %2595 = vmatmul.mubr.bf16.gmra.mxu0 %v48
  %v2596 = vpop.f32.mrf.mxu0
  %v2597 = vadd.f32 %v2556, %v2596
  %v2598 = vpop.f32.mrf.mxu0
  %v2599 = vadd.f32 %v2558, %v2598
  %v2600 = vpop.f32.mrf.mxu0
  %v2601 = vpop.f32.mrf.mxu0
  %2602 = vdwg.mxu0
  %2603 = vmatprep.subr.bf16.mxu0 %v1904
  %2604 = vmatpush1.bf16.msra.mxu0 %v1903
  %2605 = vmatprep.subr.bf16.mxu0 %v1896
  %2606 = vmatpush1.bf16.msra.mxu0 %v1895
  %2607 = vmatprep.subr.bf16.mxu0 %v1888
  %2608 = vmatpush1.bf16.msra.mxu0 %v1887
  %2609 = vmatprep.subr.bf16.mxu0 %v1880
  %2610 = vmatpush1.bf16.msra.mxu0 %v1879
  %2611 = vmatprep.subr.bf16.mxu0 %v1872
  %2612 = vmatpush1.bf16.msra.mxu0 %v1871
  %2613 = vmatprep.subr.bf16.mxu0 %v1864
  %2614 = vmatpush1.bf16.msra.mxu0 %v1863
  %2615 = vmatprep.subr.bf16.mxu0 %v1856
  %2616 = vmatpush1.bf16.msra.mxu0 %v1855
  %2617 = vmatprep.subr.bf16.mxu0 %v1848
  %2618 = vmatpush1.bf16.msra.mxu0 %v1847
  %2619 = vmatprep.subr.bf16.mxu0 %v1968
  %2620 = vmatpush2.bf16.msra.mxu0 %v1967
  %2621 = vmatprep.subr.bf16.mxu0 %v1960
  %2622 = vmatpush2.bf16.msra.mxu0 %v1959
  %2623 = vmatprep.subr.bf16.mxu0 %v1952
  %2624 = vmatpush2.bf16.msra.mxu0 %v1951
  %2625 = vmatprep.subr.bf16.mxu0 %v1944
  %2626 = vmatpush2.bf16.msra.mxu0 %v1943
  %2627 = vmatprep.subr.bf16.mxu0 %v1936
  %2628 = vmatpush2.bf16.msra.mxu0 %v1935
  %2629 = vmatprep.subr.bf16.mxu0 %v1928
  %2630 = vmatpush2.bf16.msra.mxu0 %v1927
  %2631 = vmatprep.subr.bf16.mxu0 %v1920
  %2632 = vmatpush2.bf16.msra.mxu0 %v1919
  %2633 = vmatprep.subr.bf16.mxu0 %v1912
  %2634 = vmatpush2.bf16.msra.mxu0 %v1911
  %2635 = vmatprep.mubr.bf16.mxu0 %v51
  %2636 = vmatmul.mubr.bf16.gmra.mxu0 %v50
  %v2637 = vpop.f32.mrf.mxu0
  %v2638 = vadd.f32 %v2597, %v2637
  %v2639 = vpop.f32.mrf.mxu0
  %v2640 = vadd.f32 %v2599, %v2639
  %v2641 = vpop.f32.mrf.mxu0
  %v2642 = vpop.f32.mrf.mxu0
  %2643 = vdwg.mxu0
  %2644 = vmatprep.subr.bf16.mxu0 %v1650
  %2645 = vmatpush1.bf16.msra.mxu0 %v1649
  %2646 = vmatprep.subr.bf16.mxu0 %v1642
  %2647 = vmatpush1.bf16.msra.mxu0 %v1641
  %2648 = vmatprep.subr.bf16.mxu0 %v1634
  %2649 = vmatpush1.bf16.msra.mxu0 %v1633
  %2650 = vmatprep.subr.bf16.mxu0 %v1626
  %2651 = vmatpush1.bf16.msra.mxu0 %v1625
  %2652 = vmatprep.subr.bf16.mxu0 %v1618
  %2653 = vmatpush1.bf16.msra.mxu0 %v1617
  %2654 = vmatprep.subr.bf16.mxu0 %v1610
  %2655 = vmatpush1.bf16.msra.mxu0 %v1609
  %2656 = vmatprep.subr.bf16.mxu0 %v1602
  %2657 = vmatpush1.bf16.msra.mxu0 %v1601
  %2658 = vmatprep.subr.bf16.mxu0 %v1594
  %2659 = vmatpush1.bf16.msra.mxu0 %v1593
  %2660 = vmatprep.subr.bf16.mxu0 %v1714
  %2661 = vmatpush2.bf16.msra.mxu0 %v1713
  %2662 = vmatprep.subr.bf16.mxu0 %v1706
  %2663 = vmatpush2.bf16.msra.mxu0 %v1705
  %2664 = vmatprep.subr.bf16.mxu0 %v1698
  %2665 = vmatpush2.bf16.msra.mxu0 %v1697
  %2666 = vmatprep.subr.bf16.mxu0 %v1690
  %2667 = vmatpush2.bf16.msra.mxu0 %v1689
  %2668 = vmatprep.subr.bf16.mxu0 %v1682
  %2669 = vmatpush2.bf16.msra.mxu0 %v1681
  %2670 = vmatprep.subr.bf16.mxu0 %v1674
  %2671 = vmatpush2.bf16.msra.mxu0 %v1673
  %2672 = vmatprep.subr.bf16.mxu0 %v1666
  %2673 = vmatpush2.bf16.msra.mxu0 %v1665
  %2674 = vmatprep.subr.bf16.mxu0 %v1658
  %2675 = vmatpush2.bf16.msra.mxu0 %v1657
  %2676 = vmatprep.mubr.bf16.mxu0 %v47
  %2677 = vmatmul.mubr.bf16.gmra.mxu0 %v46
  %v2678 = vpop.f32.mrf.mxu0
  %v2679 = vadd.f32 %v2377, %v2678
  %v2680 = vpop.f32.mrf.mxu0
  %v2681 = vadd.f32 %v2381, %v2680
  %v2682 = vpop.f32.mrf.mxu0
  %v2683 = vpop.f32.mrf.mxu0
  %2684 = vdwg.mxu0
  %2685 = vmatprep.subr.bf16.mxu0 %v1778
  %2686 = vmatpush1.bf16.msra.mxu0 %v1777
  %2687 = vmatprep.subr.bf16.mxu0 %v1770
  %2688 = vmatpush1.bf16.msra.mxu0 %v1769
  %2689 = vmatprep.subr.bf16.mxu0 %v1762
  %2690 = vmatpush1.bf16.msra.mxu0 %v1761
  %2691 = vmatprep.subr.bf16.mxu0 %v1754
  %2692 = vmatpush1.bf16.msra.mxu0 %v1753
  %2693 = vmatprep.subr.bf16.mxu0 %v1746
  %2694 = vmatpush1.bf16.msra.mxu0 %v1745
  %2695 = vmatprep.subr.bf16.mxu0 %v1738
  %2696 = vmatpush1.bf16.msra.mxu0 %v1737
  %2697 = vmatprep.subr.bf16.mxu0 %v1730
  %2698 = vmatpush1.bf16.msra.mxu0 %v1729
  %2699 = vmatprep.subr.bf16.mxu0 %v1722
  %2700 = vmatpush1.bf16.msra.mxu0 %v1721
  %2701 = vmatprep.subr.bf16.mxu0 %v1842
  %2702 = vmatpush2.bf16.msra.mxu0 %v1841
  %2703 = vmatprep.subr.bf16.mxu0 %v1834
  %2704 = vmatpush2.bf16.msra.mxu0 %v1833
  %2705 = vmatprep.subr.bf16.mxu0 %v1826
  %2706 = vmatpush2.bf16.msra.mxu0 %v1825
  %2707 = vmatprep.subr.bf16.mxu0 %v1818
  %2708 = vmatpush2.bf16.msra.mxu0 %v1817
  %2709 = vmatprep.subr.bf16.mxu0 %v1810
  %2710 = vmatpush2.bf16.msra.mxu0 %v1809
  %2711 = vmatprep.subr.bf16.mxu0 %v1802
  %2712 = vmatpush2.bf16.msra.mxu0 %v1801
  %2713 = vmatprep.subr.bf16.mxu0 %v1794
  %2714 = vmatpush2.bf16.msra.mxu0 %v1793
  %2715 = vmatprep.subr.bf16.mxu0 %v1786
  %2716 = vmatpush2.bf16.msra.mxu0 %v1785
  %2717 = vmatprep.mubr.bf16.mxu0 %v49
  %2718 = vmatmul.mubr.bf16.gmra.mxu0 %v48
  %v2719 = vpop.f32.mrf.mxu0
  %v2720 = vadd.f32 %v2679, %v2719
  %v2721 = vpop.f32.mrf.mxu0
  %v2722 = vadd.f32 %v2681, %v2721
  %v2723 = vpop.f32.mrf.mxu0
  %v2724 = vpop.f32.mrf.mxu0
  %2725 = vdwg.mxu0
  %2726 = vmatprep.subr.bf16.mxu0 %v1906
  %2727 = vmatpush1.bf16.msra.mxu0 %v1905
  %2728 = vmatprep.subr.bf16.mxu0 %v1898
  %2729 = vmatpush1.bf16.msra.mxu0 %v1897
  %2730 = vmatprep.subr.bf16.mxu0 %v1890
  %2731 = vmatpush1.bf16.msra.mxu0 %v1889
  %2732 = vmatprep.subr.bf16.mxu0 %v1882
  %2733 = vmatpush1.bf16.msra.mxu0 %v1881
  %2734 = vmatprep.subr.bf16.mxu0 %v1874
  %2735 = vmatpush1.bf16.msra.mxu0 %v1873
  %2736 = vmatprep.subr.bf16.mxu0 %v1866
  %2737 = vmatpush1.bf16.msra.mxu0 %v1865
  %2738 = vmatprep.subr.bf16.mxu0 %v1858
  %2739 = vmatpush1.bf16.msra.mxu0 %v1857
  %2740 = vmatprep.subr.bf16.mxu0 %v1850
  %2741 = vmatpush1.bf16.msra.mxu0 %v1849
  %2742 = vmatprep.subr.bf16.mxu0 %v1970
  %2743 = vmatpush2.bf16.msra.mxu0 %v1969
  %2744 = vmatprep.subr.bf16.mxu0 %v1962
  %2745 = vmatpush2.bf16.msra.mxu0 %v1961
  %2746 = vmatprep.subr.bf16.mxu0 %v1954
  %2747 = vmatpush2.bf16.msra.mxu0 %v1953
  %2748 = vmatprep.subr.bf16.mxu0 %v1946
  %2749 = vmatpush2.bf16.msra.mxu0 %v1945
  %2750 = vmatprep.subr.bf16.mxu0 %v1938
  %2751 = vmatpush2.bf16.msra.mxu0 %v1937
  %2752 = vmatprep.subr.bf16.mxu0 %v1930
  %2753 = vmatpush2.bf16.msra.mxu0 %v1929
  %2754 = vmatprep.subr.bf16.mxu0 %v1922
  %2755 = vmatpush2.bf16.msra.mxu0 %v1921
  %2756 = vmatprep.subr.bf16.mxu0 %v1914
  %2757 = vmatpush2.bf16.msra.mxu0 %v1913
  %2758 = vmatprep.mubr.bf16.mxu0 %v51
  %2759 = vmatmul.mubr.bf16.gmra.mxu0 %v50
  %v2760 = vpop.f32.mrf.mxu0
  %v2761 = vadd.f32 %v2720, %v2760
  %v2762 = vpop.f32.mrf.mxu0
  %v2763 = vadd.f32 %v2722, %v2762
  %v2764 = vpop.f32.mrf.mxu0
  %v2765 = vpop.f32.mrf.mxu0
  %2766 = vdwg.mxu0
  %2767 = vmatprep.subr.bf16.mxu0 %v1652
  %2768 = vmatpush1.bf16.msra.mxu0 %v1651
  %2769 = vmatprep.subr.bf16.mxu0 %v1644
  %2770 = vmatpush1.bf16.msra.mxu0 %v1643
  %2771 = vmatprep.subr.bf16.mxu0 %v1636
  %2772 = vmatpush1.bf16.msra.mxu0 %v1635
  %2773 = vmatprep.subr.bf16.mxu0 %v1628
  %2774 = vmatpush1.bf16.msra.mxu0 %v1627
  %2775 = vmatprep.subr.bf16.mxu0 %v1620
  %2776 = vmatpush1.bf16.msra.mxu0 %v1619
  %2777 = vmatprep.subr.bf16.mxu0 %v1612
  %2778 = vmatpush1.bf16.msra.mxu0 %v1611
  %2779 = vmatprep.subr.bf16.mxu0 %v1604
  %2780 = vmatpush1.bf16.msra.mxu0 %v1603
  %2781 = vmatprep.subr.bf16.mxu0 %v1596
  %2782 = vmatpush1.bf16.msra.mxu0 %v1595
  %2783 = vmatprep.subr.bf16.mxu0 %v1716
  %2784 = vmatpush2.bf16.msra.mxu0 %v1715
  %2785 = vmatprep.subr.bf16.mxu0 %v1708
  %2786 = vmatpush2.bf16.msra.mxu0 %v1707
  %2787 = vmatprep.subr.bf16.mxu0 %v1700
  %2788 = vmatpush2.bf16.msra.mxu0 %v1699
  %2789 = vmatprep.subr.bf16.mxu0 %v1692
  %2790 = vmatpush2.bf16.msra.mxu0 %v1691
  %2791 = vmatprep.subr.bf16.mxu0 %v1684
  %2792 = vmatpush2.bf16.msra.mxu0 %v1683
  %2793 = vmatprep.subr.bf16.mxu0 %v1676
  %2794 = vmatpush2.bf16.msra.mxu0 %v1675
  %2795 = vmatprep.subr.bf16.mxu0 %v1668
  %2796 = vmatpush2.bf16.msra.mxu0 %v1667
  %2797 = vmatprep.subr.bf16.mxu0 %v1660
  %2798 = vmatpush2.bf16.msra.mxu0 %v1659
  %2799 = vmatprep.mubr.bf16.mxu0 %v47
  %2800 = vmatmul.mubr.bf16.gmra.mxu0 %v46
  %v2801 = vpop.f32.mrf.mxu0
  %v2802 = vadd.f32 %v2385, %v2801
  %v2803 = vpop.f32.mrf.mxu0
  %v2804 = vadd.f32 %v2389, %v2803
  %v2805 = vpop.f32.mrf.mxu0
  %v2806 = vpop.f32.mrf.mxu0
  %2807 = vdwg.mxu0
  %2808 = vmatprep.subr.bf16.mxu0 %v1780
  %2809 = vmatpush1.bf16.msra.mxu0 %v1779
  %2810 = vmatprep.subr.bf16.mxu0 %v1772
  %2811 = vmatpush1.bf16.msra.mxu0 %v1771
  %2812 = vmatprep.subr.bf16.mxu0 %v1764
  %2813 = vmatpush1.bf16.msra.mxu0 %v1763
  %2814 = vmatprep.subr.bf16.mxu0 %v1756
  %2815 = vmatpush1.bf16.msra.mxu0 %v1755
  %2816 = vmatprep.subr.bf16.mxu0 %v1748
  %2817 = vmatpush1.bf16.msra.mxu0 %v1747
  %2818 = vmatprep.subr.bf16.mxu0 %v1740
  %2819 = vmatpush1.bf16.msra.mxu0 %v1739
  %2820 = vmatprep.subr.bf16.mxu0 %v1732
  %2821 = vmatpush1.bf16.msra.mxu0 %v1731
  %2822 = vmatprep.subr.bf16.mxu0 %v1724
  %2823 = vmatpush1.bf16.msra.mxu0 %v1723
  %2824 = vmatprep.subr.bf16.mxu0 %v1844
  %2825 = vmatpush2.bf16.msra.mxu0 %v1843
  %2826 = vmatprep.subr.bf16.mxu0 %v1836
  %2827 = vmatpush2.bf16.msra.mxu0 %v1835
  %2828 = vmatprep.subr.bf16.mxu0 %v1828
  %2829 = vmatpush2.bf16.msra.mxu0 %v1827
  %2830 = vmatprep.subr.bf16.mxu0 %v1820
  %2831 = vmatpush2.bf16.msra.mxu0 %v1819
  %2832 = vmatprep.subr.bf16.mxu0 %v1812
  %2833 = vmatpush2.bf16.msra.mxu0 %v1811
  %2834 = vmatprep.subr.bf16.mxu0 %v1804
  %2835 = vmatpush2.bf16.msra.mxu0 %v1803
  %2836 = vmatprep.subr.bf16.mxu0 %v1796
  %2837 = vmatpush2.bf16.msra.mxu0 %v1795
  %2838 = vmatprep.subr.bf16.mxu0 %v1788
  %2839 = vmatpush2.bf16.msra.mxu0 %v1787
  %2840 = vmatprep.mubr.bf16.mxu0 %v49
  %2841 = vmatmul.mubr.bf16.gmra.mxu0 %v48
  %v2842 = vpop.f32.mrf.mxu0
  %v2843 = vadd.f32 %v2802, %v2842
  %v2844 = vpop.f32.mrf.mxu0
  %v2845 = vadd.f32 %v2804, %v2844
  %v2846 = vpop.f32.mrf.mxu0
  %v2847 = vpop.f32.mrf.mxu0
  %2848 = vdwg.mxu0
  %2849 = vmatprep.subr.bf16.mxu0 %v1908
  %2850 = vmatpush1.bf16.msra.mxu0 %v1907
  %2851 = vmatprep.subr.bf16.mxu0 %v1900
  %2852 = vmatpush1.bf16.msra.mxu0 %v1899
  %2853 = vmatprep.subr.bf16.mxu0 %v1892
  %2854 = vmatpush1.bf16.msra.mxu0 %v1891
  %2855 = vmatprep.subr.bf16.mxu0 %v1884
  %2856 = vmatpush1.bf16.msra.mxu0 %v1883
  %2857 = vmatprep.subr.bf16.mxu0 %v1876
  %2858 = vmatpush1.bf16.msra.mxu0 %v1875
  %2859 = vmatprep.subr.bf16.mxu0 %v1868
  %2860 = vmatpush1.bf16.msra.mxu0 %v1867
  %2861 = vmatprep.subr.bf16.mxu0 %v1860
  %2862 = vmatpush1.bf16.msra.mxu0 %v1859
  %2863 = vmatprep.subr.bf16.mxu0 %v1852
  %2864 = vmatpush1.bf16.msra.mxu0 %v1851
  %2865 = vmatprep.subr.bf16.mxu0 %v1972
  %2866 = vmatpush2.bf16.msra.mxu0 %v1971
  %2867 = vmatprep.subr.bf16.mxu0 %v1964
  %2868 = vmatpush2.bf16.msra.mxu0 %v1963
  %2869 = vmatprep.subr.bf16.mxu0 %v1956
  %2870 = vmatpush2.bf16.msra.mxu0 %v1955
  %2871 = vmatprep.subr.bf16.mxu0 %v1948
  %2872 = vmatpush2.bf16.msra.mxu0 %v1947
  %2873 = vmatprep.subr.bf16.mxu0 %v1940
  %2874 = vmatpush2.bf16.msra.mxu0 %v1939
  %2875 = vmatprep.subr.bf16.mxu0 %v1932
  %2876 = vmatpush2.bf16.msra.mxu0 %v1931
  %2877 = vmatprep.subr.bf16.mxu0 %v1924
  %2878 = vmatpush2.bf16.msra.mxu0 %v1923
  %2879 = vmatprep.subr.bf16.mxu0 %v1916
  %2880 = vmatpush2.bf16.msra.mxu0 %v1915
  %2881 = vmatprep.mubr.bf16.mxu0 %v51
  %2882 = vmatmul.mubr.bf16.gmra.mxu0 %v50
  %v2883 = vpop.f32.mrf.mxu0
  %v2884 = vadd.f32 %v2843, %v2883
  %v2885 = vpop.f32.mrf.mxu0
  %v2886 = vadd.f32 %v2845, %v2885
  %v2887 = vpop.f32.mrf.mxu0
  %v2888 = vpop.f32.mrf.mxu0
  %2889 = vdwg.mxu0
  %v2898 = vcombine.low %v2515, %v2517
  %v2899 = vcombine.low %v2638, %v2640
  %v2900 = vcombine.low %v2761, %v2763
  %v2901 = vcombine.low %v2884, %v2886
  %v2903 = vunpack.c.l.s4 1966171168
  %v2904 = vunpack.c.0.s8 %v2903
  %v2905 = vlaneseq
  %v2906 = vshrl.u32 %v2905, 7
  %v2907 = vsub.s32 %v2904, %v2906
  %v2908 = vrot.slane %v2898, %v2907
  %v2910 = vunpack.c.l.s4 1966171168
  %v2911 = vunpack.c.0.s8 %v2910
  %v2912 = vlaneseq
  %v2913 = vshrl.u32 %v2912, 7
  %v2914 = vsub.s32 %v2911, %v2913
  %v2915 = vrot.slane %v2899, %v2914
  %v2917 = vunpack.c.l.s4 1966171168
  %v2918 = vunpack.c.0.s8 %v2917
  %v2919 = vlaneseq
  %v2920 = vshrl.u32 %v2919, 7
  %v2921 = vsub.s32 %v2918, %v2920
  %v2922 = vrot.slane %v2900, %v2921
  %v2924 = vunpack.c.l.s4 1966171168
  %v2925 = vunpack.c.0.s8 %v2924
  %v2926 = vlaneseq
  %v2927 = vshrl.u32 %v2926, 7
  %v2928 = vsub.s32 %v2925, %v2927
  %v2929 = vrot.slane %v2901, %v2928
  %v2930 = vcombine.low %v2908, %v2915
  %v2931 = vcombine.low %v2922, %v2929
  %v2933 = vunpack.c.l.s4 1966171168
  %v2934 = vunpack.c.0.s8 %v2933
  %v2935 = vlaneseq
  %v2936 = vshrl.u32 %v2935, 7
  %v2937 = vsub.s32 %v2934, %v2936
  %v2938 = vrot.slane %v2930, %v2937
  %v2940 = vunpack.c.l.s4 1966171168
  %v2941 = vunpack.c.0.s8 %v2940
  %v2942 = vlaneseq
  %v2943 = vshrl.u32 %v2942, 7
  %v2944 = vsub.s32 %v2941, %v2943
  %v2945 = vrot.slane %v2931, %v2944
  %v2946 = vcombine.low %v2938, %v2945
  %v2948 = vlaneseq
  %vm2949 = vcmp.ge.s32.totalorder %v2948, 0
  %vm2950 = vcmp.lt.s32.totalorder %v2948, 1000
  %vm2951 = vmand %vm2949, %vm2950
  %2952 = vst.msk [vmem:[%s3] sm:$0xff] %vm2951, %v2946
  // Predicated region
  $region14: #{forward.7} parent=0 // pred_check
    _
  $region15: #{forward.7} parent=0 // pred_check_branch
    %2954 = sbr.rel (0) target = $region17
  $region16: #{forward.7} parent=0 // pred_region
    _
  $region17: #{forward.7} parent=0 // pred_fallthru
    _
  // Predicated region
  $region18: #{forward.7} parent=0 // pred_check
    _
  $region19: #{forward.7} parent=0 // pred_check_branch
    %2956 = sbr.rel (0) target = $region21
  $region20: #{forward.7} parent=0 // pred_region
    _
  $region21: #{forward.7} parent=0 // pred_fallthru
    _

// kernel: forward.10
$region0: #{forward.10}
  #allocation0 [shape = 'u32[]', space=smem, size = 0x4, offset = 0x4, fixed_abs, tag = 'smem constant byte address 0x4 - core index']
  #allocation1 [shape = 'u32[144,128]{1,0:T(1,128)}', space=vmem, size = 0x12000, scoped, tag = 'internal scratch']
  %s0 = inlined_call_operand.vmem [shape: f32[1,32], index: 0, kind: input, shape index: {}]
  %s1 = inlined_call_operand.vmem [shape: f32[2,32], index: 1, kind: input, shape index: {}]
  %s2 = inlined_call_operand.vmem [shape: f32[2,32], index: 2, kind: input, shape index: {}]
  %s3 = inlined_call_operand.vmem [shape: f32[32,32], index: 3, kind: input, shape index: {}]
  %s4 = inlined_call_operand.vmem [shape: f32[32,32], index: 4, kind: input, shape index: {}]
  %s5 = inlined_call_operand.vmem [shape: f32[1,32], index: 5, kind: input, shape index: {}]
  %s6 = inlined_call_operand.vmem [shape: f32[32,32], index: 6, kind: input, shape index: {}]
  %s7 = inlined_call_operand.vmem [shape: f32[32,32], index: 7, kind: input, shape index: {}]
  %s8 = inlined_call_operand.vmem [shape: f32[1,32], index: 8, kind: input, shape index: {}]
  %s9 = inlined_call_operand.vmem [shape: f32[32,32], index: 9, kind: input, shape index: {}]
  %s10 = inlined_call_operand.vmem [shape: f32[32,32], index: 10, kind: input, shape index: {}]
  %s11 = inlined_call_operand.vmem [shape: f32[1,32], index: 11, kind: input, shape index: {}]
  %s12 = inlined_call_operand.vmem [shape: f32[32,32], index: 12, kind: input, shape index: {}]
  %s13 = inlined_call_operand.vmem [shape: f32[1,32], index: 13, kind: input, shape index: {}]
  %s14 = inlined_call_operand.vmem [shape: f32[32,32], index: 14, kind: input, shape index: {}]
  %s15 = inlined_call_operand.vmem [shape: f32[1,32], index: 15, kind: input, shape index: {}]
  %s16 = inlined_call_operand.vmem [shape: f32[1,32], index: 16, kind: output, shape index: {0}]
  %s17 = inlined_call_operand.vmem [shape: f32[1,32], index: 17, kind: output, shape index: {1}]
  %18 = xla_tuple %s16, %s17
  %s19 = sld [smem:[#allocation0]]
  $region82: #{forward.10} parent=0
    _
  %s21 = ssub.s32 1, %s19
  %s22 = scalar_select 0, %s21, %s19
  // Predicated region
  $region2: #{forward.10} parent=0 // pred_check
    _
  $region3: #{forward.10} parent=0 // pred_check_branch
    %24 = sbr.rel (0) target = $region5
  $region4: #{forward.10} parent=0 // pred_region
    _
  $region5: #{forward.10} parent=0 // pred_fallthru
    _
  // Predicated region
  $region6: #{forward.10} parent=0 // pred_check
    _
  $region7: #{forward.10} parent=0 // pred_check_branch
    %26 = sbr.rel (0) target = $region9
  $region8: #{forward.10} parent=0 // pred_region
    _
  $region9: #{forward.10} parent=0 // pred_fallthru
    _
  // Predicated region
  $region10: #{forward.10} parent=0 // pred_check
    _
  $region11: #{forward.10} parent=0 // pred_check_branch
    %28 = sbr.rel (0) target = $region13
  $region12: #{forward.10} parent=0 // pred_region
    _
  $region13: #{forward.10} parent=0 // pred_fallthru
    _
  // Predicated region
  $region14: #{forward.10} parent=0 // pred_check
    _
  $region15: #{forward.10} parent=0 // pred_check_branch
    %30 = sbr.rel (0) target = $region17
  $region16: #{forward.10} parent=0 // pred_region
    _
  $region17: #{forward.10} parent=0 // pred_fallthru
    _
  // Predicated region
  $region18: #{forward.10} parent=0 // pred_check
    _
  $region19: #{forward.10} parent=0 // pred_check_branch
    %32 = sbr.rel (0) target = $region21
  $region20: #{forward.10} parent=0 // pred_region
    _
  $region21: #{forward.10} parent=0 // pred_fallthru
    _
  // Predicated region
  $region22: #{forward.10} parent=0 // pred_check
    _
  $region23: #{forward.10} parent=0 // pred_check_branch
    %34 = sbr.rel (0) target = $region25
  $region24: #{forward.10} parent=0 // pred_region
    _
  $region25: #{forward.10} parent=0 // pred_fallthru
    _
  // Predicated region
  $region26: #{forward.10} parent=0 // pred_check
    _
  $region27: #{forward.10} parent=0 // pred_check_branch
    %36 = sbr.rel (0) target = $region29
  $region28: #{forward.10} parent=0 // pred_region
    _
  $region29: #{forward.10} parent=0 // pred_fallthru
    _
  // Predicated region
  $region30: #{forward.10} parent=0 // pred_check
    _
  $region31: #{forward.10} parent=0 // pred_check_branch
    %38 = sbr.rel (0) target = $region33
  $region32: #{forward.10} parent=0 // pred_region
    _
  $region33: #{forward.10} parent=0 // pred_fallthru
    _
  // Predicated region
  $region34: #{forward.10} parent=0 // pred_check
    _
  $region35: #{forward.10} parent=0 // pred_check_branch
    %40 = sbr.rel (0) target = $region37
  $region36: #{forward.10} parent=0 // pred_region
    _
  $region37: #{forward.10} parent=0 // pred_fallthru
    _
  // Predicated region
  $region38: #{forward.10} parent=0 // pred_check
    _
  $region39: #{forward.10} parent=0 // pred_check_branch
    %42 = sbr.rel (0) target = $region41
  $region40: #{forward.10} parent=0 // pred_region
    _
  $region41: #{forward.10} parent=0 // pred_fallthru
    _
  // Predicated region
  $region42: #{forward.10} parent=0 // pred_check
    _
  $region43: #{forward.10} parent=0 // pred_check_branch
    %44 = sbr.rel (0) target = $region45
  $region44: #{forward.10} parent=0 // pred_region
    _
  $region45: #{forward.10} parent=0 // pred_fallthru
    _
  // Predicated region
  $region46: #{forward.10} parent=0 // pred_check
    _
  $region47: #{forward.10} parent=0 // pred_check_branch
    %46 = sbr.rel (0) target = $region49
  $region48: #{forward.10} parent=0 // pred_region
    _
  $region49: #{forward.10} parent=0 // pred_fallthru
    _
  // Predicated region
  $region50: #{forward.10} parent=0 // pred_check
    _
  $region51: #{forward.10} parent=0 // pred_check_branch
    %48 = sbr.rel (0) target = $region53
  $region52: #{forward.10} parent=0 // pred_region
    _
  $region53: #{forward.10} parent=0 // pred_fallthru
    _
  // Predicated region
  $region54: #{forward.10} parent=0 // pred_check
    _
  $region55: #{forward.10} parent=0 // pred_check_branch
    %50 = sbr.rel (0) target = $region57
  $region56: #{forward.10} parent=0 // pred_region
    _
  $region57: #{forward.10} parent=0 // pred_fallthru
    _
  // Predicated region
  $region58: #{forward.10} parent=0 // pred_check
    _
  $region59: #{forward.10} parent=0 // pred_check_branch
    %52 = sbr.rel (0) target = $region61
  $region60: #{forward.10} parent=0 // pred_region
    _
  $region61: #{forward.10} parent=0 // pred_fallthru
    _
  // Predicated region
  $region62: #{forward.10} parent=0 // pred_check
    _
  $region63: #{forward.10} parent=0 // pred_check_branch
    %54 = sbr.rel (0) target = $region65
  $region64: #{forward.10} parent=0 // pred_region
    _
  $region65: #{forward.10} parent=0 // pred_fallthru
    _
  %v55 = vld [vmem:[%s0] sm:$0x1]
  %v56 = vld [vmem:[%s1] sm:$0x3]
  %v57 = vld [vmem:[%s2] sm:$0x3]
  %vm58 = vcmask 254976
  %v59 = vsel %vm58, %v57, 0.0
  %v60 = vrot.slane %v59, 4
  %v61 = vadd.f32 %v59, %v60
  %v62 = vrot.slane %v61, 2
  %v63 = vadd.f32 %v61, %v62
  %v64 = vrot.slane %v63, 1
  %v65 = vadd.f32 %v63, %v64
  %v66 = vld [vmem:[%s3] sm:$0xff]
  %v67 = vld [vmem:[%s3 + $0x8] sm:$0xff]
  %v68 = vld [vmem:[%s3 + $0x10] sm:$0xff]
  %v69 = vld [vmem:[%s3 + $0x18] sm:$0xff]
  %v70 = vld [vmem:[%s4] sm:$0xff]
  %v71 = vld [vmem:[%s4 + $0x8] sm:$0xff]
  %v72 = vld [vmem:[%s4 + $0x10] sm:$0xff]
  %v73 = vld [vmem:[%s4 + $0x18] sm:$0xff]
  %vm74 = vcmask 261120
  %v76 = vsel %vm74, %v65, 0
  %78 = vmatprep.subr.mxu0 0.0
  %79 = vmatpush1.msra.mxu0 0.0
  %80 = vmatprep.subr.mxu0 0.0
  %81 = vmatpush1.msra.mxu0 0.0
  %82 = vmatprep.subr.mxu0 0.0
  %83 = vmatpush1.msra.mxu0 0.0
  %84 = vmatprep.subr.mxu0 0.0
  %85 = vmatpush1.msra.mxu0 0.0
  %86 = vmatprep.subr.mxu0 0.0
  %87 = vmatpush1.msra.mxu0 0.0
  %88 = vmatprep.subr.mxu0 0.0
  %89 = vmatpush1.msra.mxu0 0.0
  %90 = vmatprep.subr.mxu0 0.0
  %91 = vmatpush1.msra.mxu0 0.0
  %92 = vmatprep.subr.mxu0 0.0
  %93 = vmatpush1.msra.mxu0 0.0
  %94 = vmatprep.subr.mxu0 0.0
  %95 = vmatpush1.msra.mxu0 0.0
  %96 = vmatprep.subr.mxu0 0.0
  %97 = vmatpush1.msra.mxu0 0.0
  %98 = vmatprep.subr.mxu0 0.0
  %99 = vmatpush1.msra.mxu0 0.0
  %100 = vmatprep.subr.mxu0 0.0
  %101 = vmatpush1.msra.mxu0 0.0
  %102 = vmatprep.subr.mxu0 0.0
  %103 = vmatpush1.msra.mxu0 %v73
  %104 = vmatprep.subr.mxu0 0.0
  %105 = vmatpush1.msra.mxu0 %v72
  %106 = vmatprep.subr.mxu0 0.0
  %107 = vmatpush1.msra.mxu0 %v71
  %108 = vmatprep.subr.mxu0 0.0
  %109 = vmatpush1.msra.mxu0 %v70
  %110 = vmatprep.subr.mxu0 0.0
  %111 = vmatpush2.msra.mxu0 0.0
  %112 = vmatprep.subr.mxu0 0.0
  %113 = vmatpush2.msra.mxu0 0.0
  %114 = vmatprep.subr.mxu0 0.0
  %115 = vmatpush2.msra.mxu0 0.0
  %116 = vmatprep.subr.mxu0 0.0
  %117 = vmatpush2.msra.mxu0 0.0
  %118 = vmatprep.subr.mxu0 0.0
  %119 = vmatpush2.msra.mxu0 0.0
  %120 = vmatprep.subr.mxu0 0.0
  %121 = vmatpush2.msra.mxu0 0.0
  %122 = vmatprep.subr.mxu0 0.0
  %123 = vmatpush2.msra.mxu0 0.0
  %124 = vmatprep.subr.mxu0 0.0
  %125 = vmatpush2.msra.mxu0 0.0
  %126 = vmatprep.subr.mxu0 0.0
  %127 = vmatpush2.msra.mxu0 0.0
  %128 = vmatprep.subr.mxu0 0.0
  %129 = vmatpush2.msra.mxu0 0.0
  %130 = vmatprep.subr.mxu0 0.0
  %131 = vmatpush2.msra.mxu0 0.0
  %132 = vmatprep.subr.mxu0 0.0
  %133 = vmatpush2.msra.mxu0 0.0
  %134 = vmatprep.subr.mxu0 0.0
  %135 = vmatpush2.msra.mxu0 0.0
  %136 = vmatprep.subr.mxu0 0.0
  %137 = vmatpush2.msra.mxu0 0.0
  %138 = vmatprep.subr.mxu0 0.0
  %139 = vmatpush2.msra.mxu0 0.0
  %140 = vmatprep.subr.mxu0 0.0
  %141 = vmatpush2.msra.mxu0 0.0
  %142 = vmatprep.mubr.f32.mxu0 0.0
  %143 = vmatmul.mubr.f32.gmra.mxu0 %v76
  %v144 = vpop.f32.mrf.mxu0
  %v145 = vadd.f32 0.0, %v144
  %v146 = vpop.f32.mrf.mxu0
  %147 = vdwg.mxu0
  %v149 = vsel %vm74, %v55, 0
  %151 = vmatprep.subr.mxu0 0.0
  %152 = vmatpush1.msra.mxu0 0.0
  %153 = vmatprep.subr.mxu0 0.0
  %154 = vmatpush1.msra.mxu0 0.0
  %155 = vmatprep.subr.mxu0 0.0
  %156 = vmatpush1.msra.mxu0 0.0
  %157 = vmatprep.subr.mxu0 0.0
  %158 = vmatpush1.msra.mxu0 0.0
  %159 = vmatprep.subr.mxu0 0.0
  %160 = vmatpush1.msra.mxu0 0.0
  %161 = vmatprep.subr.mxu0 0.0
  %162 = vmatpush1.msra.mxu0 0.0
  %163 = vmatprep.subr.mxu0 0.0
  %164 = vmatpush1.msra.mxu0 0.0
  %165 = vmatprep.subr.mxu0 0.0
  %166 = vmatpush1.msra.mxu0 0.0
  %167 = vmatprep.subr.mxu0 0.0
  %168 = vmatpush1.msra.mxu0 0.0
  %169 = vmatprep.subr.mxu0 0.0
  %170 = vmatpush1.msra.mxu0 0.0
  %171 = vmatprep.subr.mxu0 0.0
  %172 = vmatpush1.msra.mxu0 0.0
  %173 = vmatprep.subr.mxu0 0.0
  %174 = vmatpush1.msra.mxu0 0.0
  %175 = vmatprep.subr.mxu0 0.0
  %176 = vmatpush1.msra.mxu0 %v69
  %177 = vmatprep.subr.mxu0 0.0
  %178 = vmatpush1.msra.mxu0 %v68
  %179 = vmatprep.subr.mxu0 0.0
  %180 = vmatpush1.msra.mxu0 %v67
  %181 = vmatprep.subr.mxu0 0.0
  %182 = vmatpush1.msra.mxu0 %v66
  %183 = vmatprep.subr.mxu0 0.0
  %184 = vmatpush2.msra.mxu0 0.0
  %185 = vmatprep.subr.mxu0 0.0
  %186 = vmatpush2.msra.mxu0 0.0
  %187 = vmatprep.subr.mxu0 0.0
  %188 = vmatpush2.msra.mxu0 0.0
  %189 = vmatprep.subr.mxu0 0.0
  %190 = vmatpush2.msra.mxu0 0.0
  %191 = vmatprep.subr.mxu0 0.0
  %192 = vmatpush2.msra.mxu0 0.0
  %193 = vmatprep.subr.mxu0 0.0
  %194 = vmatpush2.msra.mxu0 0.0
  %195 = vmatprep.subr.mxu0 0.0
  %196 = vmatpush2.msra.mxu0 0.0
  %197 = vmatprep.subr.mxu0 0.0
  %198 = vmatpush2.msra.mxu0 0.0
  %199 = vmatprep.subr.mxu0 0.0
  %200 = vmatpush2.msra.mxu0 0.0
  %201 = vmatprep.subr.mxu0 0.0
  %202 = vmatpush2.msra.mxu0 0.0
  %203 = vmatprep.subr.mxu0 0.0
  %204 = vmatpush2.msra.mxu0 0.0
  %205 = vmatprep.subr.mxu0 0.0
  %206 = vmatpush2.msra.mxu0 0.0
  %207 = vmatprep.subr.mxu0 0.0
  %208 = vmatpush2.msra.mxu0 0.0
  %209 = vmatprep.subr.mxu0 0.0
  %210 = vmatpush2.msra.mxu0 0.0
  %211 = vmatprep.subr.mxu0 0.0
  %212 = vmatpush2.msra.mxu0 0.0
  %213 = vmatprep.subr.mxu0 0.0
  %214 = vmatpush2.msra.mxu0 0.0
  %215 = vmatprep.mubr.f32.mxu0 0.0
  %216 = vmatmul.mubr.f32.gmra.mxu0 %v149
  %v217 = vpop.f32.mrf.mxu0
  %v218 = vadd.f32 %v145, %v217
  %v219 = vpop.f32.mrf.mxu0
  %220 = vdwg.mxu0
  %v221 = vld [vmem:[%s5] sm:$0x1]
  %v222 = vadd.f32 %v218, %v221
  %v223 = vxor.u32 %v222, 2147483648
  %v224 = vmul.f32 %v223, 1.442695
  %v225 = vpow.pop %v224
  %v226 = vadd.f32 %v225, 1.0
  %v227 = vrcp.pop %v226
  %v228 = vmul.f32 1.0, %v227
  %v229 = vld [vmem:[%s6] sm:$0xff]
  %v230 = vld [vmem:[%s6 + $0x8] sm:$0xff]
  %v231 = vld [vmem:[%s6 + $0x10] sm:$0xff]
  %v232 = vld [vmem:[%s6 + $0x18] sm:$0xff]
  %v233 = vld [vmem:[%s7] sm:$0xff]
  %v234 = vld [vmem:[%s7 + $0x8] sm:$0xff]
  %v235 = vld [vmem:[%s7 + $0x10] sm:$0xff]
  %v236 = vld [vmem:[%s7 + $0x18] sm:$0xff]
  %237 = vmatprep.subr.mxu0 0.0
  %238 = vmatpush1.msra.mxu0 0.0
  %239 = vmatprep.subr.mxu0 0.0
  %240 = vmatpush1.msra.mxu0 0.0
  %241 = vmatprep.subr.mxu0 0.0
  %242 = vmatpush1.msra.mxu0 0.0
  %243 = vmatprep.subr.mxu0 0.0
  %244 = vmatpush1.msra.mxu0 0.0
  %245 = vmatprep.subr.mxu0 0.0
  %246 = vmatpush1.msra.mxu0 0.0
  %247 = vmatprep.subr.mxu0 0.0
  %248 = vmatpush1.msra.mxu0 0.0
  %249 = vmatprep.subr.mxu0 0.0
  %250 = vmatpush1.msra.mxu0 0.0
  %251 = vmatprep.subr.mxu0 0.0
  %252 = vmatpush1.msra.mxu0 0.0
  %253 = vmatprep.subr.mxu0 0.0
  %254 = vmatpush1.msra.mxu0 0.0
  %255 = vmatprep.subr.mxu0 0.0
  %256 = vmatpush1.msra.mxu0 0.0
  %257 = vmatprep.subr.mxu0 0.0
  %258 = vmatpush1.msra.mxu0 0.0
  %259 = vmatprep.subr.mxu0 0.0
  %260 = vmatpush1.msra.mxu0 0.0
  %261 = vmatprep.subr.mxu0 0.0
  %262 = vmatpush1.msra.mxu0 %v236
  %263 = vmatprep.subr.mxu0 0.0
  %264 = vmatpush1.msra.mxu0 %v235
  %265 = vmatprep.subr.mxu0 0.0
  %266 = vmatpush1.msra.mxu0 %v234
  %267 = vmatprep.subr.mxu0 0.0
  %268 = vmatpush1.msra.mxu0 %v233
  %269 = vmatprep.subr.mxu0 0.0
  %270 = vmatpush2.msra.mxu0 0.0
  %271 = vmatprep.subr.mxu0 0.0
  %272 = vmatpush2.msra.mxu0 0.0
  %273 = vmatprep.subr.mxu0 0.0
  %274 = vmatpush2.msra.mxu0 0.0
  %275 = vmatprep.subr.mxu0 0.0
  %276 = vmatpush2.msra.mxu0 0.0
  %277 = vmatprep.subr.mxu0 0.0
  %278 = vmatpush2.msra.mxu0 0.0
  %279 = vmatprep.subr.mxu0 0.0
  %280 = vmatpush2.msra.mxu0 0.0
  %281 = vmatprep.subr.mxu0 0.0
  %282 = vmatpush2.msra.mxu0 0.0
  %283 = vmatprep.subr.mxu0 0.0
  %284 = vmatpush2.msra.mxu0 0.0
  %285 = vmatprep.subr.mxu0 0.0
  %286 = vmatpush2.msra.mxu0 0.0
  %287 = vmatprep.subr.mxu0 0.0
  %288 = vmatpush2.msra.mxu0 0.0
  %289 = vmatprep.subr.mxu0 0.0
  %290 = vmatpush2.msra.mxu0 0.0
  %291 = vmatprep.subr.mxu0 0.0
  %292 = vmatpush2.msra.mxu0 0.0
  %293 = vmatprep.subr.mxu0 0.0
  %294 = vmatpush2.msra.mxu0 0.0
  %295 = vmatprep.subr.mxu0 0.0
  %296 = vmatpush2.msra.mxu0 0.0
  %297 = vmatprep.subr.mxu0 0.0
  %298 = vmatpush2.msra.mxu0 0.0
  %299 = vmatprep.subr.mxu0 0.0
  %300 = vmatpush2.msra.mxu0 0.0
  %301 = vmatprep.mubr.f32.mxu0 0.0
  %302 = vmatmul.mubr.f32.gmra.mxu0 %v76
  %v303 = vpop.f32.mrf.mxu0
  %v304 = vadd.f32 0.0, %v303
  %v305 = vpop.f32.mrf.mxu0
  %306 = vdwg.mxu0
  %307 = vmatprep.subr.mxu0 0.0
  %308 = vmatpush1.msra.mxu0 0.0
  %309 = vmatprep.subr.mxu0 0.0
  %310 = vmatpush1.msra.mxu0 0.0
  %311 = vmatprep.subr.mxu0 0.0
  %312 = vmatpush1.msra.mxu0 0.0
  %313 = vmatprep.subr.mxu0 0.0
  %314 = vmatpush1.msra.mxu0 0.0
  %315 = vmatprep.subr.mxu0 0.0
  %316 = vmatpush1.msra.mxu0 0.0
  %317 = vmatprep.subr.mxu0 0.0
  %318 = vmatpush1.msra.mxu0 0.0
  %319 = vmatprep.subr.mxu0 0.0
  %320 = vmatpush1.msra.mxu0 0.0
  %321 = vmatprep.subr.mxu0 0.0
  %322 = vmatpush1.msra.mxu0 0.0
  %323 = vmatprep.subr.mxu0 0.0
  %324 = vmatpush1.msra.mxu0 0.0
  %325 = vmatprep.subr.mxu0 0.0
  %326 = vmatpush1.msra.mxu0 0.0
  %327 = vmatprep.subr.mxu0 0.0
  %328 = vmatpush1.msra.mxu0 0.0
  %329 = vmatprep.subr.mxu0 0.0
  %330 = vmatpush1.msra.mxu0 0.0
  %331 = vmatprep.subr.mxu0 0.0
  %332 = vmatpush1.msra.mxu0 %v232
  %333 = vmatprep.subr.mxu0 0.0
  %334 = vmatpush1.msra.mxu0 %v231
  %335 = vmatprep.subr.mxu0 0.0
  %336 = vmatpush1.msra.mxu0 %v230
  %337 = vmatprep.subr.mxu0 0.0
  %338 = vmatpush1.msra.mxu0 %v229
  %339 = vmatprep.subr.mxu0 0.0
  %340 = vmatpush2.msra.mxu0 0.0
  %341 = vmatprep.subr.mxu0 0.0
  %342 = vmatpush2.msra.mxu0 0.0
  %343 = vmatprep.subr.mxu0 0.0
  %344 = vmatpush2.msra.mxu0 0.0
  %345 = vmatprep.subr.mxu0 0.0
  %346 = vmatpush2.msra.mxu0 0.0
  %347 = vmatprep.subr.mxu0 0.0
  %348 = vmatpush2.msra.mxu0 0.0
  %349 = vmatprep.subr.mxu0 0.0
  %350 = vmatpush2.msra.mxu0 0.0
  %351 = vmatprep.subr.mxu0 0.0
  %352 = vmatpush2.msra.mxu0 0.0
  %353 = vmatprep.subr.mxu0 0.0
  %354 = vmatpush2.msra.mxu0 0.0
  %355 = vmatprep.subr.mxu0 0.0
  %356 = vmatpush2.msra.mxu0 0.0
  %357 = vmatprep.subr.mxu0 0.0
  %358 = vmatpush2.msra.mxu0 0.0
  %359 = vmatprep.subr.mxu0 0.0
  %360 = vmatpush2.msra.mxu0 0.0
  %361 = vmatprep.subr.mxu0 0.0
  %362 = vmatpush2.msra.mxu0 0.0
  %363 = vmatprep.subr.mxu0 0.0
  %364 = vmatpush2.msra.mxu0 0.0
  %365 = vmatprep.subr.mxu0 0.0
  %366 = vmatpush2.msra.mxu0 0.0
  %367 = vmatprep.subr.mxu0 0.0
  %368 = vmatpush2.msra.mxu0 0.0
  %369 = vmatprep.subr.mxu0 0.0
  %370 = vmatpush2.msra.mxu0 0.0
  %371 = vmatprep.mubr.f32.mxu0 0.0
  %372 = vmatmul.mubr.f32.gmra.mxu0 %v149
  %v373 = vpop.f32.mrf.mxu0
  %v374 = vadd.f32 %v304, %v373
  %v375 = vpop.f32.mrf.mxu0
  %376 = vdwg.mxu0
  %v377 = vld [vmem:[%s8] sm:$0x1]
  %v378 = vadd.f32 %v374, %v377
  %v379 = vxor.u32 %v378, 2147483648
  %v380 = vmul.f32 %v379, 1.442695
  %v381 = vpow.pop %v380
  %v382 = vadd.f32 %v381, 1.0
  %v383 = vrcp.pop %v382
  %v384 = vmul.f32 1.0, %v383
  %v385 = vld [vmem:[%s9] sm:$0xff]
  %v386 = vld [vmem:[%s9 + $0x8] sm:$0xff]
  %v387 = vld [vmem:[%s9 + $0x10] sm:$0xff]
  %v388 = vld [vmem:[%s9 + $0x18] sm:$0xff]
  %v389 = vld [vmem:[%s10] sm:$0xff]
  %v390 = vld [vmem:[%s10 + $0x8] sm:$0xff]
  %v391 = vld [vmem:[%s10 + $0x10] sm:$0xff]
  %v392 = vld [vmem:[%s10 + $0x18] sm:$0xff]
  %393 = vmatprep.subr.mxu0 0.0
  %394 = vmatpush1.msra.mxu0 0.0
  %395 = vmatprep.subr.mxu0 0.0
  %396 = vmatpush1.msra.mxu0 0.0
  %397 = vmatprep.subr.mxu0 0.0
  %398 = vmatpush1.msra.mxu0 0.0
  %399 = vmatprep.subr.mxu0 0.0
  %400 = vmatpush1.msra.mxu0 0.0
  %401 = vmatprep.subr.mxu0 0.0
  %402 = vmatpush1.msra.mxu0 0.0
  %403 = vmatprep.subr.mxu0 0.0
  %404 = vmatpush1.msra.mxu0 0.0
  %405 = vmatprep.subr.mxu0 0.0
  %406 = vmatpush1.msra.mxu0 0.0
  %407 = vmatprep.subr.mxu0 0.0
  %408 = vmatpush1.msra.mxu0 0.0
  %409 = vmatprep.subr.mxu0 0.0
  %410 = vmatpush1.msra.mxu0 0.0
  %411 = vmatprep.subr.mxu0 0.0
  %412 = vmatpush1.msra.mxu0 0.0
  %413 = vmatprep.subr.mxu0 0.0
  %414 = vmatpush1.msra.mxu0 0.0
  %415 = vmatprep.subr.mxu0 0.0
  %416 = vmatpush1.msra.mxu0 0.0
  %417 = vmatprep.subr.mxu0 0.0
  %418 = vmatpush1.msra.mxu0 %v392
  %419 = vmatprep.subr.mxu0 0.0
  %420 = vmatpush1.msra.mxu0 %v391
  %421 = vmatprep.subr.mxu0 0.0
  %422 = vmatpush1.msra.mxu0 %v390
  %423 = vmatprep.subr.mxu0 0.0
  %424 = vmatpush1.msra.mxu0 %v389
  %425 = vmatprep.subr.mxu0 0.0
  %426 = vmatpush2.msra.mxu0 0.0
  %427 = vmatprep.subr.mxu0 0.0
  %428 = vmatpush2.msra.mxu0 0.0
  %429 = vmatprep.subr.mxu0 0.0
  %430 = vmatpush2.msra.mxu0 0.0
  %431 = vmatprep.subr.mxu0 0.0
  %432 = vmatpush2.msra.mxu0 0.0
  %433 = vmatprep.subr.mxu0 0.0
  %434 = vmatpush2.msra.mxu0 0.0
  %435 = vmatprep.subr.mxu0 0.0
  %436 = vmatpush2.msra.mxu0 0.0
  %437 = vmatprep.subr.mxu0 0.0
  %438 = vmatpush2.msra.mxu0 0.0
  %439 = vmatprep.subr.mxu0 0.0
  %440 = vmatpush2.msra.mxu0 0.0
  %441 = vmatprep.subr.mxu0 0.0
  %442 = vmatpush2.msra.mxu0 0.0
  %443 = vmatprep.subr.mxu0 0.0
  %444 = vmatpush2.msra.mxu0 0.0
  %445 = vmatprep.subr.mxu0 0.0
  %446 = vmatpush2.msra.mxu0 0.0
  %447 = vmatprep.subr.mxu0 0.0
  %448 = vmatpush2.msra.mxu0 0.0
  %449 = vmatprep.subr.mxu0 0.0
  %450 = vmatpush2.msra.mxu0 0.0
  %451 = vmatprep.subr.mxu0 0.0
  %452 = vmatpush2.msra.mxu0 0.0
  %453 = vmatprep.subr.mxu0 0.0
  %454 = vmatpush2.msra.mxu0 0.0
  %455 = vmatprep.subr.mxu0 0.0
  %456 = vmatpush2.msra.mxu0 0.0
  %457 = vmatprep.mubr.f32.mxu0 0.0
  %458 = vmatmul.mubr.f32.gmra.mxu0 %v76
  %v459 = vpop.f32.mrf.mxu0
  %v460 = vadd.f32 0.0, %v459
  %v461 = vpop.f32.mrf.mxu0
  %462 = vdwg.mxu0
  %463 = vmatprep.subr.mxu0 0.0
  %464 = vmatpush1.msra.mxu0 0.0
  %465 = vmatprep.subr.mxu0 0.0
  %466 = vmatpush1.msra.mxu0 0.0
  %467 = vmatprep.subr.mxu0 0.0
  %468 = vmatpush1.msra.mxu0 0.0
  %469 = vmatprep.subr.mxu0 0.0
  %470 = vmatpush1.msra.mxu0 0.0
  %471 = vmatprep.subr.mxu0 0.0
  %472 = vmatpush1.msra.mxu0 0.0
  %473 = vmatprep.subr.mxu0 0.0
  %474 = vmatpush1.msra.mxu0 0.0
  %475 = vmatprep.subr.mxu0 0.0
  %476 = vmatpush1.msra.mxu0 0.0
  %477 = vmatprep.subr.mxu0 0.0
  %478 = vmatpush1.msra.mxu0 0.0
  %479 = vmatprep.subr.mxu0 0.0
  %480 = vmatpush1.msra.mxu0 0.0
  %481 = vmatprep.subr.mxu0 0.0
  %482 = vmatpush1.msra.mxu0 0.0
  %483 = vmatprep.subr.mxu0 0.0
  %484 = vmatpush1.msra.mxu0 0.0
  %485 = vmatprep.subr.mxu0 0.0
  %486 = vmatpush1.msra.mxu0 0.0
  %487 = vmatprep.subr.mxu0 0.0
  %488 = vmatpush1.msra.mxu0 %v388
  %489 = vmatprep.subr.mxu0 0.0
  %490 = vmatpush1.msra.mxu0 %v387
  %491 = vmatprep.subr.mxu0 0.0
  %492 = vmatpush1.msra.mxu0 %v386
  %493 = vmatprep.subr.mxu0 0.0
  %494 = vmatpush1.msra.mxu0 %v385
  %495 = vmatprep.subr.mxu0 0.0
  %496 = vmatpush2.msra.mxu0 0.0
  %497 = vmatprep.subr.mxu0 0.0
  %498 = vmatpush2.msra.mxu0 0.0
  %499 = vmatprep.subr.mxu0 0.0
  %500 = vmatpush2.msra.mxu0 0.0
  %501 = vmatprep.subr.mxu0 0.0
  %502 = vmatpush2.msra.mxu0 0.0
  %503 = vmatprep.subr.mxu0 0.0
  %504 = vmatpush2.msra.mxu0 0.0
  %505 = vmatprep.subr.mxu0 0.0
  %506 = vmatpush2.msra.mxu0 0.0
  %507 = vmatprep.subr.mxu0 0.0
  %508 = vmatpush2.msra.mxu0 0.0
  %509 = vmatprep.subr.mxu0 0.0
  %510 = vmatpush2.msra.mxu0 0.0
  %511 = vmatprep.subr.mxu0 0.0
  %512 = vmatpush2.msra.mxu0 0.0
  %513 = vmatprep.subr.mxu0 0.0
  %514 = vmatpush2.msra.mxu0 0.0
  %515 = vmatprep.subr.mxu0 0.0
  %516 = vmatpush2.msra.mxu0 0.0
  %517 = vmatprep.subr.mxu0 0.0
  %518 = vmatpush2.msra.mxu0 0.0
  %519 = vmatprep.subr.mxu0 0.0
  %520 = vmatpush2.msra.mxu0 0.0
  %521 = vmatprep.subr.mxu0 0.0
  %522 = vmatpush2.msra.mxu0 0.0
  %523 = vmatprep.subr.mxu0 0.0
  %524 = vmatpush2.msra.mxu0 0.0
  %525 = vmatprep.subr.mxu0 0.0
  %526 = vmatpush2.msra.mxu0 0.0
  %527 = vmatprep.mubr.f32.mxu0 0.0
  %528 = vmatmul.mubr.f32.gmra.mxu0 %v149
  %v529 = vpop.f32.mrf.mxu0
  %v530 = vadd.f32 %v460, %v529
  %v531 = vpop.f32.mrf.mxu0
  %532 = vdwg.mxu0
  %v533 = vld [vmem:[%s11] sm:$0x1]
  %v534 = vadd.f32 %v530, %v533
  %v535 = vtanh.pop %v534
  %v536 = vld [vmem:[%s12] sm:$0xff]
  %v537 = vld [vmem:[%s12 + $0x8] sm:$0xff]
  %v538 = vld [vmem:[%s12 + $0x10] sm:$0xff]
  %v539 = vld [vmem:[%s12 + $0x18] sm:$0xff]
  %v540 = vld [vmem:[%s13] sm:$0x1]
  %541 = vmatprep.subr.mxu0 0.0
  %542 = vmatpush1.msra.mxu0 0.0
  %543 = vmatprep.subr.mxu0 0.0
  %544 = vmatpush1.msra.mxu0 0.0
  %545 = vmatprep.subr.mxu0 0.0
  %546 = vmatpush1.msra.mxu0 0.0
  %547 = vmatprep.subr.mxu0 0.0
  %548 = vmatpush1.msra.mxu0 0.0
  %549 = vmatprep.subr.mxu0 0.0
  %550 = vmatpush1.msra.mxu0 0.0
  %551 = vmatprep.subr.mxu0 0.0
  %552 = vmatpush1.msra.mxu0 0.0
  %553 = vmatprep.subr.mxu0 0.0
  %554 = vmatpush1.msra.mxu0 0.0
  %555 = vmatprep.subr.mxu0 0.0
  %556 = vmatpush1.msra.mxu0 0.0
  %557 = vmatprep.subr.mxu0 0.0
  %558 = vmatpush1.msra.mxu0 0.0
  %559 = vmatprep.subr.mxu0 0.0
  %560 = vmatpush1.msra.mxu0 0.0
  %561 = vmatprep.subr.mxu0 0.0
  %562 = vmatpush1.msra.mxu0 0.0
  %563 = vmatprep.subr.mxu0 0.0
  %564 = vmatpush1.msra.mxu0 0.0
  %565 = vmatprep.subr.mxu0 0.0
  %566 = vmatpush1.msra.mxu0 %v539
  %567 = vmatprep.subr.mxu0 0.0
  %568 = vmatpush1.msra.mxu0 %v538
  %569 = vmatprep.subr.mxu0 0.0
  %570 = vmatpush1.msra.mxu0 %v537
  %571 = vmatprep.subr.mxu0 0.0
  %572 = vmatpush1.msra.mxu0 %v536
  %573 = vmatprep.subr.mxu0 0.0
  %574 = vmatpush2.msra.mxu0 0.0
  %575 = vmatprep.subr.mxu0 0.0
  %576 = vmatpush2.msra.mxu0 0.0
  %577 = vmatprep.subr.mxu0 0.0
  %578 = vmatpush2.msra.mxu0 0.0
  %579 = vmatprep.subr.mxu0 0.0
  %580 = vmatpush2.msra.mxu0 0.0
  %581 = vmatprep.subr.mxu0 0.0
  %582 = vmatpush2.msra.mxu0 0.0
  %583 = vmatprep.subr.mxu0 0.0
  %584 = vmatpush2.msra.mxu0 0.0
  %585 = vmatprep.subr.mxu0 0.0
  %586 = vmatpush2.msra.mxu0 0.0
  %587 = vmatprep.subr.mxu0 0.0
  %588 = vmatpush2.msra.mxu0 0.0
  %589 = vmatprep.subr.mxu0 0.0
  %590 = vmatpush2.msra.mxu0 0.0
  %591 = vmatprep.subr.mxu0 0.0
  %592 = vmatpush2.msra.mxu0 0.0
  %593 = vmatprep.subr.mxu0 0.0
  %594 = vmatpush2.msra.mxu0 0.0
  %595 = vmatprep.subr.mxu0 0.0
  %596 = vmatpush2.msra.mxu0 0.0
  %597 = vmatprep.subr.mxu0 0.0
  %598 = vmatpush2.msra.mxu0 0.0
  %599 = vmatprep.subr.mxu0 0.0
  %600 = vmatpush2.msra.mxu0 0.0
  %601 = vmatprep.subr.mxu0 0.0
  %602 = vmatpush2.msra.mxu0 0.0
  %603 = vmatprep.subr.mxu0 0.0
  %604 = vmatpush2.msra.mxu0 0.0
  %605 = vmatprep.mubr.f32.mxu0 0.0
  %606 = vmatmul.mubr.f32.gmra.mxu0 %v149
  %v607 = vpop.f32.mrf.mxu0
  %v608 = vadd.f32 %v540, %v607
  %v609 = vpop.f32.mrf.mxu0
  %610 = vdwg.mxu0
  %v611 = vld [vmem:[%s14] sm:$0xff]
  %v612 = vld [vmem:[%s14 + $0x8] sm:$0xff]
  %v613 = vld [vmem:[%s14 + $0x10] sm:$0xff]
  %v614 = vld [vmem:[%s14 + $0x18] sm:$0xff]
  %v615 = vld [vmem:[%s15] sm:$0x1]
  %v617 = vlaneseq
  %v618 = vshrl.u32 %v617, 7
  %v619 = vsub.s32 0, %v618
  %v620 = vrot.slane %v615, %v619
  %v623 = vsel %vm74, %v57, 0
  %625 = vmatprep.subr.mxu0 0.0
  %626 = vmatpush1.msra.mxu0 0.0
  %627 = vmatprep.subr.mxu0 0.0
  %628 = vmatpush1.msra.mxu0 0.0
  %629 = vmatprep.subr.mxu0 0.0
  %630 = vmatpush1.msra.mxu0 0.0
  %631 = vmatprep.subr.mxu0 0.0
  %632 = vmatpush1.msra.mxu0 0.0
  %633 = vmatprep.subr.mxu0 0.0
  %634 = vmatpush1.msra.mxu0 0.0
  %635 = vmatprep.subr.mxu0 0.0
  %636 = vmatpush1.msra.mxu0 0.0
  %637 = vmatprep.subr.mxu0 0.0
  %638 = vmatpush1.msra.mxu0 0.0
  %639 = vmatprep.subr.mxu0 0.0
  %640 = vmatpush1.msra.mxu0 0.0
  %641 = vmatprep.subr.mxu0 0.0
  %642 = vmatpush1.msra.mxu0 0.0
  %643 = vmatprep.subr.mxu0 0.0
  %644 = vmatpush1.msra.mxu0 0.0
  %645 = vmatprep.subr.mxu0 0.0
  %646 = vmatpush1.msra.mxu0 0.0
  %647 = vmatprep.subr.mxu0 0.0
  %648 = vmatpush1.msra.mxu0 0.0
  %649 = vmatprep.subr.mxu0 0.0
  %650 = vmatpush1.msra.mxu0 %v614
  %651 = vmatprep.subr.mxu0 0.0
  %652 = vmatpush1.msra.mxu0 %v613
  %653 = vmatprep.subr.mxu0 0.0
  %654 = vmatpush1.msra.mxu0 %v612
  %655 = vmatprep.subr.mxu0 0.0
  %656 = vmatpush1.msra.mxu0 %v611
  %657 = vmatprep.subr.mxu0 0.0
  %658 = vmatpush2.msra.mxu0 0.0
  %659 = vmatprep.subr.mxu0 0.0
  %660 = vmatpush2.msra.mxu0 0.0
  %661 = vmatprep.subr.mxu0 0.0
  %662 = vmatpush2.msra.mxu0 0.0
  %663 = vmatprep.subr.mxu0 0.0
  %664 = vmatpush2.msra.mxu0 0.0
  %665 = vmatprep.subr.mxu0 0.0
  %666 = vmatpush2.msra.mxu0 0.0
  %667 = vmatprep.subr.mxu0 0.0
  %668 = vmatpush2.msra.mxu0 0.0
  %669 = vmatprep.subr.mxu0 0.0
  %670 = vmatpush2.msra.mxu0 0.0
  %671 = vmatprep.subr.mxu0 0.0
  %672 = vmatpush2.msra.mxu0 0.0
  %673 = vmatprep.subr.mxu0 0.0
  %674 = vmatpush2.msra.mxu0 0.0
  %675 = vmatprep.subr.mxu0 0.0
  %676 = vmatpush2.msra.mxu0 0.0
  %677 = vmatprep.subr.mxu0 0.0
  %678 = vmatpush2.msra.mxu0 0.0
  %679 = vmatprep.subr.mxu0 0.0
  %680 = vmatpush2.msra.mxu0 0.0
  %681 = vmatprep.subr.mxu0 0.0
  %682 = vmatpush2.msra.mxu0 0.0
  %683 = vmatprep.subr.mxu0 0.0
  %684 = vmatpush2.msra.mxu0 0.0
  %685 = vmatprep.subr.mxu0 0.0
  %686 = vmatpush2.msra.mxu0 0.0
  %687 = vmatprep.subr.mxu0 0.0
  %688 = vmatpush2.msra.mxu0 0.0
  %689 = vmatprep.mubr.f32.mxu0 0.0
  %690 = vmatmul.mubr.f32.gmra.mxu0 %v623
  %v691 = vpop.f32.mrf.mxu0
  %v692 = vadd.f32 %v620, %v691
  %v693 = vpop.f32.mrf.mxu0
  %694 = vdwg.mxu0
  %v695 = vlaneseq
  %v696 = vshrl.u32 %v695, 7
  %v697 = vsub.s32 0, %v696
  %v698 = vrot.slane %v608, %v697
  %v699 = vadd.f32 %v692, %v698
  %v700 = vxor.u32 %v699, 2147483648
  %v701 = vmul.f32 %v700, 1.442695
  %v702 = vpow.pop %v701
  %v703 = vadd.f32 %v702, 1.0
  %v704 = vrcp.pop %v703
  %v705 = vmul.f32 1.0, %v704
  %v706 = vmul.f32 %v705, %v56
  %v707 = vmul.f32 %v228, %v535
  %v708 = vsel %vm58, %v706, 0.0
  %v709 = vrot.slane %v708, 4
  %v710 = vadd.f32 %v708, %v709
  %v711 = vrot.slane %v710, 2
  %v712 = vadd.f32 %v710, %v711
  %v713 = vrot.slane %v712, 1
  %v714 = vadd.f32 %v712, %v713
  %v715 = vadd.f32 %v707, %v714
  %vm716 = vcmask 253952
  %717 = vst.msk [vmem:[%s16] sm:$0x1] %vm716, %v715
  %v718 = vtanh.pop %v715
  %v719 = vmul.f32 %v384, %v718
  %720 = vst.msk [vmem:[%s17] sm:$0x1] %vm716, %v719
  // Predicated region
  $region66: #{forward.10} parent=0 // pred_check
    _
  $region67: #{forward.10} parent=0 // pred_check_branch
    %722 = sbr.rel (0) target = $region69
  $region68: #{forward.10} parent=0 // pred_region
    _
  $region69: #{forward.10} parent=0 // pred_fallthru
    _
  // Predicated region
  $region70: #{forward.10} parent=0 // pred_check
    _
  $region71: #{forward.10} parent=0 // pred_check_branch
    %724 = sbr.rel (0) target = $region73
  $region72: #{forward.10} parent=0 // pred_region
    _
  $region73: #{forward.10} parent=0 // pred_fallthru
    _
  // Predicated region
  $region74: #{forward.10} parent=0 // pred_check
    _
  $region75: #{forward.10} parent=0 // pred_check_branch
    %726 = sbr.rel (0) target = $region77
  $region76: #{forward.10} parent=0 // pred_region
    _
  $region77: #{forward.10} parent=0 // pred_fallthru
    _
  // Predicated region
  $region78: #{forward.10} parent=0 // pred_check
    _
  $region79: #{forward.10} parent=0 // pred_check_branch
    %728 = sbr.rel (0) target = $region81
  $region80: #{forward.10} parent=0 // pred_region
    _
  $region81: #{forward.10} parent=0 // pred_fallthru
    _

// kernel: forward.12
$region0: #{forward.12}
  #allocation0 [shape = 'u32[]', space=smem, size = 0x4, offset = 0x4, fixed_abs, tag = 'smem constant byte address 0x4 - core index']
  #allocation1 [shape = 'u32[144,128]{1,0:T(1,128)}', space=vmem, size = 0x12000, scoped, tag = 'internal scratch']
  %s0 = inlined_call_operand.vmem [shape: f32[1,32], index: 0, kind: input, shape index: {}]
  %s1 = inlined_call_operand.vmem [shape: f32[4,32], index: 1, kind: input, shape index: {}]
  %s2 = inlined_call_operand.vmem [shape: f32[4,32], index: 2, kind: input, shape index: {}]
  %s3 = inlined_call_operand.vmem [shape: f32[32,32], index: 3, kind: input, shape index: {}]
  %s4 = inlined_call_operand.vmem [shape: f32[32,32], index: 4, kind: input, shape index: {}]
  %s5 = inlined_call_operand.vmem [shape: f32[1,32], index: 5, kind: input, shape index: {}]
  %s6 = inlined_call_operand.vmem [shape: f32[32,32], index: 6, kind: input, shape index: {}]
  %s7 = inlined_call_operand.vmem [shape: f32[32,32], index: 7, kind: input, shape index: {}]
  %s8 = inlined_call_operand.vmem [shape: f32[1,32], index: 8, kind: input, shape index: {}]
  %s9 = inlined_call_operand.vmem [shape: f32[32,32], index: 9, kind: input, shape index: {}]
  %s10 = inlined_call_operand.vmem [shape: f32[32,32], index: 10, kind: input, shape index: {}]
  %s11 = inlined_call_operand.vmem [shape: f32[1,32], index: 11, kind: input, shape index: {}]
  %s12 = inlined_call_operand.vmem [shape: f32[32,32], index: 12, kind: input, shape index: {}]
  %s13 = inlined_call_operand.vmem [shape: f32[1,32], index: 13, kind: input, shape index: {}]
  %s14 = inlined_call_operand.vmem [shape: f32[32,32], index: 14, kind: input, shape index: {}]
  %s15 = inlined_call_operand.vmem [shape: f32[1,32], index: 15, kind: input, shape index: {}]
  %s16 = inlined_call_operand.hbm [shape: f32[1,32], index: 16, kind: output, shape index: {0}]
  %s17 = inlined_call_operand.vmem [shape: f32[1,32], index: 17, kind: output, shape index: {1}]
  %18 = xla_tuple %s16, %s17
  %s19 = sld [smem:[#allocation0]]
  $region82: #{forward.12} parent=0
    _
  %s21 = ssub.s32 1, %s19
  %s22 = scalar_select 0, %s21, %s19
  $region1: #{forward.12} parent=0
    #allocation2 [shape = 'u8[512]{0}', space=vmem, size = 0x400, scoped, tag = 'output window, operand 0, single buffered']
    #allocation3 [shape = 's32[1]{0}', space=sflag, size = 0x4, scoped, tag = 'scoped memory for forward.12']
    %23 = vsyncpa [#allocation3], 0
    // Predicated region
    $region2: #{forward.12} parent=1 // pred_check
      _
    $region3: #{forward.12} parent=1 // pred_check_branch
      %25 = sbr.rel (0) target = $region5
    $region4: #{forward.12} parent=1 // pred_region
      _
    $region5: #{forward.12} parent=1 // pred_fallthru
      _
    // Predicated region
    $region6: #{forward.12} parent=1 // pred_check
      _
    $region7: #{forward.12} parent=1 // pred_check_branch
      %27 = sbr.rel (0) target = $region9
    $region8: #{forward.12} parent=1 // pred_region
      _
    $region9: #{forward.12} parent=1 // pred_fallthru
      _
    // Predicated region
    $region10: #{forward.12} parent=1 // pred_check
      _
    $region11: #{forward.12} parent=1 // pred_check_branch
      %29 = sbr.rel (0) target = $region13
    $region12: #{forward.12} parent=1 // pred_region
      _
    $region13: #{forward.12} parent=1 // pred_fallthru
      _
    // Predicated region
    $region14: #{forward.12} parent=1 // pred_check
      _
    $region15: #{forward.12} parent=1 // pred_check_branch
      %31 = sbr.rel (0) target = $region17
    $region16: #{forward.12} parent=1 // pred_region
      _
    $region17: #{forward.12} parent=1 // pred_fallthru
      _
    // Predicated region
    $region18: #{forward.12} parent=1 // pred_check
      _
    $region19: #{forward.12} parent=1 // pred_check_branch
      %33 = sbr.rel (0) target = $region21
    $region20: #{forward.12} parent=1 // pred_region
      _
    $region21: #{forward.12} parent=1 // pred_fallthru
      _
    // Predicated region
    $region22: #{forward.12} parent=1 // pred_check
      _
    $region23: #{forward.12} parent=1 // pred_check_branch
      %35 = sbr.rel (0) target = $region25
    $region24: #{forward.12} parent=1 // pred_region
      _
    $region25: #{forward.12} parent=1 // pred_fallthru
      _
    // Predicated region
    $region26: #{forward.12} parent=1 // pred_check
      _
    $region27: #{forward.12} parent=1 // pred_check_branch
      %37 = sbr.rel (0) target = $region29
    $region28: #{forward.12} parent=1 // pred_region
      _
    $region29: #{forward.12} parent=1 // pred_fallthru
      _
    // Predicated region
    $region30: #{forward.12} parent=1 // pred_check
      _
    $region31: #{forward.12} parent=1 // pred_check_branch
      %39 = sbr.rel (0) target = $region33
    $region32: #{forward.12} parent=1 // pred_region
      _
    $region33: #{forward.12} parent=1 // pred_fallthru
      _
    // Predicated region
    $region34: #{forward.12} parent=1 // pred_check
      _
    $region35: #{forward.12} parent=1 // pred_check_branch
      %41 = sbr.rel (0) target = $region37
    $region36: #{forward.12} parent=1 // pred_region
      _
    $region37: #{forward.12} parent=1 // pred_fallthru
      _
    // Predicated region
    $region38: #{forward.12} parent=1 // pred_check
      _
    $region39: #{forward.12} parent=1 // pred_check_branch
      %43 = sbr.rel (0) target = $region41
    $region40: #{forward.12} parent=1 // pred_region
      _
    $region41: #{forward.12} parent=1 // pred_fallthru
      _
    // Predicated region
    $region42: #{forward.12} parent=1 // pred_check
      _
    $region43: #{forward.12} parent=1 // pred_check_branch
      %45 = sbr.rel (0) target = $region45
    $region44: #{forward.12} parent=1 // pred_region
      _
    $region45: #{forward.12} parent=1 // pred_fallthru
      _
    // Predicated region
    $region46: #{forward.12} parent=1 // pred_check
      _
    $region47: #{forward.12} parent=1 // pred_check_branch
      %47 = sbr.rel (0) target = $region49
    $region48: #{forward.12} parent=1 // pred_region
      _
    $region49: #{forward.12} parent=1 // pred_fallthru
      _
    // Predicated region
    $region50: #{forward.12} parent=1 // pred_check
      _
    $region51: #{forward.12} parent=1 // pred_check_branch
      %49 = sbr.rel (0) target = $region53
    $region52: #{forward.12} parent=1 // pred_region
      _
    $region53: #{forward.12} parent=1 // pred_fallthru
      _
    // Predicated region
    $region54: #{forward.12} parent=1 // pred_check
      _
    $region55: #{forward.12} parent=1 // pred_check_branch
      %51 = sbr.rel (0) target = $region57
    $region56: #{forward.12} parent=1 // pred_region
      _
    $region57: #{forward.12} parent=1 // pred_fallthru
      _
    // Predicated region
    $region58: #{forward.12} parent=1 // pred_check
      _
    $region59: #{forward.12} parent=1 // pred_check_branch
      %53 = sbr.rel (0) target = $region61
    $region60: #{forward.12} parent=1 // pred_region
      _
    $region61: #{forward.12} parent=1 // pred_fallthru
      _
    // Predicated region
    $region62: #{forward.12} parent=1 // pred_check
      _
    $region63: #{forward.12} parent=1 // pred_check_branch
      %55 = sbr.rel (0) target = $region65
    $region64: #{forward.12} parent=1 // pred_region
      _
    $region65: #{forward.12} parent=1 // pred_fallthru
      _
    %v56 = vld [vmem:[%s0] sm:$0x1]
    %v57 = vld [vmem:[%s1] sm:$0xf]
    %v58 = vld [vmem:[%s2] sm:$0xf]
    %vm59 = vcmask 257024
    %v60 = vsel %vm59, %v58, 0.0
    %v61 = vrot.slane %v60, 4
    %v62 = vadd.f32 %v60, %v61
    %v63 = vrot.slane %v62, 2
    %v64 = vadd.f32 %v62, %v63
    %v65 = vrot.slane %v64, 1
    %v66 = vadd.f32 %v64, %v65
    %v67 = vld [vmem:[%s3] sm:$0xff]
    %v68 = vld [vmem:[%s3 + $0x8] sm:$0xff]
    %v69 = vld [vmem:[%s3 + $0x10] sm:$0xff]
    %v70 = vld [vmem:[%s3 + $0x18] sm:$0xff]
    %v71 = vld [vmem:[%s4] sm:$0xff]
    %v72 = vld [vmem:[%s4 + $0x8] sm:$0xff]
    %v73 = vld [vmem:[%s4 + $0x10] sm:$0xff]
    %v74 = vld [vmem:[%s4 + $0x18] sm:$0xff]
    %vm75 = vcmask 261120
    %v77 = vsel %vm75, %v66, 0
    %79 = vmatprep.subr.mxu0 0.0
    %80 = vmatpush1.msra.mxu0 0.0
    %81 = vmatprep.subr.mxu0 0.0
    %82 = vmatpush1.msra.mxu0 0.0
    %83 = vmatprep.subr.mxu0 0.0
    %84 = vmatpush1.msra.mxu0 0.0
    %85 = vmatprep.subr.mxu0 0.0
    %86 = vmatpush1.msra.mxu0 0.0
    %87 = vmatprep.subr.mxu0 0.0
    %88 = vmatpush1.msra.mxu0 0.0
    %89 = vmatprep.subr.mxu0 0.0
    %90 = vmatpush1.msra.mxu0 0.0
    %91 = vmatprep.subr.mxu0 0.0
    %92 = vmatpush1.msra.mxu0 0.0
    %93 = vmatprep.subr.mxu0 0.0
    %94 = vmatpush1.msra.mxu0 0.0
    %95 = vmatprep.subr.mxu0 0.0
    %96 = vmatpush1.msra.mxu0 0.0
    %97 = vmatprep.subr.mxu0 0.0
    %98 = vmatpush1.msra.mxu0 0.0
    %99 = vmatprep.subr.mxu0 0.0
    %100 = vmatpush1.msra.mxu0 0.0
    %101 = vmatprep.subr.mxu0 0.0
    %102 = vmatpush1.msra.mxu0 0.0
    %103 = vmatprep.subr.mxu0 0.0
    %104 = vmatpush1.msra.mxu0 %v74
    %105 = vmatprep.subr.mxu0 0.0
    %106 = vmatpush1.msra.mxu0 %v73
    %107 = vmatprep.subr.mxu0 0.0
    %108 = vmatpush1.msra.mxu0 %v72
    %109 = vmatprep.subr.mxu0 0.0
    %110 = vmatpush1.msra.mxu0 %v71
    %111 = vmatprep.subr.mxu0 0.0
    %112 = vmatpush2.msra.mxu0 0.0
    %113 = vmatprep.subr.mxu0 0.0
    %114 = vmatpush2.msra.mxu0 0.0
    %115 = vmatprep.subr.mxu0 0.0
    %116 = vmatpush2.msra.mxu0 0.0
    %117 = vmatprep.subr.mxu0 0.0
    %118 = vmatpush2.msra.mxu0 0.0
    %119 = vmatprep.subr.mxu0 0.0
    %120 = vmatpush2.msra.mxu0 0.0
    %121 = vmatprep.subr.mxu0 0.0
    %122 = vmatpush2.msra.mxu0 0.0
    %123 = vmatprep.subr.mxu0 0.0
    %124 = vmatpush2.msra.mxu0 0.0
    %125 = vmatprep.subr.mxu0 0.0
    %126 = vmatpush2.msra.mxu0 0.0
    %127 = vmatprep.subr.mxu0 0.0
    %128 = vmatpush2.msra.mxu0 0.0
    %129 = vmatprep.subr.mxu0 0.0
    %130 = vmatpush2.msra.mxu0 0.0
    %131 = vmatprep.subr.mxu0 0.0
    %132 = vmatpush2.msra.mxu0 0.0
    %133 = vmatprep.subr.mxu0 0.0
    %134 = vmatpush2.msra.mxu0 0.0
    %135 = vmatprep.subr.mxu0 0.0
    %136 = vmatpush2.msra.mxu0 0.0
    %137 = vmatprep.subr.mxu0 0.0
    %138 = vmatpush2.msra.mxu0 0.0
    %139 = vmatprep.subr.mxu0 0.0
    %140 = vmatpush2.msra.mxu0 0.0
    %141 = vmatprep.subr.mxu0 0.0
    %142 = vmatpush2.msra.mxu0 0.0
    %143 = vmatprep.mubr.f32.mxu0 0.0
    %144 = vmatmul.mubr.f32.gmra.mxu0 %v77
    %v145 = vpop.f32.mrf.mxu0
    %v146 = vadd.f32 0.0, %v145
    %v147 = vpop.f32.mrf.mxu0
    %148 = vdwg.mxu0
    %v150 = vsel %vm75, %v56, 0
    %152 = vmatprep.subr.mxu0 0.0
    %153 = vmatpush1.msra.mxu0 0.0
    %154 = vmatprep.subr.mxu0 0.0
    %155 = vmatpush1.msra.mxu0 0.0
    %156 = vmatprep.subr.mxu0 0.0
    %157 = vmatpush1.msra.mxu0 0.0
    %158 = vmatprep.subr.mxu0 0.0
    %159 = vmatpush1.msra.mxu0 0.0
    %160 = vmatprep.subr.mxu0 0.0
    %161 = vmatpush1.msra.mxu0 0.0
    %162 = vmatprep.subr.mxu0 0.0
    %163 = vmatpush1.msra.mxu0 0.0
    %164 = vmatprep.subr.mxu0 0.0
    %165 = vmatpush1.msra.mxu0 0.0
    %166 = vmatprep.subr.mxu0 0.0
    %167 = vmatpush1.msra.mxu0 0.0
    %168 = vmatprep.subr.mxu0 0.0
    %169 = vmatpush1.msra.mxu0 0.0
    %170 = vmatprep.subr.mxu0 0.0
    %171 = vmatpush1.msra.mxu0 0.0
    %172 = vmatprep.subr.mxu0 0.0
    %173 = vmatpush1.msra.mxu0 0.0
    %174 = vmatprep.subr.mxu0 0.0
    %175 = vmatpush1.msra.mxu0 0.0
    %176 = vmatprep.subr.mxu0 0.0
    %177 = vmatpush1.msra.mxu0 %v70
    %178 = vmatprep.subr.mxu0 0.0
    %179 = vmatpush1.msra.mxu0 %v69
    %180 = vmatprep.subr.mxu0 0.0
    %181 = vmatpush1.msra.mxu0 %v68
    %182 = vmatprep.subr.mxu0 0.0
    %183 = vmatpush1.msra.mxu0 %v67
    %184 = vmatprep.subr.mxu0 0.0
    %185 = vmatpush2.msra.mxu0 0.0
    %186 = vmatprep.subr.mxu0 0.0
    %187 = vmatpush2.msra.mxu0 0.0
    %188 = vmatprep.subr.mxu0 0.0
    %189 = vmatpush2.msra.mxu0 0.0
    %190 = vmatprep.subr.mxu0 0.0
    %191 = vmatpush2.msra.mxu0 0.0
    %192 = vmatprep.subr.mxu0 0.0
    %193 = vmatpush2.msra.mxu0 0.0
    %194 = vmatprep.subr.mxu0 0.0
    %195 = vmatpush2.msra.mxu0 0.0
    %196 = vmatprep.subr.mxu0 0.0
    %197 = vmatpush2.msra.mxu0 0.0
    %198 = vmatprep.subr.mxu0 0.0
    %199 = vmatpush2.msra.mxu0 0.0
    %200 = vmatprep.subr.mxu0 0.0
    %201 = vmatpush2.msra.mxu0 0.0
    %202 = vmatprep.subr.mxu0 0.0
    %203 = vmatpush2.msra.mxu0 0.0
    %204 = vmatprep.subr.mxu0 0.0
    %205 = vmatpush2.msra.mxu0 0.0
    %206 = vmatprep.subr.mxu0 0.0
    %207 = vmatpush2.msra.mxu0 0.0
    %208 = vmatprep.subr.mxu0 0.0
    %209 = vmatpush2.msra.mxu0 0.0
    %210 = vmatprep.subr.mxu0 0.0
    %211 = vmatpush2.msra.mxu0 0.0
    %212 = vmatprep.subr.mxu0 0.0
    %213 = vmatpush2.msra.mxu0 0.0
    %214 = vmatprep.subr.mxu0 0.0
    %215 = vmatpush2.msra.mxu0 0.0
    %216 = vmatprep.mubr.f32.mxu0 0.0
    %217 = vmatmul.mubr.f32.gmra.mxu0 %v150
    %v218 = vpop.f32.mrf.mxu0
    %v219 = vadd.f32 %v146, %v218
    %v220 = vpop.f32.mrf.mxu0
    %221 = vdwg.mxu0
    %v222 = vld [vmem:[%s5] sm:$0x1]
    %v223 = vadd.f32 %v219, %v222
    %v224 = vxor.u32 %v223, 2147483648
    %v225 = vmul.f32 %v224, 1.442695
    %v226 = vpow.pop %v225
    %v227 = vadd.f32 %v226, 1.0
    %v228 = vrcp.pop %v227
    %v229 = vmul.f32 1.0, %v228
    %v230 = vld [vmem:[%s6] sm:$0xff]
    %v231 = vld [vmem:[%s6 + $0x8] sm:$0xff]
    %v232 = vld [vmem:[%s6 + $0x10] sm:$0xff]
    %v233 = vld [vmem:[%s6 + $0x18] sm:$0xff]
    %v234 = vld [vmem:[%s7] sm:$0xff]
    %v235 = vld [vmem:[%s7 + $0x8] sm:$0xff]
    %v236 = vld [vmem:[%s7 + $0x10] sm:$0xff]
    %v237 = vld [vmem:[%s7 + $0x18] sm:$0xff]
    %238 = vmatprep.subr.mxu0 0.0
    %239 = vmatpush1.msra.mxu0 0.0
    %240 = vmatprep.subr.mxu0 0.0
    %241 = vmatpush1.msra.mxu0 0.0
    %242 = vmatprep.subr.mxu0 0.0
    %243 = vmatpush1.msra.mxu0 0.0
    %244 = vmatprep.subr.mxu0 0.0
    %245 = vmatpush1.msra.mxu0 0.0
    %246 = vmatprep.subr.mxu0 0.0
    %247 = vmatpush1.msra.mxu0 0.0
    %248 = vmatprep.subr.mxu0 0.0
    %249 = vmatpush1.msra.mxu0 0.0
    %250 = vmatprep.subr.mxu0 0.0
    %251 = vmatpush1.msra.mxu0 0.0
    %252 = vmatprep.subr.mxu0 0.0
    %253 = vmatpush1.msra.mxu0 0.0
    %254 = vmatprep.subr.mxu0 0.0
    %255 = vmatpush1.msra.mxu0 0.0
    %256 = vmatprep.subr.mxu0 0.0
    %257 = vmatpush1.msra.mxu0 0.0
    %258 = vmatprep.subr.mxu0 0.0
    %259 = vmatpush1.msra.mxu0 0.0
    %260 = vmatprep.subr.mxu0 0.0
    %261 = vmatpush1.msra.mxu0 0.0
    %262 = vmatprep.subr.mxu0 0.0
    %263 = vmatpush1.msra.mxu0 %v237
    %264 = vmatprep.subr.mxu0 0.0
    %265 = vmatpush1.msra.mxu0 %v236
    %266 = vmatprep.subr.mxu0 0.0
    %267 = vmatpush1.msra.mxu0 %v235
    %268 = vmatprep.subr.mxu0 0.0
    %269 = vmatpush1.msra.mxu0 %v234
    %270 = vmatprep.subr.mxu0 0.0
    %271 = vmatpush2.msra.mxu0 0.0
    %272 = vmatprep.subr.mxu0 0.0
    %273 = vmatpush2.msra.mxu0 0.0
    %274 = vmatprep.subr.mxu0 0.0
    %275 = vmatpush2.msra.mxu0 0.0
    %276 = vmatprep.subr.mxu0 0.0
    %277 = vmatpush2.msra.mxu0 0.0
    %278 = vmatprep.subr.mxu0 0.0
    %279 = vmatpush2.msra.mxu0 0.0
    %280 = vmatprep.subr.mxu0 0.0
    %281 = vmatpush2.msra.mxu0 0.0
    %282 = vmatprep.subr.mxu0 0.0
    %283 = vmatpush2.msra.mxu0 0.0
    %284 = vmatprep.subr.mxu0 0.0
    %285 = vmatpush2.msra.mxu0 0.0
    %286 = vmatprep.subr.mxu0 0.0
    %287 = vmatpush2.msra.mxu0 0.0
    %288 = vmatprep.subr.mxu0 0.0
    %289 = vmatpush2.msra.mxu0 0.0
    %290 = vmatprep.subr.mxu0 0.0
    %291 = vmatpush2.msra.mxu0 0.0
    %292 = vmatprep.subr.mxu0 0.0
    %293 = vmatpush2.msra.mxu0 0.0
    %294 = vmatprep.subr.mxu0 0.0
    %295 = vmatpush2.msra.mxu0 0.0
    %296 = vmatprep.subr.mxu0 0.0
    %297 = vmatpush2.msra.mxu0 0.0
    %298 = vmatprep.subr.mxu0 0.0
    %299 = vmatpush2.msra.mxu0 0.0
    %300 = vmatprep.subr.mxu0 0.0
    %301 = vmatpush2.msra.mxu0 0.0
    %302 = vmatprep.mubr.f32.mxu0 0.0
    %303 = vmatmul.mubr.f32.gmra.mxu0 %v77
    %v304 = vpop.f32.mrf.mxu0
    %v305 = vadd.f32 0.0, %v304
    %v306 = vpop.f32.mrf.mxu0
    %307 = vdwg.mxu0
    %308 = vmatprep.subr.mxu0 0.0
    %309 = vmatpush1.msra.mxu0 0.0
    %310 = vmatprep.subr.mxu0 0.0
    %311 = vmatpush1.msra.mxu0 0.0
    %312 = vmatprep.subr.mxu0 0.0
    %313 = vmatpush1.msra.mxu0 0.0
    %314 = vmatprep.subr.mxu0 0.0
    %315 = vmatpush1.msra.mxu0 0.0
    %316 = vmatprep.subr.mxu0 0.0
    %317 = vmatpush1.msra.mxu0 0.0
    %318 = vmatprep.subr.mxu0 0.0
    %319 = vmatpush1.msra.mxu0 0.0
    %320 = vmatprep.subr.mxu0 0.0
    %321 = vmatpush1.msra.mxu0 0.0
    %322 = vmatprep.subr.mxu0 0.0
    %323 = vmatpush1.msra.mxu0 0.0
    %324 = vmatprep.subr.mxu0 0.0
    %325 = vmatpush1.msra.mxu0 0.0
    %326 = vmatprep.subr.mxu0 0.0
    %327 = vmatpush1.msra.mxu0 0.0
    %328 = vmatprep.subr.mxu0 0.0
    %329 = vmatpush1.msra.mxu0 0.0
    %330 = vmatprep.subr.mxu0 0.0
    %331 = vmatpush1.msra.mxu0 0.0
    %332 = vmatprep.subr.mxu0 0.0
    %333 = vmatpush1.msra.mxu0 %v233
    %334 = vmatprep.subr.mxu0 0.0
    %335 = vmatpush1.msra.mxu0 %v232
    %336 = vmatprep.subr.mxu0 0.0
    %337 = vmatpush1.msra.mxu0 %v231
    %338 = vmatprep.subr.mxu0 0.0
    %339 = vmatpush1.msra.mxu0 %v230
    %340 = vmatprep.subr.mxu0 0.0
    %341 = vmatpush2.msra.mxu0 0.0
    %342 = vmatprep.subr.mxu0 0.0
    %343 = vmatpush2.msra.mxu0 0.0
    %344 = vmatprep.subr.mxu0 0.0
    %345 = vmatpush2.msra.mxu0 0.0
    %346 = vmatprep.subr.mxu0 0.0
    %347 = vmatpush2.msra.mxu0 0.0
    %348 = vmatprep.subr.mxu0 0.0
    %349 = vmatpush2.msra.mxu0 0.0
    %350 = vmatprep.subr.mxu0 0.0
    %351 = vmatpush2.msra.mxu0 0.0
    %352 = vmatprep.subr.mxu0 0.0
    %353 = vmatpush2.msra.mxu0 0.0
    %354 = vmatprep.subr.mxu0 0.0
    %355 = vmatpush2.msra.mxu0 0.0
    %356 = vmatprep.subr.mxu0 0.0
    %357 = vmatpush2.msra.mxu0 0.0
    %358 = vmatprep.subr.mxu0 0.0
    %359 = vmatpush2.msra.mxu0 0.0
    %360 = vmatprep.subr.mxu0 0.0
    %361 = vmatpush2.msra.mxu0 0.0
    %362 = vmatprep.subr.mxu0 0.0
    %363 = vmatpush2.msra.mxu0 0.0
    %364 = vmatprep.subr.mxu0 0.0
    %365 = vmatpush2.msra.mxu0 0.0
    %366 = vmatprep.subr.mxu0 0.0
    %367 = vmatpush2.msra.mxu0 0.0
    %368 = vmatprep.subr.mxu0 0.0
    %369 = vmatpush2.msra.mxu0 0.0
    %370 = vmatprep.subr.mxu0 0.0
    %371 = vmatpush2.msra.mxu0 0.0
    %372 = vmatprep.mubr.f32.mxu0 0.0
    %373 = vmatmul.mubr.f32.gmra.mxu0 %v150
    %v374 = vpop.f32.mrf.mxu0
    %v375 = vadd.f32 %v305, %v374
    %v376 = vpop.f32.mrf.mxu0
    %377 = vdwg.mxu0
    %v378 = vld [vmem:[%s8] sm:$0x1]
    %v379 = vadd.f32 %v375, %v378
    %v380 = vxor.u32 %v379, 2147483648
    %v381 = vmul.f32 %v380, 1.442695
    %v382 = vpow.pop %v381
    %v383 = vadd.f32 %v382, 1.0
    %v384 = vrcp.pop %v383
    %v385 = vmul.f32 1.0, %v384
    %v386 = vld [vmem:[%s9] sm:$0xff]
    %v387 = vld [vmem:[%s9 + $0x8] sm:$0xff]
    %v388 = vld [vmem:[%s9 + $0x10] sm:$0xff]
    %v389 = vld [vmem:[%s9 + $0x18] sm:$0xff]
    %v390 = vld [vmem:[%s10] sm:$0xff]
    %v391 = vld [vmem:[%s10 + $0x8] sm:$0xff]
    %v392 = vld [vmem:[%s10 + $0x10] sm:$0xff]
    %v393 = vld [vmem:[%s10 + $0x18] sm:$0xff]
    %394 = vmatprep.subr.mxu0 0.0
    %395 = vmatpush1.msra.mxu0 0.0
    %396 = vmatprep.subr.mxu0 0.0
    %397 = vmatpush1.msra.mxu0 0.0
    %398 = vmatprep.subr.mxu0 0.0
    %399 = vmatpush1.msra.mxu0 0.0
    %400 = vmatprep.subr.mxu0 0.0
    %401 = vmatpush1.msra.mxu0 0.0
    %402 = vmatprep.subr.mxu0 0.0
    %403 = vmatpush1.msra.mxu0 0.0
    %404 = vmatprep.subr.mxu0 0.0
    %405 = vmatpush1.msra.mxu0 0.0
    %406 = vmatprep.subr.mxu0 0.0
    %407 = vmatpush1.msra.mxu0 0.0
    %408 = vmatprep.subr.mxu0 0.0
    %409 = vmatpush1.msra.mxu0 0.0
    %410 = vmatprep.subr.mxu0 0.0
    %411 = vmatpush1.msra.mxu0 0.0
    %412 = vmatprep.subr.mxu0 0.0
    %413 = vmatpush1.msra.mxu0 0.0
    %414 = vmatprep.subr.mxu0 0.0
    %415 = vmatpush1.msra.mxu0 0.0
    %416 = vmatprep.subr.mxu0 0.0
    %417 = vmatpush1.msra.mxu0 0.0
    %418 = vmatprep.subr.mxu0 0.0
    %419 = vmatpush1.msra.mxu0 %v393
    %420 = vmatprep.subr.mxu0 0.0
    %421 = vmatpush1.msra.mxu0 %v392
    %422 = vmatprep.subr.mxu0 0.0
    %423 = vmatpush1.msra.mxu0 %v391
    %424 = vmatprep.subr.mxu0 0.0
    %425 = vmatpush1.msra.mxu0 %v390
    %426 = vmatprep.subr.mxu0 0.0
    %427 = vmatpush2.msra.mxu0 0.0
    %428 = vmatprep.subr.mxu0 0.0
    %429 = vmatpush2.msra.mxu0 0.0
    %430 = vmatprep.subr.mxu0 0.0
    %431 = vmatpush2.msra.mxu0 0.0
    %432 = vmatprep.subr.mxu0 0.0
    %433 = vmatpush2.msra.mxu0 0.0
    %434 = vmatprep.subr.mxu0 0.0
    %435 = vmatpush2.msra.mxu0 0.0
    %436 = vmatprep.subr.mxu0 0.0
    %437 = vmatpush2.msra.mxu0 0.0
    %438 = vmatprep.subr.mxu0 0.0
    %439 = vmatpush2.msra.mxu0 0.0
    %440 = vmatprep.subr.mxu0 0.0
    %441 = vmatpush2.msra.mxu0 0.0
    %442 = vmatprep.subr.mxu0 0.0
    %443 = vmatpush2.msra.mxu0 0.0
    %444 = vmatprep.subr.mxu0 0.0
    %445 = vmatpush2.msra.mxu0 0.0
    %446 = vmatprep.subr.mxu0 0.0
    %447 = vmatpush2.msra.mxu0 0.0
    %448 = vmatprep.subr.mxu0 0.0
    %449 = vmatpush2.msra.mxu0 0.0
    %450 = vmatprep.subr.mxu0 0.0
    %451 = vmatpush2.msra.mxu0 0.0
    %452 = vmatprep.subr.mxu0 0.0
    %453 = vmatpush2.msra.mxu0 0.0
    %454 = vmatprep.subr.mxu0 0.0
    %455 = vmatpush2.msra.mxu0 0.0
    %456 = vmatprep.subr.mxu0 0.0
    %457 = vmatpush2.msra.mxu0 0.0
    %458 = vmatprep.mubr.f32.mxu0 0.0
    %459 = vmatmul.mubr.f32.gmra.mxu0 %v77
    %v460 = vpop.f32.mrf.mxu0
    %v461 = vadd.f32 0.0, %v460
    %v462 = vpop.f32.mrf.mxu0
    %463 = vdwg.mxu0
    %464 = vmatprep.subr.mxu0 0.0
    %465 = vmatpush1.msra.mxu0 0.0
    %466 = vmatprep.subr.mxu0 0.0
    %467 = vmatpush1.msra.mxu0 0.0
    %468 = vmatprep.subr.mxu0 0.0
    %469 = vmatpush1.msra.mxu0 0.0
    %470 = vmatprep.subr.mxu0 0.0
    %471 = vmatpush1.msra.mxu0 0.0
    %472 = vmatprep.subr.mxu0 0.0
    %473 = vmatpush1.msra.mxu0 0.0
    %474 = vmatprep.subr.mxu0 0.0
    %475 = vmatpush1.msra.mxu0 0.0
    %476 = vmatprep.subr.mxu0 0.0
    %477 = vmatpush1.msra.mxu0 0.0
    %478 = vmatprep.subr.mxu0 0.0
    %479 = vmatpush1.msra.mxu0 0.0
    %480 = vmatprep.subr.mxu0 0.0
    %481 = vmatpush1.msra.mxu0 0.0
    %482 = vmatprep.subr.mxu0 0.0
    %483 = vmatpush1.msra.mxu0 0.0
    %484 = vmatprep.subr.mxu0 0.0
    %485 = vmatpush1.msra.mxu0 0.0
    %486 = vmatprep.subr.mxu0 0.0
    %487 = vmatpush1.msra.mxu0 0.0
    %488 = vmatprep.subr.mxu0 0.0
    %489 = vmatpush1.msra.mxu0 %v389
    %490 = vmatprep.subr.mxu0 0.0
    %491 = vmatpush1.msra.mxu0 %v388
    %492 = vmatprep.subr.mxu0 0.0
    %493 = vmatpush1.msra.mxu0 %v387
    %494 = vmatprep.subr.mxu0 0.0
    %495 = vmatpush1.msra.mxu0 %v386
    %496 = vmatprep.subr.mxu0 0.0
    %497 = vmatpush2.msra.mxu0 0.0
    %498 = vmatprep.subr.mxu0 0.0
    %499 = vmatpush2.msra.mxu0 0.0
    %500 = vmatprep.subr.mxu0 0.0
    %501 = vmatpush2.msra.mxu0 0.0
    %502 = vmatprep.subr.mxu0 0.0
    %503 = vmatpush2.msra.mxu0 0.0
    %504 = vmatprep.subr.mxu0 0.0
    %505 = vmatpush2.msra.mxu0 0.0
    %506 = vmatprep.subr.mxu0 0.0
    %507 = vmatpush2.msra.mxu0 0.0
    %508 = vmatprep.subr.mxu0 0.0
    %509 = vmatpush2.msra.mxu0 0.0
    %510 = vmatprep.subr.mxu0 0.0
    %511 = vmatpush2.msra.mxu0 0.0
    %512 = vmatprep.subr.mxu0 0.0
    %513 = vmatpush2.msra.mxu0 0.0
    %514 = vmatprep.subr.mxu0 0.0
    %515 = vmatpush2.msra.mxu0 0.0
    %516 = vmatprep.subr.mxu0 0.0
    %517 = vmatpush2.msra.mxu0 0.0
    %518 = vmatprep.subr.mxu0 0.0
    %519 = vmatpush2.msra.mxu0 0.0
    %520 = vmatprep.subr.mxu0 0.0
    %521 = vmatpush2.msra.mxu0 0.0
    %522 = vmatprep.subr.mxu0 0.0
    %523 = vmatpush2.msra.mxu0 0.0
    %524 = vmatprep.subr.mxu0 0.0
    %525 = vmatpush2.msra.mxu0 0.0
    %526 = vmatprep.subr.mxu0 0.0
    %527 = vmatpush2.msra.mxu0 0.0
    %528 = vmatprep.mubr.f32.mxu0 0.0
    %529 = vmatmul.mubr.f32.gmra.mxu0 %v150
    %v530 = vpop.f32.mrf.mxu0
    %v531 = vadd.f32 %v461, %v530
    %v532 = vpop.f32.mrf.mxu0
    %533 = vdwg.mxu0
    %v534 = vld [vmem:[%s11] sm:$0x1]
    %v535 = vadd.f32 %v531, %v534
    %v536 = vtanh.pop %v535
    %v537 = vld [vmem:[%s12] sm:$0xff]
    %v538 = vld [vmem:[%s12 + $0x8] sm:$0xff]
    %v539 = vld [vmem:[%s12 + $0x10] sm:$0xff]
    %v540 = vld [vmem:[%s12 + $0x18] sm:$0xff]
    %v541 = vld [vmem:[%s13] sm:$0x1]
    %542 = vmatprep.subr.mxu0 0.0
    %543 = vmatpush1.msra.mxu0 0.0
    %544 = vmatprep.subr.mxu0 0.0
    %545 = vmatpush1.msra.mxu0 0.0
    %546 = vmatprep.subr.mxu0 0.0
    %547 = vmatpush1.msra.mxu0 0.0
    %548 = vmatprep.subr.mxu0 0.0
    %549 = vmatpush1.msra.mxu0 0.0
    %550 = vmatprep.subr.mxu0 0.0
    %551 = vmatpush1.msra.mxu0 0.0
    %552 = vmatprep.subr.mxu0 0.0
    %553 = vmatpush1.msra.mxu0 0.0
    %554 = vmatprep.subr.mxu0 0.0
    %555 = vmatpush1.msra.mxu0 0.0
    %556 = vmatprep.subr.mxu0 0.0
    %557 = vmatpush1.msra.mxu0 0.0
    %558 = vmatprep.subr.mxu0 0.0
    %559 = vmatpush1.msra.mxu0 0.0
    %560 = vmatprep.subr.mxu0 0.0
    %561 = vmatpush1.msra.mxu0 0.0
    %562 = vmatprep.subr.mxu0 0.0
    %563 = vmatpush1.msra.mxu0 0.0
    %564 = vmatprep.subr.mxu0 0.0
    %565 = vmatpush1.msra.mxu0 0.0
    %566 = vmatprep.subr.mxu0 0.0
    %567 = vmatpush1.msra.mxu0 %v540
    %568 = vmatprep.subr.mxu0 0.0
    %569 = vmatpush1.msra.mxu0 %v539
    %570 = vmatprep.subr.mxu0 0.0
    %571 = vmatpush1.msra.mxu0 %v538
    %572 = vmatprep.subr.mxu0 0.0
    %573 = vmatpush1.msra.mxu0 %v537
    %574 = vmatprep.subr.mxu0 0.0
    %575 = vmatpush2.msra.mxu0 0.0
    %576 = vmatprep.subr.mxu0 0.0
    %577 = vmatpush2.msra.mxu0 0.0
    %578 = vmatprep.subr.mxu0 0.0
    %579 = vmatpush2.msra.mxu0 0.0
    %580 = vmatprep.subr.mxu0 0.0
    %581 = vmatpush2.msra.mxu0 0.0
    %582 = vmatprep.subr.mxu0 0.0
    %583 = vmatpush2.msra.mxu0 0.0
    %584 = vmatprep.subr.mxu0 0.0
    %585 = vmatpush2.msra.mxu0 0.0
    %586 = vmatprep.subr.mxu0 0.0
    %587 = vmatpush2.msra.mxu0 0.0
    %588 = vmatprep.subr.mxu0 0.0
    %589 = vmatpush2.msra.mxu0 0.0
    %590 = vmatprep.subr.mxu0 0.0
    %591 = vmatpush2.msra.mxu0 0.0
    %592 = vmatprep.subr.mxu0 0.0
    %593 = vmatpush2.msra.mxu0 0.0
    %594 = vmatprep.subr.mxu0 0.0
    %595 = vmatpush2.msra.mxu0 0.0
    %596 = vmatprep.subr.mxu0 0.0
    %597 = vmatpush2.msra.mxu0 0.0
    %598 = vmatprep.subr.mxu0 0.0
    %599 = vmatpush2.msra.mxu0 0.0
    %600 = vmatprep.subr.mxu0 0.0
    %601 = vmatpush2.msra.mxu0 0.0
    %602 = vmatprep.subr.mxu0 0.0
    %603 = vmatpush2.msra.mxu0 0.0
    %604 = vmatprep.subr.mxu0 0.0
    %605 = vmatpush2.msra.mxu0 0.0
    %606 = vmatprep.mubr.f32.mxu0 0.0
    %607 = vmatmul.mubr.f32.gmra.mxu0 %v150
    %v608 = vpop.f32.mrf.mxu0
    %v609 = vadd.f32 %v541, %v608
    %v610 = vpop.f32.mrf.mxu0
    %611 = vdwg.mxu0
    %v612 = vld [vmem:[%s14] sm:$0xff]
    %v613 = vld [vmem:[%s14 + $0x8] sm:$0xff]
    %v614 = vld [vmem:[%s14 + $0x10] sm:$0xff]
    %v615 = vld [vmem:[%s14 + $0x18] sm:$0xff]
    %v616 = vld [vmem:[%s15] sm:$0x1]
    %v618 = vlaneseq
    %v619 = vshrl.u32 %v618, 7
    %v620 = vsub.s32 0, %v619
    %v621 = vrot.slane %v616, %v620
    %v624 = vsel %vm75, %v58, 0
    %626 = vmatprep.subr.mxu0 0.0
    %627 = vmatpush1.msra.mxu0 0.0
    %628 = vmatprep.subr.mxu0 0.0
    %629 = vmatpush1.msra.mxu0 0.0
    %630 = vmatprep.subr.mxu0 0.0
    %631 = vmatpush1.msra.mxu0 0.0
    %632 = vmatprep.subr.mxu0 0.0
    %633 = vmatpush1.msra.mxu0 0.0
    %634 = vmatprep.subr.mxu0 0.0
    %635 = vmatpush1.msra.mxu0 0.0
    %636 = vmatprep.subr.mxu0 0.0
    %637 = vmatpush1.msra.mxu0 0.0
    %638 = vmatprep.subr.mxu0 0.0
    %639 = vmatpush1.msra.mxu0 0.0
    %640 = vmatprep.subr.mxu0 0.0
    %641 = vmatpush1.msra.mxu0 0.0
    %642 = vmatprep.subr.mxu0 0.0
    %643 = vmatpush1.msra.mxu0 0.0
    %644 = vmatprep.subr.mxu0 0.0
    %645 = vmatpush1.msra.mxu0 0.0
    %646 = vmatprep.subr.mxu0 0.0
    %647 = vmatpush1.msra.mxu0 0.0
    %648 = vmatprep.subr.mxu0 0.0
    %649 = vmatpush1.msra.mxu0 0.0
    %650 = vmatprep.subr.mxu0 0.0
    %651 = vmatpush1.msra.mxu0 %v615
    %652 = vmatprep.subr.mxu0 0.0
    %653 = vmatpush1.msra.mxu0 %v614
    %654 = vmatprep.subr.mxu0 0.0
    %655 = vmatpush1.msra.mxu0 %v613
    %656 = vmatprep.subr.mxu0 0.0
    %657 = vmatpush1.msra.mxu0 %v612
    %658 = vmatprep.subr.mxu0 0.0
    %659 = vmatpush2.msra.mxu0 0.0
    %660 = vmatprep.subr.mxu0 0.0
    %661 = vmatpush2.msra.mxu0 0.0
    %662 = vmatprep.subr.mxu0 0.0
    %663 = vmatpush2.msra.mxu0 0.0
    %664 = vmatprep.subr.mxu0 0.0
    %665 = vmatpush2.msra.mxu0 0.0
    %666 = vmatprep.subr.mxu0 0.0
    %667 = vmatpush2.msra.mxu0 0.0
    %668 = vmatprep.subr.mxu0 0.0
    %669 = vmatpush2.msra.mxu0 0.0
    %670 = vmatprep.subr.mxu0 0.0
    %671 = vmatpush2.msra.mxu0 0.0
    %672 = vmatprep.subr.mxu0 0.0
    %673 = vmatpush2.msra.mxu0 0.0
    %674 = vmatprep.subr.mxu0 0.0
    %675 = vmatpush2.msra.mxu0 0.0
    %676 = vmatprep.subr.mxu0 0.0
    %677 = vmatpush2.msra.mxu0 0.0
    %678 = vmatprep.subr.mxu0 0.0
    %679 = vmatpush2.msra.mxu0 0.0
    %680 = vmatprep.subr.mxu0 0.0
    %681 = vmatpush2.msra.mxu0 0.0
    %682 = vmatprep.subr.mxu0 0.0
    %683 = vmatpush2.msra.mxu0 0.0
    %684 = vmatprep.subr.mxu0 0.0
    %685 = vmatpush2.msra.mxu0 0.0
    %686 = vmatprep.subr.mxu0 0.0
    %687 = vmatpush2.msra.mxu0 0.0
    %688 = vmatprep.subr.mxu0 0.0
    %689 = vmatpush2.msra.mxu0 0.0
    %690 = vmatprep.mubr.f32.mxu0 0.0
    %691 = vmatmul.mubr.f32.gmra.mxu0 %v624
    %v692 = vpop.f32.mrf.mxu0
    %v693 = vadd.f32 %v621, %v692
    %v694 = vpop.f32.mrf.mxu0
    %695 = vdwg.mxu0
    %v696 = vlaneseq
    %v697 = vshrl.u32 %v696, 7
    %v698 = vsub.s32 0, %v697
    %v699 = vrot.slane %v609, %v698
    %v700 = vadd.f32 %v693, %v699
    %v701 = vxor.u32 %v700, 2147483648
    %v702 = vmul.f32 %v701, 1.442695
    %v703 = vpow.pop %v702
    %v704 = vadd.f32 %v703, 1.0
    %v705 = vrcp.pop %v704
    %v706 = vmul.f32 1.0, %v705
    %v707 = vmul.f32 %v706, %v57
    %v708 = vmul.f32 %v229, %v536
    %v709 = vsel %vm59, %v707, 0.0
    %v710 = vrot.slane %v709, 4
    %v711 = vadd.f32 %v709, %v710
    %v712 = vrot.slane %v711, 2
    %v713 = vadd.f32 %v711, %v712
    %v714 = vrot.slane %v713, 1
    %v715 = vadd.f32 %v713, %v714
    %v716 = vadd.f32 %v708, %v715
    %vm717 = vcmask 253952
    %718 = vst.msk [vmem:[#allocation2] sm:$0x1] %vm717, %v716
    %v719 = vtanh.pop %v716
    %v720 = vmul.f32 %v385, %v719
    %721 = vst.msk [vmem:[%s17] sm:$0x1] %vm717, %v720
    // Predicated region
    $region66: #{forward.12} parent=1 // pred_check
      _
    $region67: #{forward.12} parent=1 // pred_check_branch
      %723 = sbr.rel (0) target = $region69
    $region68: #{forward.12} parent=1 // pred_region
      %s725 = ssub.s32 16, 16
      %726 = vsyncadd [#allocation3], %s725
      %s728 = sshll.u32 [#allocation2], 4
      %s729 = int_to_ptr.vmem [resolvable:$true] %s728
      %731 = dma.vmem_to_hbm [thread:$0]  %s729, 16, %s16, [#allocation3]
    $region69: #{forward.12} parent=1 // pred_fallthru
      _
    // Predicated region
    $region70: #{forward.12} parent=1 // pred_check
      _
    $region71: #{forward.12} parent=1 // pred_check_branch
      %733 = sbr.rel (0) target = $region73
    $region72: #{forward.12} parent=1 // pred_region
      _
    $region73: #{forward.12} parent=1 // pred_fallthru
      _
    // Predicated region
    $region74: #{forward.12} parent=1 // pred_check
      _
    $region75: #{forward.12} parent=1 // pred_check_branch
      %735 = sbr.rel (0) target = $region77
    $region76: #{forward.12} parent=1 // pred_region
      %736 = dma.done [#allocation3], 16
    $region77: #{forward.12} parent=1 // pred_fallthru
      _
    // Predicated region
    $region78: #{forward.12} parent=1 // pred_check
      _
    $region79: #{forward.12} parent=1 // pred_check_branch
      %738 = sbr.rel (0) target = $region81
    $region80: #{forward.12} parent=1 // pred_region
      _
    $region81: #{forward.12} parent=1 // pred_fallthru
      _
    %739 = vsyncpa [#allocation3], 1

// kernel: forward.13
$region0: #{forward.13}
  #allocation0 [shape = 'u32[]', space=smem, size = 0x4, offset = 0x4, fixed_abs, tag = 'smem constant byte address 0x4 - core index']
  #allocation1 [shape = 'u32[144,128]{1,0:T(1,128)}', space=vmem, size = 0x12000, scoped, tag = 'internal scratch']
  %s0 = inlined_call_operand.vmem [shape: f32[2,32], index: 0, kind: input, shape index: {}]
  %s1 = inlined_call_operand.vmem [shape: bf16[32,1024], index: 1, kind: input, shape index: {}]
  %s2 = inlined_call_operand.vmem [shape: f32[1,1024], index: 2, kind: input, shape index: {}]
  %s3 = inlined_call_operand.vmem [shape: bf16[1024,512], index: 3, kind: input, shape index: {}]
  %s4 = inlined_call_operand.vmem [shape: f32[1,512], index: 4, kind: input, shape index: {}]
  %s5 = inlined_call_operand.vmem [shape: bf16[512,32], index: 5, kind: input, shape index: {}]
  %s6 = inlined_call_operand.vmem [shape: f32[1,32], index: 6, kind: input, shape index: {}]
  %s7 = inlined_call_operand.hbm [shape: f32[2,32], index: 7, kind: output, shape index: {}]
  %s8 = sld [smem:[#allocation0]]
  $region38: #{forward.13} parent=0
    _
  %s10 = ssub.s32 1, %s8
  %s11 = scalar_select 0, %s10, %s8
  $region1: #{forward.13} parent=0
    #allocation2 [shape = 'u8[1024]{0}', space=vmem, size = 0x400, scoped, tag = 'output window, operand 0, single buffered']
    #allocation3 [shape = 's32[1]{0}', space=sflag, size = 0x4, scoped, tag = 'scoped memory for forward.13']
    %12 = vsyncpa [#allocation3], 0
    // Predicated region
    $region2: #{forward.13} parent=1 // pred_check
      _
    $region3: #{forward.13} parent=1 // pred_check_branch
      %14 = sbr.rel (0) target = $region5
    $region4: #{forward.13} parent=1 // pred_region
      _
    $region5: #{forward.13} parent=1 // pred_fallthru
      _
    // Predicated region
    $region6: #{forward.13} parent=1 // pred_check
      _
    $region7: #{forward.13} parent=1 // pred_check_branch
      %16 = sbr.rel (0) target = $region9
    $region8: #{forward.13} parent=1 // pred_region
      _
    $region9: #{forward.13} parent=1 // pred_fallthru
      _
    // Predicated region
    $region10: #{forward.13} parent=1 // pred_check
      _
    $region11: #{forward.13} parent=1 // pred_check_branch
      %18 = sbr.rel (0) target = $region13
    $region12: #{forward.13} parent=1 // pred_region
      _
    $region13: #{forward.13} parent=1 // pred_fallthru
      _
    // Predicated region
    $region14: #{forward.13} parent=1 // pred_check
      _
    $region15: #{forward.13} parent=1 // pred_check_branch
      %20 = sbr.rel (0) target = $region17
    $region16: #{forward.13} parent=1 // pred_region
      _
    $region17: #{forward.13} parent=1 // pred_fallthru
      _
    // Predicated region
    $region18: #{forward.13} parent=1 // pred_check
      _
    $region19: #{forward.13} parent=1 // pred_check_branch
      %22 = sbr.rel (0) target = $region21
    $region20: #{forward.13} parent=1 // pred_region
      _
    $region21: #{forward.13} parent=1 // pred_fallthru
      _
    // Predicated region
    $region22: #{forward.13} parent=1 // pred_check
      _
    $region23: #{forward.13} parent=1 // pred_check_branch
      %24 = sbr.rel (0) target = $region25
    $region24: #{forward.13} parent=1 // pred_region
      _
    $region25: #{forward.13} parent=1 // pred_fallthru
      _
    // Predicated region
    $region26: #{forward.13} parent=1 // pred_check
      _
    $region27: #{forward.13} parent=1 // pred_check_branch
      %26 = sbr.rel (0) target = $region29
    $region28: #{forward.13} parent=1 // pred_region
      _
    $region29: #{forward.13} parent=1 // pred_fallthru
      _
    %v28 = vld [vmem:[%s0] sm:$0x3]
    %v29 = vpack.c.bf16 %v28, %v28
    %v30 = vld [vmem:[%s1] sm:$0xff]
    %v31 = vld [vmem:[%s1 + $0x8] sm:$0xff]
    %v32 = vld [vmem:[%s1 + $0x10] sm:$0xff]
    %v33 = vld [vmem:[%s1 + $0x18] sm:$0xff]
    %v34 = vld [vmem:[%s1 + $0x20] sm:$0xff]
    %v35 = vld [vmem:[%s1 + $0x28] sm:$0xff]
    %v36 = vld [vmem:[%s1 + $0x30] sm:$0xff]
    %v37 = vld [vmem:[%s1 + $0x38] sm:$0xff]
    %v38 = vld [vmem:[%s1 + $0x40] sm:$0xff]
    %v39 = vld [vmem:[%s1 + $0x48] sm:$0xff]
    %v40 = vld [vmem:[%s1 + $0x50] sm:$0xff]
    %v41 = vld [vmem:[%s1 + $0x58] sm:$0xff]
    %v42 = vld [vmem:[%s1 + $0x60] sm:$0xff]
    %v43 = vld [vmem:[%s1 + $0x68] sm:$0xff]
    %v44 = vld [vmem:[%s1 + $0x70] sm:$0xff]
    %v45 = vld [vmem:[%s1 + $0x78] sm:$0xff]
    %v46 = vld [vmem:[%s2] sm:$0xff]
    %v48 = vlaneseq
    %v49 = vshrl.u32 %v48, 7
    %v50 = vsub.s32 0, %v49
    %v51 = vrot.slane %v46, %v50
    %v52 = vlaneseq
    %v53 = vshrl.u32 %v52, 7
    %v54 = vsub.s32 1, %v53
    %v55 = vrot.slane %v46, %v54
    %v56 = vlaneseq
    %v57 = vshrl.u32 %v56, 7
    %v58 = vsub.s32 2, %v57
    %v59 = vrot.slane %v46, %v58
    %v60 = vlaneseq
    %v61 = vshrl.u32 %v60, 7
    %v62 = vsub.s32 3, %v61
    %v63 = vrot.slane %v46, %v62
    %v64 = vlaneseq
    %v65 = vshrl.u32 %v64, 7
    %v66 = vsub.s32 4, %v65
    %v67 = vrot.slane %v46, %v66
    %v68 = vlaneseq
    %v69 = vshrl.u32 %v68, 7
    %v70 = vsub.s32 5, %v69
    %v71 = vrot.slane %v46, %v70
    %v72 = vlaneseq
    %v73 = vshrl.u32 %v72, 7
    %v74 = vsub.s32 6, %v73
    %v75 = vrot.slane %v46, %v74
    %v76 = vlaneseq
    %v77 = vshrl.u32 %v76, 7
    %v78 = vsub.s32 7, %v77
    %v79 = vrot.slane %v46, %v78
    %v104 = vunpack.c.l.b16 %v30
    %v105 = vunpack.c.h.b16 %v30
    %v106 = vunpack.c.l.b16 %v31
    %v107 = vunpack.c.h.b16 %v31
    %v108 = vunpack.c.l.b16 %v32
    %v109 = vunpack.c.h.b16 %v32
    %v110 = vunpack.c.l.b16 %v33
    %v111 = vunpack.c.h.b16 %v33
    %v112 = vunpack.c.l.b16 %v34
    %v113 = vunpack.c.h.b16 %v34
    %v114 = vunpack.c.l.b16 %v35
    %v115 = vunpack.c.h.b16 %v35
    %v116 = vunpack.c.l.b16 %v36
    %v117 = vunpack.c.h.b16 %v36
    %v118 = vunpack.c.l.b16 %v37
    %v119 = vunpack.c.h.b16 %v37
    %v120 = vunpack.c.l.b16 %v38
    %v121 = vunpack.c.h.b16 %v38
    %v122 = vunpack.c.l.b16 %v39
    %v123 = vunpack.c.h.b16 %v39
    %v124 = vunpack.c.l.b16 %v40
    %v125 = vunpack.c.h.b16 %v40
    %v126 = vunpack.c.l.b16 %v41
    %v127 = vunpack.c.h.b16 %v41
    %v128 = vunpack.c.l.b16 %v42
    %v129 = vunpack.c.h.b16 %v42
    %v130 = vunpack.c.l.b16 %v43
    %v131 = vunpack.c.h.b16 %v43
    %v132 = vunpack.c.l.b16 %v44
    %v133 = vunpack.c.h.b16 %v44
    %v134 = vunpack.c.l.b16 %v45
    %v135 = vunpack.c.h.b16 %v45
    %v136 = vpack.c.b16 %v112, %v104
    %v137 = vpack.c.b16 %v113, %v105
    %v138 = vpack.c.b16 %v114, %v106
    %v139 = vpack.c.b16 %v115, %v107
    %v140 = vpack.c.b16 %v116, %v108
    %v141 = vpack.c.b16 %v117, %v109
    %v142 = vpack.c.b16 %v118, %v110
    %v143 = vpack.c.b16 %v119, %v111
    %v144 = vpack.c.b16 %v128, %v120
    %v145 = vpack.c.b16 %v129, %v121
    %v146 = vpack.c.b16 %v130, %v122
    %v147 = vpack.c.b16 %v131, %v123
    %v148 = vpack.c.b16 %v132, %v124
    %v149 = vpack.c.b16 %v133, %v125
    %v150 = vpack.c.b16 %v134, %v126
    %v151 = vpack.c.b16 %v135, %v127
    %vm168 = vcmask 261120
    %v170 = vsel %vm168, %v29, 0
    %172 = vmatprep.subr.bf16.mxu0 0
    %173 = vmatpush1.bf16.msra.mxu0 0
    %174 = vmatprep.subr.bf16.mxu0 0
    %175 = vmatpush1.bf16.msra.mxu0 0
    %176 = vmatprep.subr.bf16.mxu0 0
    %177 = vmatpush1.bf16.msra.mxu0 0
    %178 = vmatprep.subr.bf16.mxu0 0
    %179 = vmatpush1.bf16.msra.mxu0 0
    %180 = vmatprep.subr.bf16.mxu0 0
    %181 = vmatpush1.bf16.msra.mxu0 0
    %182 = vmatprep.subr.bf16.mxu0 0
    %183 = vmatpush1.bf16.msra.mxu0 0
    %184 = vmatprep.subr.bf16.mxu0 %v145
    %185 = vmatpush1.bf16.msra.mxu0 %v144
    %186 = vmatprep.subr.bf16.mxu0 %v137
    %187 = vmatpush1.bf16.msra.mxu0 %v136
    %188 = vmatprep.subr.bf16.mxu0 0
    %189 = vmatpush2.bf16.msra.mxu0 0
    %190 = vmatprep.subr.bf16.mxu0 0
    %191 = vmatpush2.bf16.msra.mxu0 0
    %192 = vmatprep.subr.bf16.mxu0 0
    %193 = vmatpush2.bf16.msra.mxu0 0
    %194 = vmatprep.subr.bf16.mxu0 0
    %195 = vmatpush2.bf16.msra.mxu0 0
    %196 = vmatprep.subr.bf16.mxu0 0
    %197 = vmatpush2.bf16.msra.mxu0 0
    %198 = vmatprep.subr.bf16.mxu0 0
    %199 = vmatpush2.bf16.msra.mxu0 0
    %200 = vmatprep.subr.bf16.mxu0 0
    %201 = vmatpush2.bf16.msra.mxu0 0
    %202 = vmatprep.subr.bf16.mxu0 0
    %203 = vmatpush2.bf16.msra.mxu0 0
    %204 = vmatprep.mubr.bf16.mxu0 0
    %205 = vmatmul.mubr.bf16.gmra.mxu0 %v170
    %v206 = vpop.f32.mrf.mxu0
    %v207 = vadd.f32 %v51, %v206
    %v208 = vpop.f32.mrf.mxu0
    %v209 = vadd.f32 %v55, %v208
    %v210 = vpop.f32.mrf.mxu0
    %v211 = vpop.f32.mrf.mxu0
    %212 = vdwg.mxu0
    %213 = vmatprep.subr.bf16.mxu0 0
    %214 = vmatpush1.bf16.msra.mxu0 0
    %215 = vmatprep.subr.bf16.mxu0 0
    %216 = vmatpush1.bf16.msra.mxu0 0
    %217 = vmatprep.subr.bf16.mxu0 0
    %218 = vmatpush1.bf16.msra.mxu0 0
    %219 = vmatprep.subr.bf16.mxu0 0
    %220 = vmatpush1.bf16.msra.mxu0 0
    %221 = vmatprep.subr.bf16.mxu0 0
    %222 = vmatpush1.bf16.msra.mxu0 0
    %223 = vmatprep.subr.bf16.mxu0 0
    %224 = vmatpush1.bf16.msra.mxu0 0
    %225 = vmatprep.subr.bf16.mxu0 %v147
    %226 = vmatpush1.bf16.msra.mxu0 %v146
    %227 = vmatprep.subr.bf16.mxu0 %v139
    %228 = vmatpush1.bf16.msra.mxu0 %v138
    %229 = vmatprep.subr.bf16.mxu0 0
    %230 = vmatpush2.bf16.msra.mxu0 0
    %231 = vmatprep.subr.bf16.mxu0 0
    %232 = vmatpush2.bf16.msra.mxu0 0
    %233 = vmatprep.subr.bf16.mxu0 0
    %234 = vmatpush2.bf16.msra.mxu0 0
    %235 = vmatprep.subr.bf16.mxu0 0
    %236 = vmatpush2.bf16.msra.mxu0 0
    %237 = vmatprep.subr.bf16.mxu0 0
    %238 = vmatpush2.bf16.msra.mxu0 0
    %239 = vmatprep.subr.bf16.mxu0 0
    %240 = vmatpush2.bf16.msra.mxu0 0
    %241 = vmatprep.subr.bf16.mxu0 0
    %242 = vmatpush2.bf16.msra.mxu0 0
    %243 = vmatprep.subr.bf16.mxu0 0
    %244 = vmatpush2.bf16.msra.mxu0 0
    %245 = vmatprep.mubr.bf16.mxu0 0
    %246 = vmatmul.mubr.bf16.gmra.mxu0 %v170
    %v247 = vpop.f32.mrf.mxu0
    %v248 = vadd.f32 %v59, %v247
    %v249 = vpop.f32.mrf.mxu0
    %v250 = vadd.f32 %v63, %v249
    %v251 = vpop.f32.mrf.mxu0
    %v252 = vpop.f32.mrf.mxu0
    %253 = vdwg.mxu0
    %254 = vmatprep.subr.bf16.mxu0 0
    %255 = vmatpush1.bf16.msra.mxu0 0
    %256 = vmatprep.subr.bf16.mxu0 0
    %257 = vmatpush1.bf16.msra.mxu0 0
    %258 = vmatprep.subr.bf16.mxu0 0
    %259 = vmatpush1.bf16.msra.mxu0 0
    %260 = vmatprep.subr.bf16.mxu0 0
    %261 = vmatpush1.bf16.msra.mxu0 0
    %262 = vmatprep.subr.bf16.mxu0 0
    %263 = vmatpush1.bf16.msra.mxu0 0
    %264 = vmatprep.subr.bf16.mxu0 0
    %265 = vmatpush1.bf16.msra.mxu0 0
    %266 = vmatprep.subr.bf16.mxu0 %v149
    %267 = vmatpush1.bf16.msra.mxu0 %v148
    %268 = vmatprep.subr.bf16.mxu0 %v141
    %269 = vmatpush1.bf16.msra.mxu0 %v140
    %270 = vmatprep.subr.bf16.mxu0 0
    %271 = vmatpush2.bf16.msra.mxu0 0
    %272 = vmatprep.subr.bf16.mxu0 0
    %273 = vmatpush2.bf16.msra.mxu0 0
    %274 = vmatprep.subr.bf16.mxu0 0
    %275 = vmatpush2.bf16.msra.mxu0 0
    %276 = vmatprep.subr.bf16.mxu0 0
    %277 = vmatpush2.bf16.msra.mxu0 0
    %278 = vmatprep.subr.bf16.mxu0 0
    %279 = vmatpush2.bf16.msra.mxu0 0
    %280 = vmatprep.subr.bf16.mxu0 0
    %281 = vmatpush2.bf16.msra.mxu0 0
    %282 = vmatprep.subr.bf16.mxu0 0
    %283 = vmatpush2.bf16.msra.mxu0 0
    %284 = vmatprep.subr.bf16.mxu0 0
    %285 = vmatpush2.bf16.msra.mxu0 0
    %286 = vmatprep.mubr.bf16.mxu0 0
    %287 = vmatmul.mubr.bf16.gmra.mxu0 %v170
    %v288 = vpop.f32.mrf.mxu0
    %v289 = vadd.f32 %v67, %v288
    %v290 = vpop.f32.mrf.mxu0
    %v291 = vadd.f32 %v71, %v290
    %v292 = vpop.f32.mrf.mxu0
    %v293 = vpop.f32.mrf.mxu0
    %294 = vdwg.mxu0
    %295 = vmatprep.subr.bf16.mxu0 0
    %296 = vmatpush1.bf16.msra.mxu0 0
    %297 = vmatprep.subr.bf16.mxu0 0
    %298 = vmatpush1.bf16.msra.mxu0 0
    %299 = vmatprep.subr.bf16.mxu0 0
    %300 = vmatpush1.bf16.msra.mxu0 0
    %301 = vmatprep.subr.bf16.mxu0 0
    %302 = vmatpush1.bf16.msra.mxu0 0
    %303 = vmatprep.subr.bf16.mxu0 0
    %304 = vmatpush1.bf16.msra.mxu0 0
    %305 = vmatprep.subr.bf16.mxu0 0
    %306 = vmatpush1.bf16.msra.mxu0 0
    %307 = vmatprep.subr.bf16.mxu0 %v151
    %308 = vmatpush1.bf16.msra.mxu0 %v150
    %309 = vmatprep.subr.bf16.mxu0 %v143
    %310 = vmatpush1.bf16.msra.mxu0 %v142
    %311 = vmatprep.subr.bf16.mxu0 0
    %312 = vmatpush2.bf16.msra.mxu0 0
    %313 = vmatprep.subr.bf16.mxu0 0
    %314 = vmatpush2.bf16.msra.mxu0 0
    %315 = vmatprep.subr.bf16.mxu0 0
    %316 = vmatpush2.bf16.msra.mxu0 0
    %317 = vmatprep.subr.bf16.mxu0 0
    %318 = vmatpush2.bf16.msra.mxu0 0
    %319 = vmatprep.subr.bf16.mxu0 0
    %320 = vmatpush2.bf16.msra.mxu0 0
    %321 = vmatprep.subr.bf16.mxu0 0
    %322 = vmatpush2.bf16.msra.mxu0 0
    %323 = vmatprep.subr.bf16.mxu0 0
    %324 = vmatpush2.bf16.msra.mxu0 0
    %325 = vmatprep.subr.bf16.mxu0 0
    %326 = vmatpush2.bf16.msra.mxu0 0
    %327 = vmatprep.mubr.bf16.mxu0 0
    %328 = vmatmul.mubr.bf16.gmra.mxu0 %v170
    %v329 = vpop.f32.mrf.mxu0
    %v330 = vadd.f32 %v75, %v329
    %v331 = vpop.f32.mrf.mxu0
    %v332 = vadd.f32 %v79, %v331
    %v333 = vpop.f32.mrf.mxu0
    %v334 = vpop.f32.mrf.mxu0
    %335 = vdwg.mxu0
    %v336 = vmax.f32 %v207, 0.0
    %v337 = vmax.f32 %v209, 0.0
    %v338 = vmax.f32 %v248, 0.0
    %v339 = vmax.f32 %v250, 0.0
    %v340 = vmax.f32 %v289, 0.0
    %v341 = vmax.f32 %v291, 0.0
    %v342 = vmax.f32 %v330, 0.0
    %v343 = vmax.f32 %v332, 0.0
    %v344 = vpack.c.bf16 %v336, %v336
    %v345 = vpack.c.bf16 %v337, %v337
    %v346 = vpack.c.bf16 %v338, %v338
    %v347 = vpack.c.bf16 %v339, %v339
    %v348 = vpack.c.bf16 %v340, %v340
    %v349 = vpack.c.bf16 %v341, %v341
    %v350 = vpack.c.bf16 %v342, %v342
    %v351 = vpack.c.bf16 %v343, %v343
    %v352 = vld [vmem:[%s3] sm:$0xff]
    %v353 = vld [vmem:[%s3 + $0x8] sm:$0xff]
    %v354 = vld [vmem:[%s3 + $0x10] sm:$0xff]
    %v355 = vld [vmem:[%s3 + $0x18] sm:$0xff]
    %v356 = vld [vmem:[%s3 + $0x20] sm:$0xff]
    %v357 = vld [vmem:[%s3 + $0x28] sm:$0xff]
    %v358 = vld [vmem:[%s3 + $0x30] sm:$0xff]
    %v359 = vld [vmem:[%s3 + $0x38] sm:$0xff]
    %v360 = vld [vmem:[%s3 + $0x40] sm:$0xff]
    %v361 = vld [vmem:[%s3 + $0x48] sm:$0xff]
    %v362 = vld [vmem:[%s3 + $0x50] sm:$0xff]
    %v363 = vld [vmem:[%s3 + $0x58] sm:$0xff]
    %v364 = vld [vmem:[%s3 + $0x60] sm:$0xff]
    %v365 = vld [vmem:[%s3 + $0x68] sm:$0xff]
    %v366 = vld [vmem:[%s3 + $0x70] sm:$0xff]
    %v367 = vld [vmem:[%s3 + $0x78] sm:$0xff]
    %v368 = vld [vmem:[%s3 + $0x80] sm:$0xff]
    %v369 = vld [vmem:[%s3 + $0x88] sm:$0xff]
    %v370 = vld [vmem:[%s3 + $0x90] sm:$0xff]
    %v371 = vld [vmem:[%s3 + $0x98] sm:$0xff]
    %v372 = vld [vmem:[%s3 + $0xa0] sm:$0xff]
    %v373 = vld [vmem:[%s3 + $0xa8] sm:$0xff]
    %v374 = vld [vmem:[%s3 + $0xb0] sm:$0xff]
    %v375 = vld [vmem:[%s3 + $0xb8] sm:$0xff]
    %v376 = vld [vmem:[%s3 + $0xc0] sm:$0xff]
    %v377 = vld [vmem:[%s3 + $0xc8] sm:$0xff]
    %v378 = vld [vmem:[%s3 + $0xd0] sm:$0xff]
    %v379 = vld [vmem:[%s3 + $0xd8] sm:$0xff]
    %v380 = vld [vmem:[%s3 + $0xe0] sm:$0xff]
    %v381 = vld [vmem:[%s3 + $0xe8] sm:$0xff]
    %v382 = vld [vmem:[%s3 + $0xf0] sm:$0xff]
    %v383 = vld [vmem:[%s3 + $0xf8] sm:$0xff]
    %v384 = vld [vmem:[%s3 + $0x100] sm:$0xff]
    %v385 = vld [vmem:[%s3 + $0x108] sm:$0xff]
    %v386 = vld [vmem:[%s3 + $0x110] sm:$0xff]
    %v387 = vld [vmem:[%s3 + $0x118] sm:$0xff]
    %v388 = vld [vmem:[%s3 + $0x120] sm:$0xff]
    %v389 = vld [vmem:[%s3 + $0x128] sm:$0xff]
    %v390 = vld [vmem:[%s3 + $0x130] sm:$0xff]
    %v391 = vld [vmem:[%s3 + $0x138] sm:$0xff]
    %v392 = vld [vmem:[%s3 + $0x140] sm:$0xff]
    %v393 = vld [vmem:[%s3 + $0x148] sm:$0xff]
    %v394 = vld [vmem:[%s3 + $0x150] sm:$0xff]
    %v395 = vld [vmem:[%s3 + $0x158] sm:$0xff]
    %v396 = vld [vmem:[%s3 + $0x160] sm:$0xff]
    %v397 = vld [vmem:[%s3 + $0x168] sm:$0xff]
    %v398 = vld [vmem:[%s3 + $0x170] sm:$0xff]
    %v399 = vld [vmem:[%s3 + $0x178] sm:$0xff]
    %v400 = vld [vmem:[%s3 + $0x180] sm:$0xff]
    %v401 = vld [vmem:[%s3 + $0x188] sm:$0xff]
    %v402 = vld [vmem:[%s3 + $0x190] sm:$0xff]
    %v403 = vld [vmem:[%s3 + $0x198] sm:$0xff]
    %v404 = vld [vmem:[%s3 + $0x1a0] sm:$0xff]
    %v405 = vld [vmem:[%s3 + $0x1a8] sm:$0xff]
    %v406 = vld [vmem:[%s3 + $0x1b0] sm:$0xff]
    %v407 = vld [vmem:[%s3 + $0x1b8] sm:$0xff]
    %v408 = vld [vmem:[%s3 + $0x1c0] sm:$0xff]
    %v409 = vld [vmem:[%s3 + $0x1c8] sm:$0xff]
    %v410 = vld [vmem:[%s3 + $0x1d0] sm:$0xff]
    %v411 = vld [vmem:[%s3 + $0x1d8] sm:$0xff]
    %v412 = vld [vmem:[%s3 + $0x1e0] sm:$0xff]
    %v413 = vld [vmem:[%s3 + $0x1e8] sm:$0xff]
    %v414 = vld [vmem:[%s3 + $0x1f0] sm:$0xff]
    %v415 = vld [vmem:[%s3 + $0x1f8] sm:$0xff]
    %v416 = vld [vmem:[%s3 + $0x200] sm:$0xff]
    %v417 = vld [vmem:[%s3 + $0x208] sm:$0xff]
    %v418 = vld [vmem:[%s3 + $0x210] sm:$0xff]
    %v419 = vld [vmem:[%s3 + $0x218] sm:$0xff]
    %v420 = vld [vmem:[%s3 + $0x220] sm:$0xff]
    %v421 = vld [vmem:[%s3 + $0x228] sm:$0xff]
    %v422 = vld [vmem:[%s3 + $0x230] sm:$0xff]
    %v423 = vld [vmem:[%s3 + $0x238] sm:$0xff]
    %v424 = vld [vmem:[%s3 + $0x240] sm:$0xff]
    %v425 = vld [vmem:[%s3 + $0x248] sm:$0xff]
    %v426 = vld [vmem:[%s3 + $0x250] sm:$0xff]
    %v427 = vld [vmem:[%s3 + $0x258] sm:$0xff]
    %v428 = vld [vmem:[%s3 + $0x260] sm:$0xff]
    %v429 = vld [vmem:[%s3 + $0x268] sm:$0xff]
    %v430 = vld [vmem:[%s3 + $0x270] sm:$0xff]
    %v431 = vld [vmem:[%s3 + $0x278] sm:$0xff]
    %v432 = vld [vmem:[%s3 + $0x280] sm:$0xff]
    %v433 = vld [vmem:[%s3 + $0x288] sm:$0xff]
    %v434 = vld [vmem:[%s3 + $0x290] sm:$0xff]
    %v435 = vld [vmem:[%s3 + $0x298] sm:$0xff]
    %v436 = vld [vmem:[%s3 + $0x2a0] sm:$0xff]
    %v437 = vld [vmem:[%s3 + $0x2a8] sm:$0xff]
    %v438 = vld [vmem:[%s3 + $0x2b0] sm:$0xff]
    %v439 = vld [vmem:[%s3 + $0x2b8] sm:$0xff]
    %v440 = vld [vmem:[%s3 + $0x2c0] sm:$0xff]
    %v441 = vld [vmem:[%s3 + $0x2c8] sm:$0xff]
    %v442 = vld [vmem:[%s3 + $0x2d0] sm:$0xff]
    %v443 = vld [vmem:[%s3 + $0x2d8] sm:$0xff]
    %v444 = vld [vmem:[%s3 + $0x2e0] sm:$0xff]
    %v445 = vld [vmem:[%s3 + $0x2e8] sm:$0xff]
    %v446 = vld [vmem:[%s3 + $0x2f0] sm:$0xff]
    %v447 = vld [vmem:[%s3 + $0x2f8] sm:$0xff]
    %v448 = vld [vmem:[%s3 + $0x300] sm:$0xff]
    %v449 = vld [vmem:[%s3 + $0x308] sm:$0xff]
    %v450 = vld [vmem:[%s3 + $0x310] sm:$0xff]
    %v451 = vld [vmem:[%s3 + $0x318] sm:$0xff]
    %v452 = vld [vmem:[%s3 + $0x320] sm:$0xff]
    %v453 = vld [vmem:[%s3 + $0x328] sm:$0xff]
    %v454 = vld [vmem:[%s3 + $0x330] sm:$0xff]
    %v455 = vld [vmem:[%s3 + $0x338] sm:$0xff]
    %v456 = vld [vmem:[%s3 + $0x340] sm:$0xff]
    %v457 = vld [vmem:[%s3 + $0x348] sm:$0xff]
    %v458 = vld [vmem:[%s3 + $0x350] sm:$0xff]
    %v459 = vld [vmem:[%s3 + $0x358] sm:$0xff]
    %v460 = vld [vmem:[%s3 + $0x360] sm:$0xff]
    %v461 = vld [vmem:[%s3 + $0x368] sm:$0xff]
    %v462 = vld [vmem:[%s3 + $0x370] sm:$0xff]
    %v463 = vld [vmem:[%s3 + $0x378] sm:$0xff]
    %v464 = vld [vmem:[%s3 + $0x380] sm:$0xff]
    %v465 = vld [vmem:[%s3 + $0x388] sm:$0xff]
    %v466 = vld [vmem:[%s3 + $0x390] sm:$0xff]
    %v467 = vld [vmem:[%s3 + $0x398] sm:$0xff]
    %v468 = vld [vmem:[%s3 + $0x3a0] sm:$0xff]
    %v469 = vld [vmem:[%s3 + $0x3a8] sm:$0xff]
    %v470 = vld [vmem:[%s3 + $0x3b0] sm:$0xff]
    %v471 = vld [vmem:[%s3 + $0x3b8] sm:$0xff]
    %v472 = vld [vmem:[%s3 + $0x3c0] sm:$0xff]
    %v473 = vld [vmem:[%s3 + $0x3c8] sm:$0xff]
    %v474 = vld [vmem:[%s3 + $0x3d0] sm:$0xff]
    %v475 = vld [vmem:[%s3 + $0x3d8] sm:$0xff]
    %v476 = vld [vmem:[%s3 + $0x3e0] sm:$0xff]
    %v477 = vld [vmem:[%s3 + $0x3e8] sm:$0xff]
    %v478 = vld [vmem:[%s3 + $0x3f0] sm:$0xff]
    %v479 = vld [vmem:[%s3 + $0x3f8] sm:$0xff]
    %v480 = vld [vmem:[%s3 + $0x400] sm:$0xff]
    %v481 = vld [vmem:[%s3 + $0x408] sm:$0xff]
    %v482 = vld [vmem:[%s3 + $0x410] sm:$0xff]
    %v483 = vld [vmem:[%s3 + $0x418] sm:$0xff]
    %v484 = vld [vmem:[%s3 + $0x420] sm:$0xff]
    %v485 = vld [vmem:[%s3 + $0x428] sm:$0xff]
    %v486 = vld [vmem:[%s3 + $0x430] sm:$0xff]
    %v487 = vld [vmem:[%s3 + $0x438] sm:$0xff]
    %v488 = vld [vmem:[%s3 + $0x440] sm:$0xff]
    %v489 = vld [vmem:[%s3 + $0x448] sm:$0xff]
    %v490 = vld [vmem:[%s3 + $0x450] sm:$0xff]
    %v491 = vld [vmem:[%s3 + $0x458] sm:$0xff]
    %v492 = vld [vmem:[%s3 + $0x460] sm:$0xff]
    %v493 = vld [vmem:[%s3 + $0x468] sm:$0xff]
    %v494 = vld [vmem:[%s3 + $0x470] sm:$0xff]
    %v495 = vld [vmem:[%s3 + $0x478] sm:$0xff]
    %v496 = vld [vmem:[%s3 + $0x480] sm:$0xff]
    %v497 = vld [vmem:[%s3 + $0x488] sm:$0xff]
    %v498 = vld [vmem:[%s3 + $0x490] sm:$0xff]
    %v499 = vld [vmem:[%s3 + $0x498] sm:$0xff]
    %v500 = vld [vmem:[%s3 + $0x4a0] sm:$0xff]
    %v501 = vld [vmem:[%s3 + $0x4a8] sm:$0xff]
    %v502 = vld [vmem:[%s3 + $0x4b0] sm:$0xff]
    %v503 = vld [vmem:[%s3 + $0x4b8] sm:$0xff]
    %v504 = vld [vmem:[%s3 + $0x4c0] sm:$0xff]
    %v505 = vld [vmem:[%s3 + $0x4c8] sm:$0xff]
    %v506 = vld [vmem:[%s3 + $0x4d0] sm:$0xff]
    %v507 = vld [vmem:[%s3 + $0x4d8] sm:$0xff]
    %v508 = vld [vmem:[%s3 + $0x4e0] sm:$0xff]
    %v509 = vld [vmem:[%s3 + $0x4e8] sm:$0xff]
    %v510 = vld [vmem:[%s3 + $0x4f0] sm:$0xff]
    %v511 = vld [vmem:[%s3 + $0x4f8] sm:$0xff]
    %v512 = vld [vmem:[%s3 + $0x500] sm:$0xff]
    %v513 = vld [vmem:[%s3 + $0x508] sm:$0xff]
    %v514 = vld [vmem:[%s3 + $0x510] sm:$0xff]
    %v515 = vld [vmem:[%s3 + $0x518] sm:$0xff]
    %v516 = vld [vmem:[%s3 + $0x520] sm:$0xff]
    %v517 = vld [vmem:[%s3 + $0x528] sm:$0xff]
    %v518 = vld [vmem:[%s3 + $0x530] sm:$0xff]
    %v519 = vld [vmem:[%s3 + $0x538] sm:$0xff]
    %v520 = vld [vmem:[%s3 + $0x540] sm:$0xff]
    %v521 = vld [vmem:[%s3 + $0x548] sm:$0xff]
    %v522 = vld [vmem:[%s3 + $0x550] sm:$0xff]
    %v523 = vld [vmem:[%s3 + $0x558] sm:$0xff]
    %v524 = vld [vmem:[%s3 + $0x560] sm:$0xff]
    %v525 = vld [vmem:[%s3 + $0x568] sm:$0xff]
    %v526 = vld [vmem:[%s3 + $0x570] sm:$0xff]
    %v527 = vld [vmem:[%s3 + $0x578] sm:$0xff]
    %v528 = vld [vmem:[%s3 + $0x580] sm:$0xff]
    %v529 = vld [vmem:[%s3 + $0x588] sm:$0xff]
    %v530 = vld [vmem:[%s3 + $0x590] sm:$0xff]
    %v531 = vld [vmem:[%s3 + $0x598] sm:$0xff]
    %v532 = vld [vmem:[%s3 + $0x5a0] sm:$0xff]
    %v533 = vld [vmem:[%s3 + $0x5a8] sm:$0xff]
    %v534 = vld [vmem:[%s3 + $0x5b0] sm:$0xff]
    %v535 = vld [vmem:[%s3 + $0x5b8] sm:$0xff]
    %v536 = vld [vmem:[%s3 + $0x5c0] sm:$0xff]
    %v537 = vld [vmem:[%s3 + $0x5c8] sm:$0xff]
    %v538 = vld [vmem:[%s3 + $0x5d0] sm:$0xff]
    %v539 = vld [vmem:[%s3 + $0x5d8] sm:$0xff]
    %v540 = vld [vmem:[%s3 + $0x5e0] sm:$0xff]
    %v541 = vld [vmem:[%s3 + $0x5e8] sm:$0xff]
    %v542 = vld [vmem:[%s3 + $0x5f0] sm:$0xff]
    %v543 = vld [vmem:[%s3 + $0x5f8] sm:$0xff]
    %v544 = vld [vmem:[%s3 + $0x600] sm:$0xff]
    %v545 = vld [vmem:[%s3 + $0x608] sm:$0xff]
    %v546 = vld [vmem:[%s3 + $0x610] sm:$0xff]
    %v547 = vld [vmem:[%s3 + $0x618] sm:$0xff]
    %v548 = vld [vmem:[%s3 + $0x620] sm:$0xff]
    %v549 = vld [vmem:[%s3 + $0x628] sm:$0xff]
    %v550 = vld [vmem:[%s3 + $0x630] sm:$0xff]
    %v551 = vld [vmem:[%s3 + $0x638] sm:$0xff]
    %v552 = vld [vmem:[%s3 + $0x640] sm:$0xff]
    %v553 = vld [vmem:[%s3 + $0x648] sm:$0xff]
    %v554 = vld [vmem:[%s3 + $0x650] sm:$0xff]
    %v555 = vld [vmem:[%s3 + $0x658] sm:$0xff]
    %v556 = vld [vmem:[%s3 + $0x660] sm:$0xff]
    %v557 = vld [vmem:[%s3 + $0x668] sm:$0xff]
    %v558 = vld [vmem:[%s3 + $0x670] sm:$0xff]
    %v559 = vld [vmem:[%s3 + $0x678] sm:$0xff]
    %v560 = vld [vmem:[%s3 + $0x680] sm:$0xff]
    %v561 = vld [vmem:[%s3 + $0x688] sm:$0xff]
    %v562 = vld [vmem:[%s3 + $0x690] sm:$0xff]
    %v563 = vld [vmem:[%s3 + $0x698] sm:$0xff]
    %v564 = vld [vmem:[%s3 + $0x6a0] sm:$0xff]
    %v565 = vld [vmem:[%s3 + $0x6a8] sm:$0xff]
    %v566 = vld [vmem:[%s3 + $0x6b0] sm:$0xff]
    %v567 = vld [vmem:[%s3 + $0x6b8] sm:$0xff]
    %v568 = vld [vmem:[%s3 + $0x6c0] sm:$0xff]
    %v569 = vld [vmem:[%s3 + $0x6c8] sm:$0xff]
    %v570 = vld [vmem:[%s3 + $0x6d0] sm:$0xff]
    %v571 = vld [vmem:[%s3 + $0x6d8] sm:$0xff]
    %v572 = vld [vmem:[%s3 + $0x6e0] sm:$0xff]
    %v573 = vld [vmem:[%s3 + $0x6e8] sm:$0xff]
    %v574 = vld [vmem:[%s3 + $0x6f0] sm:$0xff]
    %v575 = vld [vmem:[%s3 + $0x6f8] sm:$0xff]
    %v576 = vld [vmem:[%s3 + $0x700] sm:$0xff]
    %v577 = vld [vmem:[%s3 + $0x708] sm:$0xff]
    %v578 = vld [vmem:[%s3 + $0x710] sm:$0xff]
    %v579 = vld [vmem:[%s3 + $0x718] sm:$0xff]
    %v580 = vld [vmem:[%s3 + $0x720] sm:$0xff]
    %v581 = vld [vmem:[%s3 + $0x728] sm:$0xff]
    %v582 = vld [vmem:[%s3 + $0x730] sm:$0xff]
    %v583 = vld [vmem:[%s3 + $0x738] sm:$0xff]
    %v584 = vld [vmem:[%s3 + $0x740] sm:$0xff]
    %v585 = vld [vmem:[%s3 + $0x748] sm:$0xff]
    %v586 = vld [vmem:[%s3 + $0x750] sm:$0xff]
    %v587 = vld [vmem:[%s3 + $0x758] sm:$0xff]
    %v588 = vld [vmem:[%s3 + $0x760] sm:$0xff]
    %v589 = vld [vmem:[%s3 + $0x768] sm:$0xff]
    %v590 = vld [vmem:[%s3 + $0x770] sm:$0xff]
    %v591 = vld [vmem:[%s3 + $0x778] sm:$0xff]
    %v592 = vld [vmem:[%s3 + $0x780] sm:$0xff]
    %v593 = vld [vmem:[%s3 + $0x788] sm:$0xff]
    %v594 = vld [vmem:[%s3 + $0x790] sm:$0xff]
    %v595 = vld [vmem:[%s3 + $0x798] sm:$0xff]
    %v596 = vld [vmem:[%s3 + $0x7a0] sm:$0xff]
    %v597 = vld [vmem:[%s3 + $0x7a8] sm:$0xff]
    %v598 = vld [vmem:[%s3 + $0x7b0] sm:$0xff]
    %v599 = vld [vmem:[%s3 + $0x7b8] sm:$0xff]
    %v600 = vld [vmem:[%s3 + $0x7c0] sm:$0xff]
    %v601 = vld [vmem:[%s3 + $0x7c8] sm:$0xff]
    %v602 = vld [vmem:[%s3 + $0x7d0] sm:$0xff]
    %v603 = vld [vmem:[%s3 + $0x7d8] sm:$0xff]
    %v604 = vld [vmem:[%s3 + $0x7e0] sm:$0xff]
    %v605 = vld [vmem:[%s3 + $0x7e8] sm:$0xff]
    %v606 = vld [vmem:[%s3 + $0x7f0] sm:$0xff]
    %v607 = vld [vmem:[%s3 + $0x7f8] sm:$0xff]
    %v608 = vld [vmem:[%s4] sm:$0xf]
    %v610 = vlaneseq
    %v611 = vshrl.u32 %v610, 7
    %v612 = vsub.s32 0, %v611
    %v613 = vrot.slane %v608, %v612
    %v614 = vlaneseq
    %v615 = vshrl.u32 %v614, 7
    %v616 = vsub.s32 1, %v615
    %v617 = vrot.slane %v608, %v616
    %v618 = vlaneseq
    %v619 = vshrl.u32 %v618, 7
    %v620 = vsub.s32 2, %v619
    %v621 = vrot.slane %v608, %v620
    %v622 = vlaneseq
    %v623 = vshrl.u32 %v622, 7
    %v624 = vsub.s32 3, %v623
    %v625 = vrot.slane %v608, %v624
    %v886 = vunpack.c.l.b16 %v352
    %v887 = vunpack.c.h.b16 %v352
    %v888 = vunpack.c.l.b16 %v353
    %v889 = vunpack.c.h.b16 %v353
    %v890 = vunpack.c.l.b16 %v354
    %v891 = vunpack.c.h.b16 %v354
    %v892 = vunpack.c.l.b16 %v355
    %v893 = vunpack.c.h.b16 %v355
    %v894 = vunpack.c.l.b16 %v356
    %v895 = vunpack.c.h.b16 %v356
    %v896 = vunpack.c.l.b16 %v357
    %v897 = vunpack.c.h.b16 %v357
    %v898 = vunpack.c.l.b16 %v358
    %v899 = vunpack.c.h.b16 %v358
    %v900 = vunpack.c.l.b16 %v359
    %v901 = vunpack.c.h.b16 %v359
    %v902 = vunpack.c.l.b16 %v360
    %v903 = vunpack.c.h.b16 %v360
    %v904 = vunpack.c.l.b16 %v361
    %v905 = vunpack.c.h.b16 %v361
    %v906 = vunpack.c.l.b16 %v362
    %v907 = vunpack.c.h.b16 %v362
    %v908 = vunpack.c.l.b16 %v363
    %v909 = vunpack.c.h.b16 %v363
    %v910 = vunpack.c.l.b16 %v364
    %v911 = vunpack.c.h.b16 %v364
    %v912 = vunpack.c.l.b16 %v365
    %v913 = vunpack.c.h.b16 %v365
    %v914 = vunpack.c.l.b16 %v366
    %v915 = vunpack.c.h.b16 %v366
    %v916 = vunpack.c.l.b16 %v367
    %v917 = vunpack.c.h.b16 %v367
    %v918 = vunpack.c.l.b16 %v368
    %v919 = vunpack.c.h.b16 %v368
    %v920 = vunpack.c.l.b16 %v369
    %v921 = vunpack.c.h.b16 %v369
    %v922 = vunpack.c.l.b16 %v370
    %v923 = vunpack.c.h.b16 %v370
    %v924 = vunpack.c.l.b16 %v371
    %v925 = vunpack.c.h.b16 %v371
    %v926 = vunpack.c.l.b16 %v372
    %v927 = vunpack.c.h.b16 %v372
    %v928 = vunpack.c.l.b16 %v373
    %v929 = vunpack.c.h.b16 %v373
    %v930 = vunpack.c.l.b16 %v374
    %v931 = vunpack.c.h.b16 %v374
    %v932 = vunpack.c.l.b16 %v375
    %v933 = vunpack.c.h.b16 %v375
    %v934 = vunpack.c.l.b16 %v376
    %v935 = vunpack.c.h.b16 %v376
    %v936 = vunpack.c.l.b16 %v377
    %v937 = vunpack.c.h.b16 %v377
    %v938 = vunpack.c.l.b16 %v378
    %v939 = vunpack.c.h.b16 %v378
    %v940 = vunpack.c.l.b16 %v379
    %v941 = vunpack.c.h.b16 %v379
    %v942 = vunpack.c.l.b16 %v380
    %v943 = vunpack.c.h.b16 %v380
    %v944 = vunpack.c.l.b16 %v381
    %v945 = vunpack.c.h.b16 %v381
    %v946 = vunpack.c.l.b16 %v382
    %v947 = vunpack.c.h.b16 %v382
    %v948 = vunpack.c.l.b16 %v383
    %v949 = vunpack.c.h.b16 %v383
    %v950 = vunpack.c.l.b16 %v384
    %v951 = vunpack.c.h.b16 %v384
    %v952 = vunpack.c.l.b16 %v385
    %v953 = vunpack.c.h.b16 %v385
    %v954 = vunpack.c.l.b16 %v386
    %v955 = vunpack.c.h.b16 %v386
    %v956 = vunpack.c.l.b16 %v387
    %v957 = vunpack.c.h.b16 %v387
    %v958 = vunpack.c.l.b16 %v388
    %v959 = vunpack.c.h.b16 %v388
    %v960 = vunpack.c.l.b16 %v389
    %v961 = vunpack.c.h.b16 %v389
    %v962 = vunpack.c.l.b16 %v390
    %v963 = vunpack.c.h.b16 %v390
    %v964 = vunpack.c.l.b16 %v391
    %v965 = vunpack.c.h.b16 %v391
    %v966 = vunpack.c.l.b16 %v392
    %v967 = vunpack.c.h.b16 %v392
    %v968 = vunpack.c.l.b16 %v393
    %v969 = vunpack.c.h.b16 %v393
    %v970 = vunpack.c.l.b16 %v394
    %v971 = vunpack.c.h.b16 %v394
    %v972 = vunpack.c.l.b16 %v395
    %v973 = vunpack.c.h.b16 %v395
    %v974 = vunpack.c.l.b16 %v396
    %v975 = vunpack.c.h.b16 %v396
    %v976 = vunpack.c.l.b16 %v397
    %v977 = vunpack.c.h.b16 %v397
    %v978 = vunpack.c.l.b16 %v398
    %v979 = vunpack.c.h.b16 %v398
    %v980 = vunpack.c.l.b16 %v399
    %v981 = vunpack.c.h.b16 %v399
    %v982 = vunpack.c.l.b16 %v400
    %v983 = vunpack.c.h.b16 %v400
    %v984 = vunpack.c.l.b16 %v401
    %v985 = vunpack.c.h.b16 %v401
    %v986 = vunpack.c.l.b16 %v402
    %v987 = vunpack.c.h.b16 %v402
    %v988 = vunpack.c.l.b16 %v403
    %v989 = vunpack.c.h.b16 %v403
    %v990 = vunpack.c.l.b16 %v404
    %v991 = vunpack.c.h.b16 %v404
    %v992 = vunpack.c.l.b16 %v405
    %v993 = vunpack.c.h.b16 %v405
    %v994 = vunpack.c.l.b16 %v406
    %v995 = vunpack.c.h.b16 %v406
    %v996 = vunpack.c.l.b16 %v407
    %v997 = vunpack.c.h.b16 %v407
    %v998 = vunpack.c.l.b16 %v408
    %v999 = vunpack.c.h.b16 %v408
    %v1000 = vunpack.c.l.b16 %v409
    %v1001 = vunpack.c.h.b16 %v409
    %v1002 = vunpack.c.l.b16 %v410
    %v1003 = vunpack.c.h.b16 %v410
    %v1004 = vunpack.c.l.b16 %v411
    %v1005 = vunpack.c.h.b16 %v411
    %v1006 = vunpack.c.l.b16 %v412
    %v1007 = vunpack.c.h.b16 %v412
    %v1008 = vunpack.c.l.b16 %v413
    %v1009 = vunpack.c.h.b16 %v413
    %v1010 = vunpack.c.l.b16 %v414
    %v1011 = vunpack.c.h.b16 %v414
    %v1012 = vunpack.c.l.b16 %v415
    %v1013 = vunpack.c.h.b16 %v415
    %v1014 = vunpack.c.l.b16 %v416
    %v1015 = vunpack.c.h.b16 %v416
    %v1016 = vunpack.c.l.b16 %v417
    %v1017 = vunpack.c.h.b16 %v417
    %v1018 = vunpack.c.l.b16 %v418
    %v1019 = vunpack.c.h.b16 %v418
    %v1020 = vunpack.c.l.b16 %v419
    %v1021 = vunpack.c.h.b16 %v419
    %v1022 = vunpack.c.l.b16 %v420
    %v1023 = vunpack.c.h.b16 %v420
    %v1024 = vunpack.c.l.b16 %v421
    %v1025 = vunpack.c.h.b16 %v421
    %v1026 = vunpack.c.l.b16 %v422
    %v1027 = vunpack.c.h.b16 %v422
    %v1028 = vunpack.c.l.b16 %v423
    %v1029 = vunpack.c.h.b16 %v423
    %v1030 = vunpack.c.l.b16 %v424
    %v1031 = vunpack.c.h.b16 %v424
    %v1032 = vunpack.c.l.b16 %v425
    %v1033 = vunpack.c.h.b16 %v425
    %v1034 = vunpack.c.l.b16 %v426
    %v1035 = vunpack.c.h.b16 %v426
    %v1036 = vunpack.c.l.b16 %v427
    %v1037 = vunpack.c.h.b16 %v427
    %v1038 = vunpack.c.l.b16 %v428
    %v1039 = vunpack.c.h.b16 %v428
    %v1040 = vunpack.c.l.b16 %v429
    %v1041 = vunpack.c.h.b16 %v429
    %v1042 = vunpack.c.l.b16 %v430
    %v1043 = vunpack.c.h.b16 %v430
    %v1044 = vunpack.c.l.b16 %v431
    %v1045 = vunpack.c.h.b16 %v431
    %v1046 = vunpack.c.l.b16 %v432
    %v1047 = vunpack.c.h.b16 %v432
    %v1048 = vunpack.c.l.b16 %v433
    %v1049 = vunpack.c.h.b16 %v433
    %v1050 = vunpack.c.l.b16 %v434
    %v1051 = vunpack.c.h.b16 %v434
    %v1052 = vunpack.c.l.b16 %v435
    %v1053 = vunpack.c.h.b16 %v435
    %v1054 = vunpack.c.l.b16 %v436
    %v1055 = vunpack.c.h.b16 %v436
    %v1056 = vunpack.c.l.b16 %v437
    %v1057 = vunpack.c.h.b16 %v437
    %v1058 = vunpack.c.l.b16 %v438
    %v1059 = vunpack.c.h.b16 %v438
    %v1060 = vunpack.c.l.b16 %v439
    %v1061 = vunpack.c.h.b16 %v439
    %v1062 = vunpack.c.l.b16 %v440
    %v1063 = vunpack.c.h.b16 %v440
    %v1064 = vunpack.c.l.b16 %v441
    %v1065 = vunpack.c.h.b16 %v441
    %v1066 = vunpack.c.l.b16 %v442
    %v1067 = vunpack.c.h.b16 %v442
    %v1068 = vunpack.c.l.b16 %v443
    %v1069 = vunpack.c.h.b16 %v443
    %v1070 = vunpack.c.l.b16 %v444
    %v1071 = vunpack.c.h.b16 %v444
    %v1072 = vunpack.c.l.b16 %v445
    %v1073 = vunpack.c.h.b16 %v445
    %v1074 = vunpack.c.l.b16 %v446
    %v1075 = vunpack.c.h.b16 %v446
    %v1076 = vunpack.c.l.b16 %v447
    %v1077 = vunpack.c.h.b16 %v447
    %v1078 = vunpack.c.l.b16 %v448
    %v1079 = vunpack.c.h.b16 %v448
    %v1080 = vunpack.c.l.b16 %v449
    %v1081 = vunpack.c.h.b16 %v449
    %v1082 = vunpack.c.l.b16 %v450
    %v1083 = vunpack.c.h.b16 %v450
    %v1084 = vunpack.c.l.b16 %v451
    %v1085 = vunpack.c.h.b16 %v451
    %v1086 = vunpack.c.l.b16 %v452
    %v1087 = vunpack.c.h.b16 %v452
    %v1088 = vunpack.c.l.b16 %v453
    %v1089 = vunpack.c.h.b16 %v453
    %v1090 = vunpack.c.l.b16 %v454
    %v1091 = vunpack.c.h.b16 %v454
    %v1092 = vunpack.c.l.b16 %v455
    %v1093 = vunpack.c.h.b16 %v455
    %v1094 = vunpack.c.l.b16 %v456
    %v1095 = vunpack.c.h.b16 %v456
    %v1096 = vunpack.c.l.b16 %v457
    %v1097 = vunpack.c.h.b16 %v457
    %v1098 = vunpack.c.l.b16 %v458
    %v1099 = vunpack.c.h.b16 %v458
    %v1100 = vunpack.c.l.b16 %v459
    %v1101 = vunpack.c.h.b16 %v459
    %v1102 = vunpack.c.l.b16 %v460
    %v1103 = vunpack.c.h.b16 %v460
    %v1104 = vunpack.c.l.b16 %v461
    %v1105 = vunpack.c.h.b16 %v461
    %v1106 = vunpack.c.l.b16 %v462
    %v1107 = vunpack.c.h.b16 %v462
    %v1108 = vunpack.c.l.b16 %v463
    %v1109 = vunpack.c.h.b16 %v463
    %v1110 = vunpack.c.l.b16 %v464
    %v1111 = vunpack.c.h.b16 %v464
    %v1112 = vunpack.c.l.b16 %v465
    %v1113 = vunpack.c.h.b16 %v465
    %v1114 = vunpack.c.l.b16 %v466
    %v1115 = vunpack.c.h.b16 %v466
    %v1116 = vunpack.c.l.b16 %v467
    %v1117 = vunpack.c.h.b16 %v467
    %v1118 = vunpack.c.l.b16 %v468
    %v1119 = vunpack.c.h.b16 %v468
    %v1120 = vunpack.c.l.b16 %v469
    %v1121 = vunpack.c.h.b16 %v469
    %v1122 = vunpack.c.l.b16 %v470
    %v1123 = vunpack.c.h.b16 %v470
    %v1124 = vunpack.c.l.b16 %v471
    %v1125 = vunpack.c.h.b16 %v471
    %v1126 = vunpack.c.l.b16 %v472
    %v1127 = vunpack.c.h.b16 %v472
    %v1128 = vunpack.c.l.b16 %v473
    %v1129 = vunpack.c.h.b16 %v473
    %v1130 = vunpack.c.l.b16 %v474
    %v1131 = vunpack.c.h.b16 %v474
    %v1132 = vunpack.c.l.b16 %v475
    %v1133 = vunpack.c.h.b16 %v475
    %v1134 = vunpack.c.l.b16 %v476
    %v1135 = vunpack.c.h.b16 %v476
    %v1136 = vunpack.c.l.b16 %v477
    %v1137 = vunpack.c.h.b16 %v477
    %v1138 = vunpack.c.l.b16 %v478
    %v1139 = vunpack.c.h.b16 %v478
    %v1140 = vunpack.c.l.b16 %v479
    %v1141 = vunpack.c.h.b16 %v479
    %v1142 = vunpack.c.l.b16 %v480
    %v1143 = vunpack.c.h.b16 %v480
    %v1144 = vunpack.c.l.b16 %v481
    %v1145 = vunpack.c.h.b16 %v481
    %v1146 = vunpack.c.l.b16 %v482
    %v1147 = vunpack.c.h.b16 %v482
    %v1148 = vunpack.c.l.b16 %v483
    %v1149 = vunpack.c.h.b16 %v483
    %v1150 = vunpack.c.l.b16 %v484
    %v1151 = vunpack.c.h.b16 %v484
    %v1152 = vunpack.c.l.b16 %v485
    %v1153 = vunpack.c.h.b16 %v485
    %v1154 = vunpack.c.l.b16 %v486
    %v1155 = vunpack.c.h.b16 %v486
    %v1156 = vunpack.c.l.b16 %v487
    %v1157 = vunpack.c.h.b16 %v487
    %v1158 = vunpack.c.l.b16 %v488
    %v1159 = vunpack.c.h.b16 %v488
    %v1160 = vunpack.c.l.b16 %v489
    %v1161 = vunpack.c.h.b16 %v489
    %v1162 = vunpack.c.l.b16 %v490
    %v1163 = vunpack.c.h.b16 %v490
    %v1164 = vunpack.c.l.b16 %v491
    %v1165 = vunpack.c.h.b16 %v491
    %v1166 = vunpack.c.l.b16 %v492
    %v1167 = vunpack.c.h.b16 %v492
    %v1168 = vunpack.c.l.b16 %v493
    %v1169 = vunpack.c.h.b16 %v493
    %v1170 = vunpack.c.l.b16 %v494
    %v1171 = vunpack.c.h.b16 %v494
    %v1172 = vunpack.c.l.b16 %v495
    %v1173 = vunpack.c.h.b16 %v495
    %v1174 = vunpack.c.l.b16 %v496
    %v1175 = vunpack.c.h.b16 %v496
    %v1176 = vunpack.c.l.b16 %v497
    %v1177 = vunpack.c.h.b16 %v497
    %v1178 = vunpack.c.l.b16 %v498
    %v1179 = vunpack.c.h.b16 %v498
    %v1180 = vunpack.c.l.b16 %v499
    %v1181 = vunpack.c.h.b16 %v499
    %v1182 = vunpack.c.l.b16 %v500
    %v1183 = vunpack.c.h.b16 %v500
    %v1184 = vunpack.c.l.b16 %v501
    %v1185 = vunpack.c.h.b16 %v501
    %v1186 = vunpack.c.l.b16 %v502
    %v1187 = vunpack.c.h.b16 %v502
    %v1188 = vunpack.c.l.b16 %v503
    %v1189 = vunpack.c.h.b16 %v503
    %v1190 = vunpack.c.l.b16 %v504
    %v1191 = vunpack.c.h.b16 %v504
    %v1192 = vunpack.c.l.b16 %v505
    %v1193 = vunpack.c.h.b16 %v505
    %v1194 = vunpack.c.l.b16 %v506
    %v1195 = vunpack.c.h.b16 %v506
    %v1196 = vunpack.c.l.b16 %v507
    %v1197 = vunpack.c.h.b16 %v507
    %v1198 = vunpack.c.l.b16 %v508
    %v1199 = vunpack.c.h.b16 %v508
    %v1200 = vunpack.c.l.b16 %v509
    %v1201 = vunpack.c.h.b16 %v509
    %v1202 = vunpack.c.l.b16 %v510
    %v1203 = vunpack.c.h.b16 %v510
    %v1204 = vunpack.c.l.b16 %v511
    %v1205 = vunpack.c.h.b16 %v511
    %v1206 = vunpack.c.l.b16 %v512
    %v1207 = vunpack.c.h.b16 %v512
    %v1208 = vunpack.c.l.b16 %v513
    %v1209 = vunpack.c.h.b16 %v513
    %v1210 = vunpack.c.l.b16 %v514
    %v1211 = vunpack.c.h.b16 %v514
    %v1212 = vunpack.c.l.b16 %v515
    %v1213 = vunpack.c.h.b16 %v515
    %v1214 = vunpack.c.l.b16 %v516
    %v1215 = vunpack.c.h.b16 %v516
    %v1216 = vunpack.c.l.b16 %v517
    %v1217 = vunpack.c.h.b16 %v517
    %v1218 = vunpack.c.l.b16 %v518
    %v1219 = vunpack.c.h.b16 %v518
    %v1220 = vunpack.c.l.b16 %v519
    %v1221 = vunpack.c.h.b16 %v519
    %v1222 = vunpack.c.l.b16 %v520
    %v1223 = vunpack.c.h.b16 %v520
    %v1224 = vunpack.c.l.b16 %v521
    %v1225 = vunpack.c.h.b16 %v521
    %v1226 = vunpack.c.l.b16 %v522
    %v1227 = vunpack.c.h.b16 %v522
    %v1228 = vunpack.c.l.b16 %v523
    %v1229 = vunpack.c.h.b16 %v523
    %v1230 = vunpack.c.l.b16 %v524
    %v1231 = vunpack.c.h.b16 %v524
    %v1232 = vunpack.c.l.b16 %v525
    %v1233 = vunpack.c.h.b16 %v525
    %v1234 = vunpack.c.l.b16 %v526
    %v1235 = vunpack.c.h.b16 %v526
    %v1236 = vunpack.c.l.b16 %v527
    %v1237 = vunpack.c.h.b16 %v527
    %v1238 = vunpack.c.l.b16 %v528
    %v1239 = vunpack.c.h.b16 %v528
    %v1240 = vunpack.c.l.b16 %v529
    %v1241 = vunpack.c.h.b16 %v529
    %v1242 = vunpack.c.l.b16 %v530
    %v1243 = vunpack.c.h.b16 %v530
    %v1244 = vunpack.c.l.b16 %v531
    %v1245 = vunpack.c.h.b16 %v531
    %v1246 = vunpack.c.l.b16 %v532
    %v1247 = vunpack.c.h.b16 %v532
    %v1248 = vunpack.c.l.b16 %v533
    %v1249 = vunpack.c.h.b16 %v533
    %v1250 = vunpack.c.l.b16 %v534
    %v1251 = vunpack.c.h.b16 %v534
    %v1252 = vunpack.c.l.b16 %v535
    %v1253 = vunpack.c.h.b16 %v535
    %v1254 = vunpack.c.l.b16 %v536
    %v1255 = vunpack.c.h.b16 %v536
    %v1256 = vunpack.c.l.b16 %v537
    %v1257 = vunpack.c.h.b16 %v537
    %v1258 = vunpack.c.l.b16 %v538
    %v1259 = vunpack.c.h.b16 %v538
    %v1260 = vunpack.c.l.b16 %v539
    %v1261 = vunpack.c.h.b16 %v539
    %v1262 = vunpack.c.l.b16 %v540
    %v1263 = vunpack.c.h.b16 %v540
    %v1264 = vunpack.c.l.b16 %v541
    %v1265 = vunpack.c.h.b16 %v541
    %v1266 = vunpack.c.l.b16 %v542
    %v1267 = vunpack.c.h.b16 %v542
    %v1268 = vunpack.c.l.b16 %v543
    %v1269 = vunpack.c.h.b16 %v543
    %v1270 = vunpack.c.l.b16 %v544
    %v1271 = vunpack.c.h.b16 %v544
    %v1272 = vunpack.c.l.b16 %v545
    %v1273 = vunpack.c.h.b16 %v545
    %v1274 = vunpack.c.l.b16 %v546
    %v1275 = vunpack.c.h.b16 %v546
    %v1276 = vunpack.c.l.b16 %v547
    %v1277 = vunpack.c.h.b16 %v547
    %v1278 = vunpack.c.l.b16 %v548
    %v1279 = vunpack.c.h.b16 %v548
    %v1280 = vunpack.c.l.b16 %v549
    %v1281 = vunpack.c.h.b16 %v549
    %v1282 = vunpack.c.l.b16 %v550
    %v1283 = vunpack.c.h.b16 %v550
    %v1284 = vunpack.c.l.b16 %v551
    %v1285 = vunpack.c.h.b16 %v551
    %v1286 = vunpack.c.l.b16 %v552
    %v1287 = vunpack.c.h.b16 %v552
    %v1288 = vunpack.c.l.b16 %v553
    %v1289 = vunpack.c.h.b16 %v553
    %v1290 = vunpack.c.l.b16 %v554
    %v1291 = vunpack.c.h.b16 %v554
    %v1292 = vunpack.c.l.b16 %v555
    %v1293 = vunpack.c.h.b16 %v555
    %v1294 = vunpack.c.l.b16 %v556
    %v1295 = vunpack.c.h.b16 %v556
    %v1296 = vunpack.c.l.b16 %v557
    %v1297 = vunpack.c.h.b16 %v557
    %v1298 = vunpack.c.l.b16 %v558
    %v1299 = vunpack.c.h.b16 %v558
    %v1300 = vunpack.c.l.b16 %v559
    %v1301 = vunpack.c.h.b16 %v559
    %v1302 = vunpack.c.l.b16 %v560
    %v1303 = vunpack.c.h.b16 %v560
    %v1304 = vunpack.c.l.b16 %v561
    %v1305 = vunpack.c.h.b16 %v561
    %v1306 = vunpack.c.l.b16 %v562
    %v1307 = vunpack.c.h.b16 %v562
    %v1308 = vunpack.c.l.b16 %v563
    %v1309 = vunpack.c.h.b16 %v563
    %v1310 = vunpack.c.l.b16 %v564
    %v1311 = vunpack.c.h.b16 %v564
    %v1312 = vunpack.c.l.b16 %v565
    %v1313 = vunpack.c.h.b16 %v565
    %v1314 = vunpack.c.l.b16 %v566
    %v1315 = vunpack.c.h.b16 %v566
    %v1316 = vunpack.c.l.b16 %v567
    %v1317 = vunpack.c.h.b16 %v567
    %v1318 = vunpack.c.l.b16 %v568
    %v1319 = vunpack.c.h.b16 %v568
    %v1320 = vunpack.c.l.b16 %v569
    %v1321 = vunpack.c.h.b16 %v569
    %v1322 = vunpack.c.l.b16 %v570
    %v1323 = vunpack.c.h.b16 %v570
    %v1324 = vunpack.c.l.b16 %v571
    %v1325 = vunpack.c.h.b16 %v571
    %v1326 = vunpack.c.l.b16 %v572
    %v1327 = vunpack.c.h.b16 %v572
    %v1328 = vunpack.c.l.b16 %v573
    %v1329 = vunpack.c.h.b16 %v573
    %v1330 = vunpack.c.l.b16 %v574
    %v1331 = vunpack.c.h.b16 %v574
    %v1332 = vunpack.c.l.b16 %v575
    %v1333 = vunpack.c.h.b16 %v575
    %v1334 = vunpack.c.l.b16 %v576
    %v1335 = vunpack.c.h.b16 %v576
    %v1336 = vunpack.c.l.b16 %v577
    %v1337 = vunpack.c.h.b16 %v577
    %v1338 = vunpack.c.l.b16 %v578
    %v1339 = vunpack.c.h.b16 %v578
    %v1340 = vunpack.c.l.b16 %v579
    %v1341 = vunpack.c.h.b16 %v579
    %v1342 = vunpack.c.l.b16 %v580
    %v1343 = vunpack.c.h.b16 %v580
    %v1344 = vunpack.c.l.b16 %v581
    %v1345 = vunpack.c.h.b16 %v581
    %v1346 = vunpack.c.l.b16 %v582
    %v1347 = vunpack.c.h.b16 %v582
    %v1348 = vunpack.c.l.b16 %v583
    %v1349 = vunpack.c.h.b16 %v583
    %v1350 = vunpack.c.l.b16 %v584
    %v1351 = vunpack.c.h.b16 %v584
    %v1352 = vunpack.c.l.b16 %v585
    %v1353 = vunpack.c.h.b16 %v585
    %v1354 = vunpack.c.l.b16 %v586
    %v1355 = vunpack.c.h.b16 %v586
    %v1356 = vunpack.c.l.b16 %v587
    %v1357 = vunpack.c.h.b16 %v587
    %v1358 = vunpack.c.l.b16 %v588
    %v1359 = vunpack.c.h.b16 %v588
    %v1360 = vunpack.c.l.b16 %v589
    %v1361 = vunpack.c.h.b16 %v589
    %v1362 = vunpack.c.l.b16 %v590
    %v1363 = vunpack.c.h.b16 %v590
    %v1364 = vunpack.c.l.b16 %v591
    %v1365 = vunpack.c.h.b16 %v591
    %v1366 = vunpack.c.l.b16 %v592
    %v1367 = vunpack.c.h.b16 %v592
    %v1368 = vunpack.c.l.b16 %v593
    %v1369 = vunpack.c.h.b16 %v593
    %v1370 = vunpack.c.l.b16 %v594
    %v1371 = vunpack.c.h.b16 %v594
    %v1372 = vunpack.c.l.b16 %v595
    %v1373 = vunpack.c.h.b16 %v595
    %v1374 = vunpack.c.l.b16 %v596
    %v1375 = vunpack.c.h.b16 %v596
    %v1376 = vunpack.c.l.b16 %v597
    %v1377 = vunpack.c.h.b16 %v597
    %v1378 = vunpack.c.l.b16 %v598
    %v1379 = vunpack.c.h.b16 %v598
    %v1380 = vunpack.c.l.b16 %v599
    %v1381 = vunpack.c.h.b16 %v599
    %v1382 = vunpack.c.l.b16 %v600
    %v1383 = vunpack.c.h.b16 %v600
    %v1384 = vunpack.c.l.b16 %v601
    %v1385 = vunpack.c.h.b16 %v601
    %v1386 = vunpack.c.l.b16 %v602
    %v1387 = vunpack.c.h.b16 %v602
    %v1388 = vunpack.c.l.b16 %v603
    %v1389 = vunpack.c.h.b16 %v603
    %v1390 = vunpack.c.l.b16 %v604
    %v1391 = vunpack.c.h.b16 %v604
    %v1392 = vunpack.c.l.b16 %v605
    %v1393 = vunpack.c.h.b16 %v605
    %v1394 = vunpack.c.l.b16 %v606
    %v1395 = vunpack.c.h.b16 %v606
    %v1396 = vunpack.c.l.b16 %v607
    %v1397 = vunpack.c.h.b16 %v607
    %v1398 = vpack.c.b16 %v890, %v886
    %v1399 = vpack.c.b16 %v891, %v887
    %v1400 = vpack.c.b16 %v892, %v888
    %v1401 = vpack.c.b16 %v893, %v889
    %v1402 = vpack.c.b16 %v898, %v894
    %v1403 = vpack.c.b16 %v899, %v895
    %v1404 = vpack.c.b16 %v900, %v896
    %v1405 = vpack.c.b16 %v901, %v897
    %v1406 = vpack.c.b16 %v906, %v902
    %v1407 = vpack.c.b16 %v907, %v903
    %v1408 = vpack.c.b16 %v908, %v904
    %v1409 = vpack.c.b16 %v909, %v905
    %v1410 = vpack.c.b16 %v914, %v910
    %v1411 = vpack.c.b16 %v915, %v911
    %v1412 = vpack.c.b16 %v916, %v912
    %v1413 = vpack.c.b16 %v917, %v913
    %v1414 = vpack.c.b16 %v922, %v918
    %v1415 = vpack.c.b16 %v923, %v919
    %v1416 = vpack.c.b16 %v924, %v920
    %v1417 = vpack.c.b16 %v925, %v921
    %v1418 = vpack.c.b16 %v930, %v926
    %v1419 = vpack.c.b16 %v931, %v927
    %v1420 = vpack.c.b16 %v932, %v928
    %v1421 = vpack.c.b16 %v933, %v929
    %v1422 = vpack.c.b16 %v938, %v934
    %v1423 = vpack.c.b16 %v939, %v935
    %v1424 = vpack.c.b16 %v940, %v936
    %v1425 = vpack.c.b16 %v941, %v937
    %v1426 = vpack.c.b16 %v946, %v942
    %v1427 = vpack.c.b16 %v947, %v943
    %v1428 = vpack.c.b16 %v948, %v944
    %v1429 = vpack.c.b16 %v949, %v945
    %v1430 = vpack.c.b16 %v954, %v950
    %v1431 = vpack.c.b16 %v955, %v951
    %v1432 = vpack.c.b16 %v956, %v952
    %v1433 = vpack.c.b16 %v957, %v953
    %v1434 = vpack.c.b16 %v962, %v958
    %v1435 = vpack.c.b16 %v963, %v959
    %v1436 = vpack.c.b16 %v964, %v960
    %v1437 = vpack.c.b16 %v965, %v961
    %v1438 = vpack.c.b16 %v970, %v966
    %v1439 = vpack.c.b16 %v971, %v967
    %v1440 = vpack.c.b16 %v972, %v968
    %v1441 = vpack.c.b16 %v973, %v969
    %v1442 = vpack.c.b16 %v978, %v974
    %v1443 = vpack.c.b16 %v979, %v975
    %v1444 = vpack.c.b16 %v980, %v976
    %v1445 = vpack.c.b16 %v981, %v977
    %v1446 = vpack.c.b16 %v986, %v982
    %v1447 = vpack.c.b16 %v987, %v983
    %v1448 = vpack.c.b16 %v988, %v984
    %v1449 = vpack.c.b16 %v989, %v985
    %v1450 = vpack.c.b16 %v994, %v990
    %v1451 = vpack.c.b16 %v995, %v991
    %v1452 = vpack.c.b16 %v996, %v992
    %v1453 = vpack.c.b16 %v997, %v993
    %v1454 = vpack.c.b16 %v1002, %v998
    %v1455 = vpack.c.b16 %v1003, %v999
    %v1456 = vpack.c.b16 %v1004, %v1000
    %v1457 = vpack.c.b16 %v1005, %v1001
    %v1458 = vpack.c.b16 %v1010, %v1006
    %v1459 = vpack.c.b16 %v1011, %v1007
    %v1460 = vpack.c.b16 %v1012, %v1008
    %v1461 = vpack.c.b16 %v1013, %v1009
    %v1462 = vpack.c.b16 %v1018, %v1014
    %v1463 = vpack.c.b16 %v1019, %v1015
    %v1464 = vpack.c.b16 %v1020, %v1016
    %v1465 = vpack.c.b16 %v1021, %v1017
    %v1466 = vpack.c.b16 %v1026, %v1022
    %v1467 = vpack.c.b16 %v1027, %v1023
    %v1468 = vpack.c.b16 %v1028, %v1024
    %v1469 = vpack.c.b16 %v1029, %v1025
    %v1470 = vpack.c.b16 %v1034, %v1030
    %v1471 = vpack.c.b16 %v1035, %v1031
    %v1472 = vpack.c.b16 %v1036, %v1032
    %v1473 = vpack.c.b16 %v1037, %v1033
    %v1474 = vpack.c.b16 %v1042, %v1038
    %v1475 = vpack.c.b16 %v1043, %v1039
    %v1476 = vpack.c.b16 %v1044, %v1040
    %v1477 = vpack.c.b16 %v1045, %v1041
    %v1478 = vpack.c.b16 %v1050, %v1046
    %v1479 = vpack.c.b16 %v1051, %v1047
    %v1480 = vpack.c.b16 %v1052, %v1048
    %v1481 = vpack.c.b16 %v1053, %v1049
    %v1482 = vpack.c.b16 %v1058, %v1054
    %v1483 = vpack.c.b16 %v1059, %v1055
    %v1484 = vpack.c.b16 %v1060, %v1056
    %v1485 = vpack.c.b16 %v1061, %v1057
    %v1486 = vpack.c.b16 %v1066, %v1062
    %v1487 = vpack.c.b16 %v1067, %v1063
    %v1488 = vpack.c.b16 %v1068, %v1064
    %v1489 = vpack.c.b16 %v1069, %v1065
    %v1490 = vpack.c.b16 %v1074, %v1070
    %v1491 = vpack.c.b16 %v1075, %v1071
    %v1492 = vpack.c.b16 %v1076, %v1072
    %v1493 = vpack.c.b16 %v1077, %v1073
    %v1494 = vpack.c.b16 %v1082, %v1078
    %v1495 = vpack.c.b16 %v1083, %v1079
    %v1496 = vpack.c.b16 %v1084, %v1080
    %v1497 = vpack.c.b16 %v1085, %v1081
    %v1498 = vpack.c.b16 %v1090, %v1086
    %v1499 = vpack.c.b16 %v1091, %v1087
    %v1500 = vpack.c.b16 %v1092, %v1088
    %v1501 = vpack.c.b16 %v1093, %v1089
    %v1502 = vpack.c.b16 %v1098, %v1094
    %v1503 = vpack.c.b16 %v1099, %v1095
    %v1504 = vpack.c.b16 %v1100, %v1096
    %v1505 = vpack.c.b16 %v1101, %v1097
    %v1506 = vpack.c.b16 %v1106, %v1102
    %v1507 = vpack.c.b16 %v1107, %v1103
    %v1508 = vpack.c.b16 %v1108, %v1104
    %v1509 = vpack.c.b16 %v1109, %v1105
    %v1510 = vpack.c.b16 %v1114, %v1110
    %v1511 = vpack.c.b16 %v1115, %v1111
    %v1512 = vpack.c.b16 %v1116, %v1112
    %v1513 = vpack.c.b16 %v1117, %v1113
    %v1514 = vpack.c.b16 %v1122, %v1118
    %v1515 = vpack.c.b16 %v1123, %v1119
    %v1516 = vpack.c.b16 %v1124, %v1120
    %v1517 = vpack.c.b16 %v1125, %v1121
    %v1518 = vpack.c.b16 %v1130, %v1126
    %v1519 = vpack.c.b16 %v1131, %v1127
    %v1520 = vpack.c.b16 %v1132, %v1128
    %v1521 = vpack.c.b16 %v1133, %v1129
    %v1522 = vpack.c.b16 %v1138, %v1134
    %v1523 = vpack.c.b16 %v1139, %v1135
    %v1524 = vpack.c.b16 %v1140, %v1136
    %v1525 = vpack.c.b16 %v1141, %v1137
    %v1526 = vpack.c.b16 %v1146, %v1142
    %v1527 = vpack.c.b16 %v1147, %v1143
    %v1528 = vpack.c.b16 %v1148, %v1144
    %v1529 = vpack.c.b16 %v1149, %v1145
    %v1530 = vpack.c.b16 %v1154, %v1150
    %v1531 = vpack.c.b16 %v1155, %v1151
    %v1532 = vpack.c.b16 %v1156, %v1152
    %v1533 = vpack.c.b16 %v1157, %v1153
    %v1534 = vpack.c.b16 %v1162, %v1158
    %v1535 = vpack.c.b16 %v1163, %v1159
    %v1536 = vpack.c.b16 %v1164, %v1160
    %v1537 = vpack.c.b16 %v1165, %v1161
    %v1538 = vpack.c.b16 %v1170, %v1166
    %v1539 = vpack.c.b16 %v1171, %v1167
    %v1540 = vpack.c.b16 %v1172, %v1168
    %v1541 = vpack.c.b16 %v1173, %v1169
    %v1542 = vpack.c.b16 %v1178, %v1174
    %v1543 = vpack.c.b16 %v1179, %v1175
    %v1544 = vpack.c.b16 %v1180, %v1176
    %v1545 = vpack.c.b16 %v1181, %v1177
    %v1546 = vpack.c.b16 %v1186, %v1182
    %v1547 = vpack.c.b16 %v1187, %v1183
    %v1548 = vpack.c.b16 %v1188, %v1184
    %v1549 = vpack.c.b16 %v1189, %v1185
    %v1550 = vpack.c.b16 %v1194, %v1190
    %v1551 = vpack.c.b16 %v1195, %v1191
    %v1552 = vpack.c.b16 %v1196, %v1192
    %v1553 = vpack.c.b16 %v1197, %v1193
    %v1554 = vpack.c.b16 %v1202, %v1198
    %v1555 = vpack.c.b16 %v1203, %v1199
    %v1556 = vpack.c.b16 %v1204, %v1200
    %v1557 = vpack.c.b16 %v1205, %v1201
    %v1558 = vpack.c.b16 %v1210, %v1206
    %v1559 = vpack.c.b16 %v1211, %v1207
    %v1560 = vpack.c.b16 %v1212, %v1208
    %v1561 = vpack.c.b16 %v1213, %v1209
    %v1562 = vpack.c.b16 %v1218, %v1214
    %v1563 = vpack.c.b16 %v1219, %v1215
    %v1564 = vpack.c.b16 %v1220, %v1216
    %v1565 = vpack.c.b16 %v1221, %v1217
    %v1566 = vpack.c.b16 %v1226, %v1222
    %v1567 = vpack.c.b16 %v1227, %v1223
    %v1568 = vpack.c.b16 %v1228, %v1224
    %v1569 = vpack.c.b16 %v1229, %v1225
    %v1570 = vpack.c.b16 %v1234, %v1230
    %v1571 = vpack.c.b16 %v1235, %v1231
    %v1572 = vpack.c.b16 %v1236, %v1232
    %v1573 = vpack.c.b16 %v1237, %v1233
    %v1574 = vpack.c.b16 %v1242, %v1238
    %v1575 = vpack.c.b16 %v1243, %v1239
    %v1576 = vpack.c.b16 %v1244, %v1240
    %v1577 = vpack.c.b16 %v1245, %v1241
    %v1578 = vpack.c.b16 %v1250, %v1246
    %v1579 = vpack.c.b16 %v1251, %v1247
    %v1580 = vpack.c.b16 %v1252, %v1248
    %v1581 = vpack.c.b16 %v1253, %v1249
    %v1582 = vpack.c.b16 %v1258, %v1254
    %v1583 = vpack.c.b16 %v1259, %v1255
    %v1584 = vpack.c.b16 %v1260, %v1256
    %v1585 = vpack.c.b16 %v1261, %v1257
    %v1586 = vpack.c.b16 %v1266, %v1262
    %v1587 = vpack.c.b16 %v1267, %v1263
    %v1588 = vpack.c.b16 %v1268, %v1264
    %v1589 = vpack.c.b16 %v1269, %v1265
    %v1590 = vpack.c.b16 %v1274, %v1270
    %v1591 = vpack.c.b16 %v1275, %v1271
    %v1592 = vpack.c.b16 %v1276, %v1272
    %v1593 = vpack.c.b16 %v1277, %v1273
    %v1594 = vpack.c.b16 %v1282, %v1278
    %v1595 = vpack.c.b16 %v1283, %v1279
    %v1596 = vpack.c.b16 %v1284, %v1280
    %v1597 = vpack.c.b16 %v1285, %v1281
    %v1598 = vpack.c.b16 %v1290, %v1286
    %v1599 = vpack.c.b16 %v1291, %v1287
    %v1600 = vpack.c.b16 %v1292, %v1288
    %v1601 = vpack.c.b16 %v1293, %v1289
    %v1602 = vpack.c.b16 %v1298, %v1294
    %v1603 = vpack.c.b16 %v1299, %v1295
    %v1604 = vpack.c.b16 %v1300, %v1296
    %v1605 = vpack.c.b16 %v1301, %v1297
    %v1606 = vpack.c.b16 %v1306, %v1302
    %v1607 = vpack.c.b16 %v1307, %v1303
    %v1608 = vpack.c.b16 %v1308, %v1304
    %v1609 = vpack.c.b16 %v1309, %v1305
    %v1610 = vpack.c.b16 %v1314, %v1310
    %v1611 = vpack.c.b16 %v1315, %v1311
    %v1612 = vpack.c.b16 %v1316, %v1312
    %v1613 = vpack.c.b16 %v1317, %v1313
    %v1614 = vpack.c.b16 %v1322, %v1318
    %v1615 = vpack.c.b16 %v1323, %v1319
    %v1616 = vpack.c.b16 %v1324, %v1320
    %v1617 = vpack.c.b16 %v1325, %v1321
    %v1618 = vpack.c.b16 %v1330, %v1326
    %v1619 = vpack.c.b16 %v1331, %v1327
    %v1620 = vpack.c.b16 %v1332, %v1328
    %v1621 = vpack.c.b16 %v1333, %v1329
    %v1622 = vpack.c.b16 %v1338, %v1334
    %v1623 = vpack.c.b16 %v1339, %v1335
    %v1624 = vpack.c.b16 %v1340, %v1336
    %v1625 = vpack.c.b16 %v1341, %v1337
    %v1626 = vpack.c.b16 %v1346, %v1342
    %v1627 = vpack.c.b16 %v1347, %v1343
    %v1628 = vpack.c.b16 %v1348, %v1344
    %v1629 = vpack.c.b16 %v1349, %v1345
    %v1630 = vpack.c.b16 %v1354, %v1350
    %v1631 = vpack.c.b16 %v1355, %v1351
    %v1632 = vpack.c.b16 %v1356, %v1352
    %v1633 = vpack.c.b16 %v1357, %v1353
    %v1634 = vpack.c.b16 %v1362, %v1358
    %v1635 = vpack.c.b16 %v1363, %v1359
    %v1636 = vpack.c.b16 %v1364, %v1360
    %v1637 = vpack.c.b16 %v1365, %v1361
    %v1638 = vpack.c.b16 %v1370, %v1366
    %v1639 = vpack.c.b16 %v1371, %v1367
    %v1640 = vpack.c.b16 %v1372, %v1368
    %v1641 = vpack.c.b16 %v1373, %v1369
    %v1642 = vpack.c.b16 %v1378, %v1374
    %v1643 = vpack.c.b16 %v1379, %v1375
    %v1644 = vpack.c.b16 %v1380, %v1376
    %v1645 = vpack.c.b16 %v1381, %v1377
    %v1646 = vpack.c.b16 %v1386, %v1382
    %v1647 = vpack.c.b16 %v1387, %v1383
    %v1648 = vpack.c.b16 %v1388, %v1384
    %v1649 = vpack.c.b16 %v1389, %v1385
    %v1650 = vpack.c.b16 %v1394, %v1390
    %v1651 = vpack.c.b16 %v1395, %v1391
    %v1652 = vpack.c.b16 %v1396, %v1392
    %v1653 = vpack.c.b16 %v1397, %v1393
    %1910 = vmatprep.subr.bf16.mxu0 %v1427
    %1911 = vmatpush1.bf16.msra.mxu0 %v1426
    %1912 = vmatprep.subr.bf16.mxu0 %v1423
    %1913 = vmatpush1.bf16.msra.mxu0 %v1422
    %1914 = vmatprep.subr.bf16.mxu0 %v1419
    %1915 = vmatpush1.bf16.msra.mxu0 %v1418
    %1916 = vmatprep.subr.bf16.mxu0 %v1415
    %1917 = vmatpush1.bf16.msra.mxu0 %v1414
    %1918 = vmatprep.subr.bf16.mxu0 %v1411
    %1919 = vmatpush1.bf16.msra.mxu0 %v1410
    %1920 = vmatprep.subr.bf16.mxu0 %v1407
    %1921 = vmatpush1.bf16.msra.mxu0 %v1406
    %1922 = vmatprep.subr.bf16.mxu0 %v1403
    %1923 = vmatpush1.bf16.msra.mxu0 %v1402
    %1924 = vmatprep.subr.bf16.mxu0 %v1399
    %1925 = vmatpush1.bf16.msra.mxu0 %v1398
    %1926 = vmatprep.subr.bf16.mxu0 %v1459
    %1927 = vmatpush2.bf16.msra.mxu0 %v1458
    %1928 = vmatprep.subr.bf16.mxu0 %v1455
    %1929 = vmatpush2.bf16.msra.mxu0 %v1454
    %1930 = vmatprep.subr.bf16.mxu0 %v1451
    %1931 = vmatpush2.bf16.msra.mxu0 %v1450
    %1932 = vmatprep.subr.bf16.mxu0 %v1447
    %1933 = vmatpush2.bf16.msra.mxu0 %v1446
    %1934 = vmatprep.subr.bf16.mxu0 %v1443
    %1935 = vmatpush2.bf16.msra.mxu0 %v1442
    %1936 = vmatprep.subr.bf16.mxu0 %v1439
    %1937 = vmatpush2.bf16.msra.mxu0 %v1438
    %1938 = vmatprep.subr.bf16.mxu0 %v1435
    %1939 = vmatpush2.bf16.msra.mxu0 %v1434
    %1940 = vmatprep.subr.bf16.mxu0 %v1431
    %1941 = vmatpush2.bf16.msra.mxu0 %v1430
    %1942 = vmatprep.mubr.bf16.mxu0 %v345
    %1943 = vmatmul.mubr.bf16.gmra.mxu0 %v344
    %v1944 = vpop.f32.mrf.mxu0
    %v1945 = vadd.f32 %v613, %v1944
    %v1946 = vpop.f32.mrf.mxu0
    %v1947 = vadd.f32 %v617, %v1946
    %v1948 = vpop.f32.mrf.mxu0
    %v1949 = vpop.f32.mrf.mxu0
    %1950 = vdwg.mxu0
    %1951 = vmatprep.subr.bf16.mxu0 %v1491
    %1952 = vmatpush1.bf16.msra.mxu0 %v1490
    %1953 = vmatprep.subr.bf16.mxu0 %v1487
    %1954 = vmatpush1.bf16.msra.mxu0 %v1486
    %1955 = vmatprep.subr.bf16.mxu0 %v1483
    %1956 = vmatpush1.bf16.msra.mxu0 %v1482
    %1957 = vmatprep.subr.bf16.mxu0 %v1479
    %1958 = vmatpush1.bf16.msra.mxu0 %v1478
    %1959 = vmatprep.subr.bf16.mxu0 %v1475
    %1960 = vmatpush1.bf16.msra.mxu0 %v1474
    %1961 = vmatprep.subr.bf16.mxu0 %v1471
    %1962 = vmatpush1.bf16.msra.mxu0 %v1470
    %1963 = vmatprep.subr.bf16.mxu0 %v1467
    %1964 = vmatpush1.bf16.msra.mxu0 %v1466
    %1965 = vmatprep.subr.bf16.mxu0 %v1463
    %1966 = vmatpush1.bf16.msra.mxu0 %v1462
    %1967 = vmatprep.subr.bf16.mxu0 %v1523
    %1968 = vmatpush2.bf16.msra.mxu0 %v1522
    %1969 = vmatprep.subr.bf16.mxu0 %v1519
    %1970 = vmatpush2.bf16.msra.mxu0 %v1518
    %1971 = vmatprep.subr.bf16.mxu0 %v1515
    %1972 = vmatpush2.bf16.msra.mxu0 %v1514
    %1973 = vmatprep.subr.bf16.mxu0 %v1511
    %1974 = vmatpush2.bf16.msra.mxu0 %v1510
    %1975 = vmatprep.subr.bf16.mxu0 %v1507
    %1976 = vmatpush2.bf16.msra.mxu0 %v1506
    %1977 = vmatprep.subr.bf16.mxu0 %v1503
    %1978 = vmatpush2.bf16.msra.mxu0 %v1502
    %1979 = vmatprep.subr.bf16.mxu0 %v1499
    %1980 = vmatpush2.bf16.msra.mxu0 %v1498
    %1981 = vmatprep.subr.bf16.mxu0 %v1495
    %1982 = vmatpush2.bf16.msra.mxu0 %v1494
    %1983 = vmatprep.mubr.bf16.mxu0 %v347
    %1984 = vmatmul.mubr.bf16.gmra.mxu0 %v346
    %v1985 = vpop.f32.mrf.mxu0
    %v1986 = vadd.f32 %v1945, %v1985
    %v1987 = vpop.f32.mrf.mxu0
    %v1988 = vadd.f32 %v1947, %v1987
    %v1989 = vpop.f32.mrf.mxu0
    %v1990 = vpop.f32.mrf.mxu0
    %1991 = vdwg.mxu0
    %1992 = vmatprep.subr.bf16.mxu0 %v1555
    %1993 = vmatpush1.bf16.msra.mxu0 %v1554
    %1994 = vmatprep.subr.bf16.mxu0 %v1551
    %1995 = vmatpush1.bf16.msra.mxu0 %v1550
    %1996 = vmatprep.subr.bf16.mxu0 %v1547
    %1997 = vmatpush1.bf16.msra.mxu0 %v1546
    %1998 = vmatprep.subr.bf16.mxu0 %v1543
    %1999 = vmatpush1.bf16.msra.mxu0 %v1542
    %2000 = vmatprep.subr.bf16.mxu0 %v1539
    %2001 = vmatpush1.bf16.msra.mxu0 %v1538
    %2002 = vmatprep.subr.bf16.mxu0 %v1535
    %2003 = vmatpush1.bf16.msra.mxu0 %v1534
    %2004 = vmatprep.subr.bf16.mxu0 %v1531
    %2005 = vmatpush1.bf16.msra.mxu0 %v1530
    %2006 = vmatprep.subr.bf16.mxu0 %v1527
    %2007 = vmatpush1.bf16.msra.mxu0 %v1526
    %2008 = vmatprep.subr.bf16.mxu0 %v1587
    %2009 = vmatpush2.bf16.msra.mxu0 %v1586
    %2010 = vmatprep.subr.bf16.mxu0 %v1583
    %2011 = vmatpush2.bf16.msra.mxu0 %v1582
    %2012 = vmatprep.subr.bf16.mxu0 %v1579
    %2013 = vmatpush2.bf16.msra.mxu0 %v1578
    %2014 = vmatprep.subr.bf16.mxu0 %v1575
    %2015 = vmatpush2.bf16.msra.mxu0 %v1574
    %2016 = vmatprep.subr.bf16.mxu0 %v1571
    %2017 = vmatpush2.bf16.msra.mxu0 %v1570
    %2018 = vmatprep.subr.bf16.mxu0 %v1567
    %2019 = vmatpush2.bf16.msra.mxu0 %v1566
    %2020 = vmatprep.subr.bf16.mxu0 %v1563
    %2021 = vmatpush2.bf16.msra.mxu0 %v1562
    %2022 = vmatprep.subr.bf16.mxu0 %v1559
    %2023 = vmatpush2.bf16.msra.mxu0 %v1558
    %2024 = vmatprep.mubr.bf16.mxu0 %v349
    %2025 = vmatmul.mubr.bf16.gmra.mxu0 %v348
    %v2026 = vpop.f32.mrf.mxu0
    %v2027 = vadd.f32 %v1986, %v2026
    %v2028 = vpop.f32.mrf.mxu0
    %v2029 = vadd.f32 %v1988, %v2028
    %v2030 = vpop.f32.mrf.mxu0
    %v2031 = vpop.f32.mrf.mxu0
    %2032 = vdwg.mxu0
    %2033 = vmatprep.subr.bf16.mxu0 %v1619
    %2034 = vmatpush1.bf16.msra.mxu0 %v1618
    %2035 = vmatprep.subr.bf16.mxu0 %v1615
    %2036 = vmatpush1.bf16.msra.mxu0 %v1614
    %2037 = vmatprep.subr.bf16.mxu0 %v1611
    %2038 = vmatpush1.bf16.msra.mxu0 %v1610
    %2039 = vmatprep.subr.bf16.mxu0 %v1607
    %2040 = vmatpush1.bf16.msra.mxu0 %v1606
    %2041 = vmatprep.subr.bf16.mxu0 %v1603
    %2042 = vmatpush1.bf16.msra.mxu0 %v1602
    %2043 = vmatprep.subr.bf16.mxu0 %v1599
    %2044 = vmatpush1.bf16.msra.mxu0 %v1598
    %2045 = vmatprep.subr.bf16.mxu0 %v1595
    %2046 = vmatpush1.bf16.msra.mxu0 %v1594
    %2047 = vmatprep.subr.bf16.mxu0 %v1591
    %2048 = vmatpush1.bf16.msra.mxu0 %v1590
    %2049 = vmatprep.subr.bf16.mxu0 %v1651
    %2050 = vmatpush2.bf16.msra.mxu0 %v1650
    %2051 = vmatprep.subr.bf16.mxu0 %v1647
    %2052 = vmatpush2.bf16.msra.mxu0 %v1646
    %2053 = vmatprep.subr.bf16.mxu0 %v1643
    %2054 = vmatpush2.bf16.msra.mxu0 %v1642
    %2055 = vmatprep.subr.bf16.mxu0 %v1639
    %2056 = vmatpush2.bf16.msra.mxu0 %v1638
    %2057 = vmatprep.subr.bf16.mxu0 %v1635
    %2058 = vmatpush2.bf16.msra.mxu0 %v1634
    %2059 = vmatprep.subr.bf16.mxu0 %v1631
    %2060 = vmatpush2.bf16.msra.mxu0 %v1630
    %2061 = vmatprep.subr.bf16.mxu0 %v1627
    %2062 = vmatpush2.bf16.msra.mxu0 %v1626
    %2063 = vmatprep.subr.bf16.mxu0 %v1623
    %2064 = vmatpush2.bf16.msra.mxu0 %v1622
    %2065 = vmatprep.mubr.bf16.mxu0 %v351
    %2066 = vmatmul.mubr.bf16.gmra.mxu0 %v350
    %v2067 = vpop.f32.mrf.mxu0
    %v2068 = vadd.f32 %v2027, %v2067
    %v2069 = vpop.f32.mrf.mxu0
    %v2070 = vadd.f32 %v2029, %v2069
    %v2071 = vpop.f32.mrf.mxu0
    %v2072 = vpop.f32.mrf.mxu0
    %2073 = vdwg.mxu0
    %2074 = vmatprep.subr.bf16.mxu0 %v1429
    %2075 = vmatpush1.bf16.msra.mxu0 %v1428
    %2076 = vmatprep.subr.bf16.mxu0 %v1425
    %2077 = vmatpush1.bf16.msra.mxu0 %v1424
    %2078 = vmatprep.subr.bf16.mxu0 %v1421
    %2079 = vmatpush1.bf16.msra.mxu0 %v1420
    %2080 = vmatprep.subr.bf16.mxu0 %v1417
    %2081 = vmatpush1.bf16.msra.mxu0 %v1416
    %2082 = vmatprep.subr.bf16.mxu0 %v1413
    %2083 = vmatpush1.bf16.msra.mxu0 %v1412
    %2084 = vmatprep.subr.bf16.mxu0 %v1409
    %2085 = vmatpush1.bf16.msra.mxu0 %v1408
    %2086 = vmatprep.subr.bf16.mxu0 %v1405
    %2087 = vmatpush1.bf16.msra.mxu0 %v1404
    %2088 = vmatprep.subr.bf16.mxu0 %v1401
    %2089 = vmatpush1.bf16.msra.mxu0 %v1400
    %2090 = vmatprep.subr.bf16.mxu0 %v1461
    %2091 = vmatpush2.bf16.msra.mxu0 %v1460
    %2092 = vmatprep.subr.bf16.mxu0 %v1457
    %2093 = vmatpush2.bf16.msra.mxu0 %v1456
    %2094 = vmatprep.subr.bf16.mxu0 %v1453
    %2095 = vmatpush2.bf16.msra.mxu0 %v1452
    %2096 = vmatprep.subr.bf16.mxu0 %v1449
    %2097 = vmatpush2.bf16.msra.mxu0 %v1448
    %2098 = vmatprep.subr.bf16.mxu0 %v1445
    %2099 = vmatpush2.bf16.msra.mxu0 %v1444
    %2100 = vmatprep.subr.bf16.mxu0 %v1441
    %2101 = vmatpush2.bf16.msra.mxu0 %v1440
    %2102 = vmatprep.subr.bf16.mxu0 %v1437
    %2103 = vmatpush2.bf16.msra.mxu0 %v1436
    %2104 = vmatprep.subr.bf16.mxu0 %v1433
    %2105 = vmatpush2.bf16.msra.mxu0 %v1432
    %2106 = vmatprep.mubr.bf16.mxu0 %v345
    %2107 = vmatmul.mubr.bf16.gmra.mxu0 %v344
    %v2108 = vpop.f32.mrf.mxu0
    %v2109 = vadd.f32 %v621, %v2108
    %v2110 = vpop.f32.mrf.mxu0
    %v2111 = vadd.f32 %v625, %v2110
    %v2112 = vpop.f32.mrf.mxu0
    %v2113 = vpop.f32.mrf.mxu0
    %2114 = vdwg.mxu0
    %2115 = vmatprep.subr.bf16.mxu0 %v1493
    %2116 = vmatpush1.bf16.msra.mxu0 %v1492
    %2117 = vmatprep.subr.bf16.mxu0 %v1489
    %2118 = vmatpush1.bf16.msra.mxu0 %v1488
    %2119 = vmatprep.subr.bf16.mxu0 %v1485
    %2120 = vmatpush1.bf16.msra.mxu0 %v1484
    %2121 = vmatprep.subr.bf16.mxu0 %v1481
    %2122 = vmatpush1.bf16.msra.mxu0 %v1480
    %2123 = vmatprep.subr.bf16.mxu0 %v1477
    %2124 = vmatpush1.bf16.msra.mxu0 %v1476
    %2125 = vmatprep.subr.bf16.mxu0 %v1473
    %2126 = vmatpush1.bf16.msra.mxu0 %v1472
    %2127 = vmatprep.subr.bf16.mxu0 %v1469
    %2128 = vmatpush1.bf16.msra.mxu0 %v1468
    %2129 = vmatprep.subr.bf16.mxu0 %v1465
    %2130 = vmatpush1.bf16.msra.mxu0 %v1464
    %2131 = vmatprep.subr.bf16.mxu0 %v1525
    %2132 = vmatpush2.bf16.msra.mxu0 %v1524
    %2133 = vmatprep.subr.bf16.mxu0 %v1521
    %2134 = vmatpush2.bf16.msra.mxu0 %v1520
    %2135 = vmatprep.subr.bf16.mxu0 %v1517
    %2136 = vmatpush2.bf16.msra.mxu0 %v1516
    %2137 = vmatprep.subr.bf16.mxu0 %v1513
    %2138 = vmatpush2.bf16.msra.mxu0 %v1512
    %2139 = vmatprep.subr.bf16.mxu0 %v1509
    %2140 = vmatpush2.bf16.msra.mxu0 %v1508
    %2141 = vmatprep.subr.bf16.mxu0 %v1505
    %2142 = vmatpush2.bf16.msra.mxu0 %v1504
    %2143 = vmatprep.subr.bf16.mxu0 %v1501
    %2144 = vmatpush2.bf16.msra.mxu0 %v1500
    %2145 = vmatprep.subr.bf16.mxu0 %v1497
    %2146 = vmatpush2.bf16.msra.mxu0 %v1496
    %2147 = vmatprep.mubr.bf16.mxu0 %v347
    %2148 = vmatmul.mubr.bf16.gmra.mxu0 %v346
    %v2149 = vpop.f32.mrf.mxu0
    %v2150 = vadd.f32 %v2109, %v2149
    %v2151 = vpop.f32.mrf.mxu0
    %v2152 = vadd.f32 %v2111, %v2151
    %v2153 = vpop.f32.mrf.mxu0
    %v2154 = vpop.f32.mrf.mxu0
    %2155 = vdwg.mxu0
    %2156 = vmatprep.subr.bf16.mxu0 %v1557
    %2157 = vmatpush1.bf16.msra.mxu0 %v1556
    %2158 = vmatprep.subr.bf16.mxu0 %v1553
    %2159 = vmatpush1.bf16.msra.mxu0 %v1552
    %2160 = vmatprep.subr.bf16.mxu0 %v1549
    %2161 = vmatpush1.bf16.msra.mxu0 %v1548
    %2162 = vmatprep.subr.bf16.mxu0 %v1545
    %2163 = vmatpush1.bf16.msra.mxu0 %v1544
    %2164 = vmatprep.subr.bf16.mxu0 %v1541
    %2165 = vmatpush1.bf16.msra.mxu0 %v1540
    %2166 = vmatprep.subr.bf16.mxu0 %v1537
    %2167 = vmatpush1.bf16.msra.mxu0 %v1536
    %2168 = vmatprep.subr.bf16.mxu0 %v1533
    %2169 = vmatpush1.bf16.msra.mxu0 %v1532
    %2170 = vmatprep.subr.bf16.mxu0 %v1529
    %2171 = vmatpush1.bf16.msra.mxu0 %v1528
    %2172 = vmatprep.subr.bf16.mxu0 %v1589
    %2173 = vmatpush2.bf16.msra.mxu0 %v1588
    %2174 = vmatprep.subr.bf16.mxu0 %v1585
    %2175 = vmatpush2.bf16.msra.mxu0 %v1584
    %2176 = vmatprep.subr.bf16.mxu0 %v1581
    %2177 = vmatpush2.bf16.msra.mxu0 %v1580
    %2178 = vmatprep.subr.bf16.mxu0 %v1577
    %2179 = vmatpush2.bf16.msra.mxu0 %v1576
    %2180 = vmatprep.subr.bf16.mxu0 %v1573
    %2181 = vmatpush2.bf16.msra.mxu0 %v1572
    %2182 = vmatprep.subr.bf16.mxu0 %v1569
    %2183 = vmatpush2.bf16.msra.mxu0 %v1568
    %2184 = vmatprep.subr.bf16.mxu0 %v1565
    %2185 = vmatpush2.bf16.msra.mxu0 %v1564
    %2186 = vmatprep.subr.bf16.mxu0 %v1561
    %2187 = vmatpush2.bf16.msra.mxu0 %v1560
    %2188 = vmatprep.mubr.bf16.mxu0 %v349
    %2189 = vmatmul.mubr.bf16.gmra.mxu0 %v348
    %v2190 = vpop.f32.mrf.mxu0
    %v2191 = vadd.f32 %v2150, %v2190
    %v2192 = vpop.f32.mrf.mxu0
    %v2193 = vadd.f32 %v2152, %v2192
    %v2194 = vpop.f32.mrf.mxu0
    %v2195 = vpop.f32.mrf.mxu0
    %2196 = vdwg.mxu0
    %2197 = vmatprep.subr.bf16.mxu0 %v1621
    %2198 = vmatpush1.bf16.msra.mxu0 %v1620
    %2199 = vmatprep.subr.bf16.mxu0 %v1617
    %2200 = vmatpush1.bf16.msra.mxu0 %v1616
    %2201 = vmatprep.subr.bf16.mxu0 %v1613
    %2202 = vmatpush1.bf16.msra.mxu0 %v1612
    %2203 = vmatprep.subr.bf16.mxu0 %v1609
    %2204 = vmatpush1.bf16.msra.mxu0 %v1608
    %2205 = vmatprep.subr.bf16.mxu0 %v1605
    %2206 = vmatpush1.bf16.msra.mxu0 %v1604
    %2207 = vmatprep.subr.bf16.mxu0 %v1601
    %2208 = vmatpush1.bf16.msra.mxu0 %v1600
    %2209 = vmatprep.subr.bf16.mxu0 %v1597
    %2210 = vmatpush1.bf16.msra.mxu0 %v1596
    %2211 = vmatprep.subr.bf16.mxu0 %v1593
    %2212 = vmatpush1.bf16.msra.mxu0 %v1592
    %2213 = vmatprep.subr.bf16.mxu0 %v1653
    %2214 = vmatpush2.bf16.msra.mxu0 %v1652
    %2215 = vmatprep.subr.bf16.mxu0 %v1649
    %2216 = vmatpush2.bf16.msra.mxu0 %v1648
    %2217 = vmatprep.subr.bf16.mxu0 %v1645
    %2218 = vmatpush2.bf16.msra.mxu0 %v1644
    %2219 = vmatprep.subr.bf16.mxu0 %v1641
    %2220 = vmatpush2.bf16.msra.mxu0 %v1640
    %2221 = vmatprep.subr.bf16.mxu0 %v1637
    %2222 = vmatpush2.bf16.msra.mxu0 %v1636
    %2223 = vmatprep.subr.bf16.mxu0 %v1633
    %2224 = vmatpush2.bf16.msra.mxu0 %v1632
    %2225 = vmatprep.subr.bf16.mxu0 %v1629
    %2226 = vmatpush2.bf16.msra.mxu0 %v1628
    %2227 = vmatprep.subr.bf16.mxu0 %v1625
    %2228 = vmatpush2.bf16.msra.mxu0 %v1624
    %2229 = vmatprep.mubr.bf16.mxu0 %v351
    %2230 = vmatmul.mubr.bf16.gmra.mxu0 %v350
    %v2231 = vpop.f32.mrf.mxu0
    %v2232 = vadd.f32 %v2191, %v2231
    %v2233 = vpop.f32.mrf.mxu0
    %v2234 = vadd.f32 %v2193, %v2233
    %v2235 = vpop.f32.mrf.mxu0
    %v2236 = vpop.f32.mrf.mxu0
    %2237 = vdwg.mxu0
    %v2238 = vmax.f32 %v2068, 0.0
    %v2239 = vmax.f32 %v2070, 0.0
    %v2240 = vmax.f32 %v2232, 0.0
    %v2241 = vmax.f32 %v2234, 0.0
    %v2242 = vpack.c.bf16 %v2238, %v2238
    %v2243 = vpack.c.bf16 %v2239, %v2239
    %v2244 = vpack.c.bf16 %v2240, %v2240
    %v2245 = vpack.c.bf16 %v2241, %v2241
    %v2246 = vld [vmem:[%s5] sm:$0xf]
    %v2247 = vld [vmem:[%s5 + $0x4] sm:$0xf]
    %v2248 = vld [vmem:[%s5 + $0x8] sm:$0xf]
    %v2249 = vld [vmem:[%s5 + $0xc] sm:$0xf]
    %v2250 = vld [vmem:[%s5 + $0x10] sm:$0xf]
    %v2251 = vld [vmem:[%s5 + $0x14] sm:$0xf]
    %v2252 = vld [vmem:[%s5 + $0x18] sm:$0xf]
    %v2253 = vld [vmem:[%s5 + $0x1c] sm:$0xf]
    %v2254 = vld [vmem:[%s5 + $0x20] sm:$0xf]
    %v2255 = vld [vmem:[%s5 + $0x24] sm:$0xf]
    %v2256 = vld [vmem:[%s5 + $0x28] sm:$0xf]
    %v2257 = vld [vmem:[%s5 + $0x2c] sm:$0xf]
    %v2258 = vld [vmem:[%s5 + $0x30] sm:$0xf]
    %v2259 = vld [vmem:[%s5 + $0x34] sm:$0xf]
    %v2260 = vld [vmem:[%s5 + $0x38] sm:$0xf]
    %v2261 = vld [vmem:[%s5 + $0x3c] sm:$0xf]
    %v2262 = vld [vmem:[%s5 + $0x40] sm:$0xf]
    %v2263 = vld [vmem:[%s5 + $0x44] sm:$0xf]
    %v2264 = vld [vmem:[%s5 + $0x48] sm:$0xf]
    %v2265 = vld [vmem:[%s5 + $0x4c] sm:$0xf]
    %v2266 = vld [vmem:[%s5 + $0x50] sm:$0xf]
    %v2267 = vld [vmem:[%s5 + $0x54] sm:$0xf]
    %v2268 = vld [vmem:[%s5 + $0x58] sm:$0xf]
    %v2269 = vld [vmem:[%s5 + $0x5c] sm:$0xf]
    %v2270 = vld [vmem:[%s5 + $0x60] sm:$0xf]
    %v2271 = vld [vmem:[%s5 + $0x64] sm:$0xf]
    %v2272 = vld [vmem:[%s5 + $0x68] sm:$0xf]
    %v2273 = vld [vmem:[%s5 + $0x6c] sm:$0xf]
    %v2274 = vld [vmem:[%s5 + $0x70] sm:$0xf]
    %v2275 = vld [vmem:[%s5 + $0x74] sm:$0xf]
    %v2276 = vld [vmem:[%s5 + $0x78] sm:$0xf]
    %v2277 = vld [vmem:[%s5 + $0x7c] sm:$0xf]
    %v2278 = vld [vmem:[%s5 + $0x80] sm:$0xf]
    %v2279 = vld [vmem:[%s5 + $0x84] sm:$0xf]
    %v2280 = vld [vmem:[%s5 + $0x88] sm:$0xf]
    %v2281 = vld [vmem:[%s5 + $0x8c] sm:$0xf]
    %v2282 = vld [vmem:[%s5 + $0x90] sm:$0xf]
    %v2283 = vld [vmem:[%s5 + $0x94] sm:$0xf]
    %v2284 = vld [vmem:[%s5 + $0x98] sm:$0xf]
    %v2285 = vld [vmem:[%s5 + $0x9c] sm:$0xf]
    %v2286 = vld [vmem:[%s5 + $0xa0] sm:$0xf]
    %v2287 = vld [vmem:[%s5 + $0xa4] sm:$0xf]
    %v2288 = vld [vmem:[%s5 + $0xa8] sm:$0xf]
    %v2289 = vld [vmem:[%s5 + $0xac] sm:$0xf]
    %v2290 = vld [vmem:[%s5 + $0xb0] sm:$0xf]
    %v2291 = vld [vmem:[%s5 + $0xb4] sm:$0xf]
    %v2292 = vld [vmem:[%s5 + $0xb8] sm:$0xf]
    %v2293 = vld [vmem:[%s5 + $0xbc] sm:$0xf]
    %v2294 = vld [vmem:[%s5 + $0xc0] sm:$0xf]
    %v2295 = vld [vmem:[%s5 + $0xc4] sm:$0xf]
    %v2296 = vld [vmem:[%s5 + $0xc8] sm:$0xf]
    %v2297 = vld [vmem:[%s5 + $0xcc] sm:$0xf]
    %v2298 = vld [vmem:[%s5 + $0xd0] sm:$0xf]
    %v2299 = vld [vmem:[%s5 + $0xd4] sm:$0xf]
    %v2300 = vld [vmem:[%s5 + $0xd8] sm:$0xf]
    %v2301 = vld [vmem:[%s5 + $0xdc] sm:$0xf]
    %v2302 = vld [vmem:[%s5 + $0xe0] sm:$0xf]
    %v2303 = vld [vmem:[%s5 + $0xe4] sm:$0xf]
    %v2304 = vld [vmem:[%s5 + $0xe8] sm:$0xf]
    %v2305 = vld [vmem:[%s5 + $0xec] sm:$0xf]
    %v2306 = vld [vmem:[%s5 + $0xf0] sm:$0xf]
    %v2307 = vld [vmem:[%s5 + $0xf4] sm:$0xf]
    %v2308 = vld [vmem:[%s5 + $0xf8] sm:$0xf]
    %v2309 = vld [vmem:[%s5 + $0xfc] sm:$0xf]
    %v2310 = vld [vmem:[%s6] sm:$0x1]
    %v2312 = vlaneseq
    %v2313 = vshrl.u32 %v2312, 7
    %v2314 = vsub.s32 0, %v2313
    %v2315 = vrot.slane %v2310, %v2314
    %v2381 = vunpack.c.l.b16 %v2246
    %v2382 = vunpack.c.l.b16 %v2247
    %v2383 = vunpack.c.l.b16 %v2248
    %v2384 = vunpack.c.l.b16 %v2249
    %v2385 = vunpack.c.l.b16 %v2250
    %v2386 = vunpack.c.l.b16 %v2251
    %v2387 = vunpack.c.l.b16 %v2252
    %v2388 = vunpack.c.l.b16 %v2253
    %v2389 = vunpack.c.l.b16 %v2254
    %v2390 = vunpack.c.l.b16 %v2255
    %v2391 = vunpack.c.l.b16 %v2256
    %v2392 = vunpack.c.l.b16 %v2257
    %v2393 = vunpack.c.l.b16 %v2258
    %v2394 = vunpack.c.l.b16 %v2259
    %v2395 = vunpack.c.l.b16 %v2260
    %v2396 = vunpack.c.l.b16 %v2261
    %v2397 = vunpack.c.l.b16 %v2262
    %v2398 = vunpack.c.l.b16 %v2263
    %v2399 = vunpack.c.l.b16 %v2264
    %v2400 = vunpack.c.l.b16 %v2265
    %v2401 = vunpack.c.l.b16 %v2266
    %v2402 = vunpack.c.l.b16 %v2267
    %v2403 = vunpack.c.l.b16 %v2268
    %v2404 = vunpack.c.l.b16 %v2269
    %v2405 = vunpack.c.l.b16 %v2270
    %v2406 = vunpack.c.l.b16 %v2271
    %v2407 = vunpack.c.l.b16 %v2272
    %v2408 = vunpack.c.l.b16 %v2273
    %v2409 = vunpack.c.l.b16 %v2274
    %v2410 = vunpack.c.l.b16 %v2275
    %v2411 = vunpack.c.l.b16 %v2276
    %v2412 = vunpack.c.l.b16 %v2277
    %v2413 = vunpack.c.l.b16 %v2278
    %v2414 = vunpack.c.l.b16 %v2279
    %v2415 = vunpack.c.l.b16 %v2280
    %v2416 = vunpack.c.l.b16 %v2281
    %v2417 = vunpack.c.l.b16 %v2282
    %v2418 = vunpack.c.l.b16 %v2283
    %v2419 = vunpack.c.l.b16 %v2284
    %v2420 = vunpack.c.l.b16 %v2285
    %v2421 = vunpack.c.l.b16 %v2286
    %v2422 = vunpack.c.l.b16 %v2287
    %v2423 = vunpack.c.l.b16 %v2288
    %v2424 = vunpack.c.l.b16 %v2289
    %v2425 = vunpack.c.l.b16 %v2290
    %v2426 = vunpack.c.l.b16 %v2291
    %v2427 = vunpack.c.l.b16 %v2292
    %v2428 = vunpack.c.l.b16 %v2293
    %v2429 = vunpack.c.l.b16 %v2294
    %v2430 = vunpack.c.l.b16 %v2295
    %v2431 = vunpack.c.l.b16 %v2296
    %v2432 = vunpack.c.l.b16 %v2297
    %v2433 = vunpack.c.l.b16 %v2298
    %v2434 = vunpack.c.l.b16 %v2299
    %v2435 = vunpack.c.l.b16 %v2300
    %v2436 = vunpack.c.l.b16 %v2301
    %v2437 = vunpack.c.l.b16 %v2302
    %v2438 = vunpack.c.l.b16 %v2303
    %v2439 = vunpack.c.l.b16 %v2304
    %v2440 = vunpack.c.l.b16 %v2305
    %v2441 = vunpack.c.l.b16 %v2306
    %v2442 = vunpack.c.l.b16 %v2307
    %v2443 = vunpack.c.l.b16 %v2308
    %v2444 = vunpack.c.l.b16 %v2309
    %v2445 = vpack.c.b16 %v2382, %v2381
    %v2446 = vpack.c.b16 %v2384, %v2383
    %v2447 = vpack.c.b16 %v2386, %v2385
    %v2448 = vpack.c.b16 %v2388, %v2387
    %v2449 = vpack.c.b16 %v2390, %v2389
    %v2450 = vpack.c.b16 %v2392, %v2391
    %v2451 = vpack.c.b16 %v2394, %v2393
    %v2452 = vpack.c.b16 %v2396, %v2395
    %v2453 = vpack.c.b16 %v2398, %v2397
    %v2454 = vpack.c.b16 %v2400, %v2399
    %v2455 = vpack.c.b16 %v2402, %v2401
    %v2456 = vpack.c.b16 %v2404, %v2403
    %v2457 = vpack.c.b16 %v2406, %v2405
    %v2458 = vpack.c.b16 %v2408, %v2407
    %v2459 = vpack.c.b16 %v2410, %v2409
    %v2460 = vpack.c.b16 %v2412, %v2411
    %v2461 = vpack.c.b16 %v2414, %v2413
    %v2462 = vpack.c.b16 %v2416, %v2415
    %v2463 = vpack.c.b16 %v2418, %v2417
    %v2464 = vpack.c.b16 %v2420, %v2419
    %v2465 = vpack.c.b16 %v2422, %v2421
    %v2466 = vpack.c.b16 %v2424, %v2423
    %v2467 = vpack.c.b16 %v2426, %v2425
    %v2468 = vpack.c.b16 %v2428, %v2427
    %v2469 = vpack.c.b16 %v2430, %v2429
    %v2470 = vpack.c.b16 %v2432, %v2431
    %v2471 = vpack.c.b16 %v2434, %v2433
    %v2472 = vpack.c.b16 %v2436, %v2435
    %v2473 = vpack.c.b16 %v2438, %v2437
    %v2474 = vpack.c.b16 %v2440, %v2439
    %v2475 = vpack.c.b16 %v2442, %v2441
    %v2476 = vpack.c.b16 %v2444, %v2443
    %2509 = vmatprep.subr.bf16.mxu0 0
    %2510 = vmatpush1.bf16.msra.mxu0 %v2452
    %2511 = vmatprep.subr.bf16.mxu0 0
    %2512 = vmatpush1.bf16.msra.mxu0 %v2451
    %2513 = vmatprep.subr.bf16.mxu0 0
    %2514 = vmatpush1.bf16.msra.mxu0 %v2450
    %2515 = vmatprep.subr.bf16.mxu0 0
    %2516 = vmatpush1.bf16.msra.mxu0 %v2449
    %2517 = vmatprep.subr.bf16.mxu0 0
    %2518 = vmatpush1.bf16.msra.mxu0 %v2448
    %2519 = vmatprep.subr.bf16.mxu0 0
    %2520 = vmatpush1.bf16.msra.mxu0 %v2447
    %2521 = vmatprep.subr.bf16.mxu0 0
    %2522 = vmatpush1.bf16.msra.mxu0 %v2446
    %2523 = vmatprep.subr.bf16.mxu0 0
    %2524 = vmatpush1.bf16.msra.mxu0 %v2445
    %2525 = vmatprep.subr.bf16.mxu0 0
    %2526 = vmatpush2.bf16.msra.mxu0 %v2460
    %2527 = vmatprep.subr.bf16.mxu0 0
    %2528 = vmatpush2.bf16.msra.mxu0 %v2459
    %2529 = vmatprep.subr.bf16.mxu0 0
    %2530 = vmatpush2.bf16.msra.mxu0 %v2458
    %2531 = vmatprep.subr.bf16.mxu0 0
    %2532 = vmatpush2.bf16.msra.mxu0 %v2457
    %2533 = vmatprep.subr.bf16.mxu0 0
    %2534 = vmatpush2.bf16.msra.mxu0 %v2456
    %2535 = vmatprep.subr.bf16.mxu0 0
    %2536 = vmatpush2.bf16.msra.mxu0 %v2455
    %2537 = vmatprep.subr.bf16.mxu0 0
    %2538 = vmatpush2.bf16.msra.mxu0 %v2454
    %2539 = vmatprep.subr.bf16.mxu0 0
    %2540 = vmatpush2.bf16.msra.mxu0 %v2453
    %2541 = vmatprep.mubr.bf16.mxu0 %v2243
    %2542 = vmatmul.mubr.bf16.gmra.mxu0 %v2242
    %v2543 = vpop.f32.mrf.mxu0
    %v2544 = vadd.f32 %v2315, %v2543
    %v2545 = vpop.f32.mrf.mxu0
    %v2546 = vpop.f32.mrf.mxu0
    %v2547 = vpop.f32.mrf.mxu0
    %2548 = vdwg.mxu0
    %2549 = vmatprep.subr.bf16.mxu0 0
    %2550 = vmatpush1.bf16.msra.mxu0 %v2468
    %2551 = vmatprep.subr.bf16.mxu0 0
    %2552 = vmatpush1.bf16.msra.mxu0 %v2467
    %2553 = vmatprep.subr.bf16.mxu0 0
    %2554 = vmatpush1.bf16.msra.mxu0 %v2466
    %2555 = vmatprep.subr.bf16.mxu0 0
    %2556 = vmatpush1.bf16.msra.mxu0 %v2465
    %2557 = vmatprep.subr.bf16.mxu0 0
    %2558 = vmatpush1.bf16.msra.mxu0 %v2464
    %2559 = vmatprep.subr.bf16.mxu0 0
    %2560 = vmatpush1.bf16.msra.mxu0 %v2463
    %2561 = vmatprep.subr.bf16.mxu0 0
    %2562 = vmatpush1.bf16.msra.mxu0 %v2462
    %2563 = vmatprep.subr.bf16.mxu0 0
    %2564 = vmatpush1.bf16.msra.mxu0 %v2461
    %2565 = vmatprep.subr.bf16.mxu0 0
    %2566 = vmatpush2.bf16.msra.mxu0 %v2476
    %2567 = vmatprep.subr.bf16.mxu0 0
    %2568 = vmatpush2.bf16.msra.mxu0 %v2475
    %2569 = vmatprep.subr.bf16.mxu0 0
    %2570 = vmatpush2.bf16.msra.mxu0 %v2474
    %2571 = vmatprep.subr.bf16.mxu0 0
    %2572 = vmatpush2.bf16.msra.mxu0 %v2473
    %2573 = vmatprep.subr.bf16.mxu0 0
    %2574 = vmatpush2.bf16.msra.mxu0 %v2472
    %2575 = vmatprep.subr.bf16.mxu0 0
    %2576 = vmatpush2.bf16.msra.mxu0 %v2471
    %2577 = vmatprep.subr.bf16.mxu0 0
    %2578 = vmatpush2.bf16.msra.mxu0 %v2470
    %2579 = vmatprep.subr.bf16.mxu0 0
    %2580 = vmatpush2.bf16.msra.mxu0 %v2469
    %2581 = vmatprep.mubr.bf16.mxu0 %v2245
    %2582 = vmatmul.mubr.bf16.gmra.mxu0 %v2244
    %v2583 = vpop.f32.mrf.mxu0
    %v2584 = vadd.f32 %v2544, %v2583
    %v2585 = vpop.f32.mrf.mxu0
    %v2586 = vpop.f32.mrf.mxu0
    %v2587 = vpop.f32.mrf.mxu0
    %2588 = vdwg.mxu0
    %vm2589 = vcmask 254976
    %v2590 = vsel %vm2589, %v2584, -inf
    %2591 = vmax.xlane.f32.xlu0 %v2590
    %v2592 = vpop.xlane.xlu0 %2591
    %v2593 = vsub.f32 %v2584, %v2592
    %v2594 = vmul.f32 %v2593, 1.442695
    %v2595 = vpow.pop %v2594
    %v2596 = vsel %vm2589, %v2595, 0.0
    %2597 = vadd.xlane.f32.xlu0 %v2596
    %v2598 = vpop.xlane.xlu0 %2597
    %v2599 = vrcp.pop %v2598
    %v2600 = vmul.f32 %v2595, %v2599
    %2601 = vst.msk [vmem:[#allocation2] sm:$0x3] %vm2589, %v2600
    // Predicated region
    $region30: #{forward.13} parent=1 // pred_check
      _
    $region31: #{forward.13} parent=1 // pred_check_branch
      %2603 = sbr.rel (0) target = $region33
    $region32: #{forward.13} parent=1 // pred_region
      %s2605 = ssub.s32 32, 32
      %2606 = vsyncadd [#allocation3], %s2605
      %s2608 = sshll.u32 [#allocation2], 4
      %s2609 = int_to_ptr.vmem [resolvable:$true] %s2608
      %2611 = dma.vmem_to_hbm [thread:$0]  %s2609, 32, %s7, [#allocation3]
    $region33: #{forward.13} parent=1 // pred_fallthru
      _
    // Predicated region
    $region34: #{forward.13} parent=1 // pred_check
      _
    $region35: #{forward.13} parent=1 // pred_check_branch
      %2613 = sbr.rel (0) target = $region37
    $region36: #{forward.13} parent=1 // pred_region
      %2614 = dma.done [#allocation3], 32
    $region37: #{forward.13} parent=1 // pred_fallthru
      _
    %2615 = vsyncpa [#allocation3], 1

</llo_original>
